<compile_context>
chip_gen: v6e
topology: v6e:2x2x1
jax: 0.10.0
libtpu: 0.0.40
codegen_flags: <defaults>
</compile_context>

<pallas_src>
import functools

import jax
import jax.numpy as jnp
from jax.experimental import pallas as pl
from jax.experimental.pallas import tpu as pltpu

_COMPUTE_DTYPE = jnp.bfloat16
_VMEM_LIMIT = 32 * 1024 * 1024


def _round_up(x, m):
  return (x + m - 1) // m * m


# ----------------------------------------------------------------------------
# Kernels
# ----------------------------------------------------------------------------
def _make_conv_kernel(K, Wp, rows_blk, post_relu):
  """KxK stride-1 'valid' conv over a row-flattened padded image.

  x_ref: (rows_in, Cin)     flattened zero-padded image (one batch element)
  w_ref: (K*K, Cin, Cout)   per-tap weight matrices
  o_ref: (rows_blk, Cout)
  Output row i = flattened padded-grid position i; tap (ky,kx) reads input
  row i + ky*Wp + kx.  Accumulation in f32, inputs bf16 (MXU-native).
  """
  def kernel(x_ref, w_ref, o_ref):
    cout = o_ref.shape[-1]
    acc = jnp.zeros((rows_blk, cout), jnp.float32)
    for ky in range(K):
      for kx in range(K):
        xs = x_ref[pl.ds(ky * Wp + kx, rows_blk), :]
        acc += jnp.dot(xs, w_ref[ky * K + kx],
                       preferred_element_type=jnp.float32)
    if post_relu:
      acc = jnp.maximum(acc, 0.0)
    o_ref[...] = acc.astype(o_ref.dtype)
  return kernel


def _make_residual_kernel(Wp, rows_blk, last):
  """Fused ResidualLayer: x + conv1x1(relu(conv3x3(relu(x)))) [+ relu if last].

  x_ref:  (rows_in, C)   flattened zero-padded input image
  w3_ref: (9, C, C)      conv3x3 per-tap weights
  w1_ref: (C, C)         conv1x1 weight
  o_ref:  (rows_blk, C)
  The intermediate activation stays in VMEM/vregs; the residual is re-read
  from the center tap window of the input (offset Wp+1), so no extra HBM read.
  """
  def kernel(x_ref, w3_ref, w1_ref, o_ref):
    c = o_ref.shape[-1]
    acc = jnp.zeros((rows_blk, c), jnp.float32)
    for ky in range(3):
      for kx in range(3):
        xs = jnp.maximum(x_ref[pl.ds(ky * Wp + kx, rows_blk), :], 0)  # relu(x)
        acc += jnp.dot(xs, w3_ref[ky * 3 + kx],
                       preferred_element_type=jnp.float32)
    h = jnp.maximum(acc, 0.0).astype(_COMPUTE_DTYPE)                  # relu
    out = jnp.dot(h, w1_ref[...], preferred_element_type=jnp.float32)
    out = out + x_ref[pl.ds(Wp + 1, rows_blk), :].astype(jnp.float32)  # + x
    if last:                                                 # stack's final relu
      out = jnp.maximum(out, 0.0)
    o_ref[...] = out.astype(o_ref.dtype)
  return kernel


# ----------------------------------------------------------------------------
# Wrappers (glue: pad / flatten / space-to-depth; all conv math is in Pallas)
# ----------------------------------------------------------------------------
def _flatten_for_shift_conv(x, K, pad):
  """Pad + row-flatten an NHWC batch for the shift-conv kernels."""
  N, Hv, Wv, C = x.shape
  Wp = Wv + 2 * pad
  Hout = Hv + 2 * pad - K + 1
  Wout = Wv + 2 * pad - K + 1
  rows_out = Hout * Wp
  rows_blk = _round_up(rows_out, 16)                       # bf16 sublane tile
  rows_in = _round_up(rows_blk + (K - 1) * (Wp + 1), 16)   # max tap read + 1
  xf = jnp.pad(x, ((0, 0), (pad, pad), (pad, pad), (0, 0)))
  xf = xf.reshape(N, (Hv + 2 * pad) * Wp, C)
  xf = jnp.pad(xf, ((0, 0), (0, rows_in - xf.shape[1]), (0, 0)))
  return xf, (Wp, Hout, Wout, rows_out, rows_blk, rows_in)


def _unflatten_output(out, geom, N, Cout):
  Wp, Hout, Wout, rows_out, _, _ = geom
  return out[:, :rows_out, :].reshape(N, Hout, Wp, Cout)[:, :, :Wout, :]


def _compiler_params():
  return pltpu.CompilerParams(dimension_semantics=("parallel",),
                              vmem_limit_bytes=_VMEM_LIMIT)


def conv2d_shift(x, w_taps, *, K, pad, post_relu):
  """KxK stride-1 conv (no bias) with zero padding `pad`, bf16 in / bf16 out."""
  N, _, _, Cin = x.shape
  Cout = w_taps.shape[-1]
  xf, geom = _flatten_for_shift_conv(x, K, pad)
  Wp, _, _, _, rows_blk, rows_in = geom
  out = pl.pallas_call(
      _make_conv_kernel(K, Wp, rows_blk, post_relu),
      grid=(N,),
      in_specs=[
          pl.BlockSpec((None, rows_in, Cin), lambda n: (n, 0, 0)),
          pl.BlockSpec((K * K, Cin, Cout), lambda n: (0, 0, 0)),  # VMEM-resident
      ],
      out_specs=pl.BlockSpec((None, rows_blk, Cout), lambda n: (n, 0, 0)),
      out_shape=jax.ShapeDtypeStruct((N, rows_blk, Cout), _COMPUTE_DTYPE),
      compiler_params=_compiler_params(),
  )(xf, w_taps)
  return _unflatten_output(out, geom, N, Cout)


def downsample_x2(x, w_taps_s2d):
  """Conv4x4 stride-2 pad-1 + ReLU as a 2x2 stride-1 conv on space-to-depth."""
  N, H, W, Cin = x.shape
  assert H % 2 == 0 and W % 2 == 0, "DownSampleX2 requires even spatial dims"
  xp = jnp.pad(x, ((0, 0), (1, 1), (1, 1), (0, 0)))        # (N, H+2, W+2, Cin)
  Hp2, Wp2 = (H + 2) // 2, (W + 2) // 2
  xs = xp.reshape(N, Hp2, 2, Wp2, 2, Cin)
  xs = jnp.transpose(xs, (0, 1, 3, 2, 4, 5)).reshape(N, Hp2, Wp2, 4 * Cin)
  return conv2d_shift(xs, w_taps_s2d, K=2, pad=0, post_relu=True)


def residual_layer(x, w3_taps, w1, *, last):
  """One fused ResidualLayer pallas_call (+ the stack's trailing ReLU if last)."""
  N, _, _, C = x.shape
  xf, geom = _flatten_for_shift_conv(x, 3, 1)
  Wp, _, _, _, rows_blk, rows_in = geom
  out = pl.pallas_call(
      _make_residual_kernel(Wp, rows_blk, last),
      grid=(N,),
      in_specs=[
          pl.BlockSpec((None, rows_in, C), lambda n: (n, 0, 0)),
          pl.BlockSpec((9, C, C), lambda n: (0, 0, 0)),
          pl.BlockSpec((C, C), lambda n: (0, 0)),
      ],
      out_specs=pl.BlockSpec((None, rows_blk, C), lambda n: (n, 0, 0)),
      out_shape=jax.ShapeDtypeStruct((N, rows_blk, C), _COMPUTE_DTYPE),
      compiler_params=_compiler_params(),
  )(xf, w3_taps, w1)
  return _unflatten_output(out, geom, N, C)


def residual_stack(x, layers):
  n = len(layers)
  for i, (w3, w1) in enumerate(layers):
    x = residual_layer(x, w3, w1, last=(i == n - 1))
  return x


# ----------------------------------------------------------------------------
# Weight prep: PyTorch layout -> per-tap matmul layout (done ONCE, bf16)
# ----------------------------------------------------------------------------
def _prep_conv3x3(w):   # (Cout, Cin, 3, 3) -> (9, Cin, Cout)
  cout, cin = w.shape[0], w.shape[1]
  return jnp.transpose(w, (2, 3, 1, 0)).reshape(9, cin, cout).astype(_COMPUTE_DTYPE)


def _prep_conv1x1(w):   # (Cout, Cin, 1, 1) -> (Cin, Cout)
  return jnp.transpose(w[:, :, 0, 0], (1, 0)).astype(_COMPUTE_DTYPE)


def _prep_conv4x4_s2(w):  # (Cout, Cin, 4, 4) -> (4, 4*Cin, Cout) for s2d conv
  cout, cin = w.shape[0], w.shape[1]
  w6 = w.reshape(cout, cin, 2, 2, 2, 2)            # (cout, cin, KY, py, KX, px)
  w6 = jnp.transpose(w6, (2, 4, 3, 5, 1, 0))       # (KY, KX, py, px, cin, cout)
  return w6.reshape(4, 4 * cin, cout).astype(_COMPUTE_DTYPE)


# ----------------------------------------------------------------------------
# Encoder params + forward
# ----------------------------------------------------------------------------
def init_encoder_params(key, in_channels, out_channels, num_downsamples=2,
                        num_resid_downsample=1, num_resid_bottleneck=4):
  def conv_w(k, cout, cin, ksz):
    scale = 1.0 / jnp.sqrt(jnp.float32(cin * ksz * ksz))
    return scale * jax.random.normal(k, (cout, cin, ksz, ksz), dtype=jnp.float32)

  keys = iter(jax.random.split(key, 64))
  params = {}
  _out = out_channels // (2 ** num_downsamples)
  params["change_ch"] = _prep_conv3x3(conv_w(next(keys), _out, in_channels, 3))

  down = []
  for _ in range(num_downsamples):
    _in, _out = _out, _out * 2
    ds_w = _prep_conv4x4_s2(conv_w(next(keys), _out, _in, 4))
    res_layers = [(_prep_conv3x3(conv_w(next(keys), _out, _out, 3)),
                   _prep_conv1x1(conv_w(next(keys), _out, _out, 1)))
                  for _ in range(num_resid_downsample)]
    down.append((ds_w, res_layers))
  params["down"] = down

  params["bottleneck"] = [
      (_prep_conv3x3(conv_w(next(keys), out_channels, out_channels, 3)),
       _prep_conv1x1(conv_w(next(keys), out_channels, out_channels, 1)))
      for _ in range(num_resid_bottleneck)]
  params["conv1x1"] = _prep_conv1x1(conv_w(next(keys), out_channels, out_channels, 1))
  return params


def encoder_forward(params, x_nchw, use_conv1x1=False):
  # PyTorch NCHW f32 -> NHWC bf16 for kernel compute.
  x = jnp.transpose(x_nchw, (0, 2, 3, 1)).astype(_COMPUTE_DTYPE)
  # ChangeChannels: conv3x3 s1 p1 + ReLU
  x = conv2d_shift(x, params["change_ch"], K=3, pad=1, post_relu=True)
  # Downsample blocks: (DownSampleX2 -> ResidualStack) x num_downsamples
  for ds_w, res_layers in params["down"]:
    x = downsample_x2(x, ds_w)
    x = residual_stack(x, res_layers)
  # Bottleneck residual stack
  x = residual_stack(x, params["bottleneck"])
  if use_conv1x1:
    x = conv2d_shift(x, params["conv1x1"][None], K=1, pad=0, post_relu=False)
  # Back to NCHW f32 for parity with the PyTorch output convention.
  return jnp.transpose(x, (0, 3, 1, 2)).astype(jnp.float32)


if __name__ == "__main__":
  key = jax.random.PRNGKey(0)
  kp, kx = jax.random.split(key)

  batch, in_channels, out_channels, spatial = 2, 4, 16, 16
  params = init_encoder_params(kp, in_channels, out_channels)
  x = jax.random.normal(kx, (batch, in_channels, spatial, spatial),
                        dtype=jnp.float32)

  fwd = jax.jit(functools.partial(encoder_forward, use_conv1x1=False))
  out = jax.block_until_ready(fwd(params, x))

  # 2 downsamples: 16 -> 8 -> 4 spatial; channels -> out_channels
  assert out.shape == (batch, out_channels, spatial // 4, spatial // 4), out.shape
  assert bool(jnp.all(jnp.isfinite(out)))
  print("KERNEL_OK")
</pallas_src>

<mosaic_0001>
module attributes {stable_mosaic.version = 11 : i64} {
  func.func @kernel(%arg0: i32, %arg1: memref<1x336x4xbf16, #tpu.memory_space<vmem>>, %arg2: memref<9x4x4xbf16, #tpu.memory_space<vmem>>, %arg3: memref<1x288x4xbf16, #tpu.memory_space<vmem>>) attributes {dimension_semantics = [#tpu.dimension_semantics<parallel>], iteration_bounds = array<i64: 2>, scalar_prefetch = 0 : i64, scratch_operands = 0 : i64, tpu.core_type = #tpu.core_type<tc>, window_params = [{transform_indices = @transform_0, window_bounds = array<i64: 1, 336, 4>}, {pipeline_mode = #tpu.pipeline_mode<synchronous>, transform_indices = @transform_1, window_bounds = array<i64: 9, 4, 4>}, {transform_indices = @transform_2, window_bounds = array<i64: 1, 288, 4>}]} {
    %cst = arith.constant 0.000000e+00 : f32
    %0 = vector.broadcast %cst : f32 to vector<288x4xf32>
    %c0 = arith.constant 0 : index
    %c0_0 = arith.constant 0 : index
    %c0_1 = arith.constant 0 : index
    %1 = vector.load %arg1[%c0, %c0_0, %c0_1] : memref<1x336x4xbf16, #tpu.memory_space<vmem>>, vector<1x288x4xbf16>
    %2 = vector.shape_cast %1 : vector<1x288x4xbf16> to vector<288x4xbf16>
    %c0_2 = arith.constant 0 : index
    %c0_3 = arith.constant 0 : index
    %c0_4 = arith.constant 0 : index
    %3 = vector.load %arg2[%c0_2, %c0_3, %c0_4] : memref<9x4x4xbf16, #tpu.memory_space<vmem>>, vector<1x4x4xbf16>
    %4 = vector.shape_cast %3 : vector<1x4x4xbf16> to vector<4x4xbf16>
    %cst_5 = arith.constant dense<0.000000e+00> : vector<288x4xf32>
    %5 = tpu.matmul %2, %4, %cst_5 {dimension_numbers = #tpu.dot_dimension_numbers<[1], [0], [0], [1], [0, 0, 1, 1], [], []>} : vector<288x4xbf16>, vector<4x4xbf16>, vector<288x4xf32> -> vector<288x4xf32>
    %6 = arith.addf %0, %5 : vector<288x4xf32>
    %c0_6 = arith.constant 0 : index
    %c1 = arith.constant 1 : index
    %c0_7 = arith.constant 0 : index
    %7 = vector.load %arg1[%c0_6, %c1, %c0_7] : memref<1x336x4xbf16, #tpu.memory_space<vmem>>, vector<1x288x4xbf16>
    %8 = vector.shape_cast %7 : vector<1x288x4xbf16> to vector<288x4xbf16>
    %c1_8 = arith.constant 1 : index
    %c0_9 = arith.constant 0 : index
    %c0_10 = arith.constant 0 : index
    %9 = vector.load %arg2[%c1_8, %c0_9, %c0_10] : memref<9x4x4xbf16, #tpu.memory_space<vmem>>, vector<1x4x4xbf16>
    %10 = vector.shape_cast %9 : vector<1x4x4xbf16> to vector<4x4xbf16>
    %cst_11 = arith.constant dense<0.000000e+00> : vector<288x4xf32>
    %11 = tpu.matmul %8, %10, %cst_11 {dimension_numbers = #tpu.dot_dimension_numbers<[1], [0], [0], [1], [0, 0, 1, 1], [], []>} : vector<288x4xbf16>, vector<4x4xbf16>, vector<288x4xf32> -> vector<288x4xf32>
    %12 = arith.addf %6, %11 : vector<288x4xf32>
    %c0_12 = arith.constant 0 : index
    %c2 = arith.constant 2 : index
    %c0_13 = arith.constant 0 : index
    %13 = vector.load %arg1[%c0_12, %c2, %c0_13] : memref<1x336x4xbf16, #tpu.memory_space<vmem>>, vector<1x288x4xbf16>
    %14 = vector.shape_cast %13 : vector<1x288x4xbf16> to vector<288x4xbf16>
    %c2_14 = arith.constant 2 : index
    %c0_15 = arith.constant 0 : index
    %c0_16 = arith.constant 0 : index
    %15 = vector.load %arg2[%c2_14, %c0_15, %c0_16] : memref<9x4x4xbf16, #tpu.memory_space<vmem>>, vector<1x4x4xbf16>
    %16 = vector.shape_cast %15 : vector<1x4x4xbf16> to vector<4x4xbf16>
    %cst_17 = arith.constant dense<0.000000e+00> : vector<288x4xf32>
    %17 = tpu.matmul %14, %16, %cst_17 {dimension_numbers = #tpu.dot_dimension_numbers<[1], [0], [0], [1], [0, 0, 1, 1], [], []>} : vector<288x4xbf16>, vector<4x4xbf16>, vector<288x4xf32> -> vector<288x4xf32>
    %18 = arith.addf %12, %17 : vector<288x4xf32>
    %c0_18 = arith.constant 0 : index
    %c18 = arith.constant 18 : index
    %c0_19 = arith.constant 0 : index
    %19 = vector.load %arg1[%c0_18, %c18, %c0_19] : memref<1x336x4xbf16, #tpu.memory_space<vmem>>, vector<1x288x4xbf16>
    %20 = vector.shape_cast %19 : vector<1x288x4xbf16> to vector<288x4xbf16>
    %c3 = arith.constant 3 : index
    %c0_20 = arith.constant 0 : index
    %c0_21 = arith.constant 0 : index
    %21 = vector.load %arg2[%c3, %c0_20, %c0_21] : memref<9x4x4xbf16, #tpu.memory_space<vmem>>, vector<1x4x4xbf16>
    %22 = vector.shape_cast %21 : vector<1x4x4xbf16> to vector<4x4xbf16>
    %cst_22 = arith.constant dense<0.000000e+00> : vector<288x4xf32>
    %23 = tpu.matmul %20, %22, %cst_22 {dimension_numbers = #tpu.dot_dimension_numbers<[1], [0], [0], [1], [0, 0, 1, 1], [], []>} : vector<288x4xbf16>, vector<4x4xbf16>, vector<288x4xf32> -> vector<288x4xf32>
    %24 = arith.addf %18, %23 : vector<288x4xf32>
    %c0_23 = arith.constant 0 : index
    %c19 = arith.constant 19 : index
    %c0_24 = arith.constant 0 : index
    %25 = vector.load %arg1[%c0_23, %c19, %c0_24] : memref<1x336x4xbf16, #tpu.memory_space<vmem>>, vector<1x288x4xbf16>
    %26 = vector.shape_cast %25 : vector<1x288x4xbf16> to vector<288x4xbf16>
    %c4 = arith.constant 4 : index
    %c0_25 = arith.constant 0 : index
    %c0_26 = arith.constant 0 : index
    %27 = vector.load %arg2[%c4, %c0_25, %c0_26] : memref<9x4x4xbf16, #tpu.memory_space<vmem>>, vector<1x4x4xbf16>
    %28 = vector.shape_cast %27 : vector<1x4x4xbf16> to vector<4x4xbf16>
    %cst_27 = arith.constant dense<0.000000e+00> : vector<288x4xf32>
    %29 = tpu.matmul %26, %28, %cst_27 {dimension_numbers = #tpu.dot_dimension_numbers<[1], [0], [0], [1], [0, 0, 1, 1], [], []>} : vector<288x4xbf16>, vector<4x4xbf16>, vector<288x4xf32> -> vector<288x4xf32>
    %30 = arith.addf %24, %29 : vector<288x4xf32>
    %c0_28 = arith.constant 0 : index
    %c20 = arith.constant 20 : index
    %c0_29 = arith.constant 0 : index
    %31 = vector.load %arg1[%c0_28, %c20, %c0_29] : memref<1x336x4xbf16, #tpu.memory_space<vmem>>, vector<1x288x4xbf16>
    %32 = vector.shape_cast %31 : vector<1x288x4xbf16> to vector<288x4xbf16>
    %c5 = arith.constant 5 : index
    %c0_30 = arith.constant 0 : index
    %c0_31 = arith.constant 0 : index
    %33 = vector.load %arg2[%c5, %c0_30, %c0_31] : memref<9x4x4xbf16, #tpu.memory_space<vmem>>, vector<1x4x4xbf16>
    %34 = vector.shape_cast %33 : vector<1x4x4xbf16> to vector<4x4xbf16>
    %cst_32 = arith.constant dense<0.000000e+00> : vector<288x4xf32>
    %35 = tpu.matmul %32, %34, %cst_32 {dimension_numbers = #tpu.dot_dimension_numbers<[1], [0], [0], [1], [0, 0, 1, 1], [], []>} : vector<288x4xbf16>, vector<4x4xbf16>, vector<288x4xf32> -> vector<288x4xf32>
    %36 = arith.addf %30, %35 : vector<288x4xf32>
    %c0_33 = arith.constant 0 : index
    %c36 = arith.constant 36 : index
    %c0_34 = arith.constant 0 : index
    %37 = vector.load %arg1[%c0_33, %c36, %c0_34] : memref<1x336x4xbf16, #tpu.memory_space<vmem>>, vector<1x288x4xbf16>
    %38 = vector.shape_cast %37 : vector<1x288x4xbf16> to vector<288x4xbf16>
    %c6 = arith.constant 6 : index
    %c0_35 = arith.constant 0 : index
    %c0_36 = arith.constant 0 : index
    %39 = vector.load %arg2[%c6, %c0_35, %c0_36] : memref<9x4x4xbf16, #tpu.memory_space<vmem>>, vector<1x4x4xbf16>
    %40 = vector.shape_cast %39 : vector<1x4x4xbf16> to vector<4x4xbf16>
    %cst_37 = arith.constant dense<0.000000e+00> : vector<288x4xf32>
    %41 = tpu.matmul %38, %40, %cst_37 {dimension_numbers = #tpu.dot_dimension_numbers<[1], [0], [0], [1], [0, 0, 1, 1], [], []>} : vector<288x4xbf16>, vector<4x4xbf16>, vector<288x4xf32> -> vector<288x4xf32>
    %42 = arith.addf %36, %41 : vector<288x4xf32>
    %c0_38 = arith.constant 0 : index
    %c37 = arith.constant 37 : index
    %c0_39 = arith.constant 0 : index
    %43 = vector.load %arg1[%c0_38, %c37, %c0_39] : memref<1x336x4xbf16, #tpu.memory_space<vmem>>, vector<1x288x4xbf16>
    %44 = vector.shape_cast %43 : vector<1x288x4xbf16> to vector<288x4xbf16>
    %c7 = arith.constant 7 : index
    %c0_40 = arith.constant 0 : index
    %c0_41 = arith.constant 0 : index
    %45 = vector.load %arg2[%c7, %c0_40, %c0_41] : memref<9x4x4xbf16, #tpu.memory_space<vmem>>, vector<1x4x4xbf16>
    %46 = vector.shape_cast %45 : vector<1x4x4xbf16> to vector<4x4xbf16>
    %cst_42 = arith.constant dense<0.000000e+00> : vector<288x4xf32>
    %47 = tpu.matmul %44, %46, %cst_42 {dimension_numbers = #tpu.dot_dimension_numbers<[1], [0], [0], [1], [0, 0, 1, 1], [], []>} : vector<288x4xbf16>, vector<4x4xbf16>, vector<288x4xf32> -> vector<288x4xf32>
    %48 = arith.addf %42, %47 : vector<288x4xf32>
    %c0_43 = arith.constant 0 : index
    %c38 = arith.constant 38 : index
    %c0_44 = arith.constant 0 : index
    %49 = vector.load %arg1[%c0_43, %c38, %c0_44] : memref<1x336x4xbf16, #tpu.memory_space<vmem>>, vector<1x288x4xbf16>
    %50 = vector.shape_cast %49 : vector<1x288x4xbf16> to vector<288x4xbf16>
    %c8 = arith.constant 8 : index
    %c0_45 = arith.constant 0 : index
    %c0_46 = arith.constant 0 : index
    %51 = vector.load %arg2[%c8, %c0_45, %c0_46] : memref<9x4x4xbf16, #tpu.memory_space<vmem>>, vector<1x4x4xbf16>
    %52 = vector.shape_cast %51 : vector<1x4x4xbf16> to vector<4x4xbf16>
    %cst_47 = arith.constant dense<0.000000e+00> : vector<288x4xf32>
    %53 = tpu.matmul %50, %52, %cst_47 {dimension_numbers = #tpu.dot_dimension_numbers<[1], [0], [0], [1], [0, 0, 1, 1], [], []>} : vector<288x4xbf16>, vector<4x4xbf16>, vector<288x4xf32> -> vector<288x4xf32>
    %54 = arith.addf %48, %53 : vector<288x4xf32>
    %cst_48 = arith.constant 0.000000e+00 : f32
    %55 = vector.broadcast %cst_48 : f32 to vector<288x4xf32>
    %56 = arith.maximumf %54, %55 : vector<288x4xf32>
    %57 = arith.truncf %56 : vector<288x4xf32> to vector<288x4xbf16>
    %c0_49 = arith.constant 0 : index
    %c0_50 = arith.constant 0 : index
    %c0_51 = arith.constant 0 : index
    %58 = vector.load %arg3[%c0_49, %c0_50, %c0_51] : memref<1x288x4xbf16, #tpu.memory_space<vmem>>, vector<1x288x4xbf16>
    %59 = vector.shape_cast %58 : vector<1x288x4xbf16> to vector<288x4xbf16>
    %60 = vector.shape_cast %57 : vector<288x4xbf16> to vector<1x288x4xbf16>
    tpu.vector_store %arg3[%c0_49, %c0_50, %c0_51], %60 {strides = array<i32>} : memref<1x288x4xbf16, #tpu.memory_space<vmem>>, vector<1x288x4xbf16>,
    return
  }
  func.func @transform_0(%arg0: i32) -> (i32, i32, i32) {
    %c0_i32 = arith.constant 0 : i32
    %c0_i32_0 = arith.constant 0 : i32
    %c0_i32_1 = arith.constant 0 : i32
    return %arg0, %c0_i32, %c0_i32_0 : i32, i32, i32
  }
  func.func @transform_1(%arg0: i32) -> (i32, i32, i32) {
    %c0_i32 = arith.constant 0 : i32
    %c0_i32_0 = arith.constant 0 : i32
    %c0_i32_1 = arith.constant 0 : i32
    %c0_i32_2 = arith.constant 0 : i32
    return %c0_i32, %c0_i32_0, %c0_i32_1 : i32, i32, i32
  }
  func.func @transform_2(%arg0: i32) -> (i32, i32, i32) {
    %c0_i32 = arith.constant 0 : i32
    %c0_i32_0 = arith.constant 0 : i32
    %c0_i32_1 = arith.constant 0 : i32
    return %arg0, %c0_i32, %c0_i32_0 : i32, i32, i32
  }
}

module attributes {stable_mosaic.version = 11 : i64} {
  func.func @kernel(%arg0: i32, %arg1: memref<1x96x16xbf16, #tpu.memory_space<vmem>>, %arg2: memref<4x16x8xbf16, #tpu.memory_space<vmem>>, %arg3: memref<1x80x8xbf16, #tpu.memory_space<vmem>>) attributes {dimension_semantics = [#tpu.dimension_semantics<parallel>], iteration_bounds = array<i64: 2>, scalar_prefetch = 0 : i64, scratch_operands = 0 : i64, tpu.core_type = #tpu.core_type<tc>, window_params = [{transform_indices = @transform_0, window_bounds = array<i64: 1, 96, 16>}, {pipeline_mode = #tpu.pipeline_mode<synchronous>, transform_indices = @transform_1, window_bounds = array<i64: 4, 16, 8>}, {transform_indices = @transform_2, window_bounds = array<i64: 1, 80, 8>}]} {
    %cst = arith.constant 0.000000e+00 : f32
    %0 = vector.broadcast %cst : f32 to vector<80x8xf32>
    %c0 = arith.constant 0 : index
    %c0_0 = arith.constant 0 : index
    %c0_1 = arith.constant 0 : index
    %1 = vector.load %arg1[%c0, %c0_0, %c0_1] : memref<1x96x16xbf16, #tpu.memory_space<vmem>>, vector<1x80x16xbf16>
    %2 = vector.shape_cast %1 : vector<1x80x16xbf16> to vector<80x16xbf16>
    %c0_2 = arith.constant 0 : index
    %c0_3 = arith.constant 0 : index
    %c0_4 = arith.constant 0 : index
    %3 = vector.load %arg2[%c0_2, %c0_3, %c0_4] : memref<4x16x8xbf16, #tpu.memory_space<vmem>>, vector<1x16x8xbf16>
    %4 = vector.shape_cast %3 : vector<1x16x8xbf16> to vector<16x8xbf16>
    %cst_5 = arith.constant dense<0.000000e+00> : vector<80x8xf32>
    %5 = tpu.matmul %2, %4, %cst_5 {dimension_numbers = #tpu.dot_dimension_numbers<[1], [0], [0], [1], [0, 0, 1, 1], [], []>} : vector<80x16xbf16>, vector<16x8xbf16>, vector<80x8xf32> -> vector<80x8xf32>
    %6 = arith.addf %0, %5 : vector<80x8xf32>
    %c0_6 = arith.constant 0 : index
    %c1 = arith.constant 1 : index
    %c0_7 = arith.constant 0 : index
    %7 = vector.load %arg1[%c0_6, %c1, %c0_7] : memref<1x96x16xbf16, #tpu.memory_space<vmem>>, vector<1x80x16xbf16>
    %8 = vector.shape_cast %7 : vector<1x80x16xbf16> to vector<80x16xbf16>
    %c1_8 = arith.constant 1 : index
    %c0_9 = arith.constant 0 : index
    %c0_10 = arith.constant 0 : index
    %9 = vector.load %arg2[%c1_8, %c0_9, %c0_10] : memref<4x16x8xbf16, #tpu.memory_space<vmem>>, vector<1x16x8xbf16>
    %10 = vector.shape_cast %9 : vector<1x16x8xbf16> to vector<16x8xbf16>
    %cst_11 = arith.constant dense<0.000000e+00> : vector<80x8xf32>
    %11 = tpu.matmul %8, %10, %cst_11 {dimension_numbers = #tpu.dot_dimension_numbers<[1], [0], [0], [1], [0, 0, 1, 1], [], []>} : vector<80x16xbf16>, vector<16x8xbf16>, vector<80x8xf32> -> vector<80x8xf32>
    %12 = arith.addf %6, %11 : vector<80x8xf32>
    %c0_12 = arith.constant 0 : index
    %c9 = arith.constant 9 : index
    %c0_13 = arith.constant 0 : index
    %13 = vector.load %arg1[%c0_12, %c9, %c0_13] : memref<1x96x16xbf16, #tpu.memory_space<vmem>>, vector<1x80x16xbf16>
    %14 = vector.shape_cast %13 : vector<1x80x16xbf16> to vector<80x16xbf16>
    %c2 = arith.constant 2 : index
    %c0_14 = arith.constant 0 : index
    %c0_15 = arith.constant 0 : index
    %15 = vector.load %arg2[%c2, %c0_14, %c0_15] : memref<4x16x8xbf16, #tpu.memory_space<vmem>>, vector<1x16x8xbf16>
    %16 = vector.shape_cast %15 : vector<1x16x8xbf16> to vector<16x8xbf16>
    %cst_16 = arith.constant dense<0.000000e+00> : vector<80x8xf32>
    %17 = tpu.matmul %14, %16, %cst_16 {dimension_numbers = #tpu.dot_dimension_numbers<[1], [0], [0], [1], [0, 0, 1, 1], [], []>} : vector<80x16xbf16>, vector<16x8xbf16>, vector<80x8xf32> -> vector<80x8xf32>
    %18 = arith.addf %12, %17 : vector<80x8xf32>
    %c0_17 = arith.constant 0 : index
    %c10 = arith.constant 10 : index
    %c0_18 = arith.constant 0 : index
    %19 = vector.load %arg1[%c0_17, %c10, %c0_18] : memref<1x96x16xbf16, #tpu.memory_space<vmem>>, vector<1x80x16xbf16>
    %20 = vector.shape_cast %19 : vector<1x80x16xbf16> to vector<80x16xbf16>
    %c3 = arith.constant 3 : index
    %c0_19 = arith.constant 0 : index
    %c0_20 = arith.constant 0 : index
    %21 = vector.load %arg2[%c3, %c0_19, %c0_20] : memref<4x16x8xbf16, #tpu.memory_space<vmem>>, vector<1x16x8xbf16>
    %22 = vector.shape_cast %21 : vector<1x16x8xbf16> to vector<16x8xbf16>
    %cst_21 = arith.constant dense<0.000000e+00> : vector<80x8xf32>
    %23 = tpu.matmul %20, %22, %cst_21 {dimension_numbers = #tpu.dot_dimension_numbers<[1], [0], [0], [1], [0, 0, 1, 1], [], []>} : vector<80x16xbf16>, vector<16x8xbf16>, vector<80x8xf32> -> vector<80x8xf32>
    %24 = arith.addf %18, %23 : vector<80x8xf32>
    %cst_22 = arith.constant 0.000000e+00 : f32
    %25 = vector.broadcast %cst_22 : f32 to vector<80x8xf32>
    %26 = arith.maximumf %24, %25 : vector<80x8xf32>
    %27 = arith.truncf %26 : vector<80x8xf32> to vector<80x8xbf16>
    %c0_23 = arith.constant 0 : index
    %c0_24 = arith.constant 0 : index
    %c0_25 = arith.constant 0 : index
    %28 = vector.load %arg3[%c0_23, %c0_24, %c0_25] : memref<1x80x8xbf16, #tpu.memory_space<vmem>>, vector<1x80x8xbf16>
    %29 = vector.shape_cast %28 : vector<1x80x8xbf16> to vector<80x8xbf16>
    %30 = vector.shape_cast %27 : vector<80x8xbf16> to vector<1x80x8xbf16>
    tpu.vector_store %arg3[%c0_23, %c0_24, %c0_25], %30 {strides = array<i32>} : memref<1x80x8xbf16, #tpu.memory_space<vmem>>, vector<1x80x8xbf16>,
    return
  }
  func.func @transform_0(%arg0: i32) -> (i32, i32, i32) {
    %c0_i32 = arith.constant 0 : i32
    %c0_i32_0 = arith.constant 0 : i32
    %c0_i32_1 = arith.constant 0 : i32
    return %arg0, %c0_i32, %c0_i32_0 : i32, i32, i32
  }
  func.func @transform_1(%arg0: i32) -> (i32, i32, i32) {
    %c0_i32 = arith.constant 0 : i32
    %c0_i32_0 = arith.constant 0 : i32
    %c0_i32_1 = arith.constant 0 : i32
    %c0_i32_2 = arith.constant 0 : i32
    return %c0_i32, %c0_i32_0, %c0_i32_1 : i32, i32, i32
  }
  func.func @transform_2(%arg0: i32) -> (i32, i32, i32) {
    %c0_i32 = arith.constant 0 : i32
    %c0_i32_0 = arith.constant 0 : i32
    %c0_i32_1 = arith.constant 0 : i32
    return %arg0, %c0_i32, %c0_i32_0 : i32, i32, i32
  }
}

module attributes {stable_mosaic.version = 11 : i64} {
  func.func @kernel(%arg0: i32, %arg1: memref<1x112x8xbf16, #tpu.memory_space<vmem>>, %arg2: memref<9x8x8xbf16, #tpu.memory_space<vmem>>, %arg3: memref<8x8xbf16, #tpu.memory_space<vmem>>, %arg4: memref<1x80x8xbf16, #tpu.memory_space<vmem>>) attributes {dimension_semantics = [#tpu.dimension_semantics<parallel>], iteration_bounds = array<i64: 2>, scalar_prefetch = 0 : i64, scratch_operands = 0 : i64, tpu.core_type = #tpu.core_type<tc>, window_params = [{transform_indices = @transform_0, window_bounds = array<i64: 1, 112, 8>}, {pipeline_mode = #tpu.pipeline_mode<synchronous>, transform_indices = @transform_1, window_bounds = array<i64: 9, 8, 8>}, {pipeline_mode = #tpu.pipeline_mode<synchronous>, transform_indices = @transform_2, window_bounds = array<i64: 8, 8>}, {transform_indices = @transform_3, window_bounds = array<i64: 1, 80, 8>}]} {
    %cst = arith.constant 0.000000e+00 : f32
    %0 = vector.broadcast %cst : f32 to vector<80x8xf32>
    %c0 = arith.constant 0 : index
    %c0_0 = arith.constant 0 : index
    %c0_1 = arith.constant 0 : index
    %1 = vector.load %arg1[%c0, %c0_0, %c0_1] : memref<1x112x8xbf16, #tpu.memory_space<vmem>>, vector<1x80x8xbf16>
    %2 = vector.shape_cast %1 : vector<1x80x8xbf16> to vector<80x8xbf16>
    %cst_2 = arith.constant 0.000000e+00 : bf16
    %3 = vector.broadcast %cst_2 : bf16 to vector<80x8xbf16>
    %4 = arith.maximumf %2, %3 : vector<80x8xbf16>
    %c0_3 = arith.constant 0 : index
    %c0_4 = arith.constant 0 : index
    %c0_5 = arith.constant 0 : index
    %5 = vector.load %arg2[%c0_3, %c0_4, %c0_5] : memref<9x8x8xbf16, #tpu.memory_space<vmem>>, vector<1x8x8xbf16>
    %6 = vector.shape_cast %5 : vector<1x8x8xbf16> to vector<8x8xbf16>
    %cst_6 = arith.constant dense<0.000000e+00> : vector<80x8xf32>
    %7 = tpu.matmul %4, %6, %cst_6 {dimension_numbers = #tpu.dot_dimension_numbers<[1], [0], [0], [1], [0, 0, 1, 1], [], []>} : vector<80x8xbf16>, vector<8x8xbf16>, vector<80x8xf32> -> vector<80x8xf32>
    %8 = arith.addf %0, %7 : vector<80x8xf32>
    %c0_7 = arith.constant 0 : index
    %c1 = arith.constant 1 : index
    %c0_8 = arith.constant 0 : index
    %9 = vector.load %arg1[%c0_7, %c1, %c0_8] : memref<1x112x8xbf16, #tpu.memory_space<vmem>>, vector<1x80x8xbf16>
    %10 = vector.shape_cast %9 : vector<1x80x8xbf16> to vector<80x8xbf16>
    %cst_9 = arith.constant 0.000000e+00 : bf16
    %11 = vector.broadcast %cst_9 : bf16 to vector<80x8xbf16>
    %12 = arith.maximumf %10, %11 : vector<80x8xbf16>
    %c1_10 = arith.constant 1 : index
    %c0_11 = arith.constant 0 : index
    %c0_12 = arith.constant 0 : index
    %13 = vector.load %arg2[%c1_10, %c0_11, %c0_12] : memref<9x8x8xbf16, #tpu.memory_space<vmem>>, vector<1x8x8xbf16>
    %14 = vector.shape_cast %13 : vector<1x8x8xbf16> to vector<8x8xbf16>
    %cst_13 = arith.constant dense<0.000000e+00> : vector<80x8xf32>
    %15 = tpu.matmul %12, %14, %cst_13 {dimension_numbers = #tpu.dot_dimension_numbers<[1], [0], [0], [1], [0, 0, 1, 1], [], []>} : vector<80x8xbf16>, vector<8x8xbf16>, vector<80x8xf32> -> vector<80x8xf32>
    %16 = arith.addf %8, %15 : vector<80x8xf32>
    %c0_14 = arith.constant 0 : index
    %c2 = arith.constant 2 : index
    %c0_15 = arith.constant 0 : index
    %17 = vector.load %arg1[%c0_14, %c2, %c0_15] : memref<1x112x8xbf16, #tpu.memory_space<vmem>>, vector<1x80x8xbf16>
    %18 = vector.shape_cast %17 : vector<1x80x8xbf16> to vector<80x8xbf16>
    %cst_16 = arith.constant 0.000000e+00 : bf16
    %19 = vector.broadcast %cst_16 : bf16 to vector<80x8xbf16>
    %20 = arith.maximumf %18, %19 : vector<80x8xbf16>
    %c2_17 = arith.constant 2 : index
    %c0_18 = arith.constant 0 : index
    %c0_19 = arith.constant 0 : index
    %21 = vector.load %arg2[%c2_17, %c0_18, %c0_19] : memref<9x8x8xbf16, #tpu.memory_space<vmem>>, vector<1x8x8xbf16>
    %22 = vector.shape_cast %21 : vector<1x8x8xbf16> to vector<8x8xbf16>
    %cst_20 = arith.constant dense<0.000000e+00> : vector<80x8xf32>
    %23 = tpu.matmul %20, %22, %cst_20 {dimension_numbers = #tpu.dot_dimension_numbers<[1], [0], [0], [1], [0, 0, 1, 1], [], []>} : vector<80x8xbf16>, vector<8x8xbf16>, vector<80x8xf32> -> vector<80x8xf32>
    %24 = arith.addf %16, %23 : vector<80x8xf32>
    %c0_21 = arith.constant 0 : index
    %c10 = arith.constant 10 : index
    %c0_22 = arith.constant 0 : index
    %25 = vector.load %arg1[%c0_21, %c10, %c0_22] : memref<1x112x8xbf16, #tpu.memory_space<vmem>>, vector<1x80x8xbf16>
    %26 = vector.shape_cast %25 : vector<1x80x8xbf16> to vector<80x8xbf16>
    %cst_23 = arith.constant 0.000000e+00 : bf16
    %27 = vector.broadcast %cst_23 : bf16 to vector<80x8xbf16>
    %28 = arith.maximumf %26, %27 : vector<80x8xbf16>
    %c3 = arith.constant 3 : index
    %c0_24 = arith.constant 0 : index
    %c0_25 = arith.constant 0 : index
    %29 = vector.load %arg2[%c3, %c0_24, %c0_25] : memref<9x8x8xbf16, #tpu.memory_space<vmem>>, vector<1x8x8xbf16>
    %30 = vector.shape_cast %29 : vector<1x8x8xbf16> to vector<8x8xbf16>
    %cst_26 = arith.constant dense<0.000000e+00> : vector<80x8xf32>
    %31 = tpu.matmul %28, %30, %cst_26 {dimension_numbers = #tpu.dot_dimension_numbers<[1], [0], [0], [1], [0, 0, 1, 1], [], []>} : vector<80x8xbf16>, vector<8x8xbf16>, vector<80x8xf32> -> vector<80x8xf32>
    %32 = arith.addf %24, %31 : vector<80x8xf32>
    %c0_27 = arith.constant 0 : index
    %c11 = arith.constant 11 : index
    %c0_28 = arith.constant 0 : index
    %33 = vector.load %arg1[%c0_27, %c11, %c0_28] : memref<1x112x8xbf16, #tpu.memory_space<vmem>>, vector<1x80x8xbf16>
    %34 = vector.shape_cast %33 : vector<1x80x8xbf16> to vector<80x8xbf16>
    %cst_29 = arith.constant 0.000000e+00 : bf16
    %35 = vector.broadcast %cst_29 : bf16 to vector<80x8xbf16>
    %36 = arith.maximumf %34, %35 : vector<80x8xbf16>
    %c4 = arith.constant 4 : index
    %c0_30 = arith.constant 0 : index
    %c0_31 = arith.constant 0 : index
    %37 = vector.load %arg2[%c4, %c0_30, %c0_31] : memref<9x8x8xbf16, #tpu.memory_space<vmem>>, vector<1x8x8xbf16>
    %38 = vector.shape_cast %37 : vector<1x8x8xbf16> to vector<8x8xbf16>
    %cst_32 = arith.constant dense<0.000000e+00> : vector<80x8xf32>
    %39 = tpu.matmul %36, %38, %cst_32 {dimension_numbers = #tpu.dot_dimension_numbers<[1], [0], [0], [1], [0, 0, 1, 1], [], []>} : vector<80x8xbf16>, vector<8x8xbf16>, vector<80x8xf32> -> vector<80x8xf32>
    %40 = arith.addf %32, %39 : vector<80x8xf32>
    %c0_33 = arith.constant 0 : index
    %c12 = arith.constant 12 : index
    %c0_34 = arith.constant 0 : index
    %41 = vector.load %arg1[%c0_33, %c12, %c0_34] : memref<1x112x8xbf16, #tpu.memory_space<vmem>>, vector<1x80x8xbf16>
    %42 = vector.shape_cast %41 : vector<1x80x8xbf16> to vector<80x8xbf16>
    %cst_35 = arith.constant 0.000000e+00 : bf16
    %43 = vector.broadcast %cst_35 : bf16 to vector<80x8xbf16>
    %44 = arith.maximumf %42, %43 : vector<80x8xbf16>
    %c5 = arith.constant 5 : index
    %c0_36 = arith.constant 0 : index
    %c0_37 = arith.constant 0 : index
    %45 = vector.load %arg2[%c5, %c0_36, %c0_37] : memref<9x8x8xbf16, #tpu.memory_space<vmem>>, vector<1x8x8xbf16>
    %46 = vector.shape_cast %45 : vector<1x8x8xbf16> to vector<8x8xbf16>
    %cst_38 = arith.constant dense<0.000000e+00> : vector<80x8xf32>
    %47 = tpu.matmul %44, %46, %cst_38 {dimension_numbers = #tpu.dot_dimension_numbers<[1], [0], [0], [1], [0, 0, 1, 1], [], []>} : vector<80x8xbf16>, vector<8x8xbf16>, vector<80x8xf32> -> vector<80x8xf32>
    %48 = arith.addf %40, %47 : vector<80x8xf32>
    %c0_39 = arith.constant 0 : index
    %c20 = arith.constant 20 : index
    %c0_40 = arith.constant 0 : index
    %49 = vector.load %arg1[%c0_39, %c20, %c0_40] : memref<1x112x8xbf16, #tpu.memory_space<vmem>>, vector<1x80x8xbf16>
    %50 = vector.shape_cast %49 : vector<1x80x8xbf16> to vector<80x8xbf16>
    %cst_41 = arith.constant 0.000000e+00 : bf16
    %51 = vector.broadcast %cst_41 : bf16 to vector<80x8xbf16>
    %52 = arith.maximumf %50, %51 : vector<80x8xbf16>
    %c6 = arith.constant 6 : index
    %c0_42 = arith.constant 0 : index
    %c0_43 = arith.constant 0 : index
    %53 = vector.load %arg2[%c6, %c0_42, %c0_43] : memref<9x8x8xbf16, #tpu.memory_space<vmem>>, vector<1x8x8xbf16>
    %54 = vector.shape_cast %53 : vector<1x8x8xbf16> to vector<8x8xbf16>
    %cst_44 = arith.constant dense<0.000000e+00> : vector<80x8xf32>
    %55 = tpu.matmul %52, %54, %cst_44 {dimension_numbers = #tpu.dot_dimension_numbers<[1], [0], [0], [1], [0, 0, 1, 1], [], []>} : vector<80x8xbf16>, vector<8x8xbf16>, vector<80x8xf32> -> vector<80x8xf32>
    %56 = arith.addf %48, %55 : vector<80x8xf32>
    %c0_45 = arith.constant 0 : index
    %c21 = arith.constant 21 : index
    %c0_46 = arith.constant 0 : index
    %57 = vector.load %arg1[%c0_45, %c21, %c0_46] : memref<1x112x8xbf16, #tpu.memory_space<vmem>>, vector<1x80x8xbf16>
    %58 = vector.shape_cast %57 : vector<1x80x8xbf16> to vector<80x8xbf16>
    %cst_47 = arith.constant 0.000000e+00 : bf16
    %59 = vector.broadcast %cst_47 : bf16 to vector<80x8xbf16>
    %60 = arith.maximumf %58, %59 : vector<80x8xbf16>
    %c7 = arith.constant 7 : index
    %c0_48 = arith.constant 0 : index
    %c0_49 = arith.constant 0 : index
    %61 = vector.load %arg2[%c7, %c0_48, %c0_49] : memref<9x8x8xbf16, #tpu.memory_space<vmem>>, vector<1x8x8xbf16>
    %62 = vector.shape_cast %61 : vector<1x8x8xbf16> to vector<8x8xbf16>
    %cst_50 = arith.constant dense<0.000000e+00> : vector<80x8xf32>
    %63 = tpu.matmul %60, %62, %cst_50 {dimension_numbers = #tpu.dot_dimension_numbers<[1], [0], [0], [1], [0, 0, 1, 1], [], []>} : vector<80x8xbf16>, vector<8x8xbf16>, vector<80x8xf32> -> vector<80x8xf32>
    %64 = arith.addf %56, %63 : vector<80x8xf32>
    %c0_51 = arith.constant 0 : index
    %c22 = arith.constant 22 : index
    %c0_52 = arith.constant 0 : index
    %65 = vector.load %arg1[%c0_51, %c22, %c0_52] : memref<1x112x8xbf16, #tpu.memory_space<vmem>>, vector<1x80x8xbf16>
    %66 = vector.shape_cast %65 : vector<1x80x8xbf16> to vector<80x8xbf16>
    %cst_53 = arith.constant 0.000000e+00 : bf16
    %67 = vector.broadcast %cst_53 : bf16 to vector<80x8xbf16>
    %68 = arith.maximumf %66, %67 : vector<80x8xbf16>
    %c8 = arith.constant 8 : index
    %c0_54 = arith.constant 0 : index
    %c0_55 = arith.constant 0 : index
    %69 = vector.load %arg2[%c8, %c0_54, %c0_55] : memref<9x8x8xbf16, #tpu.memory_space<vmem>>, vector<1x8x8xbf16>
    %70 = vector.shape_cast %69 : vector<1x8x8xbf16> to vector<8x8xbf16>
    %cst_56 = arith.constant dense<0.000000e+00> : vector<80x8xf32>
    %71 = tpu.matmul %68, %70, %cst_56 {dimension_numbers = #tpu.dot_dimension_numbers<[1], [0], [0], [1], [0, 0, 1, 1], [], []>} : vector<80x8xbf16>, vector<8x8xbf16>, vector<80x8xf32> -> vector<80x8xf32>
    %72 = arith.addf %64, %71 : vector<80x8xf32>
    %cst_57 = arith.constant 0.000000e+00 : f32
    %73 = vector.broadcast %cst_57 : f32 to vector<80x8xf32>
    %74 = arith.maximumf %72, %73 : vector<80x8xf32>
    %75 = arith.truncf %74 : vector<80x8xf32> to vector<80x8xbf16>
    %c0_58 = arith.constant 0 : index
    %c0_59 = arith.constant 0 : index
    %76 = vector.load %arg3[%c0_58, %c0_59] : memref<8x8xbf16, #tpu.memory_space<vmem>>, vector<8x8xbf16>
    %cst_60 = arith.constant dense<0.000000e+00> : vector<80x8xf32>
    %77 = tpu.matmul %75, %76, %cst_60 {dimension_numbers = #tpu.dot_dimension_numbers<[1], [0], [0], [1], [0, 0, 1, 1], [], []>} : vector<80x8xbf16>, vector<8x8xbf16>, vector<80x8xf32> -> vector<80x8xf32>
    %c0_61 = arith.constant 0 : index
    %c11_62 = arith.constant 11 : index
    %c0_63 = arith.constant 0 : index
    %78 = vector.load %arg1[%c0_61, %c11_62, %c0_63] : memref<1x112x8xbf16, #tpu.memory_space<vmem>>, vector<1x80x8xbf16>
    %79 = vector.shape_cast %78 : vector<1x80x8xbf16> to vector<80x8xbf16>
    %80 = arith.extf %79 : vector<80x8xbf16> to vector<80x8xf32>
    %81 = arith.addf %77, %80 : vector<80x8xf32>
    %cst_64 = arith.constant 0.000000e+00 : f32
    %82 = vector.broadcast %cst_64 : f32 to vector<80x8xf32>
    %83 = arith.maximumf %81, %82 : vector<80x8xf32>
    %84 = arith.truncf %83 : vector<80x8xf32> to vector<80x8xbf16>
    %c0_65 = arith.constant 0 : index
    %c0_66 = arith.constant 0 : index
    %c0_67 = arith.constant 0 : index
    %85 = vector.load %arg4[%c0_65, %c0_66, %c0_67] : memref<1x80x8xbf16, #tpu.memory_space<vmem>>, vector<1x80x8xbf16>
    %86 = vector.shape_cast %85 : vector<1x80x8xbf16> to vector<80x8xbf16>
    %87 = vector.shape_cast %84 : vector<80x8xbf16> to vector<1x80x8xbf16>
    tpu.vector_store %arg4[%c0_65, %c0_66, %c0_67], %87 {strides = array<i32>} : memref<1x80x8xbf16, #tpu.memory_space<vmem>>, vector<1x80x8xbf16>,
    return
  }
  func.func @transform_0(%arg0: i32) -> (i32, i32, i32) {
    %c0_i32 = arith.constant 0 : i32
    %c0_i32_0 = arith.constant 0 : i32
    %c0_i32_1 = arith.constant 0 : i32
    return %arg0, %c0_i32, %c0_i32_0 : i32, i32, i32
  }
  func.func @transform_1(%arg0: i32) -> (i32, i32, i32) {
    %c0_i32 = arith.constant 0 : i32
    %c0_i32_0 = arith.constant 0 : i32
    %c0_i32_1 = arith.constant 0 : i32
    %c0_i32_2 = arith.constant 0 : i32
    return %c0_i32, %c0_i32_0, %c0_i32_1 : i32, i32, i32
  }
  func.func @transform_2(%arg0: i32) -> (i32, i32) {
    %c0_i32 = arith.constant 0 : i32
    %c0_i32_0 = arith.constant 0 : i32
    %c0_i32_1 = arith.constant 0 : i32
    return %c0_i32, %c0_i32_0 : i32, i32
  }
  func.func @transform_3(%arg0: i32) -> (i32, i32, i32) {
    %c0_i32 = arith.constant 0 : i32
    %c0_i32_0 = arith.constant 0 : i32
    %c0_i32_1 = arith.constant 0 : i32
    return %arg0, %c0_i32, %c0_i32_0 : i32, i32, i32
  }
}

module attributes {stable_mosaic.version = 11 : i64} {
  func.func @kernel(%arg0: i32, %arg1: memref<1x48x32xbf16, #tpu.memory_space<vmem>>, %arg2: memref<4x32x16xbf16, #tpu.memory_space<vmem>>, %arg3: memref<1x32x16xbf16, #tpu.memory_space<vmem>>) attributes {dimension_semantics = [#tpu.dimension_semantics<parallel>], iteration_bounds = array<i64: 2>, scalar_prefetch = 0 : i64, scratch_operands = 0 : i64, tpu.core_type = #tpu.core_type<tc>, window_params = [{transform_indices = @transform_0, window_bounds = array<i64: 1, 48, 32>}, {pipeline_mode = #tpu.pipeline_mode<synchronous>, transform_indices = @transform_1, window_bounds = array<i64: 4, 32, 16>}, {transform_indices = @transform_2, window_bounds = array<i64: 1, 32, 16>}]} {
    %cst = arith.constant 0.000000e+00 : f32
    %0 = vector.broadcast %cst : f32 to vector<32x16xf32>
    %c0 = arith.constant 0 : index
    %c0_0 = arith.constant 0 : index
    %c0_1 = arith.constant 0 : index
    %1 = vector.load %arg1[%c0, %c0_0, %c0_1] : memref<1x48x32xbf16, #tpu.memory_space<vmem>>, vector<1x32x32xbf16>
    %2 = vector.shape_cast %1 : vector<1x32x32xbf16> to vector<32x32xbf16>
    %c0_2 = arith.constant 0 : index
    %c0_3 = arith.constant 0 : index
    %c0_4 = arith.constant 0 : index
    %3 = vector.load %arg2[%c0_2, %c0_3, %c0_4] : memref<4x32x16xbf16, #tpu.memory_space<vmem>>, vector<1x32x16xbf16>
    %4 = vector.shape_cast %3 : vector<1x32x16xbf16> to vector<32x16xbf16>
    %cst_5 = arith.constant dense<0.000000e+00> : vector<32x16xf32>
    %5 = tpu.matmul %2, %4, %cst_5 {dimension_numbers = #tpu.dot_dimension_numbers<[1], [0], [0], [1], [0, 0, 1, 1], [], []>} : vector<32x32xbf16>, vector<32x16xbf16>, vector<32x16xf32> -> vector<32x16xf32>
    %6 = arith.addf %0, %5 : vector<32x16xf32>
    %c0_6 = arith.constant 0 : index
    %c1 = arith.constant 1 : index
    %c0_7 = arith.constant 0 : index
    %7 = vector.load %arg1[%c0_6, %c1, %c0_7] : memref<1x48x32xbf16, #tpu.memory_space<vmem>>, vector<1x32x32xbf16>
    %8 = vector.shape_cast %7 : vector<1x32x32xbf16> to vector<32x32xbf16>
    %c1_8 = arith.constant 1 : index
    %c0_9 = arith.constant 0 : index
    %c0_10 = arith.constant 0 : index
    %9 = vector.load %arg2[%c1_8, %c0_9, %c0_10] : memref<4x32x16xbf16, #tpu.memory_space<vmem>>, vector<1x32x16xbf16>
    %10 = vector.shape_cast %9 : vector<1x32x16xbf16> to vector<32x16xbf16>
    %cst_11 = arith.constant dense<0.000000e+00> : vector<32x16xf32>
    %11 = tpu.matmul %8, %10, %cst_11 {dimension_numbers = #tpu.dot_dimension_numbers<[1], [0], [0], [1], [0, 0, 1, 1], [], []>} : vector<32x32xbf16>, vector<32x16xbf16>, vector<32x16xf32> -> vector<32x16xf32>
    %12 = arith.addf %6, %11 : vector<32x16xf32>
    %c0_12 = arith.constant 0 : index
    %c5 = arith.constant 5 : index
    %c0_13 = arith.constant 0 : index
    %13 = vector.load %arg1[%c0_12, %c5, %c0_13] : memref<1x48x32xbf16, #tpu.memory_space<vmem>>, vector<1x32x32xbf16>
    %14 = vector.shape_cast %13 : vector<1x32x32xbf16> to vector<32x32xbf16>
    %c2 = arith.constant 2 : index
    %c0_14 = arith.constant 0 : index
    %c0_15 = arith.constant 0 : index
    %15 = vector.load %arg2[%c2, %c0_14, %c0_15] : memref<4x32x16xbf16, #tpu.memory_space<vmem>>, vector<1x32x16xbf16>
    %16 = vector.shape_cast %15 : vector<1x32x16xbf16> to vector<32x16xbf16>
    %cst_16 = arith.constant dense<0.000000e+00> : vector<32x16xf32>
    %17 = tpu.matmul %14, %16, %cst_16 {dimension_numbers = #tpu.dot_dimension_numbers<[1], [0], [0], [1], [0, 0, 1, 1], [], []>} : vector<32x32xbf16>, vector<32x16xbf16>, vector<32x16xf32> -> vector<32x16xf32>
    %18 = arith.addf %12, %17 : vector<32x16xf32>
    %c0_17 = arith.constant 0 : index
    %c6 = arith.constant 6 : index
    %c0_18 = arith.constant 0 : index
    %19 = vector.load %arg1[%c0_17, %c6, %c0_18] : memref<1x48x32xbf16, #tpu.memory_space<vmem>>, vector<1x32x32xbf16>
    %20 = vector.shape_cast %19 : vector<1x32x32xbf16> to vector<32x32xbf16>
    %c3 = arith.constant 3 : index
    %c0_19 = arith.constant 0 : index
    %c0_20 = arith.constant 0 : index
    %21 = vector.load %arg2[%c3, %c0_19, %c0_20] : memref<4x32x16xbf16, #tpu.memory_space<vmem>>, vector<1x32x16xbf16>
    %22 = vector.shape_cast %21 : vector<1x32x16xbf16> to vector<32x16xbf16>
    %cst_21 = arith.constant dense<0.000000e+00> : vector<32x16xf32>
    %23 = tpu.matmul %20, %22, %cst_21 {dimension_numbers = #tpu.dot_dimension_numbers<[1], [0], [0], [1], [0, 0, 1, 1], [], []>} : vector<32x32xbf16>, vector<32x16xbf16>, vector<32x16xf32> -> vector<32x16xf32>
    %24 = arith.addf %18, %23 : vector<32x16xf32>
    %cst_22 = arith.constant 0.000000e+00 : f32
    %25 = vector.broadcast %cst_22 : f32 to vector<32x16xf32>
    %26 = arith.maximumf %24, %25 : vector<32x16xf32>
    %27 = arith.truncf %26 : vector<32x16xf32> to vector<32x16xbf16>
    %c0_23 = arith.constant 0 : index
    %c0_24 = arith.constant 0 : index
    %c0_25 = arith.constant 0 : index
    %28 = vector.load %arg3[%c0_23, %c0_24, %c0_25] : memref<1x32x16xbf16, #tpu.memory_space<vmem>>, vector<1x32x16xbf16>
    %29 = vector.shape_cast %28 : vector<1x32x16xbf16> to vector<32x16xbf16>
    %30 = vector.shape_cast %27 : vector<32x16xbf16> to vector<1x32x16xbf16>
    tpu.vector_store %arg3[%c0_23, %c0_24, %c0_25], %30 {strides = array<i32>} : memref<1x32x16xbf16, #tpu.memory_space<vmem>>, vector<1x32x16xbf16>,
    return
  }
  func.func @transform_0(%arg0: i32) -> (i32, i32, i32) {
    %c0_i32 = arith.constant 0 : i32
    %c0_i32_0 = arith.constant 0 : i32
    %c0_i32_1 = arith.constant 0 : i32
    return %arg0, %c0_i32, %c0_i32_0 : i32, i32, i32
  }
  func.func @transform_1(%arg0: i32) -> (i32, i32, i32) {
    %c0_i32 = arith.constant 0 : i32
    %c0_i32_0 = arith.constant 0 : i32
    %c0_i32_1 = arith.constant 0 : i32
    %c0_i32_2 = arith.constant 0 : i32
    return %c0_i32, %c0_i32_0, %c0_i32_1 : i32, i32, i32
  }
  func.func @transform_2(%arg0: i32) -> (i32, i32, i32) {
    %c0_i32 = arith.constant 0 : i32
    %c0_i32_0 = arith.constant 0 : i32
    %c0_i32_1 = arith.constant 0 : i32
    return %arg0, %c0_i32, %c0_i32_0 : i32, i32, i32
  }
}

module attributes {stable_mosaic.version = 11 : i64} {
  func.func @kernel(%arg0: i32, %arg1: memref<1x48x16xbf16, #tpu.memory_space<vmem>>, %arg2: memref<9x16x16xbf16, #tpu.memory_space<vmem>>, %arg3: memref<16x16xbf16, #tpu.memory_space<vmem>>, %arg4: memref<1x32x16xbf16, #tpu.memory_space<vmem>>) attributes {dimension_semantics = [#tpu.dimension_semantics<parallel>], iteration_bounds = array<i64: 2>, scalar_prefetch = 0 : i64, scratch_operands = 0 : i64, tpu.core_type = #tpu.core_type<tc>, window_params = [{transform_indices = @transform_0, window_bounds = array<i64: 1, 48, 16>}, {pipeline_mode = #tpu.pipeline_mode<synchronous>, transform_indices = @transform_1, window_bounds = array<i64: 9, 16, 16>}, {pipeline_mode = #tpu.pipeline_mode<synchronous>, transform_indices = @transform_2, window_bounds = array<i64: 16, 16>}, {transform_indices = @transform_3, window_bounds = array<i64: 1, 32, 16>}]} {
    %cst = arith.constant 0.000000e+00 : f32
    %0 = vector.broadcast %cst : f32 to vector<32x16xf32>
    %c0 = arith.constant 0 : index
    %c0_0 = arith.constant 0 : index
    %c0_1 = arith.constant 0 : index
    %1 = vector.load %arg1[%c0, %c0_0, %c0_1] : memref<1x48x16xbf16, #tpu.memory_space<vmem>>, vector<1x32x16xbf16>
    %2 = vector.shape_cast %1 : vector<1x32x16xbf16> to vector<32x16xbf16>
    %cst_2 = arith.constant 0.000000e+00 : bf16
    %3 = vector.broadcast %cst_2 : bf16 to vector<32x16xbf16>
    %4 = arith.maximumf %2, %3 : vector<32x16xbf16>
    %c0_3 = arith.constant 0 : index
    %c0_4 = arith.constant 0 : index
    %c0_5 = arith.constant 0 : index
    %5 = vector.load %arg2[%c0_3, %c0_4, %c0_5] : memref<9x16x16xbf16, #tpu.memory_space<vmem>>, vector<1x16x16xbf16>
    %6 = vector.shape_cast %5 : vector<1x16x16xbf16> to vector<16x16xbf16>
    %cst_6 = arith.constant dense<0.000000e+00> : vector<32x16xf32>
    %7 = tpu.matmul %4, %6, %cst_6 {dimension_numbers = #tpu.dot_dimension_numbers<[1], [0], [0], [1], [0, 0, 1, 1], [], []>} : vector<32x16xbf16>, vector<16x16xbf16>, vector<32x16xf32> -> vector<32x16xf32>
    %8 = arith.addf %0, %7 : vector<32x16xf32>
    %c0_7 = arith.constant 0 : index
    %c1 = arith.constant 1 : index
    %c0_8 = arith.constant 0 : index
    %9 = vector.load %arg1[%c0_7, %c1, %c0_8] : memref<1x48x16xbf16, #tpu.memory_space<vmem>>, vector<1x32x16xbf16>
    %10 = vector.shape_cast %9 : vector<1x32x16xbf16> to vector<32x16xbf16>
    %cst_9 = arith.constant 0.000000e+00 : bf16
    %11 = vector.broadcast %cst_9 : bf16 to vector<32x16xbf16>
    %12 = arith.maximumf %10, %11 : vector<32x16xbf16>
    %c1_10 = arith.constant 1 : index
    %c0_11 = arith.constant 0 : index
    %c0_12 = arith.constant 0 : index
    %13 = vector.load %arg2[%c1_10, %c0_11, %c0_12] : memref<9x16x16xbf16, #tpu.memory_space<vmem>>, vector<1x16x16xbf16>
    %14 = vector.shape_cast %13 : vector<1x16x16xbf16> to vector<16x16xbf16>
    %cst_13 = arith.constant dense<0.000000e+00> : vector<32x16xf32>
    %15 = tpu.matmul %12, %14, %cst_13 {dimension_numbers = #tpu.dot_dimension_numbers<[1], [0], [0], [1], [0, 0, 1, 1], [], []>} : vector<32x16xbf16>, vector<16x16xbf16>, vector<32x16xf32> -> vector<32x16xf32>
    %16 = arith.addf %8, %15 : vector<32x16xf32>
    %c0_14 = arith.constant 0 : index
    %c2 = arith.constant 2 : index
    %c0_15 = arith.constant 0 : index
    %17 = vector.load %arg1[%c0_14, %c2, %c0_15] : memref<1x48x16xbf16, #tpu.memory_space<vmem>>, vector<1x32x16xbf16>
    %18 = vector.shape_cast %17 : vector<1x32x16xbf16> to vector<32x16xbf16>
    %cst_16 = arith.constant 0.000000e+00 : bf16
    %19 = vector.broadcast %cst_16 : bf16 to vector<32x16xbf16>
    %20 = arith.maximumf %18, %19 : vector<32x16xbf16>
    %c2_17 = arith.constant 2 : index
    %c0_18 = arith.constant 0 : index
    %c0_19 = arith.constant 0 : index
    %21 = vector.load %arg2[%c2_17, %c0_18, %c0_19] : memref<9x16x16xbf16, #tpu.memory_space<vmem>>, vector<1x16x16xbf16>
    %22 = vector.shape_cast %21 : vector<1x16x16xbf16> to vector<16x16xbf16>
    %cst_20 = arith.constant dense<0.000000e+00> : vector<32x16xf32>
    %23 = tpu.matmul %20, %22, %cst_20 {dimension_numbers = #tpu.dot_dimension_numbers<[1], [0], [0], [1], [0, 0, 1, 1], [], []>} : vector<32x16xbf16>, vector<16x16xbf16>, vector<32x16xf32> -> vector<32x16xf32>
    %24 = arith.addf %16, %23 : vector<32x16xf32>
    %c0_21 = arith.constant 0 : index
    %c6 = arith.constant 6 : index
    %c0_22 = arith.constant 0 : index
    %25 = vector.load %arg1[%c0_21, %c6, %c0_22] : memref<1x48x16xbf16, #tpu.memory_space<vmem>>, vector<1x32x16xbf16>
    %26 = vector.shape_cast %25 : vector<1x32x16xbf16> to vector<32x16xbf16>
    %cst_23 = arith.constant 0.000000e+00 : bf16
    %27 = vector.broadcast %cst_23 : bf16 to vector<32x16xbf16>
    %28 = arith.maximumf %26, %27 : vector<32x16xbf16>
    %c3 = arith.constant 3 : index
    %c0_24 = arith.constant 0 : index
    %c0_25 = arith.constant 0 : index
    %29 = vector.load %arg2[%c3, %c0_24, %c0_25] : memref<9x16x16xbf16, #tpu.memory_space<vmem>>, vector<1x16x16xbf16>
    %30 = vector.shape_cast %29 : vector<1x16x16xbf16> to vector<16x16xbf16>
    %cst_26 = arith.constant dense<0.000000e+00> : vector<32x16xf32>
    %31 = tpu.matmul %28, %30, %cst_26 {dimension_numbers = #tpu.dot_dimension_numbers<[1], [0], [0], [1], [0, 0, 1, 1], [], []>} : vector<32x16xbf16>, vector<16x16xbf16>, vector<32x16xf32> -> vector<32x16xf32>
    %32 = arith.addf %24, %31 : vector<32x16xf32>
    %c0_27 = arith.constant 0 : index
    %c7 = arith.constant 7 : index
    %c0_28 = arith.constant 0 : index
    %33 = vector.load %arg1[%c0_27, %c7, %c0_28] : memref<1x48x16xbf16, #tpu.memory_space<vmem>>, vector<1x32x16xbf16>
    %34 = vector.shape_cast %33 : vector<1x32x16xbf16> to vector<32x16xbf16>
    %cst_29 = arith.constant 0.000000e+00 : bf16
    %35 = vector.broadcast %cst_29 : bf16 to vector<32x16xbf16>
    %36 = arith.maximumf %34, %35 : vector<32x16xbf16>
    %c4 = arith.constant 4 : index
    %c0_30 = arith.constant 0 : index
    %c0_31 = arith.constant 0 : index
    %37 = vector.load %arg2[%c4, %c0_30, %c0_31] : memref<9x16x16xbf16, #tpu.memory_space<vmem>>, vector<1x16x16xbf16>
    %38 = vector.shape_cast %37 : vector<1x16x16xbf16> to vector<16x16xbf16>
    %cst_32 = arith.constant dense<0.000000e+00> : vector<32x16xf32>
    %39 = tpu.matmul %36, %38, %cst_32 {dimension_numbers = #tpu.dot_dimension_numbers<[1], [0], [0], [1], [0, 0, 1, 1], [], []>} : vector<32x16xbf16>, vector<16x16xbf16>, vector<32x16xf32> -> vector<32x16xf32>
    %40 = arith.addf %32, %39 : vector<32x16xf32>
    %c0_33 = arith.constant 0 : index
    %c8 = arith.constant 8 : index
    %c0_34 = arith.constant 0 : index
    %41 = vector.load %arg1[%c0_33, %c8, %c0_34] : memref<1x48x16xbf16, #tpu.memory_space<vmem>>, vector<1x32x16xbf16>
    %42 = vector.shape_cast %41 : vector<1x32x16xbf16> to vector<32x16xbf16>
    %cst_35 = arith.constant 0.000000e+00 : bf16
    %43 = vector.broadcast %cst_35 : bf16 to vector<32x16xbf16>
    %44 = arith.maximumf %42, %43 : vector<32x16xbf16>
    %c5 = arith.constant 5 : index
    %c0_36 = arith.constant 0 : index
    %c0_37 = arith.constant 0 : index
    %45 = vector.load %arg2[%c5, %c0_36, %c0_37] : memref<9x16x16xbf16, #tpu.memory_space<vmem>>, vector<1x16x16xbf16>
    %46 = vector.shape_cast %45 : vector<1x16x16xbf16> to vector<16x16xbf16>
    %cst_38 = arith.constant dense<0.000000e+00> : vector<32x16xf32>
    %47 = tpu.matmul %44, %46, %cst_38 {dimension_numbers = #tpu.dot_dimension_numbers<[1], [0], [0], [1], [0, 0, 1, 1], [], []>} : vector<32x16xbf16>, vector<16x16xbf16>, vector<32x16xf32> -> vector<32x16xf32>
    %48 = arith.addf %40, %47 : vector<32x16xf32>
    %c0_39 = arith.constant 0 : index
    %c12 = arith.constant 12 : index
    %c0_40 = arith.constant 0 : index
    %49 = vector.load %arg1[%c0_39, %c12, %c0_40] : memref<1x48x16xbf16, #tpu.memory_space<vmem>>, vector<1x32x16xbf16>
    %50 = vector.shape_cast %49 : vector<1x32x16xbf16> to vector<32x16xbf16>
    %cst_41 = arith.constant 0.000000e+00 : bf16
    %51 = vector.broadcast %cst_41 : bf16 to vector<32x16xbf16>
    %52 = arith.maximumf %50, %51 : vector<32x16xbf16>
    %c6_42 = arith.constant 6 : index
    %c0_43 = arith.constant 0 : index
    %c0_44 = arith.constant 0 : index
    %53 = vector.load %arg2[%c6_42, %c0_43, %c0_44] : memref<9x16x16xbf16, #tpu.memory_space<vmem>>, vector<1x16x16xbf16>
    %54 = vector.shape_cast %53 : vector<1x16x16xbf16> to vector<16x16xbf16>
    %cst_45 = arith.constant dense<0.000000e+00> : vector<32x16xf32>
    %55 = tpu.matmul %52, %54, %cst_45 {dimension_numbers = #tpu.dot_dimension_numbers<[1], [0], [0], [1], [0, 0, 1, 1], [], []>} : vector<32x16xbf16>, vector<16x16xbf16>, vector<32x16xf32> -> vector<32x16xf32>
    %56 = arith.addf %48, %55 : vector<32x16xf32>
    %c0_46 = arith.constant 0 : index
    %c13 = arith.constant 13 : index
    %c0_47 = arith.constant 0 : index
    %57 = vector.load %arg1[%c0_46, %c13, %c0_47] : memref<1x48x16xbf16, #tpu.memory_space<vmem>>, vector<1x32x16xbf16>
    %58 = vector.shape_cast %57 : vector<1x32x16xbf16> to vector<32x16xbf16>
    %cst_48 = arith.constant 0.000000e+00 : bf16
    %59 = vector.broadcast %cst_48 : bf16 to vector<32x16xbf16>
    %60 = arith.maximumf %58, %59 : vector<32x16xbf16>
    %c7_49 = arith.constant 7 : index
    %c0_50 = arith.constant 0 : index
    %c0_51 = arith.constant 0 : index
    %61 = vector.load %arg2[%c7_49, %c0_50, %c0_51] : memref<9x16x16xbf16, #tpu.memory_space<vmem>>, vector<1x16x16xbf16>
    %62 = vector.shape_cast %61 : vector<1x16x16xbf16> to vector<16x16xbf16>
    %cst_52 = arith.constant dense<0.000000e+00> : vector<32x16xf32>
    %63 = tpu.matmul %60, %62, %cst_52 {dimension_numbers = #tpu.dot_dimension_numbers<[1], [0], [0], [1], [0, 0, 1, 1], [], []>} : vector<32x16xbf16>, vector<16x16xbf16>, vector<32x16xf32> -> vector<32x16xf32>
    %64 = arith.addf %56, %63 : vector<32x16xf32>
    %c0_53 = arith.constant 0 : index
    %c14 = arith.constant 14 : index
    %c0_54 = arith.constant 0 : index
    %65 = vector.load %arg1[%c0_53, %c14, %c0_54] : memref<1x48x16xbf16, #tpu.memory_space<vmem>>, vector<1x32x16xbf16>
    %66 = vector.shape_cast %65 : vector<1x32x16xbf16> to vector<32x16xbf16>
    %cst_55 = arith.constant 0.000000e+00 : bf16
    %67 = vector.broadcast %cst_55 : bf16 to vector<32x16xbf16>
    %68 = arith.maximumf %66, %67 : vector<32x16xbf16>
    %c8_56 = arith.constant 8 : index
    %c0_57 = arith.constant 0 : index
    %c0_58 = arith.constant 0 : index
    %69 = vector.load %arg2[%c8_56, %c0_57, %c0_58] : memref<9x16x16xbf16, #tpu.memory_space<vmem>>, vector<1x16x16xbf16>
    %70 = vector.shape_cast %69 : vector<1x16x16xbf16> to vector<16x16xbf16>
    %cst_59 = arith.constant dense<0.000000e+00> : vector<32x16xf32>
    %71 = tpu.matmul %68, %70, %cst_59 {dimension_numbers = #tpu.dot_dimension_numbers<[1], [0], [0], [1], [0, 0, 1, 1], [], []>} : vector<32x16xbf16>, vector<16x16xbf16>, vector<32x16xf32> -> vector<32x16xf32>
    %72 = arith.addf %64, %71 : vector<32x16xf32>
    %cst_60 = arith.constant 0.000000e+00 : f32
    %73 = vector.broadcast %cst_60 : f32 to vector<32x16xf32>
    %74 = arith.maximumf %72, %73 : vector<32x16xf32>
    %75 = arith.truncf %74 : vector<32x16xf32> to vector<32x16xbf16>
    %c0_61 = arith.constant 0 : index
    %c0_62 = arith.constant 0 : index
    %76 = vector.load %arg3[%c0_61, %c0_62] : memref<16x16xbf16, #tpu.memory_space<vmem>>, vector<16x16xbf16>
    %cst_63 = arith.constant dense<0.000000e+00> : vector<32x16xf32>
    %77 = tpu.matmul %75, %76, %cst_63 {dimension_numbers = #tpu.dot_dimension_numbers<[1], [0], [0], [1], [0, 0, 1, 1], [], []>} : vector<32x16xbf16>, vector<16x16xbf16>, vector<32x16xf32> -> vector<32x16xf32>
    %c0_64 = arith.constant 0 : index
    %c7_65 = arith.constant 7 : index
    %c0_66 = arith.constant 0 : index
    %78 = vector.load %arg1[%c0_64, %c7_65, %c0_66] : memref<1x48x16xbf16, #tpu.memory_space<vmem>>, vector<1x32x16xbf16>
    %79 = vector.shape_cast %78 : vector<1x32x16xbf16> to vector<32x16xbf16>
    %80 = arith.extf %79 : vector<32x16xbf16> to vector<32x16xf32>
    %81 = arith.addf %77, %80 : vector<32x16xf32>
    %82 = arith.truncf %81 : vector<32x16xf32> to vector<32x16xbf16>
    %c0_67 = arith.constant 0 : index
    %c0_68 = arith.constant 0 : index
    %c0_69 = arith.constant 0 : index
    %83 = vector.load %arg4[%c0_67, %c0_68, %c0_69] : memref<1x32x16xbf16, #tpu.memory_space<vmem>>, vector<1x32x16xbf16>
    %84 = vector.shape_cast %83 : vector<1x32x16xbf16> to vector<32x16xbf16>
    %85 = vector.shape_cast %82 : vector<32x16xbf16> to vector<1x32x16xbf16>
    tpu.vector_store %arg4[%c0_67, %c0_68, %c0_69], %85 {strides = array<i32>} : memref<1x32x16xbf16, #tpu.memory_space<vmem>>, vector<1x32x16xbf16>,
    return
  }
  func.func @transform_0(%arg0: i32) -> (i32, i32, i32) {
    %c0_i32 = arith.constant 0 : i32
    %c0_i32_0 = arith.constant 0 : i32
    %c0_i32_1 = arith.constant 0 : i32
    return %arg0, %c0_i32, %c0_i32_0 : i32, i32, i32
  }
  func.func @transform_1(%arg0: i32) -> (i32, i32, i32) {
    %c0_i32 = arith.constant 0 : i32
    %c0_i32_0 = arith.constant 0 : i32
    %c0_i32_1 = arith.constant 0 : i32
    %c0_i32_2 = arith.constant 0 : i32
    return %c0_i32, %c0_i32_0, %c0_i32_1 : i32, i32, i32
  }
  func.func @transform_2(%arg0: i32) -> (i32, i32) {
    %c0_i32 = arith.constant 0 : i32
    %c0_i32_0 = arith.constant 0 : i32
    %c0_i32_1 = arith.constant 0 : i32
    return %c0_i32, %c0_i32_0 : i32, i32
  }
  func.func @transform_3(%arg0: i32) -> (i32, i32, i32) {
    %c0_i32 = arith.constant 0 : i32
    %c0_i32_0 = arith.constant 0 : i32
    %c0_i32_1 = arith.constant 0 : i32
    return %arg0, %c0_i32, %c0_i32_0 : i32, i32, i32
  }
}

module attributes {stable_mosaic.version = 11 : i64} {
  func.func @kernel(%arg0: i32, %arg1: memref<1x48x16xbf16, #tpu.memory_space<vmem>>, %arg2: memref<9x16x16xbf16, #tpu.memory_space<vmem>>, %arg3: memref<16x16xbf16, #tpu.memory_space<vmem>>, %arg4: memref<1x32x16xbf16, #tpu.memory_space<vmem>>) attributes {dimension_semantics = [#tpu.dimension_semantics<parallel>], iteration_bounds = array<i64: 2>, scalar_prefetch = 0 : i64, scratch_operands = 0 : i64, tpu.core_type = #tpu.core_type<tc>, window_params = [{transform_indices = @transform_0, window_bounds = array<i64: 1, 48, 16>}, {pipeline_mode = #tpu.pipeline_mode<synchronous>, transform_indices = @transform_1, window_bounds = array<i64: 9, 16, 16>}, {pipeline_mode = #tpu.pipeline_mode<synchronous>, transform_indices = @transform_2, window_bounds = array<i64: 16, 16>}, {transform_indices = @transform_3, window_bounds = array<i64: 1, 32, 16>}]} {
    %cst = arith.constant 0.000000e+00 : f32
    %0 = vector.broadcast %cst : f32 to vector<32x16xf32>
    %c0 = arith.constant 0 : index
    %c0_0 = arith.constant 0 : index
    %c0_1 = arith.constant 0 : index
    %1 = vector.load %arg1[%c0, %c0_0, %c0_1] : memref<1x48x16xbf16, #tpu.memory_space<vmem>>, vector<1x32x16xbf16>
    %2 = vector.shape_cast %1 : vector<1x32x16xbf16> to vector<32x16xbf16>
    %cst_2 = arith.constant 0.000000e+00 : bf16
    %3 = vector.broadcast %cst_2 : bf16 to vector<32x16xbf16>
    %4 = arith.maximumf %2, %3 : vector<32x16xbf16>
    %c0_3 = arith.constant 0 : index
    %c0_4 = arith.constant 0 : index
    %c0_5 = arith.constant 0 : index
    %5 = vector.load %arg2[%c0_3, %c0_4, %c0_5] : memref<9x16x16xbf16, #tpu.memory_space<vmem>>, vector<1x16x16xbf16>
    %6 = vector.shape_cast %5 : vector<1x16x16xbf16> to vector<16x16xbf16>
    %cst_6 = arith.constant dense<0.000000e+00> : vector<32x16xf32>
    %7 = tpu.matmul %4, %6, %cst_6 {dimension_numbers = #tpu.dot_dimension_numbers<[1], [0], [0], [1], [0, 0, 1, 1], [], []>} : vector<32x16xbf16>, vector<16x16xbf16>, vector<32x16xf32> -> vector<32x16xf32>
    %8 = arith.addf %0, %7 : vector<32x16xf32>
    %c0_7 = arith.constant 0 : index
    %c1 = arith.constant 1 : index
    %c0_8 = arith.constant 0 : index
    %9 = vector.load %arg1[%c0_7, %c1, %c0_8] : memref<1x48x16xbf16, #tpu.memory_space<vmem>>, vector<1x32x16xbf16>
    %10 = vector.shape_cast %9 : vector<1x32x16xbf16> to vector<32x16xbf16>
    %cst_9 = arith.constant 0.000000e+00 : bf16
    %11 = vector.broadcast %cst_9 : bf16 to vector<32x16xbf16>
    %12 = arith.maximumf %10, %11 : vector<32x16xbf16>
    %c1_10 = arith.constant 1 : index
    %c0_11 = arith.constant 0 : index
    %c0_12 = arith.constant 0 : index
    %13 = vector.load %arg2[%c1_10, %c0_11, %c0_12] : memref<9x16x16xbf16, #tpu.memory_space<vmem>>, vector<1x16x16xbf16>
    %14 = vector.shape_cast %13 : vector<1x16x16xbf16> to vector<16x16xbf16>
    %cst_13 = arith.constant dense<0.000000e+00> : vector<32x16xf32>
    %15 = tpu.matmul %12, %14, %cst_13 {dimension_numbers = #tpu.dot_dimension_numbers<[1], [0], [0], [1], [0, 0, 1, 1], [], []>} : vector<32x16xbf16>, vector<16x16xbf16>, vector<32x16xf32> -> vector<32x16xf32>
    %16 = arith.addf %8, %15 : vector<32x16xf32>
    %c0_14 = arith.constant 0 : index
    %c2 = arith.constant 2 : index
    %c0_15 = arith.constant 0 : index
    %17 = vector.load %arg1[%c0_14, %c2, %c0_15] : memref<1x48x16xbf16, #tpu.memory_space<vmem>>, vector<1x32x16xbf16>
    %18 = vector.shape_cast %17 : vector<1x32x16xbf16> to vector<32x16xbf16>
    %cst_16 = arith.constant 0.000000e+00 : bf16
    %19 = vector.broadcast %cst_16 : bf16 to vector<32x16xbf16>
    %20 = arith.maximumf %18, %19 : vector<32x16xbf16>
    %c2_17 = arith.constant 2 : index
    %c0_18 = arith.constant 0 : index
    %c0_19 = arith.constant 0 : index
    %21 = vector.load %arg2[%c2_17, %c0_18, %c0_19] : memref<9x16x16xbf16, #tpu.memory_space<vmem>>, vector<1x16x16xbf16>
    %22 = vector.shape_cast %21 : vector<1x16x16xbf16> to vector<16x16xbf16>
    %cst_20 = arith.constant dense<0.000000e+00> : vector<32x16xf32>
    %23 = tpu.matmul %20, %22, %cst_20 {dimension_numbers = #tpu.dot_dimension_numbers<[1], [0], [0], [1], [0, 0, 1, 1], [], []>} : vector<32x16xbf16>, vector<16x16xbf16>, vector<32x16xf32> -> vector<32x16xf32>
    %24 = arith.addf %16, %23 : vector<32x16xf32>
    %c0_21 = arith.constant 0 : index
    %c6 = arith.constant 6 : index
    %c0_22 = arith.constant 0 : index
    %25 = vector.load %arg1[%c0_21, %c6, %c0_22] : memref<1x48x16xbf16, #tpu.memory_space<vmem>>, vector<1x32x16xbf16>
    %26 = vector.shape_cast %25 : vector<1x32x16xbf16> to vector<32x16xbf16>
    %cst_23 = arith.constant 0.000000e+00 : bf16
    %27 = vector.broadcast %cst_23 : bf16 to vector<32x16xbf16>
    %28 = arith.maximumf %26, %27 : vector<32x16xbf16>
    %c3 = arith.constant 3 : index
    %c0_24 = arith.constant 0 : index
    %c0_25 = arith.constant 0 : index
    %29 = vector.load %arg2[%c3, %c0_24, %c0_25] : memref<9x16x16xbf16, #tpu.memory_space<vmem>>, vector<1x16x16xbf16>
    %30 = vector.shape_cast %29 : vector<1x16x16xbf16> to vector<16x16xbf16>
    %cst_26 = arith.constant dense<0.000000e+00> : vector<32x16xf32>
    %31 = tpu.matmul %28, %30, %cst_26 {dimension_numbers = #tpu.dot_dimension_numbers<[1], [0], [0], [1], [0, 0, 1, 1], [], []>} : vector<32x16xbf16>, vector<16x16xbf16>, vector<32x16xf32> -> vector<32x16xf32>
    %32 = arith.addf %24, %31 : vector<32x16xf32>
    %c0_27 = arith.constant 0 : index
    %c7 = arith.constant 7 : index
    %c0_28 = arith.constant 0 : index
    %33 = vector.load %arg1[%c0_27, %c7, %c0_28] : memref<1x48x16xbf16, #tpu.memory_space<vmem>>, vector<1x32x16xbf16>
    %34 = vector.shape_cast %33 : vector<1x32x16xbf16> to vector<32x16xbf16>
    %cst_29 = arith.constant 0.000000e+00 : bf16
    %35 = vector.broadcast %cst_29 : bf16 to vector<32x16xbf16>
    %36 = arith.maximumf %34, %35 : vector<32x16xbf16>
    %c4 = arith.constant 4 : index
    %c0_30 = arith.constant 0 : index
    %c0_31 = arith.constant 0 : index
    %37 = vector.load %arg2[%c4, %c0_30, %c0_31] : memref<9x16x16xbf16, #tpu.memory_space<vmem>>, vector<1x16x16xbf16>
    %38 = vector.shape_cast %37 : vector<1x16x16xbf16> to vector<16x16xbf16>
    %cst_32 = arith.constant dense<0.000000e+00> : vector<32x16xf32>
    %39 = tpu.matmul %36, %38, %cst_32 {dimension_numbers = #tpu.dot_dimension_numbers<[1], [0], [0], [1], [0, 0, 1, 1], [], []>} : vector<32x16xbf16>, vector<16x16xbf16>, vector<32x16xf32> -> vector<32x16xf32>
    %40 = arith.addf %32, %39 : vector<32x16xf32>
    %c0_33 = arith.constant 0 : index
    %c8 = arith.constant 8 : index
    %c0_34 = arith.constant 0 : index
    %41 = vector.load %arg1[%c0_33, %c8, %c0_34] : memref<1x48x16xbf16, #tpu.memory_space<vmem>>, vector<1x32x16xbf16>
    %42 = vector.shape_cast %41 : vector<1x32x16xbf16> to vector<32x16xbf16>
    %cst_35 = arith.constant 0.000000e+00 : bf16
    %43 = vector.broadcast %cst_35 : bf16 to vector<32x16xbf16>
    %44 = arith.maximumf %42, %43 : vector<32x16xbf16>
    %c5 = arith.constant 5 : index
    %c0_36 = arith.constant 0 : index
    %c0_37 = arith.constant 0 : index
    %45 = vector.load %arg2[%c5, %c0_36, %c0_37] : memref<9x16x16xbf16, #tpu.memory_space<vmem>>, vector<1x16x16xbf16>
    %46 = vector.shape_cast %45 : vector<1x16x16xbf16> to vector<16x16xbf16>
    %cst_38 = arith.constant dense<0.000000e+00> : vector<32x16xf32>
    %47 = tpu.matmul %44, %46, %cst_38 {dimension_numbers = #tpu.dot_dimension_numbers<[1], [0], [0], [1], [0, 0, 1, 1], [], []>} : vector<32x16xbf16>, vector<16x16xbf16>, vector<32x16xf32> -> vector<32x16xf32>
    %48 = arith.addf %40, %47 : vector<32x16xf32>
    %c0_39 = arith.constant 0 : index
    %c12 = arith.constant 12 : index
    %c0_40 = arith.constant 0 : index
    %49 = vector.load %arg1[%c0_39, %c12, %c0_40] : memref<1x48x16xbf16, #tpu.memory_space<vmem>>, vector<1x32x16xbf16>
    %50 = vector.shape_cast %49 : vector<1x32x16xbf16> to vector<32x16xbf16>
    %cst_41 = arith.constant 0.000000e+00 : bf16
    %51 = vector.broadcast %cst_41 : bf16 to vector<32x16xbf16>
    %52 = arith.maximumf %50, %51 : vector<32x16xbf16>
    %c6_42 = arith.constant 6 : index
    %c0_43 = arith.constant 0 : index
    %c0_44 = arith.constant 0 : index
    %53 = vector.load %arg2[%c6_42, %c0_43, %c0_44] : memref<9x16x16xbf16, #tpu.memory_space<vmem>>, vector<1x16x16xbf16>
    %54 = vector.shape_cast %53 : vector<1x16x16xbf16> to vector<16x16xbf16>
    %cst_45 = arith.constant dense<0.000000e+00> : vector<32x16xf32>
    %55 = tpu.matmul %52, %54, %cst_45 {dimension_numbers = #tpu.dot_dimension_numbers<[1], [0], [0], [1], [0, 0, 1, 1], [], []>} : vector<32x16xbf16>, vector<16x16xbf16>, vector<32x16xf32> -> vector<32x16xf32>
    %56 = arith.addf %48, %55 : vector<32x16xf32>
    %c0_46 = arith.constant 0 : index
    %c13 = arith.constant 13 : index
    %c0_47 = arith.constant 0 : index
    %57 = vector.load %arg1[%c0_46, %c13, %c0_47] : memref<1x48x16xbf16, #tpu.memory_space<vmem>>, vector<1x32x16xbf16>
    %58 = vector.shape_cast %57 : vector<1x32x16xbf16> to vector<32x16xbf16>
    %cst_48 = arith.constant 0.000000e+00 : bf16
    %59 = vector.broadcast %cst_48 : bf16 to vector<32x16xbf16>
    %60 = arith.maximumf %58, %59 : vector<32x16xbf16>
    %c7_49 = arith.constant 7 : index
    %c0_50 = arith.constant 0 : index
    %c0_51 = arith.constant 0 : index
    %61 = vector.load %arg2[%c7_49, %c0_50, %c0_51] : memref<9x16x16xbf16, #tpu.memory_space<vmem>>, vector<1x16x16xbf16>
    %62 = vector.shape_cast %61 : vector<1x16x16xbf16> to vector<16x16xbf16>
    %cst_52 = arith.constant dense<0.000000e+00> : vector<32x16xf32>
    %63 = tpu.matmul %60, %62, %cst_52 {dimension_numbers = #tpu.dot_dimension_numbers<[1], [0], [0], [1], [0, 0, 1, 1], [], []>} : vector<32x16xbf16>, vector<16x16xbf16>, vector<32x16xf32> -> vector<32x16xf32>
    %64 = arith.addf %56, %63 : vector<32x16xf32>
    %c0_53 = arith.constant 0 : index
    %c14 = arith.constant 14 : index
    %c0_54 = arith.constant 0 : index
    %65 = vector.load %arg1[%c0_53, %c14, %c0_54] : memref<1x48x16xbf16, #tpu.memory_space<vmem>>, vector<1x32x16xbf16>
    %66 = vector.shape_cast %65 : vector<1x32x16xbf16> to vector<32x16xbf16>
    %cst_55 = arith.constant 0.000000e+00 : bf16
    %67 = vector.broadcast %cst_55 : bf16 to vector<32x16xbf16>
    %68 = arith.maximumf %66, %67 : vector<32x16xbf16>
    %c8_56 = arith.constant 8 : index
    %c0_57 = arith.constant 0 : index
    %c0_58 = arith.constant 0 : index
    %69 = vector.load %arg2[%c8_56, %c0_57, %c0_58] : memref<9x16x16xbf16, #tpu.memory_space<vmem>>, vector<1x16x16xbf16>
    %70 = vector.shape_cast %69 : vector<1x16x16xbf16> to vector<16x16xbf16>
    %cst_59 = arith.constant dense<0.000000e+00> : vector<32x16xf32>
    %71 = tpu.matmul %68, %70, %cst_59 {dimension_numbers = #tpu.dot_dimension_numbers<[1], [0], [0], [1], [0, 0, 1, 1], [], []>} : vector<32x16xbf16>, vector<16x16xbf16>, vector<32x16xf32> -> vector<32x16xf32>
    %72 = arith.addf %64, %71 : vector<32x16xf32>
    %cst_60 = arith.constant 0.000000e+00 : f32
    %73 = vector.broadcast %cst_60 : f32 to vector<32x16xf32>
    %74 = arith.maximumf %72, %73 : vector<32x16xf32>
    %75 = arith.truncf %74 : vector<32x16xf32> to vector<32x16xbf16>
    %c0_61 = arith.constant 0 : index
    %c0_62 = arith.constant 0 : index
    %76 = vector.load %arg3[%c0_61, %c0_62] : memref<16x16xbf16, #tpu.memory_space<vmem>>, vector<16x16xbf16>
    %cst_63 = arith.constant dense<0.000000e+00> : vector<32x16xf32>
    %77 = tpu.matmul %75, %76, %cst_63 {dimension_numbers = #tpu.dot_dimension_numbers<[1], [0], [0], [1], [0, 0, 1, 1], [], []>} : vector<32x16xbf16>, vector<16x16xbf16>, vector<32x16xf32> -> vector<32x16xf32>
    %c0_64 = arith.constant 0 : index
    %c7_65 = arith.constant 7 : index
    %c0_66 = arith.constant 0 : index
    %78 = vector.load %arg1[%c0_64, %c7_65, %c0_66] : memref<1x48x16xbf16, #tpu.memory_space<vmem>>, vector<1x32x16xbf16>
    %79 = vector.shape_cast %78 : vector<1x32x16xbf16> to vector<32x16xbf16>
    %80 = arith.extf %79 : vector<32x16xbf16> to vector<32x16xf32>
    %81 = arith.addf %77, %80 : vector<32x16xf32>
    %cst_67 = arith.constant 0.000000e+00 : f32
    %82 = vector.broadcast %cst_67 : f32 to vector<32x16xf32>
    %83 = arith.maximumf %81, %82 : vector<32x16xf32>
    %84 = arith.truncf %83 : vector<32x16xf32> to vector<32x16xbf16>
    %c0_68 = arith.constant 0 : index
    %c0_69 = arith.constant 0 : index
    %c0_70 = arith.constant 0 : index
    %85 = vector.load %arg4[%c0_68, %c0_69, %c0_70] : memref<1x32x16xbf16, #tpu.memory_space<vmem>>, vector<1x32x16xbf16>
    %86 = vector.shape_cast %85 : vector<1x32x16xbf16> to vector<32x16xbf16>
    %87 = vector.shape_cast %84 : vector<32x16xbf16> to vector<1x32x16xbf16>
    tpu.vector_store %arg4[%c0_68, %c0_69, %c0_70], %87 {strides = array<i32>} : memref<1x32x16xbf16, #tpu.memory_space<vmem>>, vector<1x32x16xbf16>,
    return
  }
  func.func @transform_0(%arg0: i32) -> (i32, i32, i32) {
    %c0_i32 = arith.constant 0 : i32
    %c0_i32_0 = arith.constant 0 : i32
    %c0_i32_1 = arith.constant 0 : i32
    return %arg0, %c0_i32, %c0_i32_0 : i32, i32, i32
  }
  func.func @transform_1(%arg0: i32) -> (i32, i32, i32) {
    %c0_i32 = arith.constant 0 : i32
    %c0_i32_0 = arith.constant 0 : i32
    %c0_i32_1 = arith.constant 0 : i32
    %c0_i32_2 = arith.constant 0 : i32
    return %c0_i32, %c0_i32_0, %c0_i32_1 : i32, i32, i32
  }
  func.func @transform_2(%arg0: i32) -> (i32, i32) {
    %c0_i32 = arith.constant 0 : i32
    %c0_i32_0 = arith.constant 0 : i32
    %c0_i32_1 = arith.constant 0 : i32
    return %c0_i32, %c0_i32_0 : i32, i32
  }
  func.func @transform_3(%arg0: i32) -> (i32, i32, i32) {
    %c0_i32 = arith.constant 0 : i32
    %c0_i32_0 = arith.constant 0 : i32
    %c0_i32_1 = arith.constant 0 : i32
    return %arg0, %c0_i32, %c0_i32_0 : i32, i32, i32
  }
}

</mosaic_0001>

<llo_original>
// kernel: encoder_forward.10
$region0: #{encoder_forward.10}
  #allocation0 [shape = 'u32[]', space=smem, size = 0x4, offset = 0x4, fixed_abs, tag = 'smem constant byte address 0x4 - core index']
  #allocation1 [shape = 'u32[144,128]{1,0:T(1,128)}', space=vmem, size = 0x12000, scoped, tag = 'internal scratch']
  %s0 = inlined_call_operand.vmem [shape: bf16[2,96,16], index: 0, kind: input, shape index: {}]
  %s1 = inlined_call_operand.vmem [shape: bf16[4,16,8], index: 1, kind: input, shape index: {}]
  %s2 = inlined_call_operand.vmem [shape: bf16[2,80,8], index: 2, kind: output, shape index: {}]
  %s3 = sld [smem:[#allocation0]]
  $region41: #{encoder_forward.10} parent=0
    _
  %s5 = ssub.s32 1, %s3
  %s6 = scalar_select 0, %s5, %s3
  loop: start=0, step=1, limit=4
  $region2: #{encoder_forward.10} parent=0 // loop_pre_header
    _
  $region3: #{encoder_forward.10} parent=0 // loop_header
    %s8 = sphi 0, %s12
    %p9 = scmp.ge.s32.totalorder %s8, 4
    %s18 = sphi 0, %s20
    %s21 = sphi 0, %s18
    %s22 = sphi 0, %s21
    %s38 = sphi 0, %s22
    %s42 = sphi 0, %s42
    %s44 = sphi 0, %s42
    %s45 = sphi 0, %s44
    %s59 = sphi 0, %s45
    %s65 = sphi 0, %s67
    %s68 = sphi 0, %s65
    %s69 = sphi 0, %s68
    %s85 = sphi 0, %s69
  $region4: #{encoder_forward.10} parent=0 // loop_header_branch
    %11 = sbr.rel (%p9) target = $region8
  $region5: #{encoder_forward.10} parent=0 // loop_body
    %s13 = ssub.s32 %s8, 1
    %s14 = ssub.s32 %s8, 2
    %s15 = sadd.s32 %s8, 1
    %s16 = ssub.s32 %s8, %s15
    %p17 = scmp.eq.s32.totalorder %s16, 0
    %s19 = sadd.s32 %s18, 1
    %s20 = scalar_select %p17, %s18, %s19
    %p23 = pneg %p17
    %p24 = scmp.eq.s32.totalorder %s8, 1
    %p25 = por %p23, %p24
    %p26 = scmp.ne.s32.totalorder %s18, %s21
    %p27 = scmp.eq.s32.totalorder %s8, 0
    %p28 = por %p26, %p27
    %p29 = scmp.ne.s32.totalorder %s18, %s21
    %p30 = scmp.eq.s32.totalorder %s13, 1
    %p31 = por %p29, %p30
    %p32 = scmp.ne.s32.totalorder %s21, %s22
    %p33 = scmp.eq.s32.totalorder %s13, 0
    %p34 = por %p32, %p33
    %p35 = scmp.ne.s32.totalorder %s21, %s22
    %p36 = scmp.eq.s32.totalorder %s14, 1
    %p37 = por %p35, %p36
    %p39 = scmp.ne.s32.totalorder %s22, %s38
    %p40 = scmp.eq.s32.totalorder %s14, 0
    %p41 = por %p39, %p40
    %s43 = sadd.s32 %s42, 1
    %p46 = scmp.eq.s32.totalorder %s8, 1
    %p47 = scmp.ne.s32.totalorder %s42, %s44
    %p48 = scmp.eq.s32.totalorder %s8, 0
    %p49 = por %p47, %p48
    %p50 = scmp.ne.s32.totalorder %s42, %s44
    %p51 = scmp.eq.s32.totalorder %s13, 1
    %p52 = por %p50, %p51
    %p53 = scmp.ne.s32.totalorder %s44, %s45
    %p54 = scmp.eq.s32.totalorder %s13, 0
    %p55 = por %p53, %p54
    %p56 = scmp.ne.s32.totalorder %s44, %s45
    %p57 = scmp.eq.s32.totalorder %s14, 1
    %p58 = por %p56, %p57
    %p60 = scmp.ne.s32.totalorder %s45, %s59
    %p61 = scmp.eq.s32.totalorder %s14, 0
    %p62 = por %p60, %p61
    %s63 = ssub.s32 %s8, %s15
    %p64 = scmp.eq.s32.totalorder %s63, 0
    %s66 = sadd.s32 %s65, 1
    %s67 = scalar_select %p64, %s65, %s66
    %p70 = pneg %p64
    %p71 = scmp.eq.s32.totalorder %s8, 1
    %p72 = por %p70, %p71
    %p73 = scmp.ne.s32.totalorder %s65, %s68
    %p74 = scmp.eq.s32.totalorder %s8, 0
    %p75 = por %p73, %p74
    %p76 = scmp.ne.s32.totalorder %s65, %s68
    %p77 = scmp.eq.s32.totalorder %s13, 1
    %p78 = por %p76, %p77
    %p79 = scmp.ne.s32.totalorder %s68, %s69
    %p80 = scmp.eq.s32.totalorder %s13, 0
    %p81 = por %p79, %p80
    %p82 = scmp.ne.s32.totalorder %s68, %s69
    %p83 = scmp.eq.s32.totalorder %s14, 1
    %p84 = por %p82, %p83
    %p86 = scmp.ne.s32.totalorder %s69, %s85
    %p87 = scmp.eq.s32.totalorder %s14, 0
    %p88 = por %p86, %p87
    %p89 = scmp.le.s32.totalorder 1, %s8
    %p90 = scmp.lt.s32.totalorder %s8, 3
    %p91 = pnand %p89, %p90
    %p92 = pneg %p91
    // Predicated region
    $region9: #{encoder_forward.10} parent=5 // pred_check
      _
    $region10: #{encoder_forward.10} parent=5 // pred_check_branch
      %94 = sbr.rel (%p91) target = $region12
    $region11: #{encoder_forward.10} parent=5 // pred_region
      %s95 = ssub.s32 %s8, 1
      // Predicated region
      $region13: #{encoder_forward.10} parent=11 // pred_check
        %p96 = pneg %p55
      $region14: #{encoder_forward.10} parent=11 // pred_check_branch
        %98 = sbr.rel (%p96) target = $region16
      $region15: #{encoder_forward.10} parent=11 // pred_region
        _
      $region16: #{encoder_forward.10} parent=11 // pred_fallthru
        _
    $region12: #{encoder_forward.10} parent=5 // pred_fallthru
      _
    %p99 = scmp.lt.s32.totalorder %s8, 2
    // Predicated region
    $region17: #{encoder_forward.10} parent=5 // pred_check
      %p100 = pneg %p99
    $region18: #{encoder_forward.10} parent=5 // pred_check_branch
      %102 = sbr.rel (%p100) target = $region20
    $region19: #{encoder_forward.10} parent=5 // pred_region
      // Predicated region
      $region21: #{encoder_forward.10} parent=19 // pred_check
        %p103 = pneg %p28
      $region22: #{encoder_forward.10} parent=19 // pred_check_branch
        %105 = sbr.rel (%p103) target = $region24
      $region23: #{encoder_forward.10} parent=19 // pred_region
        %p106 = scmp.lt.s32.totalorder %s8, 1
        %s107 = scalar_select %p106, %s8, 1
        %s108 = smul.addr %s107, 12
        %s109 = smul.addr %s108, 4
        %s110 = scalar_lea.vmem %s0, %s109
      $region24: #{encoder_forward.10} parent=19 // pred_fallthru
        _
    $region20: #{encoder_forward.10} parent=5 // pred_fallthru
      _
    %p111 = scmp.le.s32.totalorder 1, %s8
    %p112 = scmp.lt.s32.totalorder %s8, 3
    %p113 = pnand %p111, %p112
    %p114 = pneg %p113
    // Predicated region
    $region25: #{encoder_forward.10} parent=5 // pred_check
      _
    $region26: #{encoder_forward.10} parent=5 // pred_check_branch
      %116 = sbr.rel (%p113) target = $region28
    $region27: #{encoder_forward.10} parent=5 // pred_region
      %s117 = ssub.s32 %s8, 1
      %p118 = scmp.lt.s32.totalorder %s13, 1
      %s119 = scalar_select %p118, %s13, 1
      %s120 = smul.addr %s119, 12
      %s121 = smul.addr %s120, 4
      %s122 = scalar_lea.vmem %s0, %s121
      %p123 = pneg %p34
      %p124 = pneg %p31
      %p125 = pneg %p55
      %p126 = pneg %p52
      %p127 = pneg %p81
      %p128 = pneg %p78
      %p129 = scmp.lt.s32.totalorder %s13, 1
      %s130 = scalar_select %p129, %s13, 1
      %s131 = smul.addr %s130, 10
      %s132 = smul.addr %s131, 4
      %s133 = scalar_lea.vmem %s2, %s132
      %p134 = scmp.lt.s32.totalorder %s13, 1
      %s135 = scalar_select %p134, %s13, 1
      %s136 = smul.addr %s135, 12
      %s137 = smul.addr %s136, 4
      %s138 = scalar_lea.vmem %s0, %s137
      %p139 = scmp.lt.s32.totalorder %s13, 1
      %s140 = scalar_select %p139, %s13, 1
      %s141 = smul.addr %s140, 10
      %s142 = smul.addr %s141, 4
      %s143 = scalar_lea.vmem %s2, %s142
      %v145 = vld [vmem:[%s138] sm:$0xf]
      %v146 = vld [vmem:[%s138 + $0x4] sm:$0xf]
      %v147 = vld [vmem:[%s138 + $0x8] sm:$0xf]
      %v148 = vld [vmem:[%s138 + $0xc] sm:$0xf]
      %v149 = vld [vmem:[%s138 + $0x10] sm:$0xf]
      %v150 = vld [vmem:[%s138 + $0x14] sm:$0xf]
      %v151 = vld [vmem:[%s138 + $0x18] sm:$0xf]
      %v152 = vld [vmem:[%s138 + $0x1c] sm:$0xf]
      %v153 = vld [vmem:[%s138 + $0x20] sm:$0xf]
      %v154 = vld [vmem:[%s138 + $0x24] sm:$0xf]
      %v155 = vld [vmem:[%s1] sm:$0xf]
      %v156 = vld [vmem:[%s1 + $0x4] sm:$0xf]
      %v157 = vld [vmem:[%s138 + $0x28] sm:$0x1]
      %s158 = scalar_lea.vmem %s1, 8
      %v159 = vld [vmem:[%s158] sm:$0xf]
      %v160 = vld [vmem:[%s158 + $0x4] sm:$0xf]
      %v172 = vunpack.c.l.b16 %v145
      %v173 = vunpack.c.l.b16 %v146
      %v174 = vunpack.c.l.b16 %v147
      %v175 = vunpack.c.l.b16 %v148
      %v176 = vunpack.c.l.b16 %v149
      %v177 = vunpack.c.l.b16 %v150
      %v178 = vunpack.c.l.b16 %v151
      %v179 = vunpack.c.l.b16 %v152
      %v180 = vunpack.c.l.b16 %v153
      %v181 = vunpack.c.l.b16 %v154
      %v182 = vunpack.c.l.b16 %v157
      %v183 = vpack.c.b16 %v173, %v172
      %v184 = vpack.c.b16 %v175, %v174
      %v185 = vpack.c.b16 %v177, %v176
      %v186 = vpack.c.b16 %v179, %v178
      %v187 = vpack.c.b16 %v181, %v180
      %v188 = vpack.c.b16 %v182, %v182
      %vm189 = vsmask.f32 7424
      %v191 = vshrl.u32 %v183, 16
      %v193 = vshll.u32 %v183, 16
      %v195 = vrot.slane %v193, 1
      %v196 = vor.u32 %v191, %v195
      %v198 = vshll.u32 %v184, 16
      %v200 = vrot.slane %v198, 1
      %v201 = vsel %vm189, %v196, %v200
      %v202 = vshrl.u32 %v184, 16
      %v204 = vor.u32 %v202, %v200
      %v206 = vshll.u32 %v185, 16
      %v208 = vrot.slane %v206, 1
      %v209 = vsel %vm189, %v204, %v208
      %v210 = vshrl.u32 %v185, 16
      %v212 = vor.u32 %v210, %v208
      %v214 = vshll.u32 %v186, 16
      %v216 = vrot.slane %v214, 1
      %v217 = vsel %vm189, %v212, %v216
      %v218 = vshrl.u32 %v186, 16
      %v220 = vor.u32 %v218, %v216
      %v222 = vshll.u32 %v187, 16
      %v224 = vrot.slane %v222, 1
      %v225 = vsel %vm189, %v220, %v224
      %v226 = vshrl.u32 %v187, 16
      %v228 = vor.u32 %v226, %v224
      %v230 = vshll.u32 %v188, 16
      %v232 = vrot.slane %v230, 1
      %v233 = vsel %vm189, %v228, %v232
      %v236 = vunpack.c.l.b16 %v159
      %v237 = vunpack.c.l.b16 %v160
      %v238 = vpack.c.b16 %v237, %v236
      %vm240 = vcmask 130048
      %v242 = vsel %vm240, %v201, 0
      %v245 = vsel %vm240, %v209, 0
      %v248 = vsel %vm240, %v217, 0
      %v251 = vsel %vm240, %v225, 0
      %v254 = vsel %vm240, %v233, 0
      %256 = vmatprep.subr.bf16.mxu0 0
      %257 = vmatpush1.bf16.msra.mxu0 0
      %258 = vmatprep.subr.bf16.mxu0 0
      %259 = vmatpush1.bf16.msra.mxu0 0
      %260 = vmatprep.subr.bf16.mxu0 0
      %261 = vmatpush1.bf16.msra.mxu0 0
      %262 = vmatprep.subr.bf16.mxu0 0
      %263 = vmatpush1.bf16.msra.mxu0 0
      %264 = vmatprep.subr.bf16.mxu0 0
      %265 = vmatpush1.bf16.msra.mxu0 0
      %266 = vmatprep.subr.bf16.mxu0 0
      %267 = vmatpush1.bf16.msra.mxu0 0
      %268 = vmatprep.subr.bf16.mxu0 0
      %269 = vmatpush1.bf16.msra.mxu0 0
      %270 = vmatprep.subr.bf16.mxu0 0
      %271 = vmatpush1.bf16.msra.mxu0 %v238
      %272 = vmatprep.subr.bf16.mxu0 0
      %273 = vmatpush2.bf16.msra.mxu0 0
      %274 = vmatprep.subr.bf16.mxu0 0
      %275 = vmatpush2.bf16.msra.mxu0 0
      %276 = vmatprep.subr.bf16.mxu0 0
      %277 = vmatpush2.bf16.msra.mxu0 0
      %278 = vmatprep.subr.bf16.mxu0 0
      %279 = vmatpush2.bf16.msra.mxu0 0
      %280 = vmatprep.subr.bf16.mxu0 0
      %281 = vmatpush2.bf16.msra.mxu0 0
      %282 = vmatprep.subr.bf16.mxu0 0
      %283 = vmatpush2.bf16.msra.mxu0 0
      %284 = vmatprep.subr.bf16.mxu0 0
      %285 = vmatpush2.bf16.msra.mxu0 0
      %286 = vmatprep.subr.bf16.mxu0 0
      %287 = vmatpush2.bf16.msra.mxu0 0
      %288 = vmatprep.mubr.bf16.mxu0 0
      %289 = vmatmul.mubr.bf16.gmra.mxu0 %v242
      %v290 = vpop.f32.mrf.mxu0
      %v291 = vadd.f32 0.0, %v290
      %v292 = vpop.f32.mrf.mxu0
      %v293 = vpop.f32.mrf.mxu0
      %v294 = vadd.f32 0.0, %v293
      %v295 = vpop.f32.mrf.mxu0
      %296 = vmatprep.mubr.bf16.mxu0 0
      %297 = vmatmul.mubr.bf16.gmra.mxu0 %v245
      %v298 = vpop.f32.mrf.mxu0
      %v299 = vadd.f32 0.0, %v298
      %v300 = vpop.f32.mrf.mxu0
      %v301 = vpop.f32.mrf.mxu0
      %v302 = vadd.f32 0.0, %v301
      %v303 = vpop.f32.mrf.mxu0
      %304 = vmatprep.mubr.bf16.mxu0 0
      %305 = vmatmul.mubr.bf16.gmra.mxu0 %v248
      %v306 = vpop.f32.mrf.mxu0
      %v307 = vadd.f32 0.0, %v306
      %v308 = vpop.f32.mrf.mxu0
      %v309 = vpop.f32.mrf.mxu0
      %v310 = vadd.f32 0.0, %v309
      %v311 = vpop.f32.mrf.mxu0
      %312 = vmatprep.mubr.bf16.mxu0 0
      %313 = vmatmul.mubr.bf16.gmra.mxu0 %v251
      %v314 = vpop.f32.mrf.mxu0
      %v315 = vadd.f32 0.0, %v314
      %v316 = vpop.f32.mrf.mxu0
      %v317 = vpop.f32.mrf.mxu0
      %v318 = vadd.f32 0.0, %v317
      %v319 = vpop.f32.mrf.mxu0
      %320 = vmatprep.mubr.bf16.mxu0 0
      %321 = vmatmul.mubr.bf16.gmra.mxu0 %v254
      %v322 = vpop.f32.mrf.mxu0
      %v323 = vadd.f32 0.0, %v322
      %v324 = vpop.f32.mrf.mxu0
      %v325 = vpop.f32.mrf.mxu0
      %v326 = vadd.f32 0.0, %v325
      %v327 = vpop.f32.mrf.mxu0
      %328 = vdwg.mxu0
      %v331 = vunpack.c.l.b16 %v155
      %v332 = vunpack.c.l.b16 %v156
      %v333 = vpack.c.b16 %v332, %v331
      %v335 = vsel %vm240, %v183, 0
      %v337 = vsel %vm240, %v184, 0
      %v339 = vsel %vm240, %v185, 0
      %v341 = vsel %vm240, %v186, 0
      %v343 = vsel %vm240, %v187, 0
      %345 = vmatprep.subr.bf16.mxu0 0
      %346 = vmatpush1.bf16.msra.mxu0 0
      %347 = vmatprep.subr.bf16.mxu0 0
      %348 = vmatpush1.bf16.msra.mxu0 0
      %349 = vmatprep.subr.bf16.mxu0 0
      %350 = vmatpush1.bf16.msra.mxu0 0
      %351 = vmatprep.subr.bf16.mxu0 0
      %352 = vmatpush1.bf16.msra.mxu0 0
      %353 = vmatprep.subr.bf16.mxu0 0
      %354 = vmatpush1.bf16.msra.mxu0 0
      %355 = vmatprep.subr.bf16.mxu0 0
      %356 = vmatpush1.bf16.msra.mxu0 0
      %357 = vmatprep.subr.bf16.mxu0 0
      %358 = vmatpush1.bf16.msra.mxu0 0
      %359 = vmatprep.subr.bf16.mxu0 0
      %360 = vmatpush1.bf16.msra.mxu0 %v333
      %361 = vmatprep.subr.bf16.mxu0 0
      %362 = vmatpush2.bf16.msra.mxu0 0
      %363 = vmatprep.subr.bf16.mxu0 0
      %364 = vmatpush2.bf16.msra.mxu0 0
      %365 = vmatprep.subr.bf16.mxu0 0
      %366 = vmatpush2.bf16.msra.mxu0 0
      %367 = vmatprep.subr.bf16.mxu0 0
      %368 = vmatpush2.bf16.msra.mxu0 0
      %369 = vmatprep.subr.bf16.mxu0 0
      %370 = vmatpush2.bf16.msra.mxu0 0
      %371 = vmatprep.subr.bf16.mxu0 0
      %372 = vmatpush2.bf16.msra.mxu0 0
      %373 = vmatprep.subr.bf16.mxu0 0
      %374 = vmatpush2.bf16.msra.mxu0 0
      %375 = vmatprep.subr.bf16.mxu0 0
      %376 = vmatpush2.bf16.msra.mxu0 0
      %377 = vmatprep.mubr.bf16.mxu0 0
      %378 = vmatmul.mubr.bf16.gmra.mxu0 %v335
      %v379 = vpop.f32.mrf.mxu0
      %v380 = vadd.f32 %v291, %v379
      %v381 = vpop.f32.mrf.mxu0
      %v382 = vpop.f32.mrf.mxu0
      %v383 = vadd.f32 %v294, %v382
      %v384 = vpop.f32.mrf.mxu0
      %385 = vmatprep.mubr.bf16.mxu0 0
      %386 = vmatmul.mubr.bf16.gmra.mxu0 %v337
      %v387 = vpop.f32.mrf.mxu0
      %v388 = vadd.f32 %v299, %v387
      %v389 = vpop.f32.mrf.mxu0
      %v390 = vpop.f32.mrf.mxu0
      %v391 = vadd.f32 %v302, %v390
      %v392 = vpop.f32.mrf.mxu0
      %393 = vmatprep.mubr.bf16.mxu0 0
      %394 = vmatmul.mubr.bf16.gmra.mxu0 %v339
      %v395 = vpop.f32.mrf.mxu0
      %v396 = vadd.f32 %v307, %v395
      %v397 = vpop.f32.mrf.mxu0
      %v398 = vpop.f32.mrf.mxu0
      %v399 = vadd.f32 %v310, %v398
      %v400 = vpop.f32.mrf.mxu0
      %401 = vmatprep.mubr.bf16.mxu0 0
      %402 = vmatmul.mubr.bf16.gmra.mxu0 %v341
      %v403 = vpop.f32.mrf.mxu0
      %v404 = vadd.f32 %v315, %v403
      %v405 = vpop.f32.mrf.mxu0
      %v406 = vpop.f32.mrf.mxu0
      %v407 = vadd.f32 %v318, %v406
      %v408 = vpop.f32.mrf.mxu0
      %409 = vmatprep.mubr.bf16.mxu0 0
      %410 = vmatmul.mubr.bf16.gmra.mxu0 %v343
      %v411 = vpop.f32.mrf.mxu0
      %v412 = vadd.f32 %v323, %v411
      %v413 = vpop.f32.mrf.mxu0
      %v414 = vpop.f32.mrf.mxu0
      %v415 = vadd.f32 %v326, %v414
      %v416 = vpop.f32.mrf.mxu0
      %417 = vdwg.mxu0
      %v418 = vld [vmem:[%s138 + $0x4] sm:$0xf]
      %v419 = vld [vmem:[%s138 + $0x8] sm:$0xf]
      %v420 = vld [vmem:[%s138 + $0xc] sm:$0xf]
      %v421 = vld [vmem:[%s138 + $0x10] sm:$0xf]
      %v422 = vld [vmem:[%s138 + $0x14] sm:$0xf]
      %v423 = vld [vmem:[%s138 + $0x18] sm:$0xf]
      %v424 = vld [vmem:[%s138 + $0x1c] sm:$0xf]
      %v425 = vld [vmem:[%s138 + $0x20] sm:$0xf]
      %v426 = vld [vmem:[%s138 + $0x24] sm:$0xf]
      %v427 = vld [vmem:[%s138 + $0x28] sm:$0xf]
      %v428 = vld [vmem:[%s138 + $0x2c] sm:$0x1]
      %s429 = scalar_lea.vmem %s1, 16
      %v430 = vld [vmem:[%s429] sm:$0xf]
      %v431 = vld [vmem:[%s429 + $0x4] sm:$0xf]
      %v443 = vunpack.c.l.b16 %v418
      %v444 = vunpack.c.l.b16 %v419
      %v445 = vunpack.c.l.b16 %v420
      %v446 = vunpack.c.l.b16 %v421
      %v447 = vunpack.c.l.b16 %v422
      %v448 = vunpack.c.l.b16 %v423
      %v449 = vunpack.c.l.b16 %v424
      %v450 = vunpack.c.l.b16 %v425
      %v451 = vunpack.c.l.b16 %v426
      %v452 = vunpack.c.l.b16 %v427
      %v453 = vunpack.c.l.b16 %v428
      %v454 = vpack.c.b16 %v444, %v443
      %v455 = vpack.c.b16 %v446, %v445
      %v456 = vpack.c.b16 %v448, %v447
      %v457 = vpack.c.b16 %v450, %v449
      %v458 = vpack.c.b16 %v452, %v451
      %v459 = vpack.c.b16 %v453, %v453
      %v461 = vshrl.u32 %v454, 16
      %v463 = vshll.u32 %v454, 16
      %v465 = vrot.slane %v463, 1
      %v466 = vor.u32 %v461, %v465
      %v468 = vshll.u32 %v455, 16
      %v470 = vrot.slane %v468, 1
      %v471 = vsel %vm189, %v466, %v470
      %v472 = vshrl.u32 %v455, 16
      %v474 = vor.u32 %v472, %v470
      %v476 = vshll.u32 %v456, 16
      %v478 = vrot.slane %v476, 1
      %v479 = vsel %vm189, %v474, %v478
      %v480 = vshrl.u32 %v456, 16
      %v482 = vor.u32 %v480, %v478
      %v484 = vshll.u32 %v457, 16
      %v486 = vrot.slane %v484, 1
      %v487 = vsel %vm189, %v482, %v486
      %v488 = vshrl.u32 %v457, 16
      %v490 = vor.u32 %v488, %v486
      %v492 = vshll.u32 %v458, 16
      %v494 = vrot.slane %v492, 1
      %v495 = vsel %vm189, %v490, %v494
      %v496 = vshrl.u32 %v458, 16
      %v498 = vor.u32 %v496, %v494
      %v500 = vshll.u32 %v459, 16
      %v502 = vrot.slane %v500, 1
      %v503 = vsel %vm189, %v498, %v502
      %v506 = vunpack.c.l.b16 %v430
      %v507 = vunpack.c.l.b16 %v431
      %v508 = vpack.c.b16 %v507, %v506
      %v511 = vsel %vm240, %v471, 0
      %v514 = vsel %vm240, %v479, 0
      %v517 = vsel %vm240, %v487, 0
      %v520 = vsel %vm240, %v495, 0
      %v523 = vsel %vm240, %v503, 0
      %525 = vmatprep.subr.bf16.mxu0 0
      %526 = vmatpush1.bf16.msra.mxu0 0
      %527 = vmatprep.subr.bf16.mxu0 0
      %528 = vmatpush1.bf16.msra.mxu0 0
      %529 = vmatprep.subr.bf16.mxu0 0
      %530 = vmatpush1.bf16.msra.mxu0 0
      %531 = vmatprep.subr.bf16.mxu0 0
      %532 = vmatpush1.bf16.msra.mxu0 0
      %533 = vmatprep.subr.bf16.mxu0 0
      %534 = vmatpush1.bf16.msra.mxu0 0
      %535 = vmatprep.subr.bf16.mxu0 0
      %536 = vmatpush1.bf16.msra.mxu0 0
      %537 = vmatprep.subr.bf16.mxu0 0
      %538 = vmatpush1.bf16.msra.mxu0 0
      %539 = vmatprep.subr.bf16.mxu0 0
      %540 = vmatpush1.bf16.msra.mxu0 %v508
      %541 = vmatprep.subr.bf16.mxu0 0
      %542 = vmatpush2.bf16.msra.mxu0 0
      %543 = vmatprep.subr.bf16.mxu0 0
      %544 = vmatpush2.bf16.msra.mxu0 0
      %545 = vmatprep.subr.bf16.mxu0 0
      %546 = vmatpush2.bf16.msra.mxu0 0
      %547 = vmatprep.subr.bf16.mxu0 0
      %548 = vmatpush2.bf16.msra.mxu0 0
      %549 = vmatprep.subr.bf16.mxu0 0
      %550 = vmatpush2.bf16.msra.mxu0 0
      %551 = vmatprep.subr.bf16.mxu0 0
      %552 = vmatpush2.bf16.msra.mxu0 0
      %553 = vmatprep.subr.bf16.mxu0 0
      %554 = vmatpush2.bf16.msra.mxu0 0
      %555 = vmatprep.subr.bf16.mxu0 0
      %556 = vmatpush2.bf16.msra.mxu0 0
      %557 = vmatprep.mubr.bf16.mxu0 0
      %558 = vmatmul.mubr.bf16.gmra.mxu0 %v511
      %v559 = vpop.f32.mrf.mxu0
      %v560 = vadd.f32 0.0, %v559
      %v561 = vpop.f32.mrf.mxu0
      %v562 = vpop.f32.mrf.mxu0
      %v563 = vadd.f32 0.0, %v562
      %v564 = vpop.f32.mrf.mxu0
      %565 = vmatprep.mubr.bf16.mxu0 0
      %566 = vmatmul.mubr.bf16.gmra.mxu0 %v514
      %v567 = vpop.f32.mrf.mxu0
      %v568 = vadd.f32 0.0, %v567
      %v569 = vpop.f32.mrf.mxu0
      %v570 = vpop.f32.mrf.mxu0
      %v571 = vadd.f32 0.0, %v570
      %v572 = vpop.f32.mrf.mxu0
      %573 = vmatprep.mubr.bf16.mxu0 0
      %574 = vmatmul.mubr.bf16.gmra.mxu0 %v517
      %v575 = vpop.f32.mrf.mxu0
      %v576 = vadd.f32 0.0, %v575
      %v577 = vpop.f32.mrf.mxu0
      %v578 = vpop.f32.mrf.mxu0
      %v579 = vadd.f32 0.0, %v578
      %v580 = vpop.f32.mrf.mxu0
      %581 = vmatprep.mubr.bf16.mxu0 0
      %582 = vmatmul.mubr.bf16.gmra.mxu0 %v520
      %v583 = vpop.f32.mrf.mxu0
      %v584 = vadd.f32 0.0, %v583
      %v585 = vpop.f32.mrf.mxu0
      %v586 = vpop.f32.mrf.mxu0
      %v587 = vadd.f32 0.0, %v586
      %v588 = vpop.f32.mrf.mxu0
      %589 = vmatprep.mubr.bf16.mxu0 0
      %590 = vmatmul.mubr.bf16.gmra.mxu0 %v523
      %v591 = vpop.f32.mrf.mxu0
      %v592 = vadd.f32 0.0, %v591
      %v593 = vpop.f32.mrf.mxu0
      %v594 = vpop.f32.mrf.mxu0
      %v595 = vadd.f32 0.0, %v594
      %v596 = vpop.f32.mrf.mxu0
      %597 = vdwg.mxu0
      %v598 = vadd.f32 %v380, %v560
      %v599 = vadd.f32 %v383, %v563
      %v600 = vadd.f32 %v388, %v568
      %v601 = vadd.f32 %v391, %v571
      %v602 = vadd.f32 %v396, %v576
      %v603 = vadd.f32 %v399, %v579
      %v604 = vadd.f32 %v404, %v584
      %v605 = vadd.f32 %v407, %v587
      %v606 = vadd.f32 %v412, %v592
      %v607 = vadd.f32 %v415, %v595
      %v608 = vld [vmem:[%s138 + $0x4] sm:$0xe]
      %s609 = scalar_lea.vmem %s1, 24
      %v610 = vld [vmem:[%s609] sm:$0xf]
      %v611 = vld [vmem:[%s609 + $0x4] sm:$0xf]
      %v613 = vunpack.c.l.b16 %v608
      %v614 = vpack.c.b16 %v444, %v613
      %vm615 = vcmask 1046528
      %v616 = vrot.slane %v614, 1
      %v617 = vrot.slane %v455, 1
      %v618 = vsel %vm615, %v616, %v617
      %v619 = vrot.slane %v456, 1
      %v620 = vsel %vm615, %v617, %v619
      %v621 = vrot.slane %v457, 1
      %v622 = vsel %vm615, %v619, %v621
      %v623 = vrot.slane %v458, 1
      %v624 = vsel %vm615, %v621, %v623
      %v625 = vrot.slane %v459, 1
      %v626 = vsel %vm615, %v623, %v625
      %v629 = vunpack.c.l.b16 %v610
      %v630 = vunpack.c.l.b16 %v611
      %v631 = vpack.c.b16 %v630, %v629
      %v634 = vsel %vm240, %v618, 0
      %v637 = vsel %vm240, %v620, 0
      %v640 = vsel %vm240, %v622, 0
      %v643 = vsel %vm240, %v624, 0
      %v646 = vsel %vm240, %v626, 0
      %648 = vmatprep.subr.bf16.mxu0 0
      %649 = vmatpush1.bf16.msra.mxu0 0
      %650 = vmatprep.subr.bf16.mxu0 0
      %651 = vmatpush1.bf16.msra.mxu0 0
      %652 = vmatprep.subr.bf16.mxu0 0
      %653 = vmatpush1.bf16.msra.mxu0 0
      %654 = vmatprep.subr.bf16.mxu0 0
      %655 = vmatpush1.bf16.msra.mxu0 0
      %656 = vmatprep.subr.bf16.mxu0 0
      %657 = vmatpush1.bf16.msra.mxu0 0
      %658 = vmatprep.subr.bf16.mxu0 0
      %659 = vmatpush1.bf16.msra.mxu0 0
      %660 = vmatprep.subr.bf16.mxu0 0
      %661 = vmatpush1.bf16.msra.mxu0 0
      %662 = vmatprep.subr.bf16.mxu0 0
      %663 = vmatpush1.bf16.msra.mxu0 %v631
      %664 = vmatprep.subr.bf16.mxu0 0
      %665 = vmatpush2.bf16.msra.mxu0 0
      %666 = vmatprep.subr.bf16.mxu0 0
      %667 = vmatpush2.bf16.msra.mxu0 0
      %668 = vmatprep.subr.bf16.mxu0 0
      %669 = vmatpush2.bf16.msra.mxu0 0
      %670 = vmatprep.subr.bf16.mxu0 0
      %671 = vmatpush2.bf16.msra.mxu0 0
      %672 = vmatprep.subr.bf16.mxu0 0
      %673 = vmatpush2.bf16.msra.mxu0 0
      %674 = vmatprep.subr.bf16.mxu0 0
      %675 = vmatpush2.bf16.msra.mxu0 0
      %676 = vmatprep.subr.bf16.mxu0 0
      %677 = vmatpush2.bf16.msra.mxu0 0
      %678 = vmatprep.subr.bf16.mxu0 0
      %679 = vmatpush2.bf16.msra.mxu0 0
      %680 = vmatprep.mubr.bf16.mxu0 0
      %681 = vmatmul.mubr.bf16.gmra.mxu0 %v634
      %v682 = vpop.f32.mrf.mxu0
      %v683 = vadd.f32 0.0, %v682
      %v684 = vpop.f32.mrf.mxu0
      %v685 = vpop.f32.mrf.mxu0
      %v686 = vadd.f32 0.0, %v685
      %v687 = vpop.f32.mrf.mxu0
      %688 = vmatprep.mubr.bf16.mxu0 0
      %689 = vmatmul.mubr.bf16.gmra.mxu0 %v637
      %v690 = vpop.f32.mrf.mxu0
      %v691 = vadd.f32 0.0, %v690
      %v692 = vpop.f32.mrf.mxu0
      %v693 = vpop.f32.mrf.mxu0
      %v694 = vadd.f32 0.0, %v693
      %v695 = vpop.f32.mrf.mxu0
      %696 = vmatprep.mubr.bf16.mxu0 0
      %697 = vmatmul.mubr.bf16.gmra.mxu0 %v640
      %v698 = vpop.f32.mrf.mxu0
      %v699 = vadd.f32 0.0, %v698
      %v700 = vpop.f32.mrf.mxu0
      %v701 = vpop.f32.mrf.mxu0
      %v702 = vadd.f32 0.0, %v701
      %v703 = vpop.f32.mrf.mxu0
      %704 = vmatprep.mubr.bf16.mxu0 0
      %705 = vmatmul.mubr.bf16.gmra.mxu0 %v643
      %v706 = vpop.f32.mrf.mxu0
      %v707 = vadd.f32 0.0, %v706
      %v708 = vpop.f32.mrf.mxu0
      %v709 = vpop.f32.mrf.mxu0
      %v710 = vadd.f32 0.0, %v709
      %v711 = vpop.f32.mrf.mxu0
      %712 = vmatprep.mubr.bf16.mxu0 0
      %713 = vmatmul.mubr.bf16.gmra.mxu0 %v646
      %v714 = vpop.f32.mrf.mxu0
      %v715 = vadd.f32 0.0, %v714
      %v716 = vpop.f32.mrf.mxu0
      %v717 = vpop.f32.mrf.mxu0
      %v718 = vadd.f32 0.0, %v717
      %v719 = vpop.f32.mrf.mxu0
      %720 = vdwg.mxu0
      %v721 = vadd.f32 %v598, %v683
      %v722 = vadd.f32 %v599, %v686
      %v723 = vadd.f32 %v600, %v691
      %v724 = vadd.f32 %v601, %v694
      %v725 = vadd.f32 %v602, %v699
      %v726 = vadd.f32 %v603, %v702
      %v727 = vadd.f32 %v604, %v707
      %v728 = vadd.f32 %v605, %v710
      %v729 = vadd.f32 %v606, %v715
      %v730 = vadd.f32 %v607, %v718
      %v731 = vmax.f32 %v721, 0.0
      %v732 = vmax.f32 %v722, 0.0
      %v733 = vmax.f32 %v723, 0.0
      %v734 = vmax.f32 %v724, 0.0
      %v735 = vmax.f32 %v725, 0.0
      %v736 = vmax.f32 %v726, 0.0
      %v737 = vmax.f32 %v727, 0.0
      %v738 = vmax.f32 %v728, 0.0
      %v739 = vmax.f32 %v729, 0.0
      %v740 = vmax.f32 %v730, 0.0
      %v741 = vpack.c.bf16 %v732, %v731
      %v742 = vpack.c.bf16 %v734, %v733
      %v743 = vpack.c.bf16 %v736, %v735
      %v744 = vpack.c.bf16 %v738, %v737
      %v745 = vpack.c.bf16 %v740, %v739
      %v751 = vunpack.c.l.b16 %v741
      %v752 = vunpack.c.h.b16 %v741
      %v753 = vunpack.c.l.b16 %v742
      %v754 = vunpack.c.h.b16 %v742
      %v755 = vunpack.c.l.b16 %v743
      %v756 = vunpack.c.h.b16 %v743
      %v757 = vunpack.c.l.b16 %v744
      %v758 = vunpack.c.h.b16 %v744
      %v759 = vunpack.c.l.b16 %v745
      %v760 = vunpack.c.h.b16 %v745
      %v761 = vpack.c.b16 %v751, %v751
      %v762 = vpack.c.b16 %v752, %v752
      %v763 = vpack.c.b16 %v753, %v753
      %v764 = vpack.c.b16 %v754, %v754
      %v765 = vpack.c.b16 %v755, %v755
      %v766 = vpack.c.b16 %v756, %v756
      %v767 = vpack.c.b16 %v757, %v757
      %v768 = vpack.c.b16 %v758, %v758
      %v769 = vpack.c.b16 %v759, %v759
      %v770 = vpack.c.b16 %v760, %v760
      %vm781 = vcmask 60416
      %782 = vst.msk [vmem:[%s143] sm:$0xf] %vm781, %v761
      %783 = vst.msk [vmem:[%s143 + $0x4] sm:$0xf] %vm781, %v762
      %784 = vst.msk [vmem:[%s143 + $0x8] sm:$0xf] %vm781, %v763
      %785 = vst.msk [vmem:[%s143 + $0xc] sm:$0xf] %vm781, %v764
      %786 = vst.msk [vmem:[%s143 + $0x10] sm:$0xf] %vm781, %v765
      %787 = vst.msk [vmem:[%s143 + $0x14] sm:$0xf] %vm781, %v766
      %788 = vst.msk [vmem:[%s143 + $0x18] sm:$0xf] %vm781, %v767
      %789 = vst.msk [vmem:[%s143 + $0x1c] sm:$0xf] %vm781, %v768
      %790 = vst.msk [vmem:[%s143 + $0x20] sm:$0xf] %vm781, %v769
      %791 = vst.msk [vmem:[%s143 + $0x24] sm:$0xf] %vm781, %v770
      %p792 = scmp.lt.s32.totalorder %s13, 1
      %s793 = scalar_select %p792, %s13, 1
      %s794 = smul.addr %s793, 10
      %s795 = smul.addr %s794, 4
      %s796 = scalar_lea.vmem %s2, %s795
      // Predicated region
      $region29: #{encoder_forward.10} parent=27 // pred_check
        %p797 = pneg %p78
      $region30: #{encoder_forward.10} parent=27 // pred_check_branch
        %799 = sbr.rel (%p797) target = $region32
      $region31: #{encoder_forward.10} parent=27 // pred_region
        _
      $region32: #{encoder_forward.10} parent=27 // pred_fallthru
        _
    $region28: #{encoder_forward.10} parent=5 // pred_fallthru
      _
    %p800 = scmp.le.s32.totalorder 2, %s8
    // Predicated region
    $region33: #{encoder_forward.10} parent=5 // pred_check
      %p801 = pneg %p800
    $region34: #{encoder_forward.10} parent=5 // pred_check_branch
      %803 = sbr.rel (%p801) target = $region36
    $region35: #{encoder_forward.10} parent=5 // pred_region
      %s804 = ssub.s32 %s8, 2
      // Predicated region
      $region37: #{encoder_forward.10} parent=35 // pred_check
        %p805 = pneg %p84
      $region38: #{encoder_forward.10} parent=35 // pred_check_branch
        %807 = sbr.rel (%p805) target = $region40
      $region39: #{encoder_forward.10} parent=35 // pred_region
        %p808 = scmp.lt.s32.totalorder %s14, 1
        %s809 = scalar_select %p808, %s14, 1
        %s810 = smul.addr %s809, 10
        %s811 = smul.addr %s810, 4
        %s812 = scalar_lea.vmem %s2, %s811
      $region40: #{encoder_forward.10} parent=35 // pred_fallthru
        _
    $region36: #{encoder_forward.10} parent=5 // pred_fallthru
      _
  $region6: #{encoder_forward.10} parent=0 // loop_footer
    %s12 = sadd.s32 1, %s8
  $region7: #{encoder_forward.10} parent=0 // loop_footer_branch
    %7 = sbr.rel target = $region3
  $region8: #{encoder_forward.10} parent=0 // loop_exit
    _

// kernel: encoder_forward.9
$region0: #{encoder_forward.9}
  #allocation0 [shape = 'u32[]', space=smem, size = 0x4, offset = 0x4, fixed_abs, tag = 'smem constant byte address 0x4 - core index']
  #allocation1 [shape = 'u32[144,128]{1,0:T(1,128)}', space=vmem, size = 0x12000, scoped, tag = 'internal scratch']
  %s0 = inlined_call_operand.vmem [shape: bf16[2,336,4], index: 0, kind: input, shape index: {}]
  %s1 = inlined_call_operand.vmem [shape: bf16[9,4,4], index: 1, kind: input, shape index: {}]
  %s2 = inlined_call_operand.vmem [shape: bf16[2,288,4], index: 2, kind: output, shape index: {}]
  %s3 = sld [smem:[#allocation0]]
  $region41: #{encoder_forward.9} parent=0
    _
  %s5 = ssub.s32 1, %s3
  %s6 = scalar_select 0, %s5, %s3
  loop: start=0, step=1, limit=4
  $region2: #{encoder_forward.9} parent=0 // loop_pre_header
    _
  $region3: #{encoder_forward.9} parent=0 // loop_header
    %s8 = sphi 0, %s12
    %p9 = scmp.ge.s32.totalorder %s8, 4
    %s18 = sphi 0, %s20
    %s21 = sphi 0, %s18
    %s22 = sphi 0, %s21
    %s38 = sphi 0, %s22
    %s42 = sphi 0, %s42
    %s44 = sphi 0, %s42
    %s45 = sphi 0, %s44
    %s59 = sphi 0, %s45
    %s65 = sphi 0, %s67
    %s68 = sphi 0, %s65
    %s69 = sphi 0, %s68
    %s85 = sphi 0, %s69
  $region4: #{encoder_forward.9} parent=0 // loop_header_branch
    %11 = sbr.rel (%p9) target = $region8
  $region5: #{encoder_forward.9} parent=0 // loop_body
    %s13 = ssub.s32 %s8, 1
    %s14 = ssub.s32 %s8, 2
    %s15 = sadd.s32 %s8, 1
    %s16 = ssub.s32 %s8, %s15
    %p17 = scmp.eq.s32.totalorder %s16, 0
    %s19 = sadd.s32 %s18, 1
    %s20 = scalar_select %p17, %s18, %s19
    %p23 = pneg %p17
    %p24 = scmp.eq.s32.totalorder %s8, 1
    %p25 = por %p23, %p24
    %p26 = scmp.ne.s32.totalorder %s18, %s21
    %p27 = scmp.eq.s32.totalorder %s8, 0
    %p28 = por %p26, %p27
    %p29 = scmp.ne.s32.totalorder %s18, %s21
    %p30 = scmp.eq.s32.totalorder %s13, 1
    %p31 = por %p29, %p30
    %p32 = scmp.ne.s32.totalorder %s21, %s22
    %p33 = scmp.eq.s32.totalorder %s13, 0
    %p34 = por %p32, %p33
    %p35 = scmp.ne.s32.totalorder %s21, %s22
    %p36 = scmp.eq.s32.totalorder %s14, 1
    %p37 = por %p35, %p36
    %p39 = scmp.ne.s32.totalorder %s22, %s38
    %p40 = scmp.eq.s32.totalorder %s14, 0
    %p41 = por %p39, %p40
    %s43 = sadd.s32 %s42, 1
    %p46 = scmp.eq.s32.totalorder %s8, 1
    %p47 = scmp.ne.s32.totalorder %s42, %s44
    %p48 = scmp.eq.s32.totalorder %s8, 0
    %p49 = por %p47, %p48
    %p50 = scmp.ne.s32.totalorder %s42, %s44
    %p51 = scmp.eq.s32.totalorder %s13, 1
    %p52 = por %p50, %p51
    %p53 = scmp.ne.s32.totalorder %s44, %s45
    %p54 = scmp.eq.s32.totalorder %s13, 0
    %p55 = por %p53, %p54
    %p56 = scmp.ne.s32.totalorder %s44, %s45
    %p57 = scmp.eq.s32.totalorder %s14, 1
    %p58 = por %p56, %p57
    %p60 = scmp.ne.s32.totalorder %s45, %s59
    %p61 = scmp.eq.s32.totalorder %s14, 0
    %p62 = por %p60, %p61
    %s63 = ssub.s32 %s8, %s15
    %p64 = scmp.eq.s32.totalorder %s63, 0
    %s66 = sadd.s32 %s65, 1
    %s67 = scalar_select %p64, %s65, %s66
    %p70 = pneg %p64
    %p71 = scmp.eq.s32.totalorder %s8, 1
    %p72 = por %p70, %p71
    %p73 = scmp.ne.s32.totalorder %s65, %s68
    %p74 = scmp.eq.s32.totalorder %s8, 0
    %p75 = por %p73, %p74
    %p76 = scmp.ne.s32.totalorder %s65, %s68
    %p77 = scmp.eq.s32.totalorder %s13, 1
    %p78 = por %p76, %p77
    %p79 = scmp.ne.s32.totalorder %s68, %s69
    %p80 = scmp.eq.s32.totalorder %s13, 0
    %p81 = por %p79, %p80
    %p82 = scmp.ne.s32.totalorder %s68, %s69
    %p83 = scmp.eq.s32.totalorder %s14, 1
    %p84 = por %p82, %p83
    %p86 = scmp.ne.s32.totalorder %s69, %s85
    %p87 = scmp.eq.s32.totalorder %s14, 0
    %p88 = por %p86, %p87
    %p89 = scmp.le.s32.totalorder 1, %s8
    %p90 = scmp.lt.s32.totalorder %s8, 3
    %p91 = pnand %p89, %p90
    %p92 = pneg %p91
    // Predicated region
    $region9: #{encoder_forward.9} parent=5 // pred_check
      _
    $region10: #{encoder_forward.9} parent=5 // pred_check_branch
      %94 = sbr.rel (%p91) target = $region12
    $region11: #{encoder_forward.9} parent=5 // pred_region
      %s95 = ssub.s32 %s8, 1
      // Predicated region
      $region13: #{encoder_forward.9} parent=11 // pred_check
        %p96 = pneg %p55
      $region14: #{encoder_forward.9} parent=11 // pred_check_branch
        %98 = sbr.rel (%p96) target = $region16
      $region15: #{encoder_forward.9} parent=11 // pred_region
        _
      $region16: #{encoder_forward.9} parent=11 // pred_fallthru
        _
    $region12: #{encoder_forward.9} parent=5 // pred_fallthru
      _
    %p99 = scmp.lt.s32.totalorder %s8, 2
    // Predicated region
    $region17: #{encoder_forward.9} parent=5 // pred_check
      %p100 = pneg %p99
    $region18: #{encoder_forward.9} parent=5 // pred_check_branch
      %102 = sbr.rel (%p100) target = $region20
    $region19: #{encoder_forward.9} parent=5 // pred_region
      // Predicated region
      $region21: #{encoder_forward.9} parent=19 // pred_check
        %p103 = pneg %p28
      $region22: #{encoder_forward.9} parent=19 // pred_check_branch
        %105 = sbr.rel (%p103) target = $region24
      $region23: #{encoder_forward.9} parent=19 // pred_region
        %p106 = scmp.lt.s32.totalorder %s8, 1
        %s107 = scalar_select %p106, %s8, 1
        %s108 = smul.addr %s107, 42
        %s109 = smul.addr %s108, 4
        %s110 = scalar_lea.vmem %s0, %s109
      $region24: #{encoder_forward.9} parent=19 // pred_fallthru
        _
    $region20: #{encoder_forward.9} parent=5 // pred_fallthru
      _
    %p111 = scmp.le.s32.totalorder 1, %s8
    %p112 = scmp.lt.s32.totalorder %s8, 3
    %p113 = pnand %p111, %p112
    %p114 = pneg %p113
    // Predicated region
    $region25: #{encoder_forward.9} parent=5 // pred_check
      _
    $region26: #{encoder_forward.9} parent=5 // pred_check_branch
      %116 = sbr.rel (%p113) target = $region28
    $region27: #{encoder_forward.9} parent=5 // pred_region
      %s117 = ssub.s32 %s8, 1
      %p118 = scmp.lt.s32.totalorder %s13, 1
      %s119 = scalar_select %p118, %s13, 1
      %s120 = smul.addr %s119, 42
      %s121 = smul.addr %s120, 4
      %s122 = scalar_lea.vmem %s0, %s121
      %p123 = pneg %p34
      %p124 = pneg %p31
      %p125 = pneg %p55
      %p126 = pneg %p52
      %p127 = pneg %p81
      %p128 = pneg %p78
      %p129 = scmp.lt.s32.totalorder %s13, 1
      %s130 = scalar_select %p129, %s13, 1
      %s131 = smul.addr %s130, 36
      %s132 = smul.addr %s131, 4
      %s133 = scalar_lea.vmem %s2, %s132
      %p134 = scmp.lt.s32.totalorder %s13, 1
      %s135 = scalar_select %p134, %s13, 1
      %s136 = smul.addr %s135, 42
      %s137 = smul.addr %s136, 4
      %s138 = scalar_lea.vmem %s0, %s137
      %p139 = scmp.lt.s32.totalorder %s13, 1
      %s140 = scalar_select %p139, %s13, 1
      %s141 = smul.addr %s140, 36
      %s142 = smul.addr %s141, 4
      %s143 = scalar_lea.vmem %s2, %s142
      %v145 = vld [vmem:[%s138] sm:$0xf]
      %v146 = vld [vmem:[%s138 + $0x4] sm:$0xf]
      %v147 = vld [vmem:[%s138 + $0x8] sm:$0xf]
      %v148 = vld [vmem:[%s138 + $0xc] sm:$0xf]
      %v149 = vld [vmem:[%s138 + $0x10] sm:$0xf]
      %v150 = vld [vmem:[%s138 + $0x14] sm:$0xf]
      %v151 = vld [vmem:[%s138 + $0x18] sm:$0xf]
      %v152 = vld [vmem:[%s138 + $0x1c] sm:$0xf]
      %v153 = vld [vmem:[%s138 + $0x20] sm:$0xf]
      %v154 = vld [vmem:[%s138 + $0x24] sm:$0xf]
      %v155 = vld [vmem:[%s138 + $0x28] sm:$0xf]
      %v156 = vld [vmem:[%s138 + $0x2c] sm:$0xf]
      %v157 = vld [vmem:[%s138 + $0x30] sm:$0xf]
      %v158 = vld [vmem:[%s138 + $0x34] sm:$0xf]
      %v159 = vld [vmem:[%s138 + $0x38] sm:$0xf]
      %v160 = vld [vmem:[%s138 + $0x3c] sm:$0xf]
      %v161 = vld [vmem:[%s138 + $0x40] sm:$0xf]
      %v162 = vld [vmem:[%s138 + $0x44] sm:$0xf]
      %v163 = vld [vmem:[%s138 + $0x48] sm:$0xf]
      %v164 = vld [vmem:[%s138 + $0x4c] sm:$0xf]
      %v165 = vld [vmem:[%s138 + $0x50] sm:$0xf]
      %v166 = vld [vmem:[%s138 + $0x54] sm:$0xf]
      %v167 = vld [vmem:[%s138 + $0x58] sm:$0xf]
      %v168 = vld [vmem:[%s138 + $0x5c] sm:$0xf]
      %v169 = vld [vmem:[%s138 + $0x60] sm:$0xf]
      %v170 = vld [vmem:[%s138 + $0x64] sm:$0xf]
      %v171 = vld [vmem:[%s138 + $0x68] sm:$0xf]
      %v172 = vld [vmem:[%s138 + $0x6c] sm:$0xf]
      %v173 = vld [vmem:[%s138 + $0x70] sm:$0xf]
      %v174 = vld [vmem:[%s138 + $0x74] sm:$0xf]
      %v175 = vld [vmem:[%s138 + $0x78] sm:$0xf]
      %v176 = vld [vmem:[%s138 + $0x7c] sm:$0xf]
      %v177 = vld [vmem:[%s138 + $0x80] sm:$0xf]
      %v178 = vld [vmem:[%s138 + $0x84] sm:$0xf]
      %v179 = vld [vmem:[%s138 + $0x88] sm:$0xf]
      %v180 = vld [vmem:[%s138 + $0x8c] sm:$0xf]
      %v181 = vld [vmem:[%s1] sm:$0x3]
      %v182 = vld [vmem:[%s138 + $0x90] sm:$0x1]
      %s183 = scalar_lea.vmem %s1, 2
      %v184 = vld [vmem:[%s183] sm:$0x3]
      %v222 = vunpack.c.l.b16 %v145
      %v223 = vunpack.c.l.b16 %v146
      %v224 = vunpack.c.l.b16 %v147
      %v225 = vunpack.c.l.b16 %v148
      %v226 = vunpack.c.l.b16 %v149
      %v227 = vunpack.c.l.b16 %v150
      %v228 = vunpack.c.l.b16 %v151
      %v229 = vunpack.c.l.b16 %v152
      %v230 = vunpack.c.l.b16 %v153
      %v231 = vunpack.c.l.b16 %v154
      %v232 = vunpack.c.l.b16 %v155
      %v233 = vunpack.c.l.b16 %v156
      %v234 = vunpack.c.l.b16 %v157
      %v235 = vunpack.c.l.b16 %v158
      %v236 = vunpack.c.l.b16 %v159
      %v237 = vunpack.c.l.b16 %v160
      %v238 = vunpack.c.l.b16 %v161
      %v239 = vunpack.c.l.b16 %v162
      %v240 = vunpack.c.l.b16 %v163
      %v241 = vunpack.c.l.b16 %v164
      %v242 = vunpack.c.l.b16 %v165
      %v243 = vunpack.c.l.b16 %v166
      %v244 = vunpack.c.l.b16 %v167
      %v245 = vunpack.c.l.b16 %v168
      %v246 = vunpack.c.l.b16 %v169
      %v247 = vunpack.c.l.b16 %v170
      %v248 = vunpack.c.l.b16 %v171
      %v249 = vunpack.c.l.b16 %v172
      %v250 = vunpack.c.l.b16 %v173
      %v251 = vunpack.c.l.b16 %v174
      %v252 = vunpack.c.l.b16 %v175
      %v253 = vunpack.c.l.b16 %v176
      %v254 = vunpack.c.l.b16 %v177
      %v255 = vunpack.c.l.b16 %v178
      %v256 = vunpack.c.l.b16 %v179
      %v257 = vunpack.c.l.b16 %v180
      %v258 = vunpack.c.l.b16 %v182
      %v259 = vpack.c.b16 %v223, %v222
      %v260 = vpack.c.b16 %v225, %v224
      %v261 = vpack.c.b16 %v227, %v226
      %v262 = vpack.c.b16 %v229, %v228
      %v263 = vpack.c.b16 %v231, %v230
      %v264 = vpack.c.b16 %v233, %v232
      %v265 = vpack.c.b16 %v235, %v234
      %v266 = vpack.c.b16 %v237, %v236
      %v267 = vpack.c.b16 %v239, %v238
      %v268 = vpack.c.b16 %v241, %v240
      %v269 = vpack.c.b16 %v243, %v242
      %v270 = vpack.c.b16 %v245, %v244
      %v271 = vpack.c.b16 %v247, %v246
      %v272 = vpack.c.b16 %v249, %v248
      %v273 = vpack.c.b16 %v251, %v250
      %v274 = vpack.c.b16 %v253, %v252
      %v275 = vpack.c.b16 %v255, %v254
      %v276 = vpack.c.b16 %v257, %v256
      %v277 = vpack.c.b16 %v258, %v258
      %vm278 = vsmask.f32 7424
      %v280 = vshrl.u32 %v259, 16
      %v282 = vshll.u32 %v259, 16
      %v284 = vrot.slane %v282, 1
      %v285 = vor.u32 %v280, %v284
      %v287 = vshll.u32 %v260, 16
      %v289 = vrot.slane %v287, 1
      %v290 = vsel %vm278, %v285, %v289
      %v291 = vshrl.u32 %v260, 16
      %v293 = vor.u32 %v291, %v289
      %v295 = vshll.u32 %v261, 16
      %v297 = vrot.slane %v295, 1
      %v298 = vsel %vm278, %v293, %v297
      %v299 = vshrl.u32 %v261, 16
      %v301 = vor.u32 %v299, %v297
      %v303 = vshll.u32 %v262, 16
      %v305 = vrot.slane %v303, 1
      %v306 = vsel %vm278, %v301, %v305
      %v307 = vshrl.u32 %v262, 16
      %v309 = vor.u32 %v307, %v305
      %v311 = vshll.u32 %v263, 16
      %v313 = vrot.slane %v311, 1
      %v314 = vsel %vm278, %v309, %v313
      %v315 = vshrl.u32 %v263, 16
      %v317 = vor.u32 %v315, %v313
      %v319 = vshll.u32 %v264, 16
      %v321 = vrot.slane %v319, 1
      %v322 = vsel %vm278, %v317, %v321
      %v323 = vshrl.u32 %v264, 16
      %v325 = vor.u32 %v323, %v321
      %v327 = vshll.u32 %v265, 16
      %v329 = vrot.slane %v327, 1
      %v330 = vsel %vm278, %v325, %v329
      %v331 = vshrl.u32 %v265, 16
      %v333 = vor.u32 %v331, %v329
      %v335 = vshll.u32 %v266, 16
      %v337 = vrot.slane %v335, 1
      %v338 = vsel %vm278, %v333, %v337
      %v339 = vshrl.u32 %v266, 16
      %v341 = vor.u32 %v339, %v337
      %v343 = vshll.u32 %v267, 16
      %v345 = vrot.slane %v343, 1
      %v346 = vsel %vm278, %v341, %v345
      %v347 = vshrl.u32 %v267, 16
      %v349 = vor.u32 %v347, %v345
      %v351 = vshll.u32 %v268, 16
      %v353 = vrot.slane %v351, 1
      %v354 = vsel %vm278, %v349, %v353
      %v355 = vshrl.u32 %v268, 16
      %v357 = vor.u32 %v355, %v353
      %v359 = vshll.u32 %v269, 16
      %v361 = vrot.slane %v359, 1
      %v362 = vsel %vm278, %v357, %v361
      %v363 = vshrl.u32 %v269, 16
      %v365 = vor.u32 %v363, %v361
      %v367 = vshll.u32 %v270, 16
      %v369 = vrot.slane %v367, 1
      %v370 = vsel %vm278, %v365, %v369
      %v371 = vshrl.u32 %v270, 16
      %v373 = vor.u32 %v371, %v369
      %v375 = vshll.u32 %v271, 16
      %v377 = vrot.slane %v375, 1
      %v378 = vsel %vm278, %v373, %v377
      %v379 = vshrl.u32 %v271, 16
      %v381 = vor.u32 %v379, %v377
      %v383 = vshll.u32 %v272, 16
      %v385 = vrot.slane %v383, 1
      %v386 = vsel %vm278, %v381, %v385
      %v387 = vshrl.u32 %v272, 16
      %v389 = vor.u32 %v387, %v385
      %v391 = vshll.u32 %v273, 16
      %v393 = vrot.slane %v391, 1
      %v394 = vsel %vm278, %v389, %v393
      %v395 = vshrl.u32 %v273, 16
      %v397 = vor.u32 %v395, %v393
      %v399 = vshll.u32 %v274, 16
      %v401 = vrot.slane %v399, 1
      %v402 = vsel %vm278, %v397, %v401
      %v403 = vshrl.u32 %v274, 16
      %v405 = vor.u32 %v403, %v401
      %v407 = vshll.u32 %v275, 16
      %v409 = vrot.slane %v407, 1
      %v410 = vsel %vm278, %v405, %v409
      %v411 = vshrl.u32 %v275, 16
      %v413 = vor.u32 %v411, %v409
      %v415 = vshll.u32 %v276, 16
      %v417 = vrot.slane %v415, 1
      %v418 = vsel %vm278, %v413, %v417
      %v419 = vshrl.u32 %v276, 16
      %v421 = vor.u32 %v419, %v417
      %v423 = vshll.u32 %v277, 16
      %v425 = vrot.slane %v423, 1
      %v426 = vsel %vm278, %v421, %v425
      %vm427 = vcmask 31744
      %v429 = vsel %vm427, %v290, 0
      %v432 = vsel %vm427, %v298, 0
      %v435 = vsel %vm427, %v306, 0
      %v438 = vsel %vm427, %v314, 0
      %v441 = vsel %vm427, %v322, 0
      %v444 = vsel %vm427, %v330, 0
      %v447 = vsel %vm427, %v338, 0
      %v450 = vsel %vm427, %v346, 0
      %v453 = vsel %vm427, %v354, 0
      %v456 = vsel %vm427, %v362, 0
      %v459 = vsel %vm427, %v370, 0
      %v462 = vsel %vm427, %v378, 0
      %v465 = vsel %vm427, %v386, 0
      %v468 = vsel %vm427, %v394, 0
      %v471 = vsel %vm427, %v402, 0
      %v474 = vsel %vm427, %v410, 0
      %v477 = vsel %vm427, %v418, 0
      %v480 = vsel %vm427, %v426, 0
      %vm482 = vcmask 1041408
      %v484 = vsel %vm482, %v184, 0
      %486 = vmatprep.subr.bf16.mxu0 0
      %487 = vmatpush1.bf16.msra.mxu0 0
      %488 = vmatprep.subr.bf16.mxu0 0
      %489 = vmatpush1.bf16.msra.mxu0 0
      %490 = vmatprep.subr.bf16.mxu0 0
      %491 = vmatpush1.bf16.msra.mxu0 0
      %492 = vmatprep.subr.bf16.mxu0 0
      %493 = vmatpush1.bf16.msra.mxu0 0
      %494 = vmatprep.subr.bf16.mxu0 0
      %495 = vmatpush1.bf16.msra.mxu0 0
      %496 = vmatprep.subr.bf16.mxu0 0
      %497 = vmatpush1.bf16.msra.mxu0 0
      %498 = vmatprep.subr.bf16.mxu0 0
      %499 = vmatpush1.bf16.msra.mxu0 0
      %500 = vmatprep.subr.bf16.mxu0 0
      %501 = vmatpush1.bf16.msra.mxu0 %v484
      %502 = vmatprep.subr.bf16.mxu0 0
      %503 = vmatpush2.bf16.msra.mxu0 0
      %504 = vmatprep.subr.bf16.mxu0 0
      %505 = vmatpush2.bf16.msra.mxu0 0
      %506 = vmatprep.subr.bf16.mxu0 0
      %507 = vmatpush2.bf16.msra.mxu0 0
      %508 = vmatprep.subr.bf16.mxu0 0
      %509 = vmatpush2.bf16.msra.mxu0 0
      %510 = vmatprep.subr.bf16.mxu0 0
      %511 = vmatpush2.bf16.msra.mxu0 0
      %512 = vmatprep.subr.bf16.mxu0 0
      %513 = vmatpush2.bf16.msra.mxu0 0
      %514 = vmatprep.subr.bf16.mxu0 0
      %515 = vmatpush2.bf16.msra.mxu0 0
      %516 = vmatprep.subr.bf16.mxu0 0
      %517 = vmatpush2.bf16.msra.mxu0 0
      %518 = vmatprep.mubr.bf16.mxu0 0
      %519 = vmatmul.mubr.bf16.gmra.mxu0 %v429
      %v520 = vpop.f32.mrf.mxu0
      %v521 = vadd.f32 0.0, %v520
      %v522 = vpop.f32.mrf.mxu0
      %v523 = vpop.f32.mrf.mxu0
      %v524 = vadd.f32 0.0, %v523
      %v525 = vpop.f32.mrf.mxu0
      %526 = vmatprep.mubr.bf16.mxu0 0
      %527 = vmatmul.mubr.bf16.gmra.mxu0 %v432
      %v528 = vpop.f32.mrf.mxu0
      %v529 = vadd.f32 0.0, %v528
      %v530 = vpop.f32.mrf.mxu0
      %v531 = vpop.f32.mrf.mxu0
      %v532 = vadd.f32 0.0, %v531
      %v533 = vpop.f32.mrf.mxu0
      %534 = vmatprep.mubr.bf16.mxu0 0
      %535 = vmatmul.mubr.bf16.gmra.mxu0 %v435
      %v536 = vpop.f32.mrf.mxu0
      %v537 = vadd.f32 0.0, %v536
      %v538 = vpop.f32.mrf.mxu0
      %v539 = vpop.f32.mrf.mxu0
      %v540 = vadd.f32 0.0, %v539
      %v541 = vpop.f32.mrf.mxu0
      %542 = vmatprep.mubr.bf16.mxu0 0
      %543 = vmatmul.mubr.bf16.gmra.mxu0 %v438
      %v544 = vpop.f32.mrf.mxu0
      %v545 = vadd.f32 0.0, %v544
      %v546 = vpop.f32.mrf.mxu0
      %v547 = vpop.f32.mrf.mxu0
      %v548 = vadd.f32 0.0, %v547
      %v549 = vpop.f32.mrf.mxu0
      %550 = vmatprep.mubr.bf16.mxu0 0
      %551 = vmatmul.mubr.bf16.gmra.mxu0 %v441
      %v552 = vpop.f32.mrf.mxu0
      %v553 = vadd.f32 0.0, %v552
      %v554 = vpop.f32.mrf.mxu0
      %v555 = vpop.f32.mrf.mxu0
      %v556 = vadd.f32 0.0, %v555
      %v557 = vpop.f32.mrf.mxu0
      %558 = vmatprep.mubr.bf16.mxu0 0
      %559 = vmatmul.mubr.bf16.gmra.mxu0 %v444
      %v560 = vpop.f32.mrf.mxu0
      %v561 = vadd.f32 0.0, %v560
      %v562 = vpop.f32.mrf.mxu0
      %v563 = vpop.f32.mrf.mxu0
      %v564 = vadd.f32 0.0, %v563
      %v565 = vpop.f32.mrf.mxu0
      %566 = vmatprep.mubr.bf16.mxu0 0
      %567 = vmatmul.mubr.bf16.gmra.mxu0 %v447
      %v568 = vpop.f32.mrf.mxu0
      %v569 = vadd.f32 0.0, %v568
      %v570 = vpop.f32.mrf.mxu0
      %v571 = vpop.f32.mrf.mxu0
      %v572 = vadd.f32 0.0, %v571
      %v573 = vpop.f32.mrf.mxu0
      %574 = vmatprep.mubr.bf16.mxu0 0
      %575 = vmatmul.mubr.bf16.gmra.mxu0 %v450
      %v576 = vpop.f32.mrf.mxu0
      %v577 = vadd.f32 0.0, %v576
      %v578 = vpop.f32.mrf.mxu0
      %v579 = vpop.f32.mrf.mxu0
      %v580 = vadd.f32 0.0, %v579
      %v581 = vpop.f32.mrf.mxu0
      %582 = vmatprep.mubr.bf16.mxu0 0
      %583 = vmatmul.mubr.bf16.gmra.mxu0 %v453
      %v584 = vpop.f32.mrf.mxu0
      %v585 = vadd.f32 0.0, %v584
      %v586 = vpop.f32.mrf.mxu0
      %v587 = vpop.f32.mrf.mxu0
      %v588 = vadd.f32 0.0, %v587
      %v589 = vpop.f32.mrf.mxu0
      %590 = vmatprep.mubr.bf16.mxu0 0
      %591 = vmatmul.mubr.bf16.gmra.mxu0 %v456
      %v592 = vpop.f32.mrf.mxu0
      %v593 = vadd.f32 0.0, %v592
      %v594 = vpop.f32.mrf.mxu0
      %v595 = vpop.f32.mrf.mxu0
      %v596 = vadd.f32 0.0, %v595
      %v597 = vpop.f32.mrf.mxu0
      %598 = vmatprep.mubr.bf16.mxu0 0
      %599 = vmatmul.mubr.bf16.gmra.mxu0 %v459
      %v600 = vpop.f32.mrf.mxu0
      %v601 = vadd.f32 0.0, %v600
      %v602 = vpop.f32.mrf.mxu0
      %v603 = vpop.f32.mrf.mxu0
      %v604 = vadd.f32 0.0, %v603
      %v605 = vpop.f32.mrf.mxu0
      %606 = vmatprep.mubr.bf16.mxu0 0
      %607 = vmatmul.mubr.bf16.gmra.mxu0 %v462
      %v608 = vpop.f32.mrf.mxu0
      %v609 = vadd.f32 0.0, %v608
      %v610 = vpop.f32.mrf.mxu0
      %v611 = vpop.f32.mrf.mxu0
      %v612 = vadd.f32 0.0, %v611
      %v613 = vpop.f32.mrf.mxu0
      %614 = vmatprep.mubr.bf16.mxu0 0
      %615 = vmatmul.mubr.bf16.gmra.mxu0 %v465
      %v616 = vpop.f32.mrf.mxu0
      %v617 = vadd.f32 0.0, %v616
      %v618 = vpop.f32.mrf.mxu0
      %v619 = vpop.f32.mrf.mxu0
      %v620 = vadd.f32 0.0, %v619
      %v621 = vpop.f32.mrf.mxu0
      %622 = vmatprep.mubr.bf16.mxu0 0
      %623 = vmatmul.mubr.bf16.gmra.mxu0 %v468
      %v624 = vpop.f32.mrf.mxu0
      %v625 = vadd.f32 0.0, %v624
      %v626 = vpop.f32.mrf.mxu0
      %v627 = vpop.f32.mrf.mxu0
      %v628 = vadd.f32 0.0, %v627
      %v629 = vpop.f32.mrf.mxu0
      %630 = vmatprep.mubr.bf16.mxu0 0
      %631 = vmatmul.mubr.bf16.gmra.mxu0 %v471
      %v632 = vpop.f32.mrf.mxu0
      %v633 = vadd.f32 0.0, %v632
      %v634 = vpop.f32.mrf.mxu0
      %v635 = vpop.f32.mrf.mxu0
      %v636 = vadd.f32 0.0, %v635
      %v637 = vpop.f32.mrf.mxu0
      %638 = vmatprep.mubr.bf16.mxu0 0
      %639 = vmatmul.mubr.bf16.gmra.mxu0 %v474
      %v640 = vpop.f32.mrf.mxu0
      %v641 = vadd.f32 0.0, %v640
      %v642 = vpop.f32.mrf.mxu0
      %v643 = vpop.f32.mrf.mxu0
      %v644 = vadd.f32 0.0, %v643
      %v645 = vpop.f32.mrf.mxu0
      %646 = vmatprep.mubr.bf16.mxu0 0
      %647 = vmatmul.mubr.bf16.gmra.mxu0 %v477
      %v648 = vpop.f32.mrf.mxu0
      %v649 = vadd.f32 0.0, %v648
      %v650 = vpop.f32.mrf.mxu0
      %v651 = vpop.f32.mrf.mxu0
      %v652 = vadd.f32 0.0, %v651
      %v653 = vpop.f32.mrf.mxu0
      %654 = vmatprep.mubr.bf16.mxu0 0
      %655 = vmatmul.mubr.bf16.gmra.mxu0 %v480
      %v656 = vpop.f32.mrf.mxu0
      %v657 = vadd.f32 0.0, %v656
      %v658 = vpop.f32.mrf.mxu0
      %v659 = vpop.f32.mrf.mxu0
      %v660 = vadd.f32 0.0, %v659
      %v661 = vpop.f32.mrf.mxu0
      %662 = vdwg.mxu0
      %v663 = vsel %vm427, %v259, 0
      %v665 = vsel %vm427, %v260, 0
      %v667 = vsel %vm427, %v261, 0
      %v669 = vsel %vm427, %v262, 0
      %v671 = vsel %vm427, %v263, 0
      %v673 = vsel %vm427, %v264, 0
      %v675 = vsel %vm427, %v265, 0
      %v677 = vsel %vm427, %v266, 0
      %v679 = vsel %vm427, %v267, 0
      %v681 = vsel %vm427, %v268, 0
      %v683 = vsel %vm427, %v269, 0
      %v685 = vsel %vm427, %v270, 0
      %v687 = vsel %vm427, %v271, 0
      %v689 = vsel %vm427, %v272, 0
      %v691 = vsel %vm427, %v273, 0
      %v693 = vsel %vm427, %v274, 0
      %v695 = vsel %vm427, %v275, 0
      %v697 = vsel %vm427, %v276, 0
      %v700 = vsel %vm482, %v181, 0
      %702 = vmatprep.subr.bf16.mxu0 0
      %703 = vmatpush1.bf16.msra.mxu0 0
      %704 = vmatprep.subr.bf16.mxu0 0
      %705 = vmatpush1.bf16.msra.mxu0 0
      %706 = vmatprep.subr.bf16.mxu0 0
      %707 = vmatpush1.bf16.msra.mxu0 0
      %708 = vmatprep.subr.bf16.mxu0 0
      %709 = vmatpush1.bf16.msra.mxu0 0
      %710 = vmatprep.subr.bf16.mxu0 0
      %711 = vmatpush1.bf16.msra.mxu0 0
      %712 = vmatprep.subr.bf16.mxu0 0
      %713 = vmatpush1.bf16.msra.mxu0 0
      %714 = vmatprep.subr.bf16.mxu0 0
      %715 = vmatpush1.bf16.msra.mxu0 0
      %716 = vmatprep.subr.bf16.mxu0 0
      %717 = vmatpush1.bf16.msra.mxu0 %v700
      %718 = vmatprep.subr.bf16.mxu0 0
      %719 = vmatpush2.bf16.msra.mxu0 0
      %720 = vmatprep.subr.bf16.mxu0 0
      %721 = vmatpush2.bf16.msra.mxu0 0
      %722 = vmatprep.subr.bf16.mxu0 0
      %723 = vmatpush2.bf16.msra.mxu0 0
      %724 = vmatprep.subr.bf16.mxu0 0
      %725 = vmatpush2.bf16.msra.mxu0 0
      %726 = vmatprep.subr.bf16.mxu0 0
      %727 = vmatpush2.bf16.msra.mxu0 0
      %728 = vmatprep.subr.bf16.mxu0 0
      %729 = vmatpush2.bf16.msra.mxu0 0
      %730 = vmatprep.subr.bf16.mxu0 0
      %731 = vmatpush2.bf16.msra.mxu0 0
      %732 = vmatprep.subr.bf16.mxu0 0
      %733 = vmatpush2.bf16.msra.mxu0 0
      %734 = vmatprep.mubr.bf16.mxu0 0
      %735 = vmatmul.mubr.bf16.gmra.mxu0 %v663
      %v736 = vpop.f32.mrf.mxu0
      %v737 = vadd.f32 %v521, %v736
      %v738 = vpop.f32.mrf.mxu0
      %v739 = vpop.f32.mrf.mxu0
      %v740 = vadd.f32 %v524, %v739
      %v741 = vpop.f32.mrf.mxu0
      %742 = vmatprep.mubr.bf16.mxu0 0
      %743 = vmatmul.mubr.bf16.gmra.mxu0 %v665
      %v744 = vpop.f32.mrf.mxu0
      %v745 = vadd.f32 %v529, %v744
      %v746 = vpop.f32.mrf.mxu0
      %v747 = vpop.f32.mrf.mxu0
      %v748 = vadd.f32 %v532, %v747
      %v749 = vpop.f32.mrf.mxu0
      %750 = vmatprep.mubr.bf16.mxu0 0
      %751 = vmatmul.mubr.bf16.gmra.mxu0 %v667
      %v752 = vpop.f32.mrf.mxu0
      %v753 = vadd.f32 %v537, %v752
      %v754 = vpop.f32.mrf.mxu0
      %v755 = vpop.f32.mrf.mxu0
      %v756 = vadd.f32 %v540, %v755
      %v757 = vpop.f32.mrf.mxu0
      %758 = vmatprep.mubr.bf16.mxu0 0
      %759 = vmatmul.mubr.bf16.gmra.mxu0 %v669
      %v760 = vpop.f32.mrf.mxu0
      %v761 = vadd.f32 %v545, %v760
      %v762 = vpop.f32.mrf.mxu0
      %v763 = vpop.f32.mrf.mxu0
      %v764 = vadd.f32 %v548, %v763
      %v765 = vpop.f32.mrf.mxu0
      %766 = vmatprep.mubr.bf16.mxu0 0
      %767 = vmatmul.mubr.bf16.gmra.mxu0 %v671
      %v768 = vpop.f32.mrf.mxu0
      %v769 = vadd.f32 %v553, %v768
      %v770 = vpop.f32.mrf.mxu0
      %v771 = vpop.f32.mrf.mxu0
      %v772 = vadd.f32 %v556, %v771
      %v773 = vpop.f32.mrf.mxu0
      %774 = vmatprep.mubr.bf16.mxu0 0
      %775 = vmatmul.mubr.bf16.gmra.mxu0 %v673
      %v776 = vpop.f32.mrf.mxu0
      %v777 = vadd.f32 %v561, %v776
      %v778 = vpop.f32.mrf.mxu0
      %v779 = vpop.f32.mrf.mxu0
      %v780 = vadd.f32 %v564, %v779
      %v781 = vpop.f32.mrf.mxu0
      %782 = vmatprep.mubr.bf16.mxu0 0
      %783 = vmatmul.mubr.bf16.gmra.mxu0 %v675
      %v784 = vpop.f32.mrf.mxu0
      %v785 = vadd.f32 %v569, %v784
      %v786 = vpop.f32.mrf.mxu0
      %v787 = vpop.f32.mrf.mxu0
      %v788 = vadd.f32 %v572, %v787
      %v789 = vpop.f32.mrf.mxu0
      %790 = vmatprep.mubr.bf16.mxu0 0
      %791 = vmatmul.mubr.bf16.gmra.mxu0 %v677
      %v792 = vpop.f32.mrf.mxu0
      %v793 = vadd.f32 %v577, %v792
      %v794 = vpop.f32.mrf.mxu0
      %v795 = vpop.f32.mrf.mxu0
      %v796 = vadd.f32 %v580, %v795
      %v797 = vpop.f32.mrf.mxu0
      %798 = vmatprep.mubr.bf16.mxu0 0
      %799 = vmatmul.mubr.bf16.gmra.mxu0 %v679
      %v800 = vpop.f32.mrf.mxu0
      %v801 = vadd.f32 %v585, %v800
      %v802 = vpop.f32.mrf.mxu0
      %v803 = vpop.f32.mrf.mxu0
      %v804 = vadd.f32 %v588, %v803
      %v805 = vpop.f32.mrf.mxu0
      %806 = vmatprep.mubr.bf16.mxu0 0
      %807 = vmatmul.mubr.bf16.gmra.mxu0 %v681
      %v808 = vpop.f32.mrf.mxu0
      %v809 = vadd.f32 %v593, %v808
      %v810 = vpop.f32.mrf.mxu0
      %v811 = vpop.f32.mrf.mxu0
      %v812 = vadd.f32 %v596, %v811
      %v813 = vpop.f32.mrf.mxu0
      %814 = vmatprep.mubr.bf16.mxu0 0
      %815 = vmatmul.mubr.bf16.gmra.mxu0 %v683
      %v816 = vpop.f32.mrf.mxu0
      %v817 = vadd.f32 %v601, %v816
      %v818 = vpop.f32.mrf.mxu0
      %v819 = vpop.f32.mrf.mxu0
      %v820 = vadd.f32 %v604, %v819
      %v821 = vpop.f32.mrf.mxu0
      %822 = vmatprep.mubr.bf16.mxu0 0
      %823 = vmatmul.mubr.bf16.gmra.mxu0 %v685
      %v824 = vpop.f32.mrf.mxu0
      %v825 = vadd.f32 %v609, %v824
      %v826 = vpop.f32.mrf.mxu0
      %v827 = vpop.f32.mrf.mxu0
      %v828 = vadd.f32 %v612, %v827
      %v829 = vpop.f32.mrf.mxu0
      %830 = vmatprep.mubr.bf16.mxu0 0
      %831 = vmatmul.mubr.bf16.gmra.mxu0 %v687
      %v832 = vpop.f32.mrf.mxu0
      %v833 = vadd.f32 %v617, %v832
      %v834 = vpop.f32.mrf.mxu0
      %v835 = vpop.f32.mrf.mxu0
      %v836 = vadd.f32 %v620, %v835
      %v837 = vpop.f32.mrf.mxu0
      %838 = vmatprep.mubr.bf16.mxu0 0
      %839 = vmatmul.mubr.bf16.gmra.mxu0 %v689
      %v840 = vpop.f32.mrf.mxu0
      %v841 = vadd.f32 %v625, %v840
      %v842 = vpop.f32.mrf.mxu0
      %v843 = vpop.f32.mrf.mxu0
      %v844 = vadd.f32 %v628, %v843
      %v845 = vpop.f32.mrf.mxu0
      %846 = vmatprep.mubr.bf16.mxu0 0
      %847 = vmatmul.mubr.bf16.gmra.mxu0 %v691
      %v848 = vpop.f32.mrf.mxu0
      %v849 = vadd.f32 %v633, %v848
      %v850 = vpop.f32.mrf.mxu0
      %v851 = vpop.f32.mrf.mxu0
      %v852 = vadd.f32 %v636, %v851
      %v853 = vpop.f32.mrf.mxu0
      %854 = vmatprep.mubr.bf16.mxu0 0
      %855 = vmatmul.mubr.bf16.gmra.mxu0 %v693
      %v856 = vpop.f32.mrf.mxu0
      %v857 = vadd.f32 %v641, %v856
      %v858 = vpop.f32.mrf.mxu0
      %v859 = vpop.f32.mrf.mxu0
      %v860 = vadd.f32 %v644, %v859
      %v861 = vpop.f32.mrf.mxu0
      %862 = vmatprep.mubr.bf16.mxu0 0
      %863 = vmatmul.mubr.bf16.gmra.mxu0 %v695
      %v864 = vpop.f32.mrf.mxu0
      %v865 = vadd.f32 %v649, %v864
      %v866 = vpop.f32.mrf.mxu0
      %v867 = vpop.f32.mrf.mxu0
      %v868 = vadd.f32 %v652, %v867
      %v869 = vpop.f32.mrf.mxu0
      %870 = vmatprep.mubr.bf16.mxu0 0
      %871 = vmatmul.mubr.bf16.gmra.mxu0 %v697
      %v872 = vpop.f32.mrf.mxu0
      %v873 = vadd.f32 %v657, %v872
      %v874 = vpop.f32.mrf.mxu0
      %v875 = vpop.f32.mrf.mxu0
      %v876 = vadd.f32 %v660, %v875
      %v877 = vpop.f32.mrf.mxu0
      %878 = vdwg.mxu0
      %v879 = vld [vmem:[%s138] sm:$0xe]
      %s880 = scalar_lea.vmem %s1, 4
      %v881 = vld [vmem:[%s880] sm:$0x3]
      %v883 = vunpack.c.l.b16 %v879
      %v884 = vpack.c.b16 %v223, %v883
      %vm885 = vcmask 1046528
      %v886 = vrot.slane %v884, 1
      %v887 = vrot.slane %v260, 1
      %v888 = vsel %vm885, %v886, %v887
      %v889 = vrot.slane %v261, 1
      %v890 = vsel %vm885, %v887, %v889
      %v891 = vrot.slane %v262, 1
      %v892 = vsel %vm885, %v889, %v891
      %v893 = vrot.slane %v263, 1
      %v894 = vsel %vm885, %v891, %v893
      %v895 = vrot.slane %v264, 1
      %v896 = vsel %vm885, %v893, %v895
      %v897 = vrot.slane %v265, 1
      %v898 = vsel %vm885, %v895, %v897
      %v899 = vrot.slane %v266, 1
      %v900 = vsel %vm885, %v897, %v899
      %v901 = vrot.slane %v267, 1
      %v902 = vsel %vm885, %v899, %v901
      %v903 = vrot.slane %v268, 1
      %v904 = vsel %vm885, %v901, %v903
      %v905 = vrot.slane %v269, 1
      %v906 = vsel %vm885, %v903, %v905
      %v907 = vrot.slane %v270, 1
      %v908 = vsel %vm885, %v905, %v907
      %v909 = vrot.slane %v271, 1
      %v910 = vsel %vm885, %v907, %v909
      %v911 = vrot.slane %v272, 1
      %v912 = vsel %vm885, %v909, %v911
      %v913 = vrot.slane %v273, 1
      %v914 = vsel %vm885, %v911, %v913
      %v915 = vrot.slane %v274, 1
      %v916 = vsel %vm885, %v913, %v915
      %v917 = vrot.slane %v275, 1
      %v918 = vsel %vm885, %v915, %v917
      %v919 = vrot.slane %v276, 1
      %v920 = vsel %vm885, %v917, %v919
      %v921 = vrot.slane %v277, 1
      %v922 = vsel %vm885, %v919, %v921
      %v924 = vsel %vm427, %v888, 0
      %v927 = vsel %vm427, %v890, 0
      %v930 = vsel %vm427, %v892, 0
      %v933 = vsel %vm427, %v894, 0
      %v936 = vsel %vm427, %v896, 0
      %v939 = vsel %vm427, %v898, 0
      %v942 = vsel %vm427, %v900, 0
      %v945 = vsel %vm427, %v902, 0
      %v948 = vsel %vm427, %v904, 0
      %v951 = vsel %vm427, %v906, 0
      %v954 = vsel %vm427, %v908, 0
      %v957 = vsel %vm427, %v910, 0
      %v960 = vsel %vm427, %v912, 0
      %v963 = vsel %vm427, %v914, 0
      %v966 = vsel %vm427, %v916, 0
      %v969 = vsel %vm427, %v918, 0
      %v972 = vsel %vm427, %v920, 0
      %v975 = vsel %vm427, %v922, 0
      %v978 = vsel %vm482, %v881, 0
      %980 = vmatprep.subr.bf16.mxu0 0
      %981 = vmatpush1.bf16.msra.mxu0 0
      %982 = vmatprep.subr.bf16.mxu0 0
      %983 = vmatpush1.bf16.msra.mxu0 0
      %984 = vmatprep.subr.bf16.mxu0 0
      %985 = vmatpush1.bf16.msra.mxu0 0
      %986 = vmatprep.subr.bf16.mxu0 0
      %987 = vmatpush1.bf16.msra.mxu0 0
      %988 = vmatprep.subr.bf16.mxu0 0
      %989 = vmatpush1.bf16.msra.mxu0 0
      %990 = vmatprep.subr.bf16.mxu0 0
      %991 = vmatpush1.bf16.msra.mxu0 0
      %992 = vmatprep.subr.bf16.mxu0 0
      %993 = vmatpush1.bf16.msra.mxu0 0
      %994 = vmatprep.subr.bf16.mxu0 0
      %995 = vmatpush1.bf16.msra.mxu0 %v978
      %996 = vmatprep.subr.bf16.mxu0 0
      %997 = vmatpush2.bf16.msra.mxu0 0
      %998 = vmatprep.subr.bf16.mxu0 0
      %999 = vmatpush2.bf16.msra.mxu0 0
      %1000 = vmatprep.subr.bf16.mxu0 0
      %1001 = vmatpush2.bf16.msra.mxu0 0
      %1002 = vmatprep.subr.bf16.mxu0 0
      %1003 = vmatpush2.bf16.msra.mxu0 0
      %1004 = vmatprep.subr.bf16.mxu0 0
      %1005 = vmatpush2.bf16.msra.mxu0 0
      %1006 = vmatprep.subr.bf16.mxu0 0
      %1007 = vmatpush2.bf16.msra.mxu0 0
      %1008 = vmatprep.subr.bf16.mxu0 0
      %1009 = vmatpush2.bf16.msra.mxu0 0
      %1010 = vmatprep.subr.bf16.mxu0 0
      %1011 = vmatpush2.bf16.msra.mxu0 0
      %1012 = vmatprep.mubr.bf16.mxu0 0
      %1013 = vmatmul.mubr.bf16.gmra.mxu0 %v924
      %v1014 = vpop.f32.mrf.mxu0
      %v1015 = vadd.f32 0.0, %v1014
      %v1016 = vpop.f32.mrf.mxu0
      %v1017 = vpop.f32.mrf.mxu0
      %v1018 = vadd.f32 0.0, %v1017
      %v1019 = vpop.f32.mrf.mxu0
      %1020 = vmatprep.mubr.bf16.mxu0 0
      %1021 = vmatmul.mubr.bf16.gmra.mxu0 %v927
      %v1022 = vpop.f32.mrf.mxu0
      %v1023 = vadd.f32 0.0, %v1022
      %v1024 = vpop.f32.mrf.mxu0
      %v1025 = vpop.f32.mrf.mxu0
      %v1026 = vadd.f32 0.0, %v1025
      %v1027 = vpop.f32.mrf.mxu0
      %1028 = vmatprep.mubr.bf16.mxu0 0
      %1029 = vmatmul.mubr.bf16.gmra.mxu0 %v930
      %v1030 = vpop.f32.mrf.mxu0
      %v1031 = vadd.f32 0.0, %v1030
      %v1032 = vpop.f32.mrf.mxu0
      %v1033 = vpop.f32.mrf.mxu0
      %v1034 = vadd.f32 0.0, %v1033
      %v1035 = vpop.f32.mrf.mxu0
      %1036 = vmatprep.mubr.bf16.mxu0 0
      %1037 = vmatmul.mubr.bf16.gmra.mxu0 %v933
      %v1038 = vpop.f32.mrf.mxu0
      %v1039 = vadd.f32 0.0, %v1038
      %v1040 = vpop.f32.mrf.mxu0
      %v1041 = vpop.f32.mrf.mxu0
      %v1042 = vadd.f32 0.0, %v1041
      %v1043 = vpop.f32.mrf.mxu0
      %1044 = vmatprep.mubr.bf16.mxu0 0
      %1045 = vmatmul.mubr.bf16.gmra.mxu0 %v936
      %v1046 = vpop.f32.mrf.mxu0
      %v1047 = vadd.f32 0.0, %v1046
      %v1048 = vpop.f32.mrf.mxu0
      %v1049 = vpop.f32.mrf.mxu0
      %v1050 = vadd.f32 0.0, %v1049
      %v1051 = vpop.f32.mrf.mxu0
      %1052 = vmatprep.mubr.bf16.mxu0 0
      %1053 = vmatmul.mubr.bf16.gmra.mxu0 %v939
      %v1054 = vpop.f32.mrf.mxu0
      %v1055 = vadd.f32 0.0, %v1054
      %v1056 = vpop.f32.mrf.mxu0
      %v1057 = vpop.f32.mrf.mxu0
      %v1058 = vadd.f32 0.0, %v1057
      %v1059 = vpop.f32.mrf.mxu0
      %1060 = vmatprep.mubr.bf16.mxu0 0
      %1061 = vmatmul.mubr.bf16.gmra.mxu0 %v942
      %v1062 = vpop.f32.mrf.mxu0
      %v1063 = vadd.f32 0.0, %v1062
      %v1064 = vpop.f32.mrf.mxu0
      %v1065 = vpop.f32.mrf.mxu0
      %v1066 = vadd.f32 0.0, %v1065
      %v1067 = vpop.f32.mrf.mxu0
      %1068 = vmatprep.mubr.bf16.mxu0 0
      %1069 = vmatmul.mubr.bf16.gmra.mxu0 %v945
      %v1070 = vpop.f32.mrf.mxu0
      %v1071 = vadd.f32 0.0, %v1070
      %v1072 = vpop.f32.mrf.mxu0
      %v1073 = vpop.f32.mrf.mxu0
      %v1074 = vadd.f32 0.0, %v1073
      %v1075 = vpop.f32.mrf.mxu0
      %1076 = vmatprep.mubr.bf16.mxu0 0
      %1077 = vmatmul.mubr.bf16.gmra.mxu0 %v948
      %v1078 = vpop.f32.mrf.mxu0
      %v1079 = vadd.f32 0.0, %v1078
      %v1080 = vpop.f32.mrf.mxu0
      %v1081 = vpop.f32.mrf.mxu0
      %v1082 = vadd.f32 0.0, %v1081
      %v1083 = vpop.f32.mrf.mxu0
      %1084 = vmatprep.mubr.bf16.mxu0 0
      %1085 = vmatmul.mubr.bf16.gmra.mxu0 %v951
      %v1086 = vpop.f32.mrf.mxu0
      %v1087 = vadd.f32 0.0, %v1086
      %v1088 = vpop.f32.mrf.mxu0
      %v1089 = vpop.f32.mrf.mxu0
      %v1090 = vadd.f32 0.0, %v1089
      %v1091 = vpop.f32.mrf.mxu0
      %1092 = vmatprep.mubr.bf16.mxu0 0
      %1093 = vmatmul.mubr.bf16.gmra.mxu0 %v954
      %v1094 = vpop.f32.mrf.mxu0
      %v1095 = vadd.f32 0.0, %v1094
      %v1096 = vpop.f32.mrf.mxu0
      %v1097 = vpop.f32.mrf.mxu0
      %v1098 = vadd.f32 0.0, %v1097
      %v1099 = vpop.f32.mrf.mxu0
      %1100 = vmatprep.mubr.bf16.mxu0 0
      %1101 = vmatmul.mubr.bf16.gmra.mxu0 %v957
      %v1102 = vpop.f32.mrf.mxu0
      %v1103 = vadd.f32 0.0, %v1102
      %v1104 = vpop.f32.mrf.mxu0
      %v1105 = vpop.f32.mrf.mxu0
      %v1106 = vadd.f32 0.0, %v1105
      %v1107 = vpop.f32.mrf.mxu0
      %1108 = vmatprep.mubr.bf16.mxu0 0
      %1109 = vmatmul.mubr.bf16.gmra.mxu0 %v960
      %v1110 = vpop.f32.mrf.mxu0
      %v1111 = vadd.f32 0.0, %v1110
      %v1112 = vpop.f32.mrf.mxu0
      %v1113 = vpop.f32.mrf.mxu0
      %v1114 = vadd.f32 0.0, %v1113
      %v1115 = vpop.f32.mrf.mxu0
      %1116 = vmatprep.mubr.bf16.mxu0 0
      %1117 = vmatmul.mubr.bf16.gmra.mxu0 %v963
      %v1118 = vpop.f32.mrf.mxu0
      %v1119 = vadd.f32 0.0, %v1118
      %v1120 = vpop.f32.mrf.mxu0
      %v1121 = vpop.f32.mrf.mxu0
      %v1122 = vadd.f32 0.0, %v1121
      %v1123 = vpop.f32.mrf.mxu0
      %1124 = vmatprep.mubr.bf16.mxu0 0
      %1125 = vmatmul.mubr.bf16.gmra.mxu0 %v966
      %v1126 = vpop.f32.mrf.mxu0
      %v1127 = vadd.f32 0.0, %v1126
      %v1128 = vpop.f32.mrf.mxu0
      %v1129 = vpop.f32.mrf.mxu0
      %v1130 = vadd.f32 0.0, %v1129
      %v1131 = vpop.f32.mrf.mxu0
      %1132 = vmatprep.mubr.bf16.mxu0 0
      %1133 = vmatmul.mubr.bf16.gmra.mxu0 %v969
      %v1134 = vpop.f32.mrf.mxu0
      %v1135 = vadd.f32 0.0, %v1134
      %v1136 = vpop.f32.mrf.mxu0
      %v1137 = vpop.f32.mrf.mxu0
      %v1138 = vadd.f32 0.0, %v1137
      %v1139 = vpop.f32.mrf.mxu0
      %1140 = vmatprep.mubr.bf16.mxu0 0
      %1141 = vmatmul.mubr.bf16.gmra.mxu0 %v972
      %v1142 = vpop.f32.mrf.mxu0
      %v1143 = vadd.f32 0.0, %v1142
      %v1144 = vpop.f32.mrf.mxu0
      %v1145 = vpop.f32.mrf.mxu0
      %v1146 = vadd.f32 0.0, %v1145
      %v1147 = vpop.f32.mrf.mxu0
      %1148 = vmatprep.mubr.bf16.mxu0 0
      %1149 = vmatmul.mubr.bf16.gmra.mxu0 %v975
      %v1150 = vpop.f32.mrf.mxu0
      %v1151 = vadd.f32 0.0, %v1150
      %v1152 = vpop.f32.mrf.mxu0
      %v1153 = vpop.f32.mrf.mxu0
      %v1154 = vadd.f32 0.0, %v1153
      %v1155 = vpop.f32.mrf.mxu0
      %1156 = vdwg.mxu0
      %v1157 = vadd.f32 %v737, %v1015
      %v1158 = vadd.f32 %v740, %v1018
      %v1159 = vadd.f32 %v745, %v1023
      %v1160 = vadd.f32 %v748, %v1026
      %v1161 = vadd.f32 %v753, %v1031
      %v1162 = vadd.f32 %v756, %v1034
      %v1163 = vadd.f32 %v761, %v1039
      %v1164 = vadd.f32 %v764, %v1042
      %v1165 = vadd.f32 %v769, %v1047
      %v1166 = vadd.f32 %v772, %v1050
      %v1167 = vadd.f32 %v777, %v1055
      %v1168 = vadd.f32 %v780, %v1058
      %v1169 = vadd.f32 %v785, %v1063
      %v1170 = vadd.f32 %v788, %v1066
      %v1171 = vadd.f32 %v793, %v1071
      %v1172 = vadd.f32 %v796, %v1074
      %v1173 = vadd.f32 %v801, %v1079
      %v1174 = vadd.f32 %v804, %v1082
      %v1175 = vadd.f32 %v809, %v1087
      %v1176 = vadd.f32 %v812, %v1090
      %v1177 = vadd.f32 %v817, %v1095
      %v1178 = vadd.f32 %v820, %v1098
      %v1179 = vadd.f32 %v825, %v1103
      %v1180 = vadd.f32 %v828, %v1106
      %v1181 = vadd.f32 %v833, %v1111
      %v1182 = vadd.f32 %v836, %v1114
      %v1183 = vadd.f32 %v841, %v1119
      %v1184 = vadd.f32 %v844, %v1122
      %v1185 = vadd.f32 %v849, %v1127
      %v1186 = vadd.f32 %v852, %v1130
      %v1187 = vadd.f32 %v857, %v1135
      %v1188 = vadd.f32 %v860, %v1138
      %v1189 = vadd.f32 %v865, %v1143
      %v1190 = vadd.f32 %v868, %v1146
      %v1191 = vadd.f32 %v873, %v1151
      %v1192 = vadd.f32 %v876, %v1154
      %v1193 = vld [vmem:[%s138 + $0x8] sm:$0xe]
      %v1194 = vld [vmem:[%s138 + $0xc] sm:$0xf]
      %v1195 = vld [vmem:[%s138 + $0x10] sm:$0xf]
      %v1196 = vld [vmem:[%s138 + $0x14] sm:$0xf]
      %v1197 = vld [vmem:[%s138 + $0x18] sm:$0xf]
      %v1198 = vld [vmem:[%s138 + $0x1c] sm:$0xf]
      %v1199 = vld [vmem:[%s138 + $0x20] sm:$0xf]
      %v1200 = vld [vmem:[%s138 + $0x24] sm:$0xf]
      %v1201 = vld [vmem:[%s138 + $0x28] sm:$0xf]
      %v1202 = vld [vmem:[%s138 + $0x2c] sm:$0xf]
      %v1203 = vld [vmem:[%s138 + $0x30] sm:$0xf]
      %v1204 = vld [vmem:[%s138 + $0x34] sm:$0xf]
      %v1205 = vld [vmem:[%s138 + $0x38] sm:$0xf]
      %v1206 = vld [vmem:[%s138 + $0x3c] sm:$0xf]
      %v1207 = vld [vmem:[%s138 + $0x40] sm:$0xf]
      %v1208 = vld [vmem:[%s138 + $0x44] sm:$0xf]
      %v1209 = vld [vmem:[%s138 + $0x48] sm:$0xf]
      %v1210 = vld [vmem:[%s138 + $0x4c] sm:$0xf]
      %v1211 = vld [vmem:[%s138 + $0x50] sm:$0xf]
      %v1212 = vld [vmem:[%s138 + $0x54] sm:$0xf]
      %v1213 = vld [vmem:[%s138 + $0x58] sm:$0xf]
      %v1214 = vld [vmem:[%s138 + $0x5c] sm:$0xf]
      %v1215 = vld [vmem:[%s138 + $0x60] sm:$0xf]
      %v1216 = vld [vmem:[%s138 + $0x64] sm:$0xf]
      %v1217 = vld [vmem:[%s138 + $0x68] sm:$0xf]
      %v1218 = vld [vmem:[%s138 + $0x6c] sm:$0xf]
      %v1219 = vld [vmem:[%s138 + $0x70] sm:$0xf]
      %v1220 = vld [vmem:[%s138 + $0x74] sm:$0xf]
      %v1221 = vld [vmem:[%s138 + $0x78] sm:$0xf]
      %v1222 = vld [vmem:[%s138 + $0x7c] sm:$0xf]
      %v1223 = vld [vmem:[%s138 + $0x80] sm:$0xf]
      %v1224 = vld [vmem:[%s138 + $0x84] sm:$0xf]
      %v1225 = vld [vmem:[%s138 + $0x88] sm:$0xf]
      %v1226 = vld [vmem:[%s138 + $0x8c] sm:$0xf]
      %v1227 = vld [vmem:[%s138 + $0x90] sm:$0xf]
      %v1228 = vld [vmem:[%s138 + $0x94] sm:$0xf]
      %v1229 = vld [vmem:[%s138 + $0x98] sm:$0x1]
      %s1230 = scalar_lea.vmem %s1, 6
      %v1231 = vld [vmem:[%s1230] sm:$0x3]
      %v1269 = vunpack.c.l.b16 %v1193
      %v1270 = vunpack.c.l.b16 %v1194
      %v1271 = vunpack.c.l.b16 %v1195
      %v1272 = vunpack.c.l.b16 %v1196
      %v1273 = vunpack.c.l.b16 %v1197
      %v1274 = vunpack.c.l.b16 %v1198
      %v1275 = vunpack.c.l.b16 %v1199
      %v1276 = vunpack.c.l.b16 %v1200
      %v1277 = vunpack.c.l.b16 %v1201
      %v1278 = vunpack.c.l.b16 %v1202
      %v1279 = vunpack.c.l.b16 %v1203
      %v1280 = vunpack.c.l.b16 %v1204
      %v1281 = vunpack.c.l.b16 %v1205
      %v1282 = vunpack.c.l.b16 %v1206
      %v1283 = vunpack.c.l.b16 %v1207
      %v1284 = vunpack.c.l.b16 %v1208
      %v1285 = vunpack.c.l.b16 %v1209
      %v1286 = vunpack.c.l.b16 %v1210
      %v1287 = vunpack.c.l.b16 %v1211
      %v1288 = vunpack.c.l.b16 %v1212
      %v1289 = vunpack.c.l.b16 %v1213
      %v1290 = vunpack.c.l.b16 %v1214
      %v1291 = vunpack.c.l.b16 %v1215
      %v1292 = vunpack.c.l.b16 %v1216
      %v1293 = vunpack.c.l.b16 %v1217
      %v1294 = vunpack.c.l.b16 %v1218
      %v1295 = vunpack.c.l.b16 %v1219
      %v1296 = vunpack.c.l.b16 %v1220
      %v1297 = vunpack.c.l.b16 %v1221
      %v1298 = vunpack.c.l.b16 %v1222
      %v1299 = vunpack.c.l.b16 %v1223
      %v1300 = vunpack.c.l.b16 %v1224
      %v1301 = vunpack.c.l.b16 %v1225
      %v1302 = vunpack.c.l.b16 %v1226
      %v1303 = vunpack.c.l.b16 %v1227
      %v1304 = vunpack.c.l.b16 %v1228
      %v1305 = vunpack.c.l.b16 %v1229
      %v1306 = vpack.c.b16 %v1270, %v1269
      %v1307 = vpack.c.b16 %v1272, %v1271
      %v1308 = vpack.c.b16 %v1274, %v1273
      %v1309 = vpack.c.b16 %v1276, %v1275
      %v1310 = vpack.c.b16 %v1278, %v1277
      %v1311 = vpack.c.b16 %v1280, %v1279
      %v1312 = vpack.c.b16 %v1282, %v1281
      %v1313 = vpack.c.b16 %v1284, %v1283
      %v1314 = vpack.c.b16 %v1286, %v1285
      %v1315 = vpack.c.b16 %v1288, %v1287
      %v1316 = vpack.c.b16 %v1290, %v1289
      %v1317 = vpack.c.b16 %v1292, %v1291
      %v1318 = vpack.c.b16 %v1294, %v1293
      %v1319 = vpack.c.b16 %v1296, %v1295
      %v1320 = vpack.c.b16 %v1298, %v1297
      %v1321 = vpack.c.b16 %v1300, %v1299
      %v1322 = vpack.c.b16 %v1302, %v1301
      %v1323 = vpack.c.b16 %v1304, %v1303
      %v1324 = vpack.c.b16 %v1305, %v1305
      %v1325 = vrot.slane %v1306, 1
      %v1326 = vrot.slane %v1307, 1
      %v1327 = vsel %vm885, %v1325, %v1326
      %v1328 = vrot.slane %v1308, 1
      %v1329 = vsel %vm885, %v1326, %v1328
      %v1330 = vrot.slane %v1309, 1
      %v1331 = vsel %vm885, %v1328, %v1330
      %v1332 = vrot.slane %v1310, 1
      %v1333 = vsel %vm885, %v1330, %v1332
      %v1334 = vrot.slane %v1311, 1
      %v1335 = vsel %vm885, %v1332, %v1334
      %v1336 = vrot.slane %v1312, 1
      %v1337 = vsel %vm885, %v1334, %v1336
      %v1338 = vrot.slane %v1313, 1
      %v1339 = vsel %vm885, %v1336, %v1338
      %v1340 = vrot.slane %v1314, 1
      %v1341 = vsel %vm885, %v1338, %v1340
      %v1342 = vrot.slane %v1315, 1
      %v1343 = vsel %vm885, %v1340, %v1342
      %v1344 = vrot.slane %v1316, 1
      %v1345 = vsel %vm885, %v1342, %v1344
      %v1346 = vrot.slane %v1317, 1
      %v1347 = vsel %vm885, %v1344, %v1346
      %v1348 = vrot.slane %v1318, 1
      %v1349 = vsel %vm885, %v1346, %v1348
      %v1350 = vrot.slane %v1319, 1
      %v1351 = vsel %vm885, %v1348, %v1350
      %v1352 = vrot.slane %v1320, 1
      %v1353 = vsel %vm885, %v1350, %v1352
      %v1354 = vrot.slane %v1321, 1
      %v1355 = vsel %vm885, %v1352, %v1354
      %v1356 = vrot.slane %v1322, 1
      %v1357 = vsel %vm885, %v1354, %v1356
      %v1358 = vrot.slane %v1323, 1
      %v1359 = vsel %vm885, %v1356, %v1358
      %v1360 = vrot.slane %v1324, 1
      %v1361 = vsel %vm885, %v1358, %v1360
      %v1363 = vsel %vm427, %v1327, 0
      %v1366 = vsel %vm427, %v1329, 0
      %v1369 = vsel %vm427, %v1331, 0
      %v1372 = vsel %vm427, %v1333, 0
      %v1375 = vsel %vm427, %v1335, 0
      %v1378 = vsel %vm427, %v1337, 0
      %v1381 = vsel %vm427, %v1339, 0
      %v1384 = vsel %vm427, %v1341, 0
      %v1387 = vsel %vm427, %v1343, 0
      %v1390 = vsel %vm427, %v1345, 0
      %v1393 = vsel %vm427, %v1347, 0
      %v1396 = vsel %vm427, %v1349, 0
      %v1399 = vsel %vm427, %v1351, 0
      %v1402 = vsel %vm427, %v1353, 0
      %v1405 = vsel %vm427, %v1355, 0
      %v1408 = vsel %vm427, %v1357, 0
      %v1411 = vsel %vm427, %v1359, 0
      %v1414 = vsel %vm427, %v1361, 0
      %v1417 = vsel %vm482, %v1231, 0
      %1419 = vmatprep.subr.bf16.mxu0 0
      %1420 = vmatpush1.bf16.msra.mxu0 0
      %1421 = vmatprep.subr.bf16.mxu0 0
      %1422 = vmatpush1.bf16.msra.mxu0 0
      %1423 = vmatprep.subr.bf16.mxu0 0
      %1424 = vmatpush1.bf16.msra.mxu0 0
      %1425 = vmatprep.subr.bf16.mxu0 0
      %1426 = vmatpush1.bf16.msra.mxu0 0
      %1427 = vmatprep.subr.bf16.mxu0 0
      %1428 = vmatpush1.bf16.msra.mxu0 0
      %1429 = vmatprep.subr.bf16.mxu0 0
      %1430 = vmatpush1.bf16.msra.mxu0 0
      %1431 = vmatprep.subr.bf16.mxu0 0
      %1432 = vmatpush1.bf16.msra.mxu0 0
      %1433 = vmatprep.subr.bf16.mxu0 0
      %1434 = vmatpush1.bf16.msra.mxu0 %v1417
      %1435 = vmatprep.subr.bf16.mxu0 0
      %1436 = vmatpush2.bf16.msra.mxu0 0
      %1437 = vmatprep.subr.bf16.mxu0 0
      %1438 = vmatpush2.bf16.msra.mxu0 0
      %1439 = vmatprep.subr.bf16.mxu0 0
      %1440 = vmatpush2.bf16.msra.mxu0 0
      %1441 = vmatprep.subr.bf16.mxu0 0
      %1442 = vmatpush2.bf16.msra.mxu0 0
      %1443 = vmatprep.subr.bf16.mxu0 0
      %1444 = vmatpush2.bf16.msra.mxu0 0
      %1445 = vmatprep.subr.bf16.mxu0 0
      %1446 = vmatpush2.bf16.msra.mxu0 0
      %1447 = vmatprep.subr.bf16.mxu0 0
      %1448 = vmatpush2.bf16.msra.mxu0 0
      %1449 = vmatprep.subr.bf16.mxu0 0
      %1450 = vmatpush2.bf16.msra.mxu0 0
      %1451 = vmatprep.mubr.bf16.mxu0 0
      %1452 = vmatmul.mubr.bf16.gmra.mxu0 %v1363
      %v1453 = vpop.f32.mrf.mxu0
      %v1454 = vadd.f32 0.0, %v1453
      %v1455 = vpop.f32.mrf.mxu0
      %v1456 = vpop.f32.mrf.mxu0
      %v1457 = vadd.f32 0.0, %v1456
      %v1458 = vpop.f32.mrf.mxu0
      %1459 = vmatprep.mubr.bf16.mxu0 0
      %1460 = vmatmul.mubr.bf16.gmra.mxu0 %v1366
      %v1461 = vpop.f32.mrf.mxu0
      %v1462 = vadd.f32 0.0, %v1461
      %v1463 = vpop.f32.mrf.mxu0
      %v1464 = vpop.f32.mrf.mxu0
      %v1465 = vadd.f32 0.0, %v1464
      %v1466 = vpop.f32.mrf.mxu0
      %1467 = vmatprep.mubr.bf16.mxu0 0
      %1468 = vmatmul.mubr.bf16.gmra.mxu0 %v1369
      %v1469 = vpop.f32.mrf.mxu0
      %v1470 = vadd.f32 0.0, %v1469
      %v1471 = vpop.f32.mrf.mxu0
      %v1472 = vpop.f32.mrf.mxu0
      %v1473 = vadd.f32 0.0, %v1472
      %v1474 = vpop.f32.mrf.mxu0
      %1475 = vmatprep.mubr.bf16.mxu0 0
      %1476 = vmatmul.mubr.bf16.gmra.mxu0 %v1372
      %v1477 = vpop.f32.mrf.mxu0
      %v1478 = vadd.f32 0.0, %v1477
      %v1479 = vpop.f32.mrf.mxu0
      %v1480 = vpop.f32.mrf.mxu0
      %v1481 = vadd.f32 0.0, %v1480
      %v1482 = vpop.f32.mrf.mxu0
      %1483 = vmatprep.mubr.bf16.mxu0 0
      %1484 = vmatmul.mubr.bf16.gmra.mxu0 %v1375
      %v1485 = vpop.f32.mrf.mxu0
      %v1486 = vadd.f32 0.0, %v1485
      %v1487 = vpop.f32.mrf.mxu0
      %v1488 = vpop.f32.mrf.mxu0
      %v1489 = vadd.f32 0.0, %v1488
      %v1490 = vpop.f32.mrf.mxu0
      %1491 = vmatprep.mubr.bf16.mxu0 0
      %1492 = vmatmul.mubr.bf16.gmra.mxu0 %v1378
      %v1493 = vpop.f32.mrf.mxu0
      %v1494 = vadd.f32 0.0, %v1493
      %v1495 = vpop.f32.mrf.mxu0
      %v1496 = vpop.f32.mrf.mxu0
      %v1497 = vadd.f32 0.0, %v1496
      %v1498 = vpop.f32.mrf.mxu0
      %1499 = vmatprep.mubr.bf16.mxu0 0
      %1500 = vmatmul.mubr.bf16.gmra.mxu0 %v1381
      %v1501 = vpop.f32.mrf.mxu0
      %v1502 = vadd.f32 0.0, %v1501
      %v1503 = vpop.f32.mrf.mxu0
      %v1504 = vpop.f32.mrf.mxu0
      %v1505 = vadd.f32 0.0, %v1504
      %v1506 = vpop.f32.mrf.mxu0
      %1507 = vmatprep.mubr.bf16.mxu0 0
      %1508 = vmatmul.mubr.bf16.gmra.mxu0 %v1384
      %v1509 = vpop.f32.mrf.mxu0
      %v1510 = vadd.f32 0.0, %v1509
      %v1511 = vpop.f32.mrf.mxu0
      %v1512 = vpop.f32.mrf.mxu0
      %v1513 = vadd.f32 0.0, %v1512
      %v1514 = vpop.f32.mrf.mxu0
      %1515 = vmatprep.mubr.bf16.mxu0 0
      %1516 = vmatmul.mubr.bf16.gmra.mxu0 %v1387
      %v1517 = vpop.f32.mrf.mxu0
      %v1518 = vadd.f32 0.0, %v1517
      %v1519 = vpop.f32.mrf.mxu0
      %v1520 = vpop.f32.mrf.mxu0
      %v1521 = vadd.f32 0.0, %v1520
      %v1522 = vpop.f32.mrf.mxu0
      %1523 = vmatprep.mubr.bf16.mxu0 0
      %1524 = vmatmul.mubr.bf16.gmra.mxu0 %v1390
      %v1525 = vpop.f32.mrf.mxu0
      %v1526 = vadd.f32 0.0, %v1525
      %v1527 = vpop.f32.mrf.mxu0
      %v1528 = vpop.f32.mrf.mxu0
      %v1529 = vadd.f32 0.0, %v1528
      %v1530 = vpop.f32.mrf.mxu0
      %1531 = vmatprep.mubr.bf16.mxu0 0
      %1532 = vmatmul.mubr.bf16.gmra.mxu0 %v1393
      %v1533 = vpop.f32.mrf.mxu0
      %v1534 = vadd.f32 0.0, %v1533
      %v1535 = vpop.f32.mrf.mxu0
      %v1536 = vpop.f32.mrf.mxu0
      %v1537 = vadd.f32 0.0, %v1536
      %v1538 = vpop.f32.mrf.mxu0
      %1539 = vmatprep.mubr.bf16.mxu0 0
      %1540 = vmatmul.mubr.bf16.gmra.mxu0 %v1396
      %v1541 = vpop.f32.mrf.mxu0
      %v1542 = vadd.f32 0.0, %v1541
      %v1543 = vpop.f32.mrf.mxu0
      %v1544 = vpop.f32.mrf.mxu0
      %v1545 = vadd.f32 0.0, %v1544
      %v1546 = vpop.f32.mrf.mxu0
      %1547 = vmatprep.mubr.bf16.mxu0 0
      %1548 = vmatmul.mubr.bf16.gmra.mxu0 %v1399
      %v1549 = vpop.f32.mrf.mxu0
      %v1550 = vadd.f32 0.0, %v1549
      %v1551 = vpop.f32.mrf.mxu0
      %v1552 = vpop.f32.mrf.mxu0
      %v1553 = vadd.f32 0.0, %v1552
      %v1554 = vpop.f32.mrf.mxu0
      %1555 = vmatprep.mubr.bf16.mxu0 0
      %1556 = vmatmul.mubr.bf16.gmra.mxu0 %v1402
      %v1557 = vpop.f32.mrf.mxu0
      %v1558 = vadd.f32 0.0, %v1557
      %v1559 = vpop.f32.mrf.mxu0
      %v1560 = vpop.f32.mrf.mxu0
      %v1561 = vadd.f32 0.0, %v1560
      %v1562 = vpop.f32.mrf.mxu0
      %1563 = vmatprep.mubr.bf16.mxu0 0
      %1564 = vmatmul.mubr.bf16.gmra.mxu0 %v1405
      %v1565 = vpop.f32.mrf.mxu0
      %v1566 = vadd.f32 0.0, %v1565
      %v1567 = vpop.f32.mrf.mxu0
      %v1568 = vpop.f32.mrf.mxu0
      %v1569 = vadd.f32 0.0, %v1568
      %v1570 = vpop.f32.mrf.mxu0
      %1571 = vmatprep.mubr.bf16.mxu0 0
      %1572 = vmatmul.mubr.bf16.gmra.mxu0 %v1408
      %v1573 = vpop.f32.mrf.mxu0
      %v1574 = vadd.f32 0.0, %v1573
      %v1575 = vpop.f32.mrf.mxu0
      %v1576 = vpop.f32.mrf.mxu0
      %v1577 = vadd.f32 0.0, %v1576
      %v1578 = vpop.f32.mrf.mxu0
      %1579 = vmatprep.mubr.bf16.mxu0 0
      %1580 = vmatmul.mubr.bf16.gmra.mxu0 %v1411
      %v1581 = vpop.f32.mrf.mxu0
      %v1582 = vadd.f32 0.0, %v1581
      %v1583 = vpop.f32.mrf.mxu0
      %v1584 = vpop.f32.mrf.mxu0
      %v1585 = vadd.f32 0.0, %v1584
      %v1586 = vpop.f32.mrf.mxu0
      %1587 = vmatprep.mubr.bf16.mxu0 0
      %1588 = vmatmul.mubr.bf16.gmra.mxu0 %v1414
      %v1589 = vpop.f32.mrf.mxu0
      %v1590 = vadd.f32 0.0, %v1589
      %v1591 = vpop.f32.mrf.mxu0
      %v1592 = vpop.f32.mrf.mxu0
      %v1593 = vadd.f32 0.0, %v1592
      %v1594 = vpop.f32.mrf.mxu0
      %1595 = vdwg.mxu0
      %v1596 = vadd.f32 %v1157, %v1454
      %v1597 = vadd.f32 %v1158, %v1457
      %v1598 = vadd.f32 %v1159, %v1462
      %v1599 = vadd.f32 %v1160, %v1465
      %v1600 = vadd.f32 %v1161, %v1470
      %v1601 = vadd.f32 %v1162, %v1473
      %v1602 = vadd.f32 %v1163, %v1478
      %v1603 = vadd.f32 %v1164, %v1481
      %v1604 = vadd.f32 %v1165, %v1486
      %v1605 = vadd.f32 %v1166, %v1489
      %v1606 = vadd.f32 %v1167, %v1494
      %v1607 = vadd.f32 %v1168, %v1497
      %v1608 = vadd.f32 %v1169, %v1502
      %v1609 = vadd.f32 %v1170, %v1505
      %v1610 = vadd.f32 %v1171, %v1510
      %v1611 = vadd.f32 %v1172, %v1513
      %v1612 = vadd.f32 %v1173, %v1518
      %v1613 = vadd.f32 %v1174, %v1521
      %v1614 = vadd.f32 %v1175, %v1526
      %v1615 = vadd.f32 %v1176, %v1529
      %v1616 = vadd.f32 %v1177, %v1534
      %v1617 = vadd.f32 %v1178, %v1537
      %v1618 = vadd.f32 %v1179, %v1542
      %v1619 = vadd.f32 %v1180, %v1545
      %v1620 = vadd.f32 %v1181, %v1550
      %v1621 = vadd.f32 %v1182, %v1553
      %v1622 = vadd.f32 %v1183, %v1558
      %v1623 = vadd.f32 %v1184, %v1561
      %v1624 = vadd.f32 %v1185, %v1566
      %v1625 = vadd.f32 %v1186, %v1569
      %v1626 = vadd.f32 %v1187, %v1574
      %v1627 = vadd.f32 %v1188, %v1577
      %v1628 = vadd.f32 %v1189, %v1582
      %v1629 = vadd.f32 %v1190, %v1585
      %v1630 = vadd.f32 %v1191, %v1590
      %v1631 = vadd.f32 %v1192, %v1593
      %v1632 = vld [vmem:[%s138 + $0x98] sm:$0x3]
      %s1633 = scalar_lea.vmem %s1, 8
      %v1634 = vld [vmem:[%s1633] sm:$0x3]
      %v1636 = vunpack.c.l.b16 %v1632
      %v1637 = vpack.c.b16 %v1636, %v1636
      %vm1638 = vsmask.f32 6400
      %v1640 = vshrl.u32 %v1306, 16
      %v1642 = vrot.slane %v1640, 1
      %v1643 = vshll.u32 %v1306, 16
      %v1645 = vrot.slane %v1643, 2
      %v1646 = vor.u32 %v1642, %v1645
      %v1648 = vshrl.u32 %v1307, 16
      %v1650 = vrot.slane %v1648, 1
      %v1651 = vshll.u32 %v1307, 16
      %v1653 = vrot.slane %v1651, 2
      %v1654 = vor.u32 %v1650, %v1653
      %v1655 = vsel %vm1638, %v1646, %v1654
      %v1657 = vshrl.u32 %v1308, 16
      %v1659 = vrot.slane %v1657, 1
      %v1660 = vshll.u32 %v1308, 16
      %v1662 = vrot.slane %v1660, 2
      %v1663 = vor.u32 %v1659, %v1662
      %v1664 = vsel %vm1638, %v1654, %v1663
      %v1666 = vshrl.u32 %v1309, 16
      %v1668 = vrot.slane %v1666, 1
      %v1669 = vshll.u32 %v1309, 16
      %v1671 = vrot.slane %v1669, 2
      %v1672 = vor.u32 %v1668, %v1671
      %v1673 = vsel %vm1638, %v1663, %v1672
      %v1675 = vshrl.u32 %v1310, 16
      %v1677 = vrot.slane %v1675, 1
      %v1678 = vshll.u32 %v1310, 16
      %v1680 = vrot.slane %v1678, 2
      %v1681 = vor.u32 %v1677, %v1680
      %v1682 = vsel %vm1638, %v1672, %v1681
      %v1684 = vshrl.u32 %v1311, 16
      %v1686 = vrot.slane %v1684, 1
      %v1687 = vshll.u32 %v1311, 16
      %v1689 = vrot.slane %v1687, 2
      %v1690 = vor.u32 %v1686, %v1689
      %v1691 = vsel %vm1638, %v1681, %v1690
      %v1693 = vshrl.u32 %v1312, 16
      %v1695 = vrot.slane %v1693, 1
      %v1696 = vshll.u32 %v1312, 16
      %v1698 = vrot.slane %v1696, 2
      %v1699 = vor.u32 %v1695, %v1698
      %v1700 = vsel %vm1638, %v1690, %v1699
      %v1702 = vshrl.u32 %v1313, 16
      %v1704 = vrot.slane %v1702, 1
      %v1705 = vshll.u32 %v1313, 16
      %v1707 = vrot.slane %v1705, 2
      %v1708 = vor.u32 %v1704, %v1707
      %v1709 = vsel %vm1638, %v1699, %v1708
      %v1711 = vshrl.u32 %v1314, 16
      %v1713 = vrot.slane %v1711, 1
      %v1714 = vshll.u32 %v1314, 16
      %v1716 = vrot.slane %v1714, 2
      %v1717 = vor.u32 %v1713, %v1716
      %v1718 = vsel %vm1638, %v1708, %v1717
      %v1720 = vshrl.u32 %v1315, 16
      %v1722 = vrot.slane %v1720, 1
      %v1723 = vshll.u32 %v1315, 16
      %v1725 = vrot.slane %v1723, 2
      %v1726 = vor.u32 %v1722, %v1725
      %v1727 = vsel %vm1638, %v1717, %v1726
      %v1729 = vshrl.u32 %v1316, 16
      %v1731 = vrot.slane %v1729, 1
      %v1732 = vshll.u32 %v1316, 16
      %v1734 = vrot.slane %v1732, 2
      %v1735 = vor.u32 %v1731, %v1734
      %v1736 = vsel %vm1638, %v1726, %v1735
      %v1738 = vshrl.u32 %v1317, 16
      %v1740 = vrot.slane %v1738, 1
      %v1741 = vshll.u32 %v1317, 16
      %v1743 = vrot.slane %v1741, 2
      %v1744 = vor.u32 %v1740, %v1743
      %v1745 = vsel %vm1638, %v1735, %v1744
      %v1747 = vshrl.u32 %v1318, 16
      %v1749 = vrot.slane %v1747, 1
      %v1750 = vshll.u32 %v1318, 16
      %v1752 = vrot.slane %v1750, 2
      %v1753 = vor.u32 %v1749, %v1752
      %v1754 = vsel %vm1638, %v1744, %v1753
      %v1756 = vshrl.u32 %v1319, 16
      %v1758 = vrot.slane %v1756, 1
      %v1759 = vshll.u32 %v1319, 16
      %v1761 = vrot.slane %v1759, 2
      %v1762 = vor.u32 %v1758, %v1761
      %v1763 = vsel %vm1638, %v1753, %v1762
      %v1765 = vshrl.u32 %v1320, 16
      %v1767 = vrot.slane %v1765, 1
      %v1768 = vshll.u32 %v1320, 16
      %v1770 = vrot.slane %v1768, 2
      %v1771 = vor.u32 %v1767, %v1770
      %v1772 = vsel %vm1638, %v1762, %v1771
      %v1774 = vshrl.u32 %v1321, 16
      %v1776 = vrot.slane %v1774, 1
      %v1777 = vshll.u32 %v1321, 16
      %v1779 = vrot.slane %v1777, 2
      %v1780 = vor.u32 %v1776, %v1779
      %v1781 = vsel %vm1638, %v1771, %v1780
      %v1783 = vshrl.u32 %v1322, 16
      %v1785 = vrot.slane %v1783, 1
      %v1786 = vshll.u32 %v1322, 16
      %v1788 = vrot.slane %v1786, 2
      %v1789 = vor.u32 %v1785, %v1788
      %v1790 = vsel %vm1638, %v1780, %v1789
      %v1792 = vshrl.u32 %v1323, 16
      %v1794 = vrot.slane %v1792, 1
      %v1795 = vshll.u32 %v1323, 16
      %v1797 = vrot.slane %v1795, 2
      %v1798 = vor.u32 %v1794, %v1797
      %v1799 = vsel %vm1638, %v1789, %v1798
      %v1801 = vshrl.u32 %v1637, 16
      %v1803 = vrot.slane %v1801, 1
      %v1804 = vshll.u32 %v1637, 16
      %v1806 = vrot.slane %v1804, 2
      %v1807 = vor.u32 %v1803, %v1806
      %v1808 = vsel %vm1638, %v1798, %v1807
      %v1810 = vsel %vm427, %v1655, 0
      %v1813 = vsel %vm427, %v1664, 0
      %v1816 = vsel %vm427, %v1673, 0
      %v1819 = vsel %vm427, %v1682, 0
      %v1822 = vsel %vm427, %v1691, 0
      %v1825 = vsel %vm427, %v1700, 0
      %v1828 = vsel %vm427, %v1709, 0
      %v1831 = vsel %vm427, %v1718, 0
      %v1834 = vsel %vm427, %v1727, 0
      %v1837 = vsel %vm427, %v1736, 0
      %v1840 = vsel %vm427, %v1745, 0
      %v1843 = vsel %vm427, %v1754, 0
      %v1846 = vsel %vm427, %v1763, 0
      %v1849 = vsel %vm427, %v1772, 0
      %v1852 = vsel %vm427, %v1781, 0
      %v1855 = vsel %vm427, %v1790, 0
      %v1858 = vsel %vm427, %v1799, 0
      %v1861 = vsel %vm427, %v1808, 0
      %v1864 = vsel %vm482, %v1634, 0
      %1866 = vmatprep.subr.bf16.mxu0 0
      %1867 = vmatpush1.bf16.msra.mxu0 0
      %1868 = vmatprep.subr.bf16.mxu0 0
      %1869 = vmatpush1.bf16.msra.mxu0 0
      %1870 = vmatprep.subr.bf16.mxu0 0
      %1871 = vmatpush1.bf16.msra.mxu0 0
      %1872 = vmatprep.subr.bf16.mxu0 0
      %1873 = vmatpush1.bf16.msra.mxu0 0
      %1874 = vmatprep.subr.bf16.mxu0 0
      %1875 = vmatpush1.bf16.msra.mxu0 0
      %1876 = vmatprep.subr.bf16.mxu0 0
      %1877 = vmatpush1.bf16.msra.mxu0 0
      %1878 = vmatprep.subr.bf16.mxu0 0
      %1879 = vmatpush1.bf16.msra.mxu0 0
      %1880 = vmatprep.subr.bf16.mxu0 0
      %1881 = vmatpush1.bf16.msra.mxu0 %v1864
      %1882 = vmatprep.subr.bf16.mxu0 0
      %1883 = vmatpush2.bf16.msra.mxu0 0
      %1884 = vmatprep.subr.bf16.mxu0 0
      %1885 = vmatpush2.bf16.msra.mxu0 0
      %1886 = vmatprep.subr.bf16.mxu0 0
      %1887 = vmatpush2.bf16.msra.mxu0 0
      %1888 = vmatprep.subr.bf16.mxu0 0
      %1889 = vmatpush2.bf16.msra.mxu0 0
      %1890 = vmatprep.subr.bf16.mxu0 0
      %1891 = vmatpush2.bf16.msra.mxu0 0
      %1892 = vmatprep.subr.bf16.mxu0 0
      %1893 = vmatpush2.bf16.msra.mxu0 0
      %1894 = vmatprep.subr.bf16.mxu0 0
      %1895 = vmatpush2.bf16.msra.mxu0 0
      %1896 = vmatprep.subr.bf16.mxu0 0
      %1897 = vmatpush2.bf16.msra.mxu0 0
      %1898 = vmatprep.mubr.bf16.mxu0 0
      %1899 = vmatmul.mubr.bf16.gmra.mxu0 %v1810
      %v1900 = vpop.f32.mrf.mxu0
      %v1901 = vadd.f32 0.0, %v1900
      %v1902 = vpop.f32.mrf.mxu0
      %v1903 = vpop.f32.mrf.mxu0
      %v1904 = vadd.f32 0.0, %v1903
      %v1905 = vpop.f32.mrf.mxu0
      %1906 = vmatprep.mubr.bf16.mxu0 0
      %1907 = vmatmul.mubr.bf16.gmra.mxu0 %v1813
      %v1908 = vpop.f32.mrf.mxu0
      %v1909 = vadd.f32 0.0, %v1908
      %v1910 = vpop.f32.mrf.mxu0
      %v1911 = vpop.f32.mrf.mxu0
      %v1912 = vadd.f32 0.0, %v1911
      %v1913 = vpop.f32.mrf.mxu0
      %1914 = vmatprep.mubr.bf16.mxu0 0
      %1915 = vmatmul.mubr.bf16.gmra.mxu0 %v1816
      %v1916 = vpop.f32.mrf.mxu0
      %v1917 = vadd.f32 0.0, %v1916
      %v1918 = vpop.f32.mrf.mxu0
      %v1919 = vpop.f32.mrf.mxu0
      %v1920 = vadd.f32 0.0, %v1919
      %v1921 = vpop.f32.mrf.mxu0
      %1922 = vmatprep.mubr.bf16.mxu0 0
      %1923 = vmatmul.mubr.bf16.gmra.mxu0 %v1819
      %v1924 = vpop.f32.mrf.mxu0
      %v1925 = vadd.f32 0.0, %v1924
      %v1926 = vpop.f32.mrf.mxu0
      %v1927 = vpop.f32.mrf.mxu0
      %v1928 = vadd.f32 0.0, %v1927
      %v1929 = vpop.f32.mrf.mxu0
      %1930 = vmatprep.mubr.bf16.mxu0 0
      %1931 = vmatmul.mubr.bf16.gmra.mxu0 %v1822
      %v1932 = vpop.f32.mrf.mxu0
      %v1933 = vadd.f32 0.0, %v1932
      %v1934 = vpop.f32.mrf.mxu0
      %v1935 = vpop.f32.mrf.mxu0
      %v1936 = vadd.f32 0.0, %v1935
      %v1937 = vpop.f32.mrf.mxu0
      %1938 = vmatprep.mubr.bf16.mxu0 0
      %1939 = vmatmul.mubr.bf16.gmra.mxu0 %v1825
      %v1940 = vpop.f32.mrf.mxu0
      %v1941 = vadd.f32 0.0, %v1940
      %v1942 = vpop.f32.mrf.mxu0
      %v1943 = vpop.f32.mrf.mxu0
      %v1944 = vadd.f32 0.0, %v1943
      %v1945 = vpop.f32.mrf.mxu0
      %1946 = vmatprep.mubr.bf16.mxu0 0
      %1947 = vmatmul.mubr.bf16.gmra.mxu0 %v1828
      %v1948 = vpop.f32.mrf.mxu0
      %v1949 = vadd.f32 0.0, %v1948
      %v1950 = vpop.f32.mrf.mxu0
      %v1951 = vpop.f32.mrf.mxu0
      %v1952 = vadd.f32 0.0, %v1951
      %v1953 = vpop.f32.mrf.mxu0
      %1954 = vmatprep.mubr.bf16.mxu0 0
      %1955 = vmatmul.mubr.bf16.gmra.mxu0 %v1831
      %v1956 = vpop.f32.mrf.mxu0
      %v1957 = vadd.f32 0.0, %v1956
      %v1958 = vpop.f32.mrf.mxu0
      %v1959 = vpop.f32.mrf.mxu0
      %v1960 = vadd.f32 0.0, %v1959
      %v1961 = vpop.f32.mrf.mxu0
      %1962 = vmatprep.mubr.bf16.mxu0 0
      %1963 = vmatmul.mubr.bf16.gmra.mxu0 %v1834
      %v1964 = vpop.f32.mrf.mxu0
      %v1965 = vadd.f32 0.0, %v1964
      %v1966 = vpop.f32.mrf.mxu0
      %v1967 = vpop.f32.mrf.mxu0
      %v1968 = vadd.f32 0.0, %v1967
      %v1969 = vpop.f32.mrf.mxu0
      %1970 = vmatprep.mubr.bf16.mxu0 0
      %1971 = vmatmul.mubr.bf16.gmra.mxu0 %v1837
      %v1972 = vpop.f32.mrf.mxu0
      %v1973 = vadd.f32 0.0, %v1972
      %v1974 = vpop.f32.mrf.mxu0
      %v1975 = vpop.f32.mrf.mxu0
      %v1976 = vadd.f32 0.0, %v1975
      %v1977 = vpop.f32.mrf.mxu0
      %1978 = vmatprep.mubr.bf16.mxu0 0
      %1979 = vmatmul.mubr.bf16.gmra.mxu0 %v1840
      %v1980 = vpop.f32.mrf.mxu0
      %v1981 = vadd.f32 0.0, %v1980
      %v1982 = vpop.f32.mrf.mxu0
      %v1983 = vpop.f32.mrf.mxu0
      %v1984 = vadd.f32 0.0, %v1983
      %v1985 = vpop.f32.mrf.mxu0
      %1986 = vmatprep.mubr.bf16.mxu0 0
      %1987 = vmatmul.mubr.bf16.gmra.mxu0 %v1843
      %v1988 = vpop.f32.mrf.mxu0
      %v1989 = vadd.f32 0.0, %v1988
      %v1990 = vpop.f32.mrf.mxu0
      %v1991 = vpop.f32.mrf.mxu0
      %v1992 = vadd.f32 0.0, %v1991
      %v1993 = vpop.f32.mrf.mxu0
      %1994 = vmatprep.mubr.bf16.mxu0 0
      %1995 = vmatmul.mubr.bf16.gmra.mxu0 %v1846
      %v1996 = vpop.f32.mrf.mxu0
      %v1997 = vadd.f32 0.0, %v1996
      %v1998 = vpop.f32.mrf.mxu0
      %v1999 = vpop.f32.mrf.mxu0
      %v2000 = vadd.f32 0.0, %v1999
      %v2001 = vpop.f32.mrf.mxu0
      %2002 = vmatprep.mubr.bf16.mxu0 0
      %2003 = vmatmul.mubr.bf16.gmra.mxu0 %v1849
      %v2004 = vpop.f32.mrf.mxu0
      %v2005 = vadd.f32 0.0, %v2004
      %v2006 = vpop.f32.mrf.mxu0
      %v2007 = vpop.f32.mrf.mxu0
      %v2008 = vadd.f32 0.0, %v2007
      %v2009 = vpop.f32.mrf.mxu0
      %2010 = vmatprep.mubr.bf16.mxu0 0
      %2011 = vmatmul.mubr.bf16.gmra.mxu0 %v1852
      %v2012 = vpop.f32.mrf.mxu0
      %v2013 = vadd.f32 0.0, %v2012
      %v2014 = vpop.f32.mrf.mxu0
      %v2015 = vpop.f32.mrf.mxu0
      %v2016 = vadd.f32 0.0, %v2015
      %v2017 = vpop.f32.mrf.mxu0
      %2018 = vmatprep.mubr.bf16.mxu0 0
      %2019 = vmatmul.mubr.bf16.gmra.mxu0 %v1855
      %v2020 = vpop.f32.mrf.mxu0
      %v2021 = vadd.f32 0.0, %v2020
      %v2022 = vpop.f32.mrf.mxu0
      %v2023 = vpop.f32.mrf.mxu0
      %v2024 = vadd.f32 0.0, %v2023
      %v2025 = vpop.f32.mrf.mxu0
      %2026 = vmatprep.mubr.bf16.mxu0 0
      %2027 = vmatmul.mubr.bf16.gmra.mxu0 %v1858
      %v2028 = vpop.f32.mrf.mxu0
      %v2029 = vadd.f32 0.0, %v2028
      %v2030 = vpop.f32.mrf.mxu0
      %v2031 = vpop.f32.mrf.mxu0
      %v2032 = vadd.f32 0.0, %v2031
      %v2033 = vpop.f32.mrf.mxu0
      %2034 = vmatprep.mubr.bf16.mxu0 0
      %2035 = vmatmul.mubr.bf16.gmra.mxu0 %v1861
      %v2036 = vpop.f32.mrf.mxu0
      %v2037 = vadd.f32 0.0, %v2036
      %v2038 = vpop.f32.mrf.mxu0
      %v2039 = vpop.f32.mrf.mxu0
      %v2040 = vadd.f32 0.0, %v2039
      %v2041 = vpop.f32.mrf.mxu0
      %2042 = vdwg.mxu0
      %v2043 = vadd.f32 %v1596, %v1901
      %v2044 = vadd.f32 %v1597, %v1904
      %v2045 = vadd.f32 %v1598, %v1909
      %v2046 = vadd.f32 %v1599, %v1912
      %v2047 = vadd.f32 %v1600, %v1917
      %v2048 = vadd.f32 %v1601, %v1920
      %v2049 = vadd.f32 %v1602, %v1925
      %v2050 = vadd.f32 %v1603, %v1928
      %v2051 = vadd.f32 %v1604, %v1933
      %v2052 = vadd.f32 %v1605, %v1936
      %v2053 = vadd.f32 %v1606, %v1941
      %v2054 = vadd.f32 %v1607, %v1944
      %v2055 = vadd.f32 %v1608, %v1949
      %v2056 = vadd.f32 %v1609, %v1952
      %v2057 = vadd.f32 %v1610, %v1957
      %v2058 = vadd.f32 %v1611, %v1960
      %v2059 = vadd.f32 %v1612, %v1965
      %v2060 = vadd.f32 %v1613, %v1968
      %v2061 = vadd.f32 %v1614, %v1973
      %v2062 = vadd.f32 %v1615, %v1976
      %v2063 = vadd.f32 %v1616, %v1981
      %v2064 = vadd.f32 %v1617, %v1984
      %v2065 = vadd.f32 %v1618, %v1989
      %v2066 = vadd.f32 %v1619, %v1992
      %v2067 = vadd.f32 %v1620, %v1997
      %v2068 = vadd.f32 %v1621, %v2000
      %v2069 = vadd.f32 %v1622, %v2005
      %v2070 = vadd.f32 %v1623, %v2008
      %v2071 = vadd.f32 %v1624, %v2013
      %v2072 = vadd.f32 %v1625, %v2016
      %v2073 = vadd.f32 %v1626, %v2021
      %v2074 = vadd.f32 %v1627, %v2024
      %v2075 = vadd.f32 %v1628, %v2029
      %v2076 = vadd.f32 %v1629, %v2032
      %v2077 = vadd.f32 %v1630, %v2037
      %v2078 = vadd.f32 %v1631, %v2040
      %v2079 = vld [vmem:[%s138 + $0x8] sm:$0xc]
      %s2080 = scalar_lea.vmem %s1, 10
      %v2081 = vld [vmem:[%s2080] sm:$0x3]
      %v2083 = vunpack.c.l.b16 %v2079
      %v2084 = vpack.c.b16 %v1270, %v2083
      %vm2085 = vcmask 1045504
      %v2086 = vrot.slane %v2084, 2
      %v2087 = vrot.slane %v1307, 2
      %v2088 = vsel %vm2085, %v2086, %v2087
      %v2089 = vrot.slane %v1308, 2
      %v2090 = vsel %vm2085, %v2087, %v2089
      %v2091 = vrot.slane %v1309, 2
      %v2092 = vsel %vm2085, %v2089, %v2091
      %v2093 = vrot.slane %v1310, 2
      %v2094 = vsel %vm2085, %v2091, %v2093
      %v2095 = vrot.slane %v1311, 2
      %v2096 = vsel %vm2085, %v2093, %v2095
      %v2097 = vrot.slane %v1312, 2
      %v2098 = vsel %vm2085, %v2095, %v2097
      %v2099 = vrot.slane %v1313, 2
      %v2100 = vsel %vm2085, %v2097, %v2099
      %v2101 = vrot.slane %v1314, 2
      %v2102 = vsel %vm2085, %v2099, %v2101
      %v2103 = vrot.slane %v1315, 2
      %v2104 = vsel %vm2085, %v2101, %v2103
      %v2105 = vrot.slane %v1316, 2
      %v2106 = vsel %vm2085, %v2103, %v2105
      %v2107 = vrot.slane %v1317, 2
      %v2108 = vsel %vm2085, %v2105, %v2107
      %v2109 = vrot.slane %v1318, 2
      %v2110 = vsel %vm2085, %v2107, %v2109
      %v2111 = vrot.slane %v1319, 2
      %v2112 = vsel %vm2085, %v2109, %v2111
      %v2113 = vrot.slane %v1320, 2
      %v2114 = vsel %vm2085, %v2111, %v2113
      %v2115 = vrot.slane %v1321, 2
      %v2116 = vsel %vm2085, %v2113, %v2115
      %v2117 = vrot.slane %v1322, 2
      %v2118 = vsel %vm2085, %v2115, %v2117
      %v2119 = vrot.slane %v1323, 2
      %v2120 = vsel %vm2085, %v2117, %v2119
      %v2121 = vrot.slane %v1637, 2
      %v2122 = vsel %vm2085, %v2119, %v2121
      %v2124 = vsel %vm427, %v2088, 0
      %v2127 = vsel %vm427, %v2090, 0
      %v2130 = vsel %vm427, %v2092, 0
      %v2133 = vsel %vm427, %v2094, 0
      %v2136 = vsel %vm427, %v2096, 0
      %v2139 = vsel %vm427, %v2098, 0
      %v2142 = vsel %vm427, %v2100, 0
      %v2145 = vsel %vm427, %v2102, 0
      %v2148 = vsel %vm427, %v2104, 0
      %v2151 = vsel %vm427, %v2106, 0
      %v2154 = vsel %vm427, %v2108, 0
      %v2157 = vsel %vm427, %v2110, 0
      %v2160 = vsel %vm427, %v2112, 0
      %v2163 = vsel %vm427, %v2114, 0
      %v2166 = vsel %vm427, %v2116, 0
      %v2169 = vsel %vm427, %v2118, 0
      %v2172 = vsel %vm427, %v2120, 0
      %v2175 = vsel %vm427, %v2122, 0
      %v2178 = vsel %vm482, %v2081, 0
      %2180 = vmatprep.subr.bf16.mxu0 0
      %2181 = vmatpush1.bf16.msra.mxu0 0
      %2182 = vmatprep.subr.bf16.mxu0 0
      %2183 = vmatpush1.bf16.msra.mxu0 0
      %2184 = vmatprep.subr.bf16.mxu0 0
      %2185 = vmatpush1.bf16.msra.mxu0 0
      %2186 = vmatprep.subr.bf16.mxu0 0
      %2187 = vmatpush1.bf16.msra.mxu0 0
      %2188 = vmatprep.subr.bf16.mxu0 0
      %2189 = vmatpush1.bf16.msra.mxu0 0
      %2190 = vmatprep.subr.bf16.mxu0 0
      %2191 = vmatpush1.bf16.msra.mxu0 0
      %2192 = vmatprep.subr.bf16.mxu0 0
      %2193 = vmatpush1.bf16.msra.mxu0 0
      %2194 = vmatprep.subr.bf16.mxu0 0
      %2195 = vmatpush1.bf16.msra.mxu0 %v2178
      %2196 = vmatprep.subr.bf16.mxu0 0
      %2197 = vmatpush2.bf16.msra.mxu0 0
      %2198 = vmatprep.subr.bf16.mxu0 0
      %2199 = vmatpush2.bf16.msra.mxu0 0
      %2200 = vmatprep.subr.bf16.mxu0 0
      %2201 = vmatpush2.bf16.msra.mxu0 0
      %2202 = vmatprep.subr.bf16.mxu0 0
      %2203 = vmatpush2.bf16.msra.mxu0 0
      %2204 = vmatprep.subr.bf16.mxu0 0
      %2205 = vmatpush2.bf16.msra.mxu0 0
      %2206 = vmatprep.subr.bf16.mxu0 0
      %2207 = vmatpush2.bf16.msra.mxu0 0
      %2208 = vmatprep.subr.bf16.mxu0 0
      %2209 = vmatpush2.bf16.msra.mxu0 0
      %2210 = vmatprep.subr.bf16.mxu0 0
      %2211 = vmatpush2.bf16.msra.mxu0 0
      %2212 = vmatprep.mubr.bf16.mxu0 0
      %2213 = vmatmul.mubr.bf16.gmra.mxu0 %v2124
      %v2214 = vpop.f32.mrf.mxu0
      %v2215 = vadd.f32 0.0, %v2214
      %v2216 = vpop.f32.mrf.mxu0
      %v2217 = vpop.f32.mrf.mxu0
      %v2218 = vadd.f32 0.0, %v2217
      %v2219 = vpop.f32.mrf.mxu0
      %2220 = vmatprep.mubr.bf16.mxu0 0
      %2221 = vmatmul.mubr.bf16.gmra.mxu0 %v2127
      %v2222 = vpop.f32.mrf.mxu0
      %v2223 = vadd.f32 0.0, %v2222
      %v2224 = vpop.f32.mrf.mxu0
      %v2225 = vpop.f32.mrf.mxu0
      %v2226 = vadd.f32 0.0, %v2225
      %v2227 = vpop.f32.mrf.mxu0
      %2228 = vmatprep.mubr.bf16.mxu0 0
      %2229 = vmatmul.mubr.bf16.gmra.mxu0 %v2130
      %v2230 = vpop.f32.mrf.mxu0
      %v2231 = vadd.f32 0.0, %v2230
      %v2232 = vpop.f32.mrf.mxu0
      %v2233 = vpop.f32.mrf.mxu0
      %v2234 = vadd.f32 0.0, %v2233
      %v2235 = vpop.f32.mrf.mxu0
      %2236 = vmatprep.mubr.bf16.mxu0 0
      %2237 = vmatmul.mubr.bf16.gmra.mxu0 %v2133
      %v2238 = vpop.f32.mrf.mxu0
      %v2239 = vadd.f32 0.0, %v2238
      %v2240 = vpop.f32.mrf.mxu0
      %v2241 = vpop.f32.mrf.mxu0
      %v2242 = vadd.f32 0.0, %v2241
      %v2243 = vpop.f32.mrf.mxu0
      %2244 = vmatprep.mubr.bf16.mxu0 0
      %2245 = vmatmul.mubr.bf16.gmra.mxu0 %v2136
      %v2246 = vpop.f32.mrf.mxu0
      %v2247 = vadd.f32 0.0, %v2246
      %v2248 = vpop.f32.mrf.mxu0
      %v2249 = vpop.f32.mrf.mxu0
      %v2250 = vadd.f32 0.0, %v2249
      %v2251 = vpop.f32.mrf.mxu0
      %2252 = vmatprep.mubr.bf16.mxu0 0
      %2253 = vmatmul.mubr.bf16.gmra.mxu0 %v2139
      %v2254 = vpop.f32.mrf.mxu0
      %v2255 = vadd.f32 0.0, %v2254
      %v2256 = vpop.f32.mrf.mxu0
      %v2257 = vpop.f32.mrf.mxu0
      %v2258 = vadd.f32 0.0, %v2257
      %v2259 = vpop.f32.mrf.mxu0
      %2260 = vmatprep.mubr.bf16.mxu0 0
      %2261 = vmatmul.mubr.bf16.gmra.mxu0 %v2142
      %v2262 = vpop.f32.mrf.mxu0
      %v2263 = vadd.f32 0.0, %v2262
      %v2264 = vpop.f32.mrf.mxu0
      %v2265 = vpop.f32.mrf.mxu0
      %v2266 = vadd.f32 0.0, %v2265
      %v2267 = vpop.f32.mrf.mxu0
      %2268 = vmatprep.mubr.bf16.mxu0 0
      %2269 = vmatmul.mubr.bf16.gmra.mxu0 %v2145
      %v2270 = vpop.f32.mrf.mxu0
      %v2271 = vadd.f32 0.0, %v2270
      %v2272 = vpop.f32.mrf.mxu0
      %v2273 = vpop.f32.mrf.mxu0
      %v2274 = vadd.f32 0.0, %v2273
      %v2275 = vpop.f32.mrf.mxu0
      %2276 = vmatprep.mubr.bf16.mxu0 0
      %2277 = vmatmul.mubr.bf16.gmra.mxu0 %v2148
      %v2278 = vpop.f32.mrf.mxu0
      %v2279 = vadd.f32 0.0, %v2278
      %v2280 = vpop.f32.mrf.mxu0
      %v2281 = vpop.f32.mrf.mxu0
      %v2282 = vadd.f32 0.0, %v2281
      %v2283 = vpop.f32.mrf.mxu0
      %2284 = vmatprep.mubr.bf16.mxu0 0
      %2285 = vmatmul.mubr.bf16.gmra.mxu0 %v2151
      %v2286 = vpop.f32.mrf.mxu0
      %v2287 = vadd.f32 0.0, %v2286
      %v2288 = vpop.f32.mrf.mxu0
      %v2289 = vpop.f32.mrf.mxu0
      %v2290 = vadd.f32 0.0, %v2289
      %v2291 = vpop.f32.mrf.mxu0
      %2292 = vmatprep.mubr.bf16.mxu0 0
      %2293 = vmatmul.mubr.bf16.gmra.mxu0 %v2154
      %v2294 = vpop.f32.mrf.mxu0
      %v2295 = vadd.f32 0.0, %v2294
      %v2296 = vpop.f32.mrf.mxu0
      %v2297 = vpop.f32.mrf.mxu0
      %v2298 = vadd.f32 0.0, %v2297
      %v2299 = vpop.f32.mrf.mxu0
      %2300 = vmatprep.mubr.bf16.mxu0 0
      %2301 = vmatmul.mubr.bf16.gmra.mxu0 %v2157
      %v2302 = vpop.f32.mrf.mxu0
      %v2303 = vadd.f32 0.0, %v2302
      %v2304 = vpop.f32.mrf.mxu0
      %v2305 = vpop.f32.mrf.mxu0
      %v2306 = vadd.f32 0.0, %v2305
      %v2307 = vpop.f32.mrf.mxu0
      %2308 = vmatprep.mubr.bf16.mxu0 0
      %2309 = vmatmul.mubr.bf16.gmra.mxu0 %v2160
      %v2310 = vpop.f32.mrf.mxu0
      %v2311 = vadd.f32 0.0, %v2310
      %v2312 = vpop.f32.mrf.mxu0
      %v2313 = vpop.f32.mrf.mxu0
      %v2314 = vadd.f32 0.0, %v2313
      %v2315 = vpop.f32.mrf.mxu0
      %2316 = vmatprep.mubr.bf16.mxu0 0
      %2317 = vmatmul.mubr.bf16.gmra.mxu0 %v2163
      %v2318 = vpop.f32.mrf.mxu0
      %v2319 = vadd.f32 0.0, %v2318
      %v2320 = vpop.f32.mrf.mxu0
      %v2321 = vpop.f32.mrf.mxu0
      %v2322 = vadd.f32 0.0, %v2321
      %v2323 = vpop.f32.mrf.mxu0
      %2324 = vmatprep.mubr.bf16.mxu0 0
      %2325 = vmatmul.mubr.bf16.gmra.mxu0 %v2166
      %v2326 = vpop.f32.mrf.mxu0
      %v2327 = vadd.f32 0.0, %v2326
      %v2328 = vpop.f32.mrf.mxu0
      %v2329 = vpop.f32.mrf.mxu0
      %v2330 = vadd.f32 0.0, %v2329
      %v2331 = vpop.f32.mrf.mxu0
      %2332 = vmatprep.mubr.bf16.mxu0 0
      %2333 = vmatmul.mubr.bf16.gmra.mxu0 %v2169
      %v2334 = vpop.f32.mrf.mxu0
      %v2335 = vadd.f32 0.0, %v2334
      %v2336 = vpop.f32.mrf.mxu0
      %v2337 = vpop.f32.mrf.mxu0
      %v2338 = vadd.f32 0.0, %v2337
      %v2339 = vpop.f32.mrf.mxu0
      %2340 = vmatprep.mubr.bf16.mxu0 0
      %2341 = vmatmul.mubr.bf16.gmra.mxu0 %v2172
      %v2342 = vpop.f32.mrf.mxu0
      %v2343 = vadd.f32 0.0, %v2342
      %v2344 = vpop.f32.mrf.mxu0
      %v2345 = vpop.f32.mrf.mxu0
      %v2346 = vadd.f32 0.0, %v2345
      %v2347 = vpop.f32.mrf.mxu0
      %2348 = vmatprep.mubr.bf16.mxu0 0
      %2349 = vmatmul.mubr.bf16.gmra.mxu0 %v2175
      %v2350 = vpop.f32.mrf.mxu0
      %v2351 = vadd.f32 0.0, %v2350
      %v2352 = vpop.f32.mrf.mxu0
      %v2353 = vpop.f32.mrf.mxu0
      %v2354 = vadd.f32 0.0, %v2353
      %v2355 = vpop.f32.mrf.mxu0
      %2356 = vdwg.mxu0
      %v2357 = vadd.f32 %v2043, %v2215
      %v2358 = vadd.f32 %v2044, %v2218
      %v2359 = vadd.f32 %v2045, %v2223
      %v2360 = vadd.f32 %v2046, %v2226
      %v2361 = vadd.f32 %v2047, %v2231
      %v2362 = vadd.f32 %v2048, %v2234
      %v2363 = vadd.f32 %v2049, %v2239
      %v2364 = vadd.f32 %v2050, %v2242
      %v2365 = vadd.f32 %v2051, %v2247
      %v2366 = vadd.f32 %v2052, %v2250
      %v2367 = vadd.f32 %v2053, %v2255
      %v2368 = vadd.f32 %v2054, %v2258
      %v2369 = vadd.f32 %v2055, %v2263
      %v2370 = vadd.f32 %v2056, %v2266
      %v2371 = vadd.f32 %v2057, %v2271
      %v2372 = vadd.f32 %v2058, %v2274
      %v2373 = vadd.f32 %v2059, %v2279
      %v2374 = vadd.f32 %v2060, %v2282
      %v2375 = vadd.f32 %v2061, %v2287
      %v2376 = vadd.f32 %v2062, %v2290
      %v2377 = vadd.f32 %v2063, %v2295
      %v2378 = vadd.f32 %v2064, %v2298
      %v2379 = vadd.f32 %v2065, %v2303
      %v2380 = vadd.f32 %v2066, %v2306
      %v2381 = vadd.f32 %v2067, %v2311
      %v2382 = vadd.f32 %v2068, %v2314
      %v2383 = vadd.f32 %v2069, %v2319
      %v2384 = vadd.f32 %v2070, %v2322
      %v2385 = vadd.f32 %v2071, %v2327
      %v2386 = vadd.f32 %v2072, %v2330
      %v2387 = vadd.f32 %v2073, %v2335
      %v2388 = vadd.f32 %v2074, %v2338
      %v2389 = vadd.f32 %v2075, %v2343
      %v2390 = vadd.f32 %v2076, %v2346
      %v2391 = vadd.f32 %v2077, %v2351
      %v2392 = vadd.f32 %v2078, %v2354
      %v2393 = vld [vmem:[%s138 + $0x10] sm:$0xc]
      %v2394 = vld [vmem:[%s138 + $0x14] sm:$0xf]
      %v2395 = vld [vmem:[%s138 + $0x18] sm:$0xf]
      %v2396 = vld [vmem:[%s138 + $0x1c] sm:$0xf]
      %v2397 = vld [vmem:[%s138 + $0x20] sm:$0xf]
      %v2398 = vld [vmem:[%s138 + $0x24] sm:$0xf]
      %v2399 = vld [vmem:[%s138 + $0x28] sm:$0xf]
      %v2400 = vld [vmem:[%s138 + $0x2c] sm:$0xf]
      %v2401 = vld [vmem:[%s138 + $0x30] sm:$0xf]
      %v2402 = vld [vmem:[%s138 + $0x34] sm:$0xf]
      %v2403 = vld [vmem:[%s138 + $0x38] sm:$0xf]
      %v2404 = vld [vmem:[%s138 + $0x3c] sm:$0xf]
      %v2405 = vld [vmem:[%s138 + $0x40] sm:$0xf]
      %v2406 = vld [vmem:[%s138 + $0x44] sm:$0xf]
      %v2407 = vld [vmem:[%s138 + $0x48] sm:$0xf]
      %v2408 = vld [vmem:[%s138 + $0x4c] sm:$0xf]
      %v2409 = vld [vmem:[%s138 + $0x50] sm:$0xf]
      %v2410 = vld [vmem:[%s138 + $0x54] sm:$0xf]
      %v2411 = vld [vmem:[%s138 + $0x58] sm:$0xf]
      %v2412 = vld [vmem:[%s138 + $0x5c] sm:$0xf]
      %v2413 = vld [vmem:[%s138 + $0x60] sm:$0xf]
      %v2414 = vld [vmem:[%s138 + $0x64] sm:$0xf]
      %v2415 = vld [vmem:[%s138 + $0x68] sm:$0xf]
      %v2416 = vld [vmem:[%s138 + $0x6c] sm:$0xf]
      %v2417 = vld [vmem:[%s138 + $0x70] sm:$0xf]
      %v2418 = vld [vmem:[%s138 + $0x74] sm:$0xf]
      %v2419 = vld [vmem:[%s138 + $0x78] sm:$0xf]
      %v2420 = vld [vmem:[%s138 + $0x7c] sm:$0xf]
      %v2421 = vld [vmem:[%s138 + $0x80] sm:$0xf]
      %v2422 = vld [vmem:[%s138 + $0x84] sm:$0xf]
      %v2423 = vld [vmem:[%s138 + $0x88] sm:$0xf]
      %v2424 = vld [vmem:[%s138 + $0x8c] sm:$0xf]
      %v2425 = vld [vmem:[%s138 + $0x90] sm:$0xf]
      %v2426 = vld [vmem:[%s138 + $0x94] sm:$0xf]
      %v2427 = vld [vmem:[%s138 + $0x98] sm:$0xf]
      %v2428 = vld [vmem:[%s138 + $0x9c] sm:$0xf]
      %v2429 = vld [vmem:[%s138 + $0xa0] sm:$0x3]
      %s2430 = scalar_lea.vmem %s1, 12
      %v2431 = vld [vmem:[%s2430] sm:$0x3]
      %v2469 = vunpack.c.l.b16 %v2393
      %v2470 = vunpack.c.l.b16 %v2394
      %v2471 = vunpack.c.l.b16 %v2395
      %v2472 = vunpack.c.l.b16 %v2396
      %v2473 = vunpack.c.l.b16 %v2397
      %v2474 = vunpack.c.l.b16 %v2398
      %v2475 = vunpack.c.l.b16 %v2399
      %v2476 = vunpack.c.l.b16 %v2400
      %v2477 = vunpack.c.l.b16 %v2401
      %v2478 = vunpack.c.l.b16 %v2402
      %v2479 = vunpack.c.l.b16 %v2403
      %v2480 = vunpack.c.l.b16 %v2404
      %v2481 = vunpack.c.l.b16 %v2405
      %v2482 = vunpack.c.l.b16 %v2406
      %v2483 = vunpack.c.l.b16 %v2407
      %v2484 = vunpack.c.l.b16 %v2408
      %v2485 = vunpack.c.l.b16 %v2409
      %v2486 = vunpack.c.l.b16 %v2410
      %v2487 = vunpack.c.l.b16 %v2411
      %v2488 = vunpack.c.l.b16 %v2412
      %v2489 = vunpack.c.l.b16 %v2413
      %v2490 = vunpack.c.l.b16 %v2414
      %v2491 = vunpack.c.l.b16 %v2415
      %v2492 = vunpack.c.l.b16 %v2416
      %v2493 = vunpack.c.l.b16 %v2417
      %v2494 = vunpack.c.l.b16 %v2418
      %v2495 = vunpack.c.l.b16 %v2419
      %v2496 = vunpack.c.l.b16 %v2420
      %v2497 = vunpack.c.l.b16 %v2421
      %v2498 = vunpack.c.l.b16 %v2422
      %v2499 = vunpack.c.l.b16 %v2423
      %v2500 = vunpack.c.l.b16 %v2424
      %v2501 = vunpack.c.l.b16 %v2425
      %v2502 = vunpack.c.l.b16 %v2426
      %v2503 = vunpack.c.l.b16 %v2427
      %v2504 = vunpack.c.l.b16 %v2428
      %v2505 = vunpack.c.l.b16 %v2429
      %v2506 = vpack.c.b16 %v2470, %v2469
      %v2507 = vpack.c.b16 %v2472, %v2471
      %v2508 = vpack.c.b16 %v2474, %v2473
      %v2509 = vpack.c.b16 %v2476, %v2475
      %v2510 = vpack.c.b16 %v2478, %v2477
      %v2511 = vpack.c.b16 %v2480, %v2479
      %v2512 = vpack.c.b16 %v2482, %v2481
      %v2513 = vpack.c.b16 %v2484, %v2483
      %v2514 = vpack.c.b16 %v2486, %v2485
      %v2515 = vpack.c.b16 %v2488, %v2487
      %v2516 = vpack.c.b16 %v2490, %v2489
      %v2517 = vpack.c.b16 %v2492, %v2491
      %v2518 = vpack.c.b16 %v2494, %v2493
      %v2519 = vpack.c.b16 %v2496, %v2495
      %v2520 = vpack.c.b16 %v2498, %v2497
      %v2521 = vpack.c.b16 %v2500, %v2499
      %v2522 = vpack.c.b16 %v2502, %v2501
      %v2523 = vpack.c.b16 %v2504, %v2503
      %v2524 = vpack.c.b16 %v2505, %v2505
      %v2525 = vrot.slane %v2506, 2
      %v2526 = vrot.slane %v2507, 2
      %v2527 = vsel %vm2085, %v2525, %v2526
      %v2528 = vrot.slane %v2508, 2
      %v2529 = vsel %vm2085, %v2526, %v2528
      %v2530 = vrot.slane %v2509, 2
      %v2531 = vsel %vm2085, %v2528, %v2530
      %v2532 = vrot.slane %v2510, 2
      %v2533 = vsel %vm2085, %v2530, %v2532
      %v2534 = vrot.slane %v2511, 2
      %v2535 = vsel %vm2085, %v2532, %v2534
      %v2536 = vrot.slane %v2512, 2
      %v2537 = vsel %vm2085, %v2534, %v2536
      %v2538 = vrot.slane %v2513, 2
      %v2539 = vsel %vm2085, %v2536, %v2538
      %v2540 = vrot.slane %v2514, 2
      %v2541 = vsel %vm2085, %v2538, %v2540
      %v2542 = vrot.slane %v2515, 2
      %v2543 = vsel %vm2085, %v2540, %v2542
      %v2544 = vrot.slane %v2516, 2
      %v2545 = vsel %vm2085, %v2542, %v2544
      %v2546 = vrot.slane %v2517, 2
      %v2547 = vsel %vm2085, %v2544, %v2546
      %v2548 = vrot.slane %v2518, 2
      %v2549 = vsel %vm2085, %v2546, %v2548
      %v2550 = vrot.slane %v2519, 2
      %v2551 = vsel %vm2085, %v2548, %v2550
      %v2552 = vrot.slane %v2520, 2
      %v2553 = vsel %vm2085, %v2550, %v2552
      %v2554 = vrot.slane %v2521, 2
      %v2555 = vsel %vm2085, %v2552, %v2554
      %v2556 = vrot.slane %v2522, 2
      %v2557 = vsel %vm2085, %v2554, %v2556
      %v2558 = vrot.slane %v2523, 2
      %v2559 = vsel %vm2085, %v2556, %v2558
      %v2560 = vrot.slane %v2524, 2
      %v2561 = vsel %vm2085, %v2558, %v2560
      %v2563 = vsel %vm427, %v2527, 0
      %v2566 = vsel %vm427, %v2529, 0
      %v2569 = vsel %vm427, %v2531, 0
      %v2572 = vsel %vm427, %v2533, 0
      %v2575 = vsel %vm427, %v2535, 0
      %v2578 = vsel %vm427, %v2537, 0
      %v2581 = vsel %vm427, %v2539, 0
      %v2584 = vsel %vm427, %v2541, 0
      %v2587 = vsel %vm427, %v2543, 0
      %v2590 = vsel %vm427, %v2545, 0
      %v2593 = vsel %vm427, %v2547, 0
      %v2596 = vsel %vm427, %v2549, 0
      %v2599 = vsel %vm427, %v2551, 0
      %v2602 = vsel %vm427, %v2553, 0
      %v2605 = vsel %vm427, %v2555, 0
      %v2608 = vsel %vm427, %v2557, 0
      %v2611 = vsel %vm427, %v2559, 0
      %v2614 = vsel %vm427, %v2561, 0
      %v2617 = vsel %vm482, %v2431, 0
      %2619 = vmatprep.subr.bf16.mxu0 0
      %2620 = vmatpush1.bf16.msra.mxu0 0
      %2621 = vmatprep.subr.bf16.mxu0 0
      %2622 = vmatpush1.bf16.msra.mxu0 0
      %2623 = vmatprep.subr.bf16.mxu0 0
      %2624 = vmatpush1.bf16.msra.mxu0 0
      %2625 = vmatprep.subr.bf16.mxu0 0
      %2626 = vmatpush1.bf16.msra.mxu0 0
      %2627 = vmatprep.subr.bf16.mxu0 0
      %2628 = vmatpush1.bf16.msra.mxu0 0
      %2629 = vmatprep.subr.bf16.mxu0 0
      %2630 = vmatpush1.bf16.msra.mxu0 0
      %2631 = vmatprep.subr.bf16.mxu0 0
      %2632 = vmatpush1.bf16.msra.mxu0 0
      %2633 = vmatprep.subr.bf16.mxu0 0
      %2634 = vmatpush1.bf16.msra.mxu0 %v2617
      %2635 = vmatprep.subr.bf16.mxu0 0
      %2636 = vmatpush2.bf16.msra.mxu0 0
      %2637 = vmatprep.subr.bf16.mxu0 0
      %2638 = vmatpush2.bf16.msra.mxu0 0
      %2639 = vmatprep.subr.bf16.mxu0 0
      %2640 = vmatpush2.bf16.msra.mxu0 0
      %2641 = vmatprep.subr.bf16.mxu0 0
      %2642 = vmatpush2.bf16.msra.mxu0 0
      %2643 = vmatprep.subr.bf16.mxu0 0
      %2644 = vmatpush2.bf16.msra.mxu0 0
      %2645 = vmatprep.subr.bf16.mxu0 0
      %2646 = vmatpush2.bf16.msra.mxu0 0
      %2647 = vmatprep.subr.bf16.mxu0 0
      %2648 = vmatpush2.bf16.msra.mxu0 0
      %2649 = vmatprep.subr.bf16.mxu0 0
      %2650 = vmatpush2.bf16.msra.mxu0 0
      %2651 = vmatprep.mubr.bf16.mxu0 0
      %2652 = vmatmul.mubr.bf16.gmra.mxu0 %v2563
      %v2653 = vpop.f32.mrf.mxu0
      %v2654 = vadd.f32 0.0, %v2653
      %v2655 = vpop.f32.mrf.mxu0
      %v2656 = vpop.f32.mrf.mxu0
      %v2657 = vadd.f32 0.0, %v2656
      %v2658 = vpop.f32.mrf.mxu0
      %2659 = vmatprep.mubr.bf16.mxu0 0
      %2660 = vmatmul.mubr.bf16.gmra.mxu0 %v2566
      %v2661 = vpop.f32.mrf.mxu0
      %v2662 = vadd.f32 0.0, %v2661
      %v2663 = vpop.f32.mrf.mxu0
      %v2664 = vpop.f32.mrf.mxu0
      %v2665 = vadd.f32 0.0, %v2664
      %v2666 = vpop.f32.mrf.mxu0
      %2667 = vmatprep.mubr.bf16.mxu0 0
      %2668 = vmatmul.mubr.bf16.gmra.mxu0 %v2569
      %v2669 = vpop.f32.mrf.mxu0
      %v2670 = vadd.f32 0.0, %v2669
      %v2671 = vpop.f32.mrf.mxu0
      %v2672 = vpop.f32.mrf.mxu0
      %v2673 = vadd.f32 0.0, %v2672
      %v2674 = vpop.f32.mrf.mxu0
      %2675 = vmatprep.mubr.bf16.mxu0 0
      %2676 = vmatmul.mubr.bf16.gmra.mxu0 %v2572
      %v2677 = vpop.f32.mrf.mxu0
      %v2678 = vadd.f32 0.0, %v2677
      %v2679 = vpop.f32.mrf.mxu0
      %v2680 = vpop.f32.mrf.mxu0
      %v2681 = vadd.f32 0.0, %v2680
      %v2682 = vpop.f32.mrf.mxu0
      %2683 = vmatprep.mubr.bf16.mxu0 0
      %2684 = vmatmul.mubr.bf16.gmra.mxu0 %v2575
      %v2685 = vpop.f32.mrf.mxu0
      %v2686 = vadd.f32 0.0, %v2685
      %v2687 = vpop.f32.mrf.mxu0
      %v2688 = vpop.f32.mrf.mxu0
      %v2689 = vadd.f32 0.0, %v2688
      %v2690 = vpop.f32.mrf.mxu0
      %2691 = vmatprep.mubr.bf16.mxu0 0
      %2692 = vmatmul.mubr.bf16.gmra.mxu0 %v2578
      %v2693 = vpop.f32.mrf.mxu0
      %v2694 = vadd.f32 0.0, %v2693
      %v2695 = vpop.f32.mrf.mxu0
      %v2696 = vpop.f32.mrf.mxu0
      %v2697 = vadd.f32 0.0, %v2696
      %v2698 = vpop.f32.mrf.mxu0
      %2699 = vmatprep.mubr.bf16.mxu0 0
      %2700 = vmatmul.mubr.bf16.gmra.mxu0 %v2581
      %v2701 = vpop.f32.mrf.mxu0
      %v2702 = vadd.f32 0.0, %v2701
      %v2703 = vpop.f32.mrf.mxu0
      %v2704 = vpop.f32.mrf.mxu0
      %v2705 = vadd.f32 0.0, %v2704
      %v2706 = vpop.f32.mrf.mxu0
      %2707 = vmatprep.mubr.bf16.mxu0 0
      %2708 = vmatmul.mubr.bf16.gmra.mxu0 %v2584
      %v2709 = vpop.f32.mrf.mxu0
      %v2710 = vadd.f32 0.0, %v2709
      %v2711 = vpop.f32.mrf.mxu0
      %v2712 = vpop.f32.mrf.mxu0
      %v2713 = vadd.f32 0.0, %v2712
      %v2714 = vpop.f32.mrf.mxu0
      %2715 = vmatprep.mubr.bf16.mxu0 0
      %2716 = vmatmul.mubr.bf16.gmra.mxu0 %v2587
      %v2717 = vpop.f32.mrf.mxu0
      %v2718 = vadd.f32 0.0, %v2717
      %v2719 = vpop.f32.mrf.mxu0
      %v2720 = vpop.f32.mrf.mxu0
      %v2721 = vadd.f32 0.0, %v2720
      %v2722 = vpop.f32.mrf.mxu0
      %2723 = vmatprep.mubr.bf16.mxu0 0
      %2724 = vmatmul.mubr.bf16.gmra.mxu0 %v2590
      %v2725 = vpop.f32.mrf.mxu0
      %v2726 = vadd.f32 0.0, %v2725
      %v2727 = vpop.f32.mrf.mxu0
      %v2728 = vpop.f32.mrf.mxu0
      %v2729 = vadd.f32 0.0, %v2728
      %v2730 = vpop.f32.mrf.mxu0
      %2731 = vmatprep.mubr.bf16.mxu0 0
      %2732 = vmatmul.mubr.bf16.gmra.mxu0 %v2593
      %v2733 = vpop.f32.mrf.mxu0
      %v2734 = vadd.f32 0.0, %v2733
      %v2735 = vpop.f32.mrf.mxu0
      %v2736 = vpop.f32.mrf.mxu0
      %v2737 = vadd.f32 0.0, %v2736
      %v2738 = vpop.f32.mrf.mxu0
      %2739 = vmatprep.mubr.bf16.mxu0 0
      %2740 = vmatmul.mubr.bf16.gmra.mxu0 %v2596
      %v2741 = vpop.f32.mrf.mxu0
      %v2742 = vadd.f32 0.0, %v2741
      %v2743 = vpop.f32.mrf.mxu0
      %v2744 = vpop.f32.mrf.mxu0
      %v2745 = vadd.f32 0.0, %v2744
      %v2746 = vpop.f32.mrf.mxu0
      %2747 = vmatprep.mubr.bf16.mxu0 0
      %2748 = vmatmul.mubr.bf16.gmra.mxu0 %v2599
      %v2749 = vpop.f32.mrf.mxu0
      %v2750 = vadd.f32 0.0, %v2749
      %v2751 = vpop.f32.mrf.mxu0
      %v2752 = vpop.f32.mrf.mxu0
      %v2753 = vadd.f32 0.0, %v2752
      %v2754 = vpop.f32.mrf.mxu0
      %2755 = vmatprep.mubr.bf16.mxu0 0
      %2756 = vmatmul.mubr.bf16.gmra.mxu0 %v2602
      %v2757 = vpop.f32.mrf.mxu0
      %v2758 = vadd.f32 0.0, %v2757
      %v2759 = vpop.f32.mrf.mxu0
      %v2760 = vpop.f32.mrf.mxu0
      %v2761 = vadd.f32 0.0, %v2760
      %v2762 = vpop.f32.mrf.mxu0
      %2763 = vmatprep.mubr.bf16.mxu0 0
      %2764 = vmatmul.mubr.bf16.gmra.mxu0 %v2605
      %v2765 = vpop.f32.mrf.mxu0
      %v2766 = vadd.f32 0.0, %v2765
      %v2767 = vpop.f32.mrf.mxu0
      %v2768 = vpop.f32.mrf.mxu0
      %v2769 = vadd.f32 0.0, %v2768
      %v2770 = vpop.f32.mrf.mxu0
      %2771 = vmatprep.mubr.bf16.mxu0 0
      %2772 = vmatmul.mubr.bf16.gmra.mxu0 %v2608
      %v2773 = vpop.f32.mrf.mxu0
      %v2774 = vadd.f32 0.0, %v2773
      %v2775 = vpop.f32.mrf.mxu0
      %v2776 = vpop.f32.mrf.mxu0
      %v2777 = vadd.f32 0.0, %v2776
      %v2778 = vpop.f32.mrf.mxu0
      %2779 = vmatprep.mubr.bf16.mxu0 0
      %2780 = vmatmul.mubr.bf16.gmra.mxu0 %v2611
      %v2781 = vpop.f32.mrf.mxu0
      %v2782 = vadd.f32 0.0, %v2781
      %v2783 = vpop.f32.mrf.mxu0
      %v2784 = vpop.f32.mrf.mxu0
      %v2785 = vadd.f32 0.0, %v2784
      %v2786 = vpop.f32.mrf.mxu0
      %2787 = vmatprep.mubr.bf16.mxu0 0
      %2788 = vmatmul.mubr.bf16.gmra.mxu0 %v2614
      %v2789 = vpop.f32.mrf.mxu0
      %v2790 = vadd.f32 0.0, %v2789
      %v2791 = vpop.f32.mrf.mxu0
      %v2792 = vpop.f32.mrf.mxu0
      %v2793 = vadd.f32 0.0, %v2792
      %v2794 = vpop.f32.mrf.mxu0
      %2795 = vdwg.mxu0
      %v2796 = vadd.f32 %v2357, %v2654
      %v2797 = vadd.f32 %v2358, %v2657
      %v2798 = vadd.f32 %v2359, %v2662
      %v2799 = vadd.f32 %v2360, %v2665
      %v2800 = vadd.f32 %v2361, %v2670
      %v2801 = vadd.f32 %v2362, %v2673
      %v2802 = vadd.f32 %v2363, %v2678
      %v2803 = vadd.f32 %v2364, %v2681
      %v2804 = vadd.f32 %v2365, %v2686
      %v2805 = vadd.f32 %v2366, %v2689
      %v2806 = vadd.f32 %v2367, %v2694
      %v2807 = vadd.f32 %v2368, %v2697
      %v2808 = vadd.f32 %v2369, %v2702
      %v2809 = vadd.f32 %v2370, %v2705
      %v2810 = vadd.f32 %v2371, %v2710
      %v2811 = vadd.f32 %v2372, %v2713
      %v2812 = vadd.f32 %v2373, %v2718
      %v2813 = vadd.f32 %v2374, %v2721
      %v2814 = vadd.f32 %v2375, %v2726
      %v2815 = vadd.f32 %v2376, %v2729
      %v2816 = vadd.f32 %v2377, %v2734
      %v2817 = vadd.f32 %v2378, %v2737
      %v2818 = vadd.f32 %v2379, %v2742
      %v2819 = vadd.f32 %v2380, %v2745
      %v2820 = vadd.f32 %v2381, %v2750
      %v2821 = vadd.f32 %v2382, %v2753
      %v2822 = vadd.f32 %v2383, %v2758
      %v2823 = vadd.f32 %v2384, %v2761
      %v2824 = vadd.f32 %v2385, %v2766
      %v2825 = vadd.f32 %v2386, %v2769
      %v2826 = vadd.f32 %v2387, %v2774
      %v2827 = vadd.f32 %v2388, %v2777
      %v2828 = vadd.f32 %v2389, %v2782
      %v2829 = vadd.f32 %v2390, %v2785
      %v2830 = vadd.f32 %v2391, %v2790
      %v2831 = vadd.f32 %v2392, %v2793
      %v2832 = vld [vmem:[%s138 + $0xa0] sm:$0x7]
      %s2833 = scalar_lea.vmem %s1, 14
      %v2834 = vld [vmem:[%s2833] sm:$0x3]
      %v2836 = vunpack.c.l.b16 %v2832
      %v2837 = vpack.c.b16 %v2836, %v2836
      %vm2838 = vsmask.f32 5376
      %v2840 = vshrl.u32 %v2506, 16
      %v2842 = vrot.slane %v2840, 2
      %v2843 = vshll.u32 %v2506, 16
      %v2845 = vrot.slane %v2843, 3
      %v2846 = vor.u32 %v2842, %v2845
      %v2848 = vshrl.u32 %v2507, 16
      %v2850 = vrot.slane %v2848, 2
      %v2851 = vshll.u32 %v2507, 16
      %v2853 = vrot.slane %v2851, 3
      %v2854 = vor.u32 %v2850, %v2853
      %v2855 = vsel %vm2838, %v2846, %v2854
      %v2857 = vshrl.u32 %v2508, 16
      %v2859 = vrot.slane %v2857, 2
      %v2860 = vshll.u32 %v2508, 16
      %v2862 = vrot.slane %v2860, 3
      %v2863 = vor.u32 %v2859, %v2862
      %v2864 = vsel %vm2838, %v2854, %v2863
      %v2866 = vshrl.u32 %v2509, 16
      %v2868 = vrot.slane %v2866, 2
      %v2869 = vshll.u32 %v2509, 16
      %v2871 = vrot.slane %v2869, 3
      %v2872 = vor.u32 %v2868, %v2871
      %v2873 = vsel %vm2838, %v2863, %v2872
      %v2875 = vshrl.u32 %v2510, 16
      %v2877 = vrot.slane %v2875, 2
      %v2878 = vshll.u32 %v2510, 16
      %v2880 = vrot.slane %v2878, 3
      %v2881 = vor.u32 %v2877, %v2880
      %v2882 = vsel %vm2838, %v2872, %v2881
      %v2884 = vshrl.u32 %v2511, 16
      %v2886 = vrot.slane %v2884, 2
      %v2887 = vshll.u32 %v2511, 16
      %v2889 = vrot.slane %v2887, 3
      %v2890 = vor.u32 %v2886, %v2889
      %v2891 = vsel %vm2838, %v2881, %v2890
      %v2893 = vshrl.u32 %v2512, 16
      %v2895 = vrot.slane %v2893, 2
      %v2896 = vshll.u32 %v2512, 16
      %v2898 = vrot.slane %v2896, 3
      %v2899 = vor.u32 %v2895, %v2898
      %v2900 = vsel %vm2838, %v2890, %v2899
      %v2902 = vshrl.u32 %v2513, 16
      %v2904 = vrot.slane %v2902, 2
      %v2905 = vshll.u32 %v2513, 16
      %v2907 = vrot.slane %v2905, 3
      %v2908 = vor.u32 %v2904, %v2907
      %v2909 = vsel %vm2838, %v2899, %v2908
      %v2911 = vshrl.u32 %v2514, 16
      %v2913 = vrot.slane %v2911, 2
      %v2914 = vshll.u32 %v2514, 16
      %v2916 = vrot.slane %v2914, 3
      %v2917 = vor.u32 %v2913, %v2916
      %v2918 = vsel %vm2838, %v2908, %v2917
      %v2920 = vshrl.u32 %v2515, 16
      %v2922 = vrot.slane %v2920, 2
      %v2923 = vshll.u32 %v2515, 16
      %v2925 = vrot.slane %v2923, 3
      %v2926 = vor.u32 %v2922, %v2925
      %v2927 = vsel %vm2838, %v2917, %v2926
      %v2929 = vshrl.u32 %v2516, 16
      %v2931 = vrot.slane %v2929, 2
      %v2932 = vshll.u32 %v2516, 16
      %v2934 = vrot.slane %v2932, 3
      %v2935 = vor.u32 %v2931, %v2934
      %v2936 = vsel %vm2838, %v2926, %v2935
      %v2938 = vshrl.u32 %v2517, 16
      %v2940 = vrot.slane %v2938, 2
      %v2941 = vshll.u32 %v2517, 16
      %v2943 = vrot.slane %v2941, 3
      %v2944 = vor.u32 %v2940, %v2943
      %v2945 = vsel %vm2838, %v2935, %v2944
      %v2947 = vshrl.u32 %v2518, 16
      %v2949 = vrot.slane %v2947, 2
      %v2950 = vshll.u32 %v2518, 16
      %v2952 = vrot.slane %v2950, 3
      %v2953 = vor.u32 %v2949, %v2952
      %v2954 = vsel %vm2838, %v2944, %v2953
      %v2956 = vshrl.u32 %v2519, 16
      %v2958 = vrot.slane %v2956, 2
      %v2959 = vshll.u32 %v2519, 16
      %v2961 = vrot.slane %v2959, 3
      %v2962 = vor.u32 %v2958, %v2961
      %v2963 = vsel %vm2838, %v2953, %v2962
      %v2965 = vshrl.u32 %v2520, 16
      %v2967 = vrot.slane %v2965, 2
      %v2968 = vshll.u32 %v2520, 16
      %v2970 = vrot.slane %v2968, 3
      %v2971 = vor.u32 %v2967, %v2970
      %v2972 = vsel %vm2838, %v2962, %v2971
      %v2974 = vshrl.u32 %v2521, 16
      %v2976 = vrot.slane %v2974, 2
      %v2977 = vshll.u32 %v2521, 16
      %v2979 = vrot.slane %v2977, 3
      %v2980 = vor.u32 %v2976, %v2979
      %v2981 = vsel %vm2838, %v2971, %v2980
      %v2983 = vshrl.u32 %v2522, 16
      %v2985 = vrot.slane %v2983, 2
      %v2986 = vshll.u32 %v2522, 16
      %v2988 = vrot.slane %v2986, 3
      %v2989 = vor.u32 %v2985, %v2988
      %v2990 = vsel %vm2838, %v2980, %v2989
      %v2992 = vshrl.u32 %v2523, 16
      %v2994 = vrot.slane %v2992, 2
      %v2995 = vshll.u32 %v2523, 16
      %v2997 = vrot.slane %v2995, 3
      %v2998 = vor.u32 %v2994, %v2997
      %v2999 = vsel %vm2838, %v2989, %v2998
      %v3001 = vshrl.u32 %v2837, 16
      %v3003 = vrot.slane %v3001, 2
      %v3004 = vshll.u32 %v2837, 16
      %v3006 = vrot.slane %v3004, 3
      %v3007 = vor.u32 %v3003, %v3006
      %v3008 = vsel %vm2838, %v2998, %v3007
      %v3010 = vsel %vm427, %v2855, 0
      %v3013 = vsel %vm427, %v2864, 0
      %v3016 = vsel %vm427, %v2873, 0
      %v3019 = vsel %vm427, %v2882, 0
      %v3022 = vsel %vm427, %v2891, 0
      %v3025 = vsel %vm427, %v2900, 0
      %v3028 = vsel %vm427, %v2909, 0
      %v3031 = vsel %vm427, %v2918, 0
      %v3034 = vsel %vm427, %v2927, 0
      %v3037 = vsel %vm427, %v2936, 0
      %v3040 = vsel %vm427, %v2945, 0
      %v3043 = vsel %vm427, %v2954, 0
      %v3046 = vsel %vm427, %v2963, 0
      %v3049 = vsel %vm427, %v2972, 0
      %v3052 = vsel %vm427, %v2981, 0
      %v3055 = vsel %vm427, %v2990, 0
      %v3058 = vsel %vm427, %v2999, 0
      %v3061 = vsel %vm427, %v3008, 0
      %v3064 = vsel %vm482, %v2834, 0
      %3066 = vmatprep.subr.bf16.mxu0 0
      %3067 = vmatpush1.bf16.msra.mxu0 0
      %3068 = vmatprep.subr.bf16.mxu0 0
      %3069 = vmatpush1.bf16.msra.mxu0 0
      %3070 = vmatprep.subr.bf16.mxu0 0
      %3071 = vmatpush1.bf16.msra.mxu0 0
      %3072 = vmatprep.subr.bf16.mxu0 0
      %3073 = vmatpush1.bf16.msra.mxu0 0
      %3074 = vmatprep.subr.bf16.mxu0 0
      %3075 = vmatpush1.bf16.msra.mxu0 0
      %3076 = vmatprep.subr.bf16.mxu0 0
      %3077 = vmatpush1.bf16.msra.mxu0 0
      %3078 = vmatprep.subr.bf16.mxu0 0
      %3079 = vmatpush1.bf16.msra.mxu0 0
      %3080 = vmatprep.subr.bf16.mxu0 0
      %3081 = vmatpush1.bf16.msra.mxu0 %v3064
      %3082 = vmatprep.subr.bf16.mxu0 0
      %3083 = vmatpush2.bf16.msra.mxu0 0
      %3084 = vmatprep.subr.bf16.mxu0 0
      %3085 = vmatpush2.bf16.msra.mxu0 0
      %3086 = vmatprep.subr.bf16.mxu0 0
      %3087 = vmatpush2.bf16.msra.mxu0 0
      %3088 = vmatprep.subr.bf16.mxu0 0
      %3089 = vmatpush2.bf16.msra.mxu0 0
      %3090 = vmatprep.subr.bf16.mxu0 0
      %3091 = vmatpush2.bf16.msra.mxu0 0
      %3092 = vmatprep.subr.bf16.mxu0 0
      %3093 = vmatpush2.bf16.msra.mxu0 0
      %3094 = vmatprep.subr.bf16.mxu0 0
      %3095 = vmatpush2.bf16.msra.mxu0 0
      %3096 = vmatprep.subr.bf16.mxu0 0
      %3097 = vmatpush2.bf16.msra.mxu0 0
      %3098 = vmatprep.mubr.bf16.mxu0 0
      %3099 = vmatmul.mubr.bf16.gmra.mxu0 %v3010
      %v3100 = vpop.f32.mrf.mxu0
      %v3101 = vadd.f32 0.0, %v3100
      %v3102 = vpop.f32.mrf.mxu0
      %v3103 = vpop.f32.mrf.mxu0
      %v3104 = vadd.f32 0.0, %v3103
      %v3105 = vpop.f32.mrf.mxu0
      %3106 = vmatprep.mubr.bf16.mxu0 0
      %3107 = vmatmul.mubr.bf16.gmra.mxu0 %v3013
      %v3108 = vpop.f32.mrf.mxu0
      %v3109 = vadd.f32 0.0, %v3108
      %v3110 = vpop.f32.mrf.mxu0
      %v3111 = vpop.f32.mrf.mxu0
      %v3112 = vadd.f32 0.0, %v3111
      %v3113 = vpop.f32.mrf.mxu0
      %3114 = vmatprep.mubr.bf16.mxu0 0
      %3115 = vmatmul.mubr.bf16.gmra.mxu0 %v3016
      %v3116 = vpop.f32.mrf.mxu0
      %v3117 = vadd.f32 0.0, %v3116
      %v3118 = vpop.f32.mrf.mxu0
      %v3119 = vpop.f32.mrf.mxu0
      %v3120 = vadd.f32 0.0, %v3119
      %v3121 = vpop.f32.mrf.mxu0
      %3122 = vmatprep.mubr.bf16.mxu0 0
      %3123 = vmatmul.mubr.bf16.gmra.mxu0 %v3019
      %v3124 = vpop.f32.mrf.mxu0
      %v3125 = vadd.f32 0.0, %v3124
      %v3126 = vpop.f32.mrf.mxu0
      %v3127 = vpop.f32.mrf.mxu0
      %v3128 = vadd.f32 0.0, %v3127
      %v3129 = vpop.f32.mrf.mxu0
      %3130 = vmatprep.mubr.bf16.mxu0 0
      %3131 = vmatmul.mubr.bf16.gmra.mxu0 %v3022
      %v3132 = vpop.f32.mrf.mxu0
      %v3133 = vadd.f32 0.0, %v3132
      %v3134 = vpop.f32.mrf.mxu0
      %v3135 = vpop.f32.mrf.mxu0
      %v3136 = vadd.f32 0.0, %v3135
      %v3137 = vpop.f32.mrf.mxu0
      %3138 = vmatprep.mubr.bf16.mxu0 0
      %3139 = vmatmul.mubr.bf16.gmra.mxu0 %v3025
      %v3140 = vpop.f32.mrf.mxu0
      %v3141 = vadd.f32 0.0, %v3140
      %v3142 = vpop.f32.mrf.mxu0
      %v3143 = vpop.f32.mrf.mxu0
      %v3144 = vadd.f32 0.0, %v3143
      %v3145 = vpop.f32.mrf.mxu0
      %3146 = vmatprep.mubr.bf16.mxu0 0
      %3147 = vmatmul.mubr.bf16.gmra.mxu0 %v3028
      %v3148 = vpop.f32.mrf.mxu0
      %v3149 = vadd.f32 0.0, %v3148
      %v3150 = vpop.f32.mrf.mxu0
      %v3151 = vpop.f32.mrf.mxu0
      %v3152 = vadd.f32 0.0, %v3151
      %v3153 = vpop.f32.mrf.mxu0
      %3154 = vmatprep.mubr.bf16.mxu0 0
      %3155 = vmatmul.mubr.bf16.gmra.mxu0 %v3031
      %v3156 = vpop.f32.mrf.mxu0
      %v3157 = vadd.f32 0.0, %v3156
      %v3158 = vpop.f32.mrf.mxu0
      %v3159 = vpop.f32.mrf.mxu0
      %v3160 = vadd.f32 0.0, %v3159
      %v3161 = vpop.f32.mrf.mxu0
      %3162 = vmatprep.mubr.bf16.mxu0 0
      %3163 = vmatmul.mubr.bf16.gmra.mxu0 %v3034
      %v3164 = vpop.f32.mrf.mxu0
      %v3165 = vadd.f32 0.0, %v3164
      %v3166 = vpop.f32.mrf.mxu0
      %v3167 = vpop.f32.mrf.mxu0
      %v3168 = vadd.f32 0.0, %v3167
      %v3169 = vpop.f32.mrf.mxu0
      %3170 = vmatprep.mubr.bf16.mxu0 0
      %3171 = vmatmul.mubr.bf16.gmra.mxu0 %v3037
      %v3172 = vpop.f32.mrf.mxu0
      %v3173 = vadd.f32 0.0, %v3172
      %v3174 = vpop.f32.mrf.mxu0
      %v3175 = vpop.f32.mrf.mxu0
      %v3176 = vadd.f32 0.0, %v3175
      %v3177 = vpop.f32.mrf.mxu0
      %3178 = vmatprep.mubr.bf16.mxu0 0
      %3179 = vmatmul.mubr.bf16.gmra.mxu0 %v3040
      %v3180 = vpop.f32.mrf.mxu0
      %v3181 = vadd.f32 0.0, %v3180
      %v3182 = vpop.f32.mrf.mxu0
      %v3183 = vpop.f32.mrf.mxu0
      %v3184 = vadd.f32 0.0, %v3183
      %v3185 = vpop.f32.mrf.mxu0
      %3186 = vmatprep.mubr.bf16.mxu0 0
      %3187 = vmatmul.mubr.bf16.gmra.mxu0 %v3043
      %v3188 = vpop.f32.mrf.mxu0
      %v3189 = vadd.f32 0.0, %v3188
      %v3190 = vpop.f32.mrf.mxu0
      %v3191 = vpop.f32.mrf.mxu0
      %v3192 = vadd.f32 0.0, %v3191
      %v3193 = vpop.f32.mrf.mxu0
      %3194 = vmatprep.mubr.bf16.mxu0 0
      %3195 = vmatmul.mubr.bf16.gmra.mxu0 %v3046
      %v3196 = vpop.f32.mrf.mxu0
      %v3197 = vadd.f32 0.0, %v3196
      %v3198 = vpop.f32.mrf.mxu0
      %v3199 = vpop.f32.mrf.mxu0
      %v3200 = vadd.f32 0.0, %v3199
      %v3201 = vpop.f32.mrf.mxu0
      %3202 = vmatprep.mubr.bf16.mxu0 0
      %3203 = vmatmul.mubr.bf16.gmra.mxu0 %v3049
      %v3204 = vpop.f32.mrf.mxu0
      %v3205 = vadd.f32 0.0, %v3204
      %v3206 = vpop.f32.mrf.mxu0
      %v3207 = vpop.f32.mrf.mxu0
      %v3208 = vadd.f32 0.0, %v3207
      %v3209 = vpop.f32.mrf.mxu0
      %3210 = vmatprep.mubr.bf16.mxu0 0
      %3211 = vmatmul.mubr.bf16.gmra.mxu0 %v3052
      %v3212 = vpop.f32.mrf.mxu0
      %v3213 = vadd.f32 0.0, %v3212
      %v3214 = vpop.f32.mrf.mxu0
      %v3215 = vpop.f32.mrf.mxu0
      %v3216 = vadd.f32 0.0, %v3215
      %v3217 = vpop.f32.mrf.mxu0
      %3218 = vmatprep.mubr.bf16.mxu0 0
      %3219 = vmatmul.mubr.bf16.gmra.mxu0 %v3055
      %v3220 = vpop.f32.mrf.mxu0
      %v3221 = vadd.f32 0.0, %v3220
      %v3222 = vpop.f32.mrf.mxu0
      %v3223 = vpop.f32.mrf.mxu0
      %v3224 = vadd.f32 0.0, %v3223
      %v3225 = vpop.f32.mrf.mxu0
      %3226 = vmatprep.mubr.bf16.mxu0 0
      %3227 = vmatmul.mubr.bf16.gmra.mxu0 %v3058
      %v3228 = vpop.f32.mrf.mxu0
      %v3229 = vadd.f32 0.0, %v3228
      %v3230 = vpop.f32.mrf.mxu0
      %v3231 = vpop.f32.mrf.mxu0
      %v3232 = vadd.f32 0.0, %v3231
      %v3233 = vpop.f32.mrf.mxu0
      %3234 = vmatprep.mubr.bf16.mxu0 0
      %3235 = vmatmul.mubr.bf16.gmra.mxu0 %v3061
      %v3236 = vpop.f32.mrf.mxu0
      %v3237 = vadd.f32 0.0, %v3236
      %v3238 = vpop.f32.mrf.mxu0
      %v3239 = vpop.f32.mrf.mxu0
      %v3240 = vadd.f32 0.0, %v3239
      %v3241 = vpop.f32.mrf.mxu0
      %3242 = vdwg.mxu0
      %v3243 = vadd.f32 %v2796, %v3101
      %v3244 = vadd.f32 %v2797, %v3104
      %v3245 = vadd.f32 %v2798, %v3109
      %v3246 = vadd.f32 %v2799, %v3112
      %v3247 = vadd.f32 %v2800, %v3117
      %v3248 = vadd.f32 %v2801, %v3120
      %v3249 = vadd.f32 %v2802, %v3125
      %v3250 = vadd.f32 %v2803, %v3128
      %v3251 = vadd.f32 %v2804, %v3133
      %v3252 = vadd.f32 %v2805, %v3136
      %v3253 = vadd.f32 %v2806, %v3141
      %v3254 = vadd.f32 %v2807, %v3144
      %v3255 = vadd.f32 %v2808, %v3149
      %v3256 = vadd.f32 %v2809, %v3152
      %v3257 = vadd.f32 %v2810, %v3157
      %v3258 = vadd.f32 %v2811, %v3160
      %v3259 = vadd.f32 %v2812, %v3165
      %v3260 = vadd.f32 %v2813, %v3168
      %v3261 = vadd.f32 %v2814, %v3173
      %v3262 = vadd.f32 %v2815, %v3176
      %v3263 = vadd.f32 %v2816, %v3181
      %v3264 = vadd.f32 %v2817, %v3184
      %v3265 = vadd.f32 %v2818, %v3189
      %v3266 = vadd.f32 %v2819, %v3192
      %v3267 = vadd.f32 %v2820, %v3197
      %v3268 = vadd.f32 %v2821, %v3200
      %v3269 = vadd.f32 %v2822, %v3205
      %v3270 = vadd.f32 %v2823, %v3208
      %v3271 = vadd.f32 %v2824, %v3213
      %v3272 = vadd.f32 %v2825, %v3216
      %v3273 = vadd.f32 %v2826, %v3221
      %v3274 = vadd.f32 %v2827, %v3224
      %v3275 = vadd.f32 %v2828, %v3229
      %v3276 = vadd.f32 %v2829, %v3232
      %v3277 = vadd.f32 %v2830, %v3237
      %v3278 = vadd.f32 %v2831, %v3240
      %v3279 = vld [vmem:[%s138 + $0x10] sm:$0x8]
      %s3280 = scalar_lea.vmem %s1, 16
      %v3281 = vld [vmem:[%s3280] sm:$0x3]
      %v3283 = vunpack.c.l.b16 %v3279
      %v3284 = vpack.c.b16 %v2470, %v3283
      %vm3285 = vcmask 1044480
      %v3286 = vrot.slane %v3284, 3
      %v3287 = vrot.slane %v2507, 3
      %v3288 = vsel %vm3285, %v3286, %v3287
      %v3289 = vrot.slane %v2508, 3
      %v3290 = vsel %vm3285, %v3287, %v3289
      %v3291 = vrot.slane %v2509, 3
      %v3292 = vsel %vm3285, %v3289, %v3291
      %v3293 = vrot.slane %v2510, 3
      %v3294 = vsel %vm3285, %v3291, %v3293
      %v3295 = vrot.slane %v2511, 3
      %v3296 = vsel %vm3285, %v3293, %v3295
      %v3297 = vrot.slane %v2512, 3
      %v3298 = vsel %vm3285, %v3295, %v3297
      %v3299 = vrot.slane %v2513, 3
      %v3300 = vsel %vm3285, %v3297, %v3299
      %v3301 = vrot.slane %v2514, 3
      %v3302 = vsel %vm3285, %v3299, %v3301
      %v3303 = vrot.slane %v2515, 3
      %v3304 = vsel %vm3285, %v3301, %v3303
      %v3305 = vrot.slane %v2516, 3
      %v3306 = vsel %vm3285, %v3303, %v3305
      %v3307 = vrot.slane %v2517, 3
      %v3308 = vsel %vm3285, %v3305, %v3307
      %v3309 = vrot.slane %v2518, 3
      %v3310 = vsel %vm3285, %v3307, %v3309
      %v3311 = vrot.slane %v2519, 3
      %v3312 = vsel %vm3285, %v3309, %v3311
      %v3313 = vrot.slane %v2520, 3
      %v3314 = vsel %vm3285, %v3311, %v3313
      %v3315 = vrot.slane %v2521, 3
      %v3316 = vsel %vm3285, %v3313, %v3315
      %v3317 = vrot.slane %v2522, 3
      %v3318 = vsel %vm3285, %v3315, %v3317
      %v3319 = vrot.slane %v2523, 3
      %v3320 = vsel %vm3285, %v3317, %v3319
      %v3321 = vrot.slane %v2837, 3
      %v3322 = vsel %vm3285, %v3319, %v3321
      %v3324 = vsel %vm427, %v3288, 0
      %v3327 = vsel %vm427, %v3290, 0
      %v3330 = vsel %vm427, %v3292, 0
      %v3333 = vsel %vm427, %v3294, 0
      %v3336 = vsel %vm427, %v3296, 0
      %v3339 = vsel %vm427, %v3298, 0
      %v3342 = vsel %vm427, %v3300, 0
      %v3345 = vsel %vm427, %v3302, 0
      %v3348 = vsel %vm427, %v3304, 0
      %v3351 = vsel %vm427, %v3306, 0
      %v3354 = vsel %vm427, %v3308, 0
      %v3357 = vsel %vm427, %v3310, 0
      %v3360 = vsel %vm427, %v3312, 0
      %v3363 = vsel %vm427, %v3314, 0
      %v3366 = vsel %vm427, %v3316, 0
      %v3369 = vsel %vm427, %v3318, 0
      %v3372 = vsel %vm427, %v3320, 0
      %v3375 = vsel %vm427, %v3322, 0
      %v3378 = vsel %vm482, %v3281, 0
      %3380 = vmatprep.subr.bf16.mxu0 0
      %3381 = vmatpush1.bf16.msra.mxu0 0
      %3382 = vmatprep.subr.bf16.mxu0 0
      %3383 = vmatpush1.bf16.msra.mxu0 0
      %3384 = vmatprep.subr.bf16.mxu0 0
      %3385 = vmatpush1.bf16.msra.mxu0 0
      %3386 = vmatprep.subr.bf16.mxu0 0
      %3387 = vmatpush1.bf16.msra.mxu0 0
      %3388 = vmatprep.subr.bf16.mxu0 0
      %3389 = vmatpush1.bf16.msra.mxu0 0
      %3390 = vmatprep.subr.bf16.mxu0 0
      %3391 = vmatpush1.bf16.msra.mxu0 0
      %3392 = vmatprep.subr.bf16.mxu0 0
      %3393 = vmatpush1.bf16.msra.mxu0 0
      %3394 = vmatprep.subr.bf16.mxu0 0
      %3395 = vmatpush1.bf16.msra.mxu0 %v3378
      %3396 = vmatprep.subr.bf16.mxu0 0
      %3397 = vmatpush2.bf16.msra.mxu0 0
      %3398 = vmatprep.subr.bf16.mxu0 0
      %3399 = vmatpush2.bf16.msra.mxu0 0
      %3400 = vmatprep.subr.bf16.mxu0 0
      %3401 = vmatpush2.bf16.msra.mxu0 0
      %3402 = vmatprep.subr.bf16.mxu0 0
      %3403 = vmatpush2.bf16.msra.mxu0 0
      %3404 = vmatprep.subr.bf16.mxu0 0
      %3405 = vmatpush2.bf16.msra.mxu0 0
      %3406 = vmatprep.subr.bf16.mxu0 0
      %3407 = vmatpush2.bf16.msra.mxu0 0
      %3408 = vmatprep.subr.bf16.mxu0 0
      %3409 = vmatpush2.bf16.msra.mxu0 0
      %3410 = vmatprep.subr.bf16.mxu0 0
      %3411 = vmatpush2.bf16.msra.mxu0 0
      %3412 = vmatprep.mubr.bf16.mxu0 0
      %3413 = vmatmul.mubr.bf16.gmra.mxu0 %v3324
      %v3414 = vpop.f32.mrf.mxu0
      %v3415 = vadd.f32 0.0, %v3414
      %v3416 = vpop.f32.mrf.mxu0
      %v3417 = vpop.f32.mrf.mxu0
      %v3418 = vadd.f32 0.0, %v3417
      %v3419 = vpop.f32.mrf.mxu0
      %3420 = vmatprep.mubr.bf16.mxu0 0
      %3421 = vmatmul.mubr.bf16.gmra.mxu0 %v3327
      %v3422 = vpop.f32.mrf.mxu0
      %v3423 = vadd.f32 0.0, %v3422
      %v3424 = vpop.f32.mrf.mxu0
      %v3425 = vpop.f32.mrf.mxu0
      %v3426 = vadd.f32 0.0, %v3425
      %v3427 = vpop.f32.mrf.mxu0
      %3428 = vmatprep.mubr.bf16.mxu0 0
      %3429 = vmatmul.mubr.bf16.gmra.mxu0 %v3330
      %v3430 = vpop.f32.mrf.mxu0
      %v3431 = vadd.f32 0.0, %v3430
      %v3432 = vpop.f32.mrf.mxu0
      %v3433 = vpop.f32.mrf.mxu0
      %v3434 = vadd.f32 0.0, %v3433
      %v3435 = vpop.f32.mrf.mxu0
      %3436 = vmatprep.mubr.bf16.mxu0 0
      %3437 = vmatmul.mubr.bf16.gmra.mxu0 %v3333
      %v3438 = vpop.f32.mrf.mxu0
      %v3439 = vadd.f32 0.0, %v3438
      %v3440 = vpop.f32.mrf.mxu0
      %v3441 = vpop.f32.mrf.mxu0
      %v3442 = vadd.f32 0.0, %v3441
      %v3443 = vpop.f32.mrf.mxu0
      %3444 = vmatprep.mubr.bf16.mxu0 0
      %3445 = vmatmul.mubr.bf16.gmra.mxu0 %v3336
      %v3446 = vpop.f32.mrf.mxu0
      %v3447 = vadd.f32 0.0, %v3446
      %v3448 = vpop.f32.mrf.mxu0
      %v3449 = vpop.f32.mrf.mxu0
      %v3450 = vadd.f32 0.0, %v3449
      %v3451 = vpop.f32.mrf.mxu0
      %3452 = vmatprep.mubr.bf16.mxu0 0
      %3453 = vmatmul.mubr.bf16.gmra.mxu0 %v3339
      %v3454 = vpop.f32.mrf.mxu0
      %v3455 = vadd.f32 0.0, %v3454
      %v3456 = vpop.f32.mrf.mxu0
      %v3457 = vpop.f32.mrf.mxu0
      %v3458 = vadd.f32 0.0, %v3457
      %v3459 = vpop.f32.mrf.mxu0
      %3460 = vmatprep.mubr.bf16.mxu0 0
      %3461 = vmatmul.mubr.bf16.gmra.mxu0 %v3342
      %v3462 = vpop.f32.mrf.mxu0
      %v3463 = vadd.f32 0.0, %v3462
      %v3464 = vpop.f32.mrf.mxu0
      %v3465 = vpop.f32.mrf.mxu0
      %v3466 = vadd.f32 0.0, %v3465
      %v3467 = vpop.f32.mrf.mxu0
      %3468 = vmatprep.mubr.bf16.mxu0 0
      %3469 = vmatmul.mubr.bf16.gmra.mxu0 %v3345
      %v3470 = vpop.f32.mrf.mxu0
      %v3471 = vadd.f32 0.0, %v3470
      %v3472 = vpop.f32.mrf.mxu0
      %v3473 = vpop.f32.mrf.mxu0
      %v3474 = vadd.f32 0.0, %v3473
      %v3475 = vpop.f32.mrf.mxu0
      %3476 = vmatprep.mubr.bf16.mxu0 0
      %3477 = vmatmul.mubr.bf16.gmra.mxu0 %v3348
      %v3478 = vpop.f32.mrf.mxu0
      %v3479 = vadd.f32 0.0, %v3478
      %v3480 = vpop.f32.mrf.mxu0
      %v3481 = vpop.f32.mrf.mxu0
      %v3482 = vadd.f32 0.0, %v3481
      %v3483 = vpop.f32.mrf.mxu0
      %3484 = vmatprep.mubr.bf16.mxu0 0
      %3485 = vmatmul.mubr.bf16.gmra.mxu0 %v3351
      %v3486 = vpop.f32.mrf.mxu0
      %v3487 = vadd.f32 0.0, %v3486
      %v3488 = vpop.f32.mrf.mxu0
      %v3489 = vpop.f32.mrf.mxu0
      %v3490 = vadd.f32 0.0, %v3489
      %v3491 = vpop.f32.mrf.mxu0
      %3492 = vmatprep.mubr.bf16.mxu0 0
      %3493 = vmatmul.mubr.bf16.gmra.mxu0 %v3354
      %v3494 = vpop.f32.mrf.mxu0
      %v3495 = vadd.f32 0.0, %v3494
      %v3496 = vpop.f32.mrf.mxu0
      %v3497 = vpop.f32.mrf.mxu0
      %v3498 = vadd.f32 0.0, %v3497
      %v3499 = vpop.f32.mrf.mxu0
      %3500 = vmatprep.mubr.bf16.mxu0 0
      %3501 = vmatmul.mubr.bf16.gmra.mxu0 %v3357
      %v3502 = vpop.f32.mrf.mxu0
      %v3503 = vadd.f32 0.0, %v3502
      %v3504 = vpop.f32.mrf.mxu0
      %v3505 = vpop.f32.mrf.mxu0
      %v3506 = vadd.f32 0.0, %v3505
      %v3507 = vpop.f32.mrf.mxu0
      %3508 = vmatprep.mubr.bf16.mxu0 0
      %3509 = vmatmul.mubr.bf16.gmra.mxu0 %v3360
      %v3510 = vpop.f32.mrf.mxu0
      %v3511 = vadd.f32 0.0, %v3510
      %v3512 = vpop.f32.mrf.mxu0
      %v3513 = vpop.f32.mrf.mxu0
      %v3514 = vadd.f32 0.0, %v3513
      %v3515 = vpop.f32.mrf.mxu0
      %3516 = vmatprep.mubr.bf16.mxu0 0
      %3517 = vmatmul.mubr.bf16.gmra.mxu0 %v3363
      %v3518 = vpop.f32.mrf.mxu0
      %v3519 = vadd.f32 0.0, %v3518
      %v3520 = vpop.f32.mrf.mxu0
      %v3521 = vpop.f32.mrf.mxu0
      %v3522 = vadd.f32 0.0, %v3521
      %v3523 = vpop.f32.mrf.mxu0
      %3524 = vmatprep.mubr.bf16.mxu0 0
      %3525 = vmatmul.mubr.bf16.gmra.mxu0 %v3366
      %v3526 = vpop.f32.mrf.mxu0
      %v3527 = vadd.f32 0.0, %v3526
      %v3528 = vpop.f32.mrf.mxu0
      %v3529 = vpop.f32.mrf.mxu0
      %v3530 = vadd.f32 0.0, %v3529
      %v3531 = vpop.f32.mrf.mxu0
      %3532 = vmatprep.mubr.bf16.mxu0 0
      %3533 = vmatmul.mubr.bf16.gmra.mxu0 %v3369
      %v3534 = vpop.f32.mrf.mxu0
      %v3535 = vadd.f32 0.0, %v3534
      %v3536 = vpop.f32.mrf.mxu0
      %v3537 = vpop.f32.mrf.mxu0
      %v3538 = vadd.f32 0.0, %v3537
      %v3539 = vpop.f32.mrf.mxu0
      %3540 = vmatprep.mubr.bf16.mxu0 0
      %3541 = vmatmul.mubr.bf16.gmra.mxu0 %v3372
      %v3542 = vpop.f32.mrf.mxu0
      %v3543 = vadd.f32 0.0, %v3542
      %v3544 = vpop.f32.mrf.mxu0
      %v3545 = vpop.f32.mrf.mxu0
      %v3546 = vadd.f32 0.0, %v3545
      %v3547 = vpop.f32.mrf.mxu0
      %3548 = vmatprep.mubr.bf16.mxu0 0
      %3549 = vmatmul.mubr.bf16.gmra.mxu0 %v3375
      %v3550 = vpop.f32.mrf.mxu0
      %v3551 = vadd.f32 0.0, %v3550
      %v3552 = vpop.f32.mrf.mxu0
      %v3553 = vpop.f32.mrf.mxu0
      %v3554 = vadd.f32 0.0, %v3553
      %v3555 = vpop.f32.mrf.mxu0
      %3556 = vdwg.mxu0
      %v3557 = vadd.f32 %v3243, %v3415
      %v3558 = vadd.f32 %v3244, %v3418
      %v3559 = vadd.f32 %v3245, %v3423
      %v3560 = vadd.f32 %v3246, %v3426
      %v3561 = vadd.f32 %v3247, %v3431
      %v3562 = vadd.f32 %v3248, %v3434
      %v3563 = vadd.f32 %v3249, %v3439
      %v3564 = vadd.f32 %v3250, %v3442
      %v3565 = vadd.f32 %v3251, %v3447
      %v3566 = vadd.f32 %v3252, %v3450
      %v3567 = vadd.f32 %v3253, %v3455
      %v3568 = vadd.f32 %v3254, %v3458
      %v3569 = vadd.f32 %v3255, %v3463
      %v3570 = vadd.f32 %v3256, %v3466
      %v3571 = vadd.f32 %v3257, %v3471
      %v3572 = vadd.f32 %v3258, %v3474
      %v3573 = vadd.f32 %v3259, %v3479
      %v3574 = vadd.f32 %v3260, %v3482
      %v3575 = vadd.f32 %v3261, %v3487
      %v3576 = vadd.f32 %v3262, %v3490
      %v3577 = vadd.f32 %v3263, %v3495
      %v3578 = vadd.f32 %v3264, %v3498
      %v3579 = vadd.f32 %v3265, %v3503
      %v3580 = vadd.f32 %v3266, %v3506
      %v3581 = vadd.f32 %v3267, %v3511
      %v3582 = vadd.f32 %v3268, %v3514
      %v3583 = vadd.f32 %v3269, %v3519
      %v3584 = vadd.f32 %v3270, %v3522
      %v3585 = vadd.f32 %v3271, %v3527
      %v3586 = vadd.f32 %v3272, %v3530
      %v3587 = vadd.f32 %v3273, %v3535
      %v3588 = vadd.f32 %v3274, %v3538
      %v3589 = vadd.f32 %v3275, %v3543
      %v3590 = vadd.f32 %v3276, %v3546
      %v3591 = vadd.f32 %v3277, %v3551
      %v3592 = vadd.f32 %v3278, %v3554
      %v3593 = vmax.f32 %v3557, 0.0
      %v3594 = vmax.f32 %v3558, 0.0
      %v3595 = vmax.f32 %v3559, 0.0
      %v3596 = vmax.f32 %v3560, 0.0
      %v3597 = vmax.f32 %v3561, 0.0
      %v3598 = vmax.f32 %v3562, 0.0
      %v3599 = vmax.f32 %v3563, 0.0
      %v3600 = vmax.f32 %v3564, 0.0
      %v3601 = vmax.f32 %v3565, 0.0
      %v3602 = vmax.f32 %v3566, 0.0
      %v3603 = vmax.f32 %v3567, 0.0
      %v3604 = vmax.f32 %v3568, 0.0
      %v3605 = vmax.f32 %v3569, 0.0
      %v3606 = vmax.f32 %v3570, 0.0
      %v3607 = vmax.f32 %v3571, 0.0
      %v3608 = vmax.f32 %v3572, 0.0
      %v3609 = vmax.f32 %v3573, 0.0
      %v3610 = vmax.f32 %v3574, 0.0
      %v3611 = vmax.f32 %v3575, 0.0
      %v3612 = vmax.f32 %v3576, 0.0
      %v3613 = vmax.f32 %v3577, 0.0
      %v3614 = vmax.f32 %v3578, 0.0
      %v3615 = vmax.f32 %v3579, 0.0
      %v3616 = vmax.f32 %v3580, 0.0
      %v3617 = vmax.f32 %v3581, 0.0
      %v3618 = vmax.f32 %v3582, 0.0
      %v3619 = vmax.f32 %v3583, 0.0
      %v3620 = vmax.f32 %v3584, 0.0
      %v3621 = vmax.f32 %v3585, 0.0
      %v3622 = vmax.f32 %v3586, 0.0
      %v3623 = vmax.f32 %v3587, 0.0
      %v3624 = vmax.f32 %v3588, 0.0
      %v3625 = vmax.f32 %v3589, 0.0
      %v3626 = vmax.f32 %v3590, 0.0
      %v3627 = vmax.f32 %v3591, 0.0
      %v3628 = vmax.f32 %v3592, 0.0
      %v3629 = vpack.c.bf16 %v3594, %v3593
      %v3630 = vpack.c.bf16 %v3596, %v3595
      %v3631 = vpack.c.bf16 %v3598, %v3597
      %v3632 = vpack.c.bf16 %v3600, %v3599
      %v3633 = vpack.c.bf16 %v3602, %v3601
      %v3634 = vpack.c.bf16 %v3604, %v3603
      %v3635 = vpack.c.bf16 %v3606, %v3605
      %v3636 = vpack.c.bf16 %v3608, %v3607
      %v3637 = vpack.c.bf16 %v3610, %v3609
      %v3638 = vpack.c.bf16 %v3612, %v3611
      %v3639 = vpack.c.bf16 %v3614, %v3613
      %v3640 = vpack.c.bf16 %v3616, %v3615
      %v3641 = vpack.c.bf16 %v3618, %v3617
      %v3642 = vpack.c.bf16 %v3620, %v3619
      %v3643 = vpack.c.bf16 %v3622, %v3621
      %v3644 = vpack.c.bf16 %v3624, %v3623
      %v3645 = vpack.c.bf16 %v3626, %v3625
      %v3646 = vpack.c.bf16 %v3628, %v3627
      %v3665 = vunpack.c.l.b16 %v3629
      %v3666 = vunpack.c.h.b16 %v3629
      %v3667 = vunpack.c.l.b16 %v3630
      %v3668 = vunpack.c.h.b16 %v3630
      %v3669 = vunpack.c.l.b16 %v3631
      %v3670 = vunpack.c.h.b16 %v3631
      %v3671 = vunpack.c.l.b16 %v3632
      %v3672 = vunpack.c.h.b16 %v3632
      %v3673 = vunpack.c.l.b16 %v3633
      %v3674 = vunpack.c.h.b16 %v3633
      %v3675 = vunpack.c.l.b16 %v3634
      %v3676 = vunpack.c.h.b16 %v3634
      %v3677 = vunpack.c.l.b16 %v3635
      %v3678 = vunpack.c.h.b16 %v3635
      %v3679 = vunpack.c.l.b16 %v3636
      %v3680 = vunpack.c.h.b16 %v3636
      %v3681 = vunpack.c.l.b16 %v3637
      %v3682 = vunpack.c.h.b16 %v3637
      %v3683 = vunpack.c.l.b16 %v3638
      %v3684 = vunpack.c.h.b16 %v3638
      %v3685 = vunpack.c.l.b16 %v3639
      %v3686 = vunpack.c.h.b16 %v3639
      %v3687 = vunpack.c.l.b16 %v3640
      %v3688 = vunpack.c.h.b16 %v3640
      %v3689 = vunpack.c.l.b16 %v3641
      %v3690 = vunpack.c.h.b16 %v3641
      %v3691 = vunpack.c.l.b16 %v3642
      %v3692 = vunpack.c.h.b16 %v3642
      %v3693 = vunpack.c.l.b16 %v3643
      %v3694 = vunpack.c.h.b16 %v3643
      %v3695 = vunpack.c.l.b16 %v3644
      %v3696 = vunpack.c.h.b16 %v3644
      %v3697 = vunpack.c.l.b16 %v3645
      %v3698 = vunpack.c.h.b16 %v3645
      %v3699 = vunpack.c.l.b16 %v3646
      %v3700 = vunpack.c.h.b16 %v3646
      %v3701 = vpack.c.b16 %v3665, %v3665
      %v3702 = vpack.c.b16 %v3666, %v3666
      %v3703 = vpack.c.b16 %v3667, %v3667
      %v3704 = vpack.c.b16 %v3668, %v3668
      %v3705 = vpack.c.b16 %v3669, %v3669
      %v3706 = vpack.c.b16 %v3670, %v3670
      %v3707 = vpack.c.b16 %v3671, %v3671
      %v3708 = vpack.c.b16 %v3672, %v3672
      %v3709 = vpack.c.b16 %v3673, %v3673
      %v3710 = vpack.c.b16 %v3674, %v3674
      %v3711 = vpack.c.b16 %v3675, %v3675
      %v3712 = vpack.c.b16 %v3676, %v3676
      %v3713 = vpack.c.b16 %v3677, %v3677
      %v3714 = vpack.c.b16 %v3678, %v3678
      %v3715 = vpack.c.b16 %v3679, %v3679
      %v3716 = vpack.c.b16 %v3680, %v3680
      %v3717 = vpack.c.b16 %v3681, %v3681
      %v3718 = vpack.c.b16 %v3682, %v3682
      %v3719 = vpack.c.b16 %v3683, %v3683
      %v3720 = vpack.c.b16 %v3684, %v3684
      %v3721 = vpack.c.b16 %v3685, %v3685
      %v3722 = vpack.c.b16 %v3686, %v3686
      %v3723 = vpack.c.b16 %v3687, %v3687
      %v3724 = vpack.c.b16 %v3688, %v3688
      %v3725 = vpack.c.b16 %v3689, %v3689
      %v3726 = vpack.c.b16 %v3690, %v3690
      %v3727 = vpack.c.b16 %v3691, %v3691
      %v3728 = vpack.c.b16 %v3692, %v3692
      %v3729 = vpack.c.b16 %v3693, %v3693
      %v3730 = vpack.c.b16 %v3694, %v3694
      %v3731 = vpack.c.b16 %v3695, %v3695
      %v3732 = vpack.c.b16 %v3696, %v3696
      %v3733 = vpack.c.b16 %v3697, %v3697
      %v3734 = vpack.c.b16 %v3698, %v3698
      %v3735 = vpack.c.b16 %v3699, %v3699
      %v3736 = vpack.c.b16 %v3700, %v3700
      %vm3773 = vcmask 27648
      %3774 = vst.msk [vmem:[%s143] sm:$0xf] %vm3773, %v3701
      %3775 = vst.msk [vmem:[%s143 + $0x4] sm:$0xf] %vm3773, %v3702
      %3776 = vst.msk [vmem:[%s143 + $0x8] sm:$0xf] %vm3773, %v3703
      %3777 = vst.msk [vmem:[%s143 + $0xc] sm:$0xf] %vm3773, %v3704
      %3778 = vst.msk [vmem:[%s143 + $0x10] sm:$0xf] %vm3773, %v3705
      %3779 = vst.msk [vmem:[%s143 + $0x14] sm:$0xf] %vm3773, %v3706
      %3780 = vst.msk [vmem:[%s143 + $0x18] sm:$0xf] %vm3773, %v3707
      %3781 = vst.msk [vmem:[%s143 + $0x1c] sm:$0xf] %vm3773, %v3708
      %3782 = vst.msk [vmem:[%s143 + $0x20] sm:$0xf] %vm3773, %v3709
      %3783 = vst.msk [vmem:[%s143 + $0x24] sm:$0xf] %vm3773, %v3710
      %3784 = vst.msk [vmem:[%s143 + $0x28] sm:$0xf] %vm3773, %v3711
      %3785 = vst.msk [vmem:[%s143 + $0x2c] sm:$0xf] %vm3773, %v3712
      %3786 = vst.msk [vmem:[%s143 + $0x30] sm:$0xf] %vm3773, %v3713
      %3787 = vst.msk [vmem:[%s143 + $0x34] sm:$0xf] %vm3773, %v3714
      %3788 = vst.msk [vmem:[%s143 + $0x38] sm:$0xf] %vm3773, %v3715
      %3789 = vst.msk [vmem:[%s143 + $0x3c] sm:$0xf] %vm3773, %v3716
      %3790 = vst.msk [vmem:[%s143 + $0x40] sm:$0xf] %vm3773, %v3717
      %3791 = vst.msk [vmem:[%s143 + $0x44] sm:$0xf] %vm3773, %v3718
      %3792 = vst.msk [vmem:[%s143 + $0x48] sm:$0xf] %vm3773, %v3719
      %3793 = vst.msk [vmem:[%s143 + $0x4c] sm:$0xf] %vm3773, %v3720
      %3794 = vst.msk [vmem:[%s143 + $0x50] sm:$0xf] %vm3773, %v3721
      %3795 = vst.msk [vmem:[%s143 + $0x54] sm:$0xf] %vm3773, %v3722
      %3796 = vst.msk [vmem:[%s143 + $0x58] sm:$0xf] %vm3773, %v3723
      %3797 = vst.msk [vmem:[%s143 + $0x5c] sm:$0xf] %vm3773, %v3724
      %3798 = vst.msk [vmem:[%s143 + $0x60] sm:$0xf] %vm3773, %v3725
      %3799 = vst.msk [vmem:[%s143 + $0x64] sm:$0xf] %vm3773, %v3726
      %3800 = vst.msk [vmem:[%s143 + $0x68] sm:$0xf] %vm3773, %v3727
      %3801 = vst.msk [vmem:[%s143 + $0x6c] sm:$0xf] %vm3773, %v3728
      %3802 = vst.msk [vmem:[%s143 + $0x70] sm:$0xf] %vm3773, %v3729
      %3803 = vst.msk [vmem:[%s143 + $0x74] sm:$0xf] %vm3773, %v3730
      %3804 = vst.msk [vmem:[%s143 + $0x78] sm:$0xf] %vm3773, %v3731
      %3805 = vst.msk [vmem:[%s143 + $0x7c] sm:$0xf] %vm3773, %v3732
      %3806 = vst.msk [vmem:[%s143 + $0x80] sm:$0xf] %vm3773, %v3733
      %3807 = vst.msk [vmem:[%s143 + $0x84] sm:$0xf] %vm3773, %v3734
      %3808 = vst.msk [vmem:[%s143 + $0x88] sm:$0xf] %vm3773, %v3735
      %3809 = vst.msk [vmem:[%s143 + $0x8c] sm:$0xf] %vm3773, %v3736
      %p3810 = scmp.lt.s32.totalorder %s13, 1
      %s3811 = scalar_select %p3810, %s13, 1
      %s3812 = smul.addr %s3811, 36
      %s3813 = smul.addr %s3812, 4
      %s3814 = scalar_lea.vmem %s2, %s3813
      // Predicated region
      $region29: #{encoder_forward.9} parent=27 // pred_check
        %p3815 = pneg %p78
      $region30: #{encoder_forward.9} parent=27 // pred_check_branch
        %3817 = sbr.rel (%p3815) target = $region32
      $region31: #{encoder_forward.9} parent=27 // pred_region
        _
      $region32: #{encoder_forward.9} parent=27 // pred_fallthru
        _
    $region28: #{encoder_forward.9} parent=5 // pred_fallthru
      _
    %p3818 = scmp.le.s32.totalorder 2, %s8
    // Predicated region
    $region33: #{encoder_forward.9} parent=5 // pred_check
      %p3819 = pneg %p3818
    $region34: #{encoder_forward.9} parent=5 // pred_check_branch
      %3821 = sbr.rel (%p3819) target = $region36
    $region35: #{encoder_forward.9} parent=5 // pred_region
      %s3822 = ssub.s32 %s8, 2
      // Predicated region
      $region37: #{encoder_forward.9} parent=35 // pred_check
        %p3823 = pneg %p84
      $region38: #{encoder_forward.9} parent=35 // pred_check_branch
        %3825 = sbr.rel (%p3823) target = $region40
      $region39: #{encoder_forward.9} parent=35 // pred_region
        %p3826 = scmp.lt.s32.totalorder %s14, 1
        %s3827 = scalar_select %p3826, %s14, 1
        %s3828 = smul.addr %s3827, 36
        %s3829 = smul.addr %s3828, 4
        %s3830 = scalar_lea.vmem %s2, %s3829
      $region40: #{encoder_forward.9} parent=35 // pred_fallthru
        _
    $region36: #{encoder_forward.9} parent=5 // pred_fallthru
      _
  $region6: #{encoder_forward.9} parent=0 // loop_footer
    %s12 = sadd.s32 1, %s8
  $region7: #{encoder_forward.9} parent=0 // loop_footer_branch
    %7 = sbr.rel target = $region3
  $region8: #{encoder_forward.9} parent=0 // loop_exit
    _

// kernel: encoder_forward.11
$region0: #{encoder_forward.11}
  #allocation0 [shape = 'u32[]', space=smem, size = 0x4, offset = 0x4, fixed_abs, tag = 'smem constant byte address 0x4 - core index']
  #allocation1 [shape = 'u32[144,128]{1,0:T(1,128)}', space=vmem, size = 0x12000, scoped, tag = 'internal scratch']
  %s0 = inlined_call_operand.vmem [shape: bf16[2,112,8], index: 0, kind: input, shape index: {}]
  %s1 = inlined_call_operand.vmem [shape: bf16[9,8,8], index: 1, kind: input, shape index: {}]
  %s2 = inlined_call_operand.vmem [shape: bf16[8,8], index: 2, kind: input, shape index: {}]
  %s3 = inlined_call_operand.vmem [shape: bf16[2,80,8], index: 3, kind: output, shape index: {}]
  %s4 = sld [smem:[#allocation0]]
  $region45: #{encoder_forward.11} parent=0
    _
  %s6 = ssub.s32 1, %s4
  %s7 = scalar_select 0, %s6, %s4
  loop: start=0, step=1, limit=4
  $region2: #{encoder_forward.11} parent=0 // loop_pre_header
    _
  $region3: #{encoder_forward.11} parent=0 // loop_header
    %s9 = sphi 0, %s13
    %p10 = scmp.ge.s32.totalorder %s9, 4
    %s19 = sphi 0, %s21
    %s22 = sphi 0, %s19
    %s23 = sphi 0, %s22
    %s39 = sphi 0, %s23
    %s43 = sphi 0, %s43
    %s45 = sphi 0, %s43
    %s46 = sphi 0, %s45
    %s60 = sphi 0, %s46
    %s64 = sphi 0, %s64
    %s66 = sphi 0, %s64
    %s67 = sphi 0, %s66
    %s81 = sphi 0, %s67
    %s87 = sphi 0, %s89
    %s90 = sphi 0, %s87
    %s91 = sphi 0, %s90
    %s107 = sphi 0, %s91
  $region4: #{encoder_forward.11} parent=0 // loop_header_branch
    %12 = sbr.rel (%p10) target = $region8
  $region5: #{encoder_forward.11} parent=0 // loop_body
    %s14 = ssub.s32 %s9, 1
    %s15 = ssub.s32 %s9, 2
    %s16 = sadd.s32 %s9, 1
    %s17 = ssub.s32 %s9, %s16
    %p18 = scmp.eq.s32.totalorder %s17, 0
    %s20 = sadd.s32 %s19, 1
    %s21 = scalar_select %p18, %s19, %s20
    %p24 = pneg %p18
    %p25 = scmp.eq.s32.totalorder %s9, 1
    %p26 = por %p24, %p25
    %p27 = scmp.ne.s32.totalorder %s19, %s22
    %p28 = scmp.eq.s32.totalorder %s9, 0
    %p29 = por %p27, %p28
    %p30 = scmp.ne.s32.totalorder %s19, %s22
    %p31 = scmp.eq.s32.totalorder %s14, 1
    %p32 = por %p30, %p31
    %p33 = scmp.ne.s32.totalorder %s22, %s23
    %p34 = scmp.eq.s32.totalorder %s14, 0
    %p35 = por %p33, %p34
    %p36 = scmp.ne.s32.totalorder %s22, %s23
    %p37 = scmp.eq.s32.totalorder %s15, 1
    %p38 = por %p36, %p37
    %p40 = scmp.ne.s32.totalorder %s23, %s39
    %p41 = scmp.eq.s32.totalorder %s15, 0
    %p42 = por %p40, %p41
    %s44 = sadd.s32 %s43, 1
    %p47 = scmp.eq.s32.totalorder %s9, 1
    %p48 = scmp.ne.s32.totalorder %s43, %s45
    %p49 = scmp.eq.s32.totalorder %s9, 0
    %p50 = por %p48, %p49
    %p51 = scmp.ne.s32.totalorder %s43, %s45
    %p52 = scmp.eq.s32.totalorder %s14, 1
    %p53 = por %p51, %p52
    %p54 = scmp.ne.s32.totalorder %s45, %s46
    %p55 = scmp.eq.s32.totalorder %s14, 0
    %p56 = por %p54, %p55
    %p57 = scmp.ne.s32.totalorder %s45, %s46
    %p58 = scmp.eq.s32.totalorder %s15, 1
    %p59 = por %p57, %p58
    %p61 = scmp.ne.s32.totalorder %s46, %s60
    %p62 = scmp.eq.s32.totalorder %s15, 0
    %p63 = por %p61, %p62
    %s65 = sadd.s32 %s64, 1
    %p68 = scmp.eq.s32.totalorder %s9, 1
    %p69 = scmp.ne.s32.totalorder %s64, %s66
    %p70 = scmp.eq.s32.totalorder %s9, 0
    %p71 = por %p69, %p70
    %p72 = scmp.ne.s32.totalorder %s64, %s66
    %p73 = scmp.eq.s32.totalorder %s14, 1
    %p74 = por %p72, %p73
    %p75 = scmp.ne.s32.totalorder %s66, %s67
    %p76 = scmp.eq.s32.totalorder %s14, 0
    %p77 = por %p75, %p76
    %p78 = scmp.ne.s32.totalorder %s66, %s67
    %p79 = scmp.eq.s32.totalorder %s15, 1
    %p80 = por %p78, %p79
    %p82 = scmp.ne.s32.totalorder %s67, %s81
    %p83 = scmp.eq.s32.totalorder %s15, 0
    %p84 = por %p82, %p83
    %s85 = ssub.s32 %s9, %s16
    %p86 = scmp.eq.s32.totalorder %s85, 0
    %s88 = sadd.s32 %s87, 1
    %s89 = scalar_select %p86, %s87, %s88
    %p92 = pneg %p86
    %p93 = scmp.eq.s32.totalorder %s9, 1
    %p94 = por %p92, %p93
    %p95 = scmp.ne.s32.totalorder %s87, %s90
    %p96 = scmp.eq.s32.totalorder %s9, 0
    %p97 = por %p95, %p96
    %p98 = scmp.ne.s32.totalorder %s87, %s90
    %p99 = scmp.eq.s32.totalorder %s14, 1
    %p100 = por %p98, %p99
    %p101 = scmp.ne.s32.totalorder %s90, %s91
    %p102 = scmp.eq.s32.totalorder %s14, 0
    %p103 = por %p101, %p102
    %p104 = scmp.ne.s32.totalorder %s90, %s91
    %p105 = scmp.eq.s32.totalorder %s15, 1
    %p106 = por %p104, %p105
    %p108 = scmp.ne.s32.totalorder %s91, %s107
    %p109 = scmp.eq.s32.totalorder %s15, 0
    %p110 = por %p108, %p109
    %p111 = scmp.le.s32.totalorder 1, %s9
    %p112 = scmp.lt.s32.totalorder %s9, 3
    %p113 = pnand %p111, %p112
    %p114 = pneg %p113
    // Predicated region
    $region9: #{encoder_forward.11} parent=5 // pred_check
      _
    $region10: #{encoder_forward.11} parent=5 // pred_check_branch
      %116 = sbr.rel (%p113) target = $region12
    $region11: #{encoder_forward.11} parent=5 // pred_region
      %s117 = ssub.s32 %s9, 1
      // Predicated region
      $region13: #{encoder_forward.11} parent=11 // pred_check
        %p118 = pneg %p56
      $region14: #{encoder_forward.11} parent=11 // pred_check_branch
        %120 = sbr.rel (%p118) target = $region16
      $region15: #{encoder_forward.11} parent=11 // pred_region
        _
      $region16: #{encoder_forward.11} parent=11 // pred_fallthru
        _
      // Predicated region
      $region17: #{encoder_forward.11} parent=11 // pred_check
        %p121 = pneg %p77
      $region18: #{encoder_forward.11} parent=11 // pred_check_branch
        %123 = sbr.rel (%p121) target = $region20
      $region19: #{encoder_forward.11} parent=11 // pred_region
        _
      $region20: #{encoder_forward.11} parent=11 // pred_fallthru
        _
    $region12: #{encoder_forward.11} parent=5 // pred_fallthru
      _
    %p124 = scmp.lt.s32.totalorder %s9, 2
    // Predicated region
    $region21: #{encoder_forward.11} parent=5 // pred_check
      %p125 = pneg %p124
    $region22: #{encoder_forward.11} parent=5 // pred_check_branch
      %127 = sbr.rel (%p125) target = $region24
    $region23: #{encoder_forward.11} parent=5 // pred_region
      // Predicated region
      $region25: #{encoder_forward.11} parent=23 // pred_check
        %p128 = pneg %p29
      $region26: #{encoder_forward.11} parent=23 // pred_check_branch
        %130 = sbr.rel (%p128) target = $region28
      $region27: #{encoder_forward.11} parent=23 // pred_region
        %p131 = scmp.lt.s32.totalorder %s9, 1
        %s132 = scalar_select %p131, %s9, 1
        %s133 = smul.addr %s132, 14
        %s134 = smul.addr %s133, 4
        %s135 = scalar_lea.vmem %s0, %s134
      $region28: #{encoder_forward.11} parent=23 // pred_fallthru
        _
    $region24: #{encoder_forward.11} parent=5 // pred_fallthru
      _
    %p136 = scmp.le.s32.totalorder 1, %s9
    %p137 = scmp.lt.s32.totalorder %s9, 3
    %p138 = pnand %p136, %p137
    %p139 = pneg %p138
    // Predicated region
    $region29: #{encoder_forward.11} parent=5 // pred_check
      _
    $region30: #{encoder_forward.11} parent=5 // pred_check_branch
      %141 = sbr.rel (%p138) target = $region32
    $region31: #{encoder_forward.11} parent=5 // pred_region
      %s142 = ssub.s32 %s9, 1
      %p143 = scmp.lt.s32.totalorder %s14, 1
      %s144 = scalar_select %p143, %s14, 1
      %s145 = smul.addr %s144, 14
      %s146 = smul.addr %s145, 4
      %s147 = scalar_lea.vmem %s0, %s146
      %p148 = pneg %p35
      %p149 = pneg %p32
      %p150 = pneg %p56
      %p151 = pneg %p53
      %p152 = pneg %p77
      %p153 = pneg %p74
      %p154 = pneg %p103
      %p155 = pneg %p100
      %p156 = scmp.lt.s32.totalorder %s14, 1
      %s157 = scalar_select %p156, %s14, 1
      %s158 = smul.addr %s157, 10
      %s159 = smul.addr %s158, 4
      %s160 = scalar_lea.vmem %s3, %s159
      %p161 = scmp.lt.s32.totalorder %s14, 1
      %s162 = scalar_select %p161, %s14, 1
      %s163 = smul.addr %s162, 14
      %s164 = smul.addr %s163, 4
      %s165 = scalar_lea.vmem %s0, %s164
      %p166 = scmp.lt.s32.totalorder %s14, 1
      %s167 = scalar_select %p166, %s14, 1
      %s168 = smul.addr %s167, 10
      %s169 = smul.addr %s168, 4
      %s170 = scalar_lea.vmem %s3, %s169
      %v172 = vld [vmem:[%s165] sm:$0xf]
      %v173 = vld [vmem:[%s165 + $0x4] sm:$0xf]
      %v174 = vld [vmem:[%s165 + $0x8] sm:$0xf]
      %v175 = vld [vmem:[%s165 + $0xc] sm:$0xf]
      %v176 = vld [vmem:[%s165 + $0x10] sm:$0xf]
      %v177 = vld [vmem:[%s165 + $0x14] sm:$0xf]
      %v178 = vld [vmem:[%s165 + $0x18] sm:$0xf]
      %v179 = vld [vmem:[%s165 + $0x1c] sm:$0xf]
      %v180 = vld [vmem:[%s165 + $0x20] sm:$0xf]
      %v181 = vld [vmem:[%s165 + $0x24] sm:$0xf]
      %v182 = vmax.bf16 %v172, 0
      %v183 = vmax.bf16 %v173, 0
      %v184 = vmax.bf16 %v174, 0
      %v185 = vmax.bf16 %v175, 0
      %v186 = vmax.bf16 %v176, 0
      %v187 = vmax.bf16 %v177, 0
      %v188 = vmax.bf16 %v178, 0
      %v189 = vmax.bf16 %v179, 0
      %v190 = vmax.bf16 %v180, 0
      %v191 = vmax.bf16 %v181, 0
      %v192 = vld [vmem:[%s1] sm:$0xf]
      %v193 = vld [vmem:[%s165 + $0x28] sm:$0x1]
      %v194 = vmax.bf16 %v193, 0
      %s195 = scalar_lea.vmem %s1, 4
      %v196 = vld [vmem:[%s195] sm:$0xf]
      %v208 = vunpack.c.l.b16 %v182
      %v209 = vunpack.c.l.b16 %v183
      %v210 = vunpack.c.l.b16 %v184
      %v211 = vunpack.c.l.b16 %v185
      %v212 = vunpack.c.l.b16 %v186
      %v213 = vunpack.c.l.b16 %v187
      %v214 = vunpack.c.l.b16 %v188
      %v215 = vunpack.c.l.b16 %v189
      %v216 = vunpack.c.l.b16 %v190
      %v217 = vunpack.c.l.b16 %v191
      %v218 = vunpack.c.l.b16 %v194
      %v219 = vpack.c.b16 %v209, %v208
      %v220 = vpack.c.b16 %v211, %v210
      %v221 = vpack.c.b16 %v213, %v212
      %v222 = vpack.c.b16 %v215, %v214
      %v223 = vpack.c.b16 %v217, %v216
      %v224 = vpack.c.b16 %v218, %v218
      %vm225 = vsmask.f32 7424
      %v227 = vshrl.u32 %v219, 16
      %v229 = vshll.u32 %v219, 16
      %v231 = vrot.slane %v229, 1
      %v232 = vor.u32 %v227, %v231
      %v234 = vshll.u32 %v220, 16
      %v236 = vrot.slane %v234, 1
      %v237 = vsel %vm225, %v232, %v236
      %v238 = vshrl.u32 %v220, 16
      %v240 = vor.u32 %v238, %v236
      %v242 = vshll.u32 %v221, 16
      %v244 = vrot.slane %v242, 1
      %v245 = vsel %vm225, %v240, %v244
      %v246 = vshrl.u32 %v221, 16
      %v248 = vor.u32 %v246, %v244
      %v250 = vshll.u32 %v222, 16
      %v252 = vrot.slane %v250, 1
      %v253 = vsel %vm225, %v248, %v252
      %v254 = vshrl.u32 %v222, 16
      %v256 = vor.u32 %v254, %v252
      %v258 = vshll.u32 %v223, 16
      %v260 = vrot.slane %v258, 1
      %v261 = vsel %vm225, %v256, %v260
      %v262 = vshrl.u32 %v223, 16
      %v264 = vor.u32 %v262, %v260
      %v266 = vshll.u32 %v224, 16
      %v268 = vrot.slane %v266, 1
      %v269 = vsel %vm225, %v264, %v268
      %vm270 = vcmask 64512
      %v272 = vsel %vm270, %v237, 0
      %v275 = vsel %vm270, %v245, 0
      %v278 = vsel %vm270, %v253, 0
      %v281 = vsel %vm270, %v261, 0
      %v284 = vsel %vm270, %v269, 0
      %vm286 = vcmask 1043456
      %v288 = vsel %vm286, %v196, 0
      %290 = vmatprep.subr.bf16.mxu0 0
      %291 = vmatpush1.bf16.msra.mxu0 0
      %292 = vmatprep.subr.bf16.mxu0 0
      %293 = vmatpush1.bf16.msra.mxu0 0
      %294 = vmatprep.subr.bf16.mxu0 0
      %295 = vmatpush1.bf16.msra.mxu0 0
      %296 = vmatprep.subr.bf16.mxu0 0
      %297 = vmatpush1.bf16.msra.mxu0 0
      %298 = vmatprep.subr.bf16.mxu0 0
      %299 = vmatpush1.bf16.msra.mxu0 0
      %300 = vmatprep.subr.bf16.mxu0 0
      %301 = vmatpush1.bf16.msra.mxu0 0
      %302 = vmatprep.subr.bf16.mxu0 0
      %303 = vmatpush1.bf16.msra.mxu0 0
      %304 = vmatprep.subr.bf16.mxu0 0
      %305 = vmatpush1.bf16.msra.mxu0 %v288
      %306 = vmatprep.subr.bf16.mxu0 0
      %307 = vmatpush2.bf16.msra.mxu0 0
      %308 = vmatprep.subr.bf16.mxu0 0
      %309 = vmatpush2.bf16.msra.mxu0 0
      %310 = vmatprep.subr.bf16.mxu0 0
      %311 = vmatpush2.bf16.msra.mxu0 0
      %312 = vmatprep.subr.bf16.mxu0 0
      %313 = vmatpush2.bf16.msra.mxu0 0
      %314 = vmatprep.subr.bf16.mxu0 0
      %315 = vmatpush2.bf16.msra.mxu0 0
      %316 = vmatprep.subr.bf16.mxu0 0
      %317 = vmatpush2.bf16.msra.mxu0 0
      %318 = vmatprep.subr.bf16.mxu0 0
      %319 = vmatpush2.bf16.msra.mxu0 0
      %320 = vmatprep.subr.bf16.mxu0 0
      %321 = vmatpush2.bf16.msra.mxu0 0
      %322 = vmatprep.mubr.bf16.mxu0 0
      %323 = vmatmul.mubr.bf16.gmra.mxu0 %v272
      %v324 = vpop.f32.mrf.mxu0
      %v325 = vadd.f32 0.0, %v324
      %v326 = vpop.f32.mrf.mxu0
      %v327 = vpop.f32.mrf.mxu0
      %v328 = vadd.f32 0.0, %v327
      %v329 = vpop.f32.mrf.mxu0
      %330 = vmatprep.mubr.bf16.mxu0 0
      %331 = vmatmul.mubr.bf16.gmra.mxu0 %v275
      %v332 = vpop.f32.mrf.mxu0
      %v333 = vadd.f32 0.0, %v332
      %v334 = vpop.f32.mrf.mxu0
      %v335 = vpop.f32.mrf.mxu0
      %v336 = vadd.f32 0.0, %v335
      %v337 = vpop.f32.mrf.mxu0
      %338 = vmatprep.mubr.bf16.mxu0 0
      %339 = vmatmul.mubr.bf16.gmra.mxu0 %v278
      %v340 = vpop.f32.mrf.mxu0
      %v341 = vadd.f32 0.0, %v340
      %v342 = vpop.f32.mrf.mxu0
      %v343 = vpop.f32.mrf.mxu0
      %v344 = vadd.f32 0.0, %v343
      %v345 = vpop.f32.mrf.mxu0
      %346 = vmatprep.mubr.bf16.mxu0 0
      %347 = vmatmul.mubr.bf16.gmra.mxu0 %v281
      %v348 = vpop.f32.mrf.mxu0
      %v349 = vadd.f32 0.0, %v348
      %v350 = vpop.f32.mrf.mxu0
      %v351 = vpop.f32.mrf.mxu0
      %v352 = vadd.f32 0.0, %v351
      %v353 = vpop.f32.mrf.mxu0
      %354 = vmatprep.mubr.bf16.mxu0 0
      %355 = vmatmul.mubr.bf16.gmra.mxu0 %v284
      %v356 = vpop.f32.mrf.mxu0
      %v357 = vadd.f32 0.0, %v356
      %v358 = vpop.f32.mrf.mxu0
      %v359 = vpop.f32.mrf.mxu0
      %v360 = vadd.f32 0.0, %v359
      %v361 = vpop.f32.mrf.mxu0
      %362 = vdwg.mxu0
      %v363 = vsel %vm270, %v219, 0
      %v365 = vsel %vm270, %v220, 0
      %v367 = vsel %vm270, %v221, 0
      %v369 = vsel %vm270, %v222, 0
      %v371 = vsel %vm270, %v223, 0
      %v374 = vsel %vm286, %v192, 0
      %376 = vmatprep.subr.bf16.mxu0 0
      %377 = vmatpush1.bf16.msra.mxu0 0
      %378 = vmatprep.subr.bf16.mxu0 0
      %379 = vmatpush1.bf16.msra.mxu0 0
      %380 = vmatprep.subr.bf16.mxu0 0
      %381 = vmatpush1.bf16.msra.mxu0 0
      %382 = vmatprep.subr.bf16.mxu0 0
      %383 = vmatpush1.bf16.msra.mxu0 0
      %384 = vmatprep.subr.bf16.mxu0 0
      %385 = vmatpush1.bf16.msra.mxu0 0
      %386 = vmatprep.subr.bf16.mxu0 0
      %387 = vmatpush1.bf16.msra.mxu0 0
      %388 = vmatprep.subr.bf16.mxu0 0
      %389 = vmatpush1.bf16.msra.mxu0 0
      %390 = vmatprep.subr.bf16.mxu0 0
      %391 = vmatpush1.bf16.msra.mxu0 %v374
      %392 = vmatprep.subr.bf16.mxu0 0
      %393 = vmatpush2.bf16.msra.mxu0 0
      %394 = vmatprep.subr.bf16.mxu0 0
      %395 = vmatpush2.bf16.msra.mxu0 0
      %396 = vmatprep.subr.bf16.mxu0 0
      %397 = vmatpush2.bf16.msra.mxu0 0
      %398 = vmatprep.subr.bf16.mxu0 0
      %399 = vmatpush2.bf16.msra.mxu0 0
      %400 = vmatprep.subr.bf16.mxu0 0
      %401 = vmatpush2.bf16.msra.mxu0 0
      %402 = vmatprep.subr.bf16.mxu0 0
      %403 = vmatpush2.bf16.msra.mxu0 0
      %404 = vmatprep.subr.bf16.mxu0 0
      %405 = vmatpush2.bf16.msra.mxu0 0
      %406 = vmatprep.subr.bf16.mxu0 0
      %407 = vmatpush2.bf16.msra.mxu0 0
      %408 = vmatprep.mubr.bf16.mxu0 0
      %409 = vmatmul.mubr.bf16.gmra.mxu0 %v363
      %v410 = vpop.f32.mrf.mxu0
      %v411 = vadd.f32 %v325, %v410
      %v412 = vpop.f32.mrf.mxu0
      %v413 = vpop.f32.mrf.mxu0
      %v414 = vadd.f32 %v328, %v413
      %v415 = vpop.f32.mrf.mxu0
      %416 = vmatprep.mubr.bf16.mxu0 0
      %417 = vmatmul.mubr.bf16.gmra.mxu0 %v365
      %v418 = vpop.f32.mrf.mxu0
      %v419 = vadd.f32 %v333, %v418
      %v420 = vpop.f32.mrf.mxu0
      %v421 = vpop.f32.mrf.mxu0
      %v422 = vadd.f32 %v336, %v421
      %v423 = vpop.f32.mrf.mxu0
      %424 = vmatprep.mubr.bf16.mxu0 0
      %425 = vmatmul.mubr.bf16.gmra.mxu0 %v367
      %v426 = vpop.f32.mrf.mxu0
      %v427 = vadd.f32 %v341, %v426
      %v428 = vpop.f32.mrf.mxu0
      %v429 = vpop.f32.mrf.mxu0
      %v430 = vadd.f32 %v344, %v429
      %v431 = vpop.f32.mrf.mxu0
      %432 = vmatprep.mubr.bf16.mxu0 0
      %433 = vmatmul.mubr.bf16.gmra.mxu0 %v369
      %v434 = vpop.f32.mrf.mxu0
      %v435 = vadd.f32 %v349, %v434
      %v436 = vpop.f32.mrf.mxu0
      %v437 = vpop.f32.mrf.mxu0
      %v438 = vadd.f32 %v352, %v437
      %v439 = vpop.f32.mrf.mxu0
      %440 = vmatprep.mubr.bf16.mxu0 0
      %441 = vmatmul.mubr.bf16.gmra.mxu0 %v371
      %v442 = vpop.f32.mrf.mxu0
      %v443 = vadd.f32 %v357, %v442
      %v444 = vpop.f32.mrf.mxu0
      %v445 = vpop.f32.mrf.mxu0
      %v446 = vadd.f32 %v360, %v445
      %v447 = vpop.f32.mrf.mxu0
      %448 = vdwg.mxu0
      %v449 = vld [vmem:[%s165] sm:$0xe]
      %v450 = vmax.bf16 %v449, 0
      %s451 = scalar_lea.vmem %s1, 8
      %v452 = vld [vmem:[%s451] sm:$0xf]
      %v454 = vunpack.c.l.b16 %v450
      %v455 = vpack.c.b16 %v209, %v454
      %vm456 = vcmask 1046528
      %v457 = vrot.slane %v455, 1
      %v458 = vrot.slane %v220, 1
      %v459 = vsel %vm456, %v457, %v458
      %v460 = vrot.slane %v221, 1
      %v461 = vsel %vm456, %v458, %v460
      %v462 = vrot.slane %v222, 1
      %v463 = vsel %vm456, %v460, %v462
      %v464 = vrot.slane %v223, 1
      %v465 = vsel %vm456, %v462, %v464
      %v466 = vrot.slane %v224, 1
      %v467 = vsel %vm456, %v464, %v466
      %v469 = vsel %vm270, %v459, 0
      %v472 = vsel %vm270, %v461, 0
      %v475 = vsel %vm270, %v463, 0
      %v478 = vsel %vm270, %v465, 0
      %v481 = vsel %vm270, %v467, 0
      %v484 = vsel %vm286, %v452, 0
      %486 = vmatprep.subr.bf16.mxu0 0
      %487 = vmatpush1.bf16.msra.mxu0 0
      %488 = vmatprep.subr.bf16.mxu0 0
      %489 = vmatpush1.bf16.msra.mxu0 0
      %490 = vmatprep.subr.bf16.mxu0 0
      %491 = vmatpush1.bf16.msra.mxu0 0
      %492 = vmatprep.subr.bf16.mxu0 0
      %493 = vmatpush1.bf16.msra.mxu0 0
      %494 = vmatprep.subr.bf16.mxu0 0
      %495 = vmatpush1.bf16.msra.mxu0 0
      %496 = vmatprep.subr.bf16.mxu0 0
      %497 = vmatpush1.bf16.msra.mxu0 0
      %498 = vmatprep.subr.bf16.mxu0 0
      %499 = vmatpush1.bf16.msra.mxu0 0
      %500 = vmatprep.subr.bf16.mxu0 0
      %501 = vmatpush1.bf16.msra.mxu0 %v484
      %502 = vmatprep.subr.bf16.mxu0 0
      %503 = vmatpush2.bf16.msra.mxu0 0
      %504 = vmatprep.subr.bf16.mxu0 0
      %505 = vmatpush2.bf16.msra.mxu0 0
      %506 = vmatprep.subr.bf16.mxu0 0
      %507 = vmatpush2.bf16.msra.mxu0 0
      %508 = vmatprep.subr.bf16.mxu0 0
      %509 = vmatpush2.bf16.msra.mxu0 0
      %510 = vmatprep.subr.bf16.mxu0 0
      %511 = vmatpush2.bf16.msra.mxu0 0
      %512 = vmatprep.subr.bf16.mxu0 0
      %513 = vmatpush2.bf16.msra.mxu0 0
      %514 = vmatprep.subr.bf16.mxu0 0
      %515 = vmatpush2.bf16.msra.mxu0 0
      %516 = vmatprep.subr.bf16.mxu0 0
      %517 = vmatpush2.bf16.msra.mxu0 0
      %518 = vmatprep.mubr.bf16.mxu0 0
      %519 = vmatmul.mubr.bf16.gmra.mxu0 %v469
      %v520 = vpop.f32.mrf.mxu0
      %v521 = vadd.f32 0.0, %v520
      %v522 = vpop.f32.mrf.mxu0
      %v523 = vpop.f32.mrf.mxu0
      %v524 = vadd.f32 0.0, %v523
      %v525 = vpop.f32.mrf.mxu0
      %526 = vmatprep.mubr.bf16.mxu0 0
      %527 = vmatmul.mubr.bf16.gmra.mxu0 %v472
      %v528 = vpop.f32.mrf.mxu0
      %v529 = vadd.f32 0.0, %v528
      %v530 = vpop.f32.mrf.mxu0
      %v531 = vpop.f32.mrf.mxu0
      %v532 = vadd.f32 0.0, %v531
      %v533 = vpop.f32.mrf.mxu0
      %534 = vmatprep.mubr.bf16.mxu0 0
      %535 = vmatmul.mubr.bf16.gmra.mxu0 %v475
      %v536 = vpop.f32.mrf.mxu0
      %v537 = vadd.f32 0.0, %v536
      %v538 = vpop.f32.mrf.mxu0
      %v539 = vpop.f32.mrf.mxu0
      %v540 = vadd.f32 0.0, %v539
      %v541 = vpop.f32.mrf.mxu0
      %542 = vmatprep.mubr.bf16.mxu0 0
      %543 = vmatmul.mubr.bf16.gmra.mxu0 %v478
      %v544 = vpop.f32.mrf.mxu0
      %v545 = vadd.f32 0.0, %v544
      %v546 = vpop.f32.mrf.mxu0
      %v547 = vpop.f32.mrf.mxu0
      %v548 = vadd.f32 0.0, %v547
      %v549 = vpop.f32.mrf.mxu0
      %550 = vmatprep.mubr.bf16.mxu0 0
      %551 = vmatmul.mubr.bf16.gmra.mxu0 %v481
      %v552 = vpop.f32.mrf.mxu0
      %v553 = vadd.f32 0.0, %v552
      %v554 = vpop.f32.mrf.mxu0
      %v555 = vpop.f32.mrf.mxu0
      %v556 = vadd.f32 0.0, %v555
      %v557 = vpop.f32.mrf.mxu0
      %558 = vdwg.mxu0
      %v559 = vadd.f32 %v411, %v521
      %v560 = vadd.f32 %v414, %v524
      %v561 = vadd.f32 %v419, %v529
      %v562 = vadd.f32 %v422, %v532
      %v563 = vadd.f32 %v427, %v537
      %v564 = vadd.f32 %v430, %v540
      %v565 = vadd.f32 %v435, %v545
      %v566 = vadd.f32 %v438, %v548
      %v567 = vadd.f32 %v443, %v553
      %v568 = vadd.f32 %v446, %v556
      %v569 = vld [vmem:[%s165 + $0x4] sm:$0xe]
      %v570 = vld [vmem:[%s165 + $0x8] sm:$0xf]
      %v571 = vld [vmem:[%s165 + $0xc] sm:$0xf]
      %v572 = vld [vmem:[%s165 + $0x10] sm:$0xf]
      %v573 = vld [vmem:[%s165 + $0x14] sm:$0xf]
      %v574 = vld [vmem:[%s165 + $0x18] sm:$0xf]
      %v575 = vld [vmem:[%s165 + $0x1c] sm:$0xf]
      %v576 = vld [vmem:[%s165 + $0x20] sm:$0xf]
      %v577 = vld [vmem:[%s165 + $0x24] sm:$0xf]
      %v578 = vld [vmem:[%s165 + $0x28] sm:$0xf]
      %v579 = vld [vmem:[%s165 + $0x2c] sm:$0x1]
      %v580 = vmax.bf16 %v569, 0
      %v581 = vmax.bf16 %v570, 0
      %v582 = vmax.bf16 %v571, 0
      %v583 = vmax.bf16 %v572, 0
      %v584 = vmax.bf16 %v573, 0
      %v585 = vmax.bf16 %v574, 0
      %v586 = vmax.bf16 %v575, 0
      %v587 = vmax.bf16 %v576, 0
      %v588 = vmax.bf16 %v577, 0
      %v589 = vmax.bf16 %v578, 0
      %v590 = vmax.bf16 %v579, 0
      %s591 = scalar_lea.vmem %s1, 12
      %v592 = vld [vmem:[%s591] sm:$0xf]
      %v604 = vunpack.c.l.b16 %v580
      %v605 = vunpack.c.l.b16 %v581
      %v606 = vunpack.c.l.b16 %v582
      %v607 = vunpack.c.l.b16 %v583
      %v608 = vunpack.c.l.b16 %v584
      %v609 = vunpack.c.l.b16 %v585
      %v610 = vunpack.c.l.b16 %v586
      %v611 = vunpack.c.l.b16 %v587
      %v612 = vunpack.c.l.b16 %v588
      %v613 = vunpack.c.l.b16 %v589
      %v614 = vunpack.c.l.b16 %v590
      %v615 = vpack.c.b16 %v605, %v604
      %v616 = vpack.c.b16 %v607, %v606
      %v617 = vpack.c.b16 %v609, %v608
      %v618 = vpack.c.b16 %v611, %v610
      %v619 = vpack.c.b16 %v613, %v612
      %v620 = vpack.c.b16 %v614, %v614
      %v621 = vrot.slane %v615, 1
      %v622 = vrot.slane %v616, 1
      %v623 = vsel %vm456, %v621, %v622
      %v624 = vrot.slane %v617, 1
      %v625 = vsel %vm456, %v622, %v624
      %v626 = vrot.slane %v618, 1
      %v627 = vsel %vm456, %v624, %v626
      %v628 = vrot.slane %v619, 1
      %v629 = vsel %vm456, %v626, %v628
      %v630 = vrot.slane %v620, 1
      %v631 = vsel %vm456, %v628, %v630
      %v633 = vsel %vm270, %v623, 0
      %v636 = vsel %vm270, %v625, 0
      %v639 = vsel %vm270, %v627, 0
      %v642 = vsel %vm270, %v629, 0
      %v645 = vsel %vm270, %v631, 0
      %v648 = vsel %vm286, %v592, 0
      %650 = vmatprep.subr.bf16.mxu0 0
      %651 = vmatpush1.bf16.msra.mxu0 0
      %652 = vmatprep.subr.bf16.mxu0 0
      %653 = vmatpush1.bf16.msra.mxu0 0
      %654 = vmatprep.subr.bf16.mxu0 0
      %655 = vmatpush1.bf16.msra.mxu0 0
      %656 = vmatprep.subr.bf16.mxu0 0
      %657 = vmatpush1.bf16.msra.mxu0 0
      %658 = vmatprep.subr.bf16.mxu0 0
      %659 = vmatpush1.bf16.msra.mxu0 0
      %660 = vmatprep.subr.bf16.mxu0 0
      %661 = vmatpush1.bf16.msra.mxu0 0
      %662 = vmatprep.subr.bf16.mxu0 0
      %663 = vmatpush1.bf16.msra.mxu0 0
      %664 = vmatprep.subr.bf16.mxu0 0
      %665 = vmatpush1.bf16.msra.mxu0 %v648
      %666 = vmatprep.subr.bf16.mxu0 0
      %667 = vmatpush2.bf16.msra.mxu0 0
      %668 = vmatprep.subr.bf16.mxu0 0
      %669 = vmatpush2.bf16.msra.mxu0 0
      %670 = vmatprep.subr.bf16.mxu0 0
      %671 = vmatpush2.bf16.msra.mxu0 0
      %672 = vmatprep.subr.bf16.mxu0 0
      %673 = vmatpush2.bf16.msra.mxu0 0
      %674 = vmatprep.subr.bf16.mxu0 0
      %675 = vmatpush2.bf16.msra.mxu0 0
      %676 = vmatprep.subr.bf16.mxu0 0
      %677 = vmatpush2.bf16.msra.mxu0 0
      %678 = vmatprep.subr.bf16.mxu0 0
      %679 = vmatpush2.bf16.msra.mxu0 0
      %680 = vmatprep.subr.bf16.mxu0 0
      %681 = vmatpush2.bf16.msra.mxu0 0
      %682 = vmatprep.mubr.bf16.mxu0 0
      %683 = vmatmul.mubr.bf16.gmra.mxu0 %v633
      %v684 = vpop.f32.mrf.mxu0
      %v685 = vadd.f32 0.0, %v684
      %v686 = vpop.f32.mrf.mxu0
      %v687 = vpop.f32.mrf.mxu0
      %v688 = vadd.f32 0.0, %v687
      %v689 = vpop.f32.mrf.mxu0
      %690 = vmatprep.mubr.bf16.mxu0 0
      %691 = vmatmul.mubr.bf16.gmra.mxu0 %v636
      %v692 = vpop.f32.mrf.mxu0
      %v693 = vadd.f32 0.0, %v692
      %v694 = vpop.f32.mrf.mxu0
      %v695 = vpop.f32.mrf.mxu0
      %v696 = vadd.f32 0.0, %v695
      %v697 = vpop.f32.mrf.mxu0
      %698 = vmatprep.mubr.bf16.mxu0 0
      %699 = vmatmul.mubr.bf16.gmra.mxu0 %v639
      %v700 = vpop.f32.mrf.mxu0
      %v701 = vadd.f32 0.0, %v700
      %v702 = vpop.f32.mrf.mxu0
      %v703 = vpop.f32.mrf.mxu0
      %v704 = vadd.f32 0.0, %v703
      %v705 = vpop.f32.mrf.mxu0
      %706 = vmatprep.mubr.bf16.mxu0 0
      %707 = vmatmul.mubr.bf16.gmra.mxu0 %v642
      %v708 = vpop.f32.mrf.mxu0
      %v709 = vadd.f32 0.0, %v708
      %v710 = vpop.f32.mrf.mxu0
      %v711 = vpop.f32.mrf.mxu0
      %v712 = vadd.f32 0.0, %v711
      %v713 = vpop.f32.mrf.mxu0
      %714 = vmatprep.mubr.bf16.mxu0 0
      %715 = vmatmul.mubr.bf16.gmra.mxu0 %v645
      %v716 = vpop.f32.mrf.mxu0
      %v717 = vadd.f32 0.0, %v716
      %v718 = vpop.f32.mrf.mxu0
      %v719 = vpop.f32.mrf.mxu0
      %v720 = vadd.f32 0.0, %v719
      %v721 = vpop.f32.mrf.mxu0
      %722 = vdwg.mxu0
      %v723 = vadd.f32 %v559, %v685
      %v724 = vadd.f32 %v560, %v688
      %v725 = vadd.f32 %v561, %v693
      %v726 = vadd.f32 %v562, %v696
      %v727 = vadd.f32 %v563, %v701
      %v728 = vadd.f32 %v564, %v704
      %v729 = vadd.f32 %v565, %v709
      %v730 = vadd.f32 %v566, %v712
      %v731 = vadd.f32 %v567, %v717
      %v732 = vadd.f32 %v568, %v720
      %v733 = vld [vmem:[%s165 + $0x2c] sm:$0x3]
      %v734 = vmax.bf16 %v733, 0
      %s735 = scalar_lea.vmem %s1, 16
      %v736 = vld [vmem:[%s735] sm:$0xf]
      %v738 = vunpack.c.l.b16 %v734
      %v739 = vpack.c.b16 %v738, %v738
      %vm740 = vsmask.f32 6400
      %v742 = vshrl.u32 %v615, 16
      %v744 = vrot.slane %v742, 1
      %v745 = vshll.u32 %v615, 16
      %v747 = vrot.slane %v745, 2
      %v748 = vor.u32 %v744, %v747
      %v750 = vshrl.u32 %v616, 16
      %v752 = vrot.slane %v750, 1
      %v753 = vshll.u32 %v616, 16
      %v755 = vrot.slane %v753, 2
      %v756 = vor.u32 %v752, %v755
      %v757 = vsel %vm740, %v748, %v756
      %v759 = vshrl.u32 %v617, 16
      %v761 = vrot.slane %v759, 1
      %v762 = vshll.u32 %v617, 16
      %v764 = vrot.slane %v762, 2
      %v765 = vor.u32 %v761, %v764
      %v766 = vsel %vm740, %v756, %v765
      %v768 = vshrl.u32 %v618, 16
      %v770 = vrot.slane %v768, 1
      %v771 = vshll.u32 %v618, 16
      %v773 = vrot.slane %v771, 2
      %v774 = vor.u32 %v770, %v773
      %v775 = vsel %vm740, %v765, %v774
      %v777 = vshrl.u32 %v619, 16
      %v779 = vrot.slane %v777, 1
      %v780 = vshll.u32 %v619, 16
      %v782 = vrot.slane %v780, 2
      %v783 = vor.u32 %v779, %v782
      %v784 = vsel %vm740, %v774, %v783
      %v786 = vshrl.u32 %v739, 16
      %v788 = vrot.slane %v786, 1
      %v789 = vshll.u32 %v739, 16
      %v791 = vrot.slane %v789, 2
      %v792 = vor.u32 %v788, %v791
      %v793 = vsel %vm740, %v783, %v792
      %v795 = vsel %vm270, %v757, 0
      %v798 = vsel %vm270, %v766, 0
      %v801 = vsel %vm270, %v775, 0
      %v804 = vsel %vm270, %v784, 0
      %v807 = vsel %vm270, %v793, 0
      %v810 = vsel %vm286, %v736, 0
      %812 = vmatprep.subr.bf16.mxu0 0
      %813 = vmatpush1.bf16.msra.mxu0 0
      %814 = vmatprep.subr.bf16.mxu0 0
      %815 = vmatpush1.bf16.msra.mxu0 0
      %816 = vmatprep.subr.bf16.mxu0 0
      %817 = vmatpush1.bf16.msra.mxu0 0
      %818 = vmatprep.subr.bf16.mxu0 0
      %819 = vmatpush1.bf16.msra.mxu0 0
      %820 = vmatprep.subr.bf16.mxu0 0
      %821 = vmatpush1.bf16.msra.mxu0 0
      %822 = vmatprep.subr.bf16.mxu0 0
      %823 = vmatpush1.bf16.msra.mxu0 0
      %824 = vmatprep.subr.bf16.mxu0 0
      %825 = vmatpush1.bf16.msra.mxu0 0
      %826 = vmatprep.subr.bf16.mxu0 0
      %827 = vmatpush1.bf16.msra.mxu0 %v810
      %828 = vmatprep.subr.bf16.mxu0 0
      %829 = vmatpush2.bf16.msra.mxu0 0
      %830 = vmatprep.subr.bf16.mxu0 0
      %831 = vmatpush2.bf16.msra.mxu0 0
      %832 = vmatprep.subr.bf16.mxu0 0
      %833 = vmatpush2.bf16.msra.mxu0 0
      %834 = vmatprep.subr.bf16.mxu0 0
      %835 = vmatpush2.bf16.msra.mxu0 0
      %836 = vmatprep.subr.bf16.mxu0 0
      %837 = vmatpush2.bf16.msra.mxu0 0
      %838 = vmatprep.subr.bf16.mxu0 0
      %839 = vmatpush2.bf16.msra.mxu0 0
      %840 = vmatprep.subr.bf16.mxu0 0
      %841 = vmatpush2.bf16.msra.mxu0 0
      %842 = vmatprep.subr.bf16.mxu0 0
      %843 = vmatpush2.bf16.msra.mxu0 0
      %844 = vmatprep.mubr.bf16.mxu0 0
      %845 = vmatmul.mubr.bf16.gmra.mxu0 %v795
      %v846 = vpop.f32.mrf.mxu0
      %v847 = vadd.f32 0.0, %v846
      %v848 = vpop.f32.mrf.mxu0
      %v849 = vpop.f32.mrf.mxu0
      %v850 = vadd.f32 0.0, %v849
      %v851 = vpop.f32.mrf.mxu0
      %852 = vmatprep.mubr.bf16.mxu0 0
      %853 = vmatmul.mubr.bf16.gmra.mxu0 %v798
      %v854 = vpop.f32.mrf.mxu0
      %v855 = vadd.f32 0.0, %v854
      %v856 = vpop.f32.mrf.mxu0
      %v857 = vpop.f32.mrf.mxu0
      %v858 = vadd.f32 0.0, %v857
      %v859 = vpop.f32.mrf.mxu0
      %860 = vmatprep.mubr.bf16.mxu0 0
      %861 = vmatmul.mubr.bf16.gmra.mxu0 %v801
      %v862 = vpop.f32.mrf.mxu0
      %v863 = vadd.f32 0.0, %v862
      %v864 = vpop.f32.mrf.mxu0
      %v865 = vpop.f32.mrf.mxu0
      %v866 = vadd.f32 0.0, %v865
      %v867 = vpop.f32.mrf.mxu0
      %868 = vmatprep.mubr.bf16.mxu0 0
      %869 = vmatmul.mubr.bf16.gmra.mxu0 %v804
      %v870 = vpop.f32.mrf.mxu0
      %v871 = vadd.f32 0.0, %v870
      %v872 = vpop.f32.mrf.mxu0
      %v873 = vpop.f32.mrf.mxu0
      %v874 = vadd.f32 0.0, %v873
      %v875 = vpop.f32.mrf.mxu0
      %876 = vmatprep.mubr.bf16.mxu0 0
      %877 = vmatmul.mubr.bf16.gmra.mxu0 %v807
      %v878 = vpop.f32.mrf.mxu0
      %v879 = vadd.f32 0.0, %v878
      %v880 = vpop.f32.mrf.mxu0
      %v881 = vpop.f32.mrf.mxu0
      %v882 = vadd.f32 0.0, %v881
      %v883 = vpop.f32.mrf.mxu0
      %884 = vdwg.mxu0
      %v885 = vadd.f32 %v723, %v847
      %v886 = vadd.f32 %v724, %v850
      %v887 = vadd.f32 %v725, %v855
      %v888 = vadd.f32 %v726, %v858
      %v889 = vadd.f32 %v727, %v863
      %v890 = vadd.f32 %v728, %v866
      %v891 = vadd.f32 %v729, %v871
      %v892 = vadd.f32 %v730, %v874
      %v893 = vadd.f32 %v731, %v879
      %v894 = vadd.f32 %v732, %v882
      %v895 = vld [vmem:[%s165 + $0x4] sm:$0xc]
      %v896 = vmax.bf16 %v895, 0
      %s897 = scalar_lea.vmem %s1, 20
      %v898 = vld [vmem:[%s897] sm:$0xf]
      %v900 = vunpack.c.l.b16 %v896
      %v901 = vpack.c.b16 %v605, %v900
      %vm902 = vcmask 1045504
      %v903 = vrot.slane %v901, 2
      %v904 = vrot.slane %v616, 2
      %v905 = vsel %vm902, %v903, %v904
      %v906 = vrot.slane %v617, 2
      %v907 = vsel %vm902, %v904, %v906
      %v908 = vrot.slane %v618, 2
      %v909 = vsel %vm902, %v906, %v908
      %v910 = vrot.slane %v619, 2
      %v911 = vsel %vm902, %v908, %v910
      %v912 = vrot.slane %v739, 2
      %v913 = vsel %vm902, %v910, %v912
      %v915 = vsel %vm270, %v905, 0
      %v918 = vsel %vm270, %v907, 0
      %v921 = vsel %vm270, %v909, 0
      %v924 = vsel %vm270, %v911, 0
      %v927 = vsel %vm270, %v913, 0
      %v930 = vsel %vm286, %v898, 0
      %932 = vmatprep.subr.bf16.mxu0 0
      %933 = vmatpush1.bf16.msra.mxu0 0
      %934 = vmatprep.subr.bf16.mxu0 0
      %935 = vmatpush1.bf16.msra.mxu0 0
      %936 = vmatprep.subr.bf16.mxu0 0
      %937 = vmatpush1.bf16.msra.mxu0 0
      %938 = vmatprep.subr.bf16.mxu0 0
      %939 = vmatpush1.bf16.msra.mxu0 0
      %940 = vmatprep.subr.bf16.mxu0 0
      %941 = vmatpush1.bf16.msra.mxu0 0
      %942 = vmatprep.subr.bf16.mxu0 0
      %943 = vmatpush1.bf16.msra.mxu0 0
      %944 = vmatprep.subr.bf16.mxu0 0
      %945 = vmatpush1.bf16.msra.mxu0 0
      %946 = vmatprep.subr.bf16.mxu0 0
      %947 = vmatpush1.bf16.msra.mxu0 %v930
      %948 = vmatprep.subr.bf16.mxu0 0
      %949 = vmatpush2.bf16.msra.mxu0 0
      %950 = vmatprep.subr.bf16.mxu0 0
      %951 = vmatpush2.bf16.msra.mxu0 0
      %952 = vmatprep.subr.bf16.mxu0 0
      %953 = vmatpush2.bf16.msra.mxu0 0
      %954 = vmatprep.subr.bf16.mxu0 0
      %955 = vmatpush2.bf16.msra.mxu0 0
      %956 = vmatprep.subr.bf16.mxu0 0
      %957 = vmatpush2.bf16.msra.mxu0 0
      %958 = vmatprep.subr.bf16.mxu0 0
      %959 = vmatpush2.bf16.msra.mxu0 0
      %960 = vmatprep.subr.bf16.mxu0 0
      %961 = vmatpush2.bf16.msra.mxu0 0
      %962 = vmatprep.subr.bf16.mxu0 0
      %963 = vmatpush2.bf16.msra.mxu0 0
      %964 = vmatprep.mubr.bf16.mxu0 0
      %965 = vmatmul.mubr.bf16.gmra.mxu0 %v915
      %v966 = vpop.f32.mrf.mxu0
      %v967 = vadd.f32 0.0, %v966
      %v968 = vpop.f32.mrf.mxu0
      %v969 = vpop.f32.mrf.mxu0
      %v970 = vadd.f32 0.0, %v969
      %v971 = vpop.f32.mrf.mxu0
      %972 = vmatprep.mubr.bf16.mxu0 0
      %973 = vmatmul.mubr.bf16.gmra.mxu0 %v918
      %v974 = vpop.f32.mrf.mxu0
      %v975 = vadd.f32 0.0, %v974
      %v976 = vpop.f32.mrf.mxu0
      %v977 = vpop.f32.mrf.mxu0
      %v978 = vadd.f32 0.0, %v977
      %v979 = vpop.f32.mrf.mxu0
      %980 = vmatprep.mubr.bf16.mxu0 0
      %981 = vmatmul.mubr.bf16.gmra.mxu0 %v921
      %v982 = vpop.f32.mrf.mxu0
      %v983 = vadd.f32 0.0, %v982
      %v984 = vpop.f32.mrf.mxu0
      %v985 = vpop.f32.mrf.mxu0
      %v986 = vadd.f32 0.0, %v985
      %v987 = vpop.f32.mrf.mxu0
      %988 = vmatprep.mubr.bf16.mxu0 0
      %989 = vmatmul.mubr.bf16.gmra.mxu0 %v924
      %v990 = vpop.f32.mrf.mxu0
      %v991 = vadd.f32 0.0, %v990
      %v992 = vpop.f32.mrf.mxu0
      %v993 = vpop.f32.mrf.mxu0
      %v994 = vadd.f32 0.0, %v993
      %v995 = vpop.f32.mrf.mxu0
      %996 = vmatprep.mubr.bf16.mxu0 0
      %997 = vmatmul.mubr.bf16.gmra.mxu0 %v927
      %v998 = vpop.f32.mrf.mxu0
      %v999 = vadd.f32 0.0, %v998
      %v1000 = vpop.f32.mrf.mxu0
      %v1001 = vpop.f32.mrf.mxu0
      %v1002 = vadd.f32 0.0, %v1001
      %v1003 = vpop.f32.mrf.mxu0
      %1004 = vdwg.mxu0
      %v1005 = vadd.f32 %v885, %v967
      %v1006 = vadd.f32 %v886, %v970
      %v1007 = vadd.f32 %v887, %v975
      %v1008 = vadd.f32 %v888, %v978
      %v1009 = vadd.f32 %v889, %v983
      %v1010 = vadd.f32 %v890, %v986
      %v1011 = vadd.f32 %v891, %v991
      %v1012 = vadd.f32 %v892, %v994
      %v1013 = vadd.f32 %v893, %v999
      %v1014 = vadd.f32 %v894, %v1002
      %v1015 = vld [vmem:[%s165 + $0x8] sm:$0xc]
      %v1016 = vld [vmem:[%s165 + $0xc] sm:$0xf]
      %v1017 = vld [vmem:[%s165 + $0x10] sm:$0xf]
      %v1018 = vld [vmem:[%s165 + $0x14] sm:$0xf]
      %v1019 = vld [vmem:[%s165 + $0x18] sm:$0xf]
      %v1020 = vld [vmem:[%s165 + $0x1c] sm:$0xf]
      %v1021 = vld [vmem:[%s165 + $0x20] sm:$0xf]
      %v1022 = vld [vmem:[%s165 + $0x24] sm:$0xf]
      %v1023 = vld [vmem:[%s165 + $0x28] sm:$0xf]
      %v1024 = vld [vmem:[%s165 + $0x2c] sm:$0xf]
      %v1025 = vld [vmem:[%s165 + $0x30] sm:$0x3]
      %v1026 = vmax.bf16 %v1015, 0
      %v1027 = vmax.bf16 %v1016, 0
      %v1028 = vmax.bf16 %v1017, 0
      %v1029 = vmax.bf16 %v1018, 0
      %v1030 = vmax.bf16 %v1019, 0
      %v1031 = vmax.bf16 %v1020, 0
      %v1032 = vmax.bf16 %v1021, 0
      %v1033 = vmax.bf16 %v1022, 0
      %v1034 = vmax.bf16 %v1023, 0
      %v1035 = vmax.bf16 %v1024, 0
      %v1036 = vmax.bf16 %v1025, 0
      %s1037 = scalar_lea.vmem %s1, 24
      %v1038 = vld [vmem:[%s1037] sm:$0xf]
      %v1050 = vunpack.c.l.b16 %v1026
      %v1051 = vunpack.c.l.b16 %v1027
      %v1052 = vunpack.c.l.b16 %v1028
      %v1053 = vunpack.c.l.b16 %v1029
      %v1054 = vunpack.c.l.b16 %v1030
      %v1055 = vunpack.c.l.b16 %v1031
      %v1056 = vunpack.c.l.b16 %v1032
      %v1057 = vunpack.c.l.b16 %v1033
      %v1058 = vunpack.c.l.b16 %v1034
      %v1059 = vunpack.c.l.b16 %v1035
      %v1060 = vunpack.c.l.b16 %v1036
      %v1061 = vpack.c.b16 %v1051, %v1050
      %v1062 = vpack.c.b16 %v1053, %v1052
      %v1063 = vpack.c.b16 %v1055, %v1054
      %v1064 = vpack.c.b16 %v1057, %v1056
      %v1065 = vpack.c.b16 %v1059, %v1058
      %v1066 = vpack.c.b16 %v1060, %v1060
      %v1067 = vrot.slane %v1061, 2
      %v1068 = vrot.slane %v1062, 2
      %v1069 = vsel %vm902, %v1067, %v1068
      %v1070 = vrot.slane %v1063, 2
      %v1071 = vsel %vm902, %v1068, %v1070
      %v1072 = vrot.slane %v1064, 2
      %v1073 = vsel %vm902, %v1070, %v1072
      %v1074 = vrot.slane %v1065, 2
      %v1075 = vsel %vm902, %v1072, %v1074
      %v1076 = vrot.slane %v1066, 2
      %v1077 = vsel %vm902, %v1074, %v1076
      %v1079 = vsel %vm270, %v1069, 0
      %v1082 = vsel %vm270, %v1071, 0
      %v1085 = vsel %vm270, %v1073, 0
      %v1088 = vsel %vm270, %v1075, 0
      %v1091 = vsel %vm270, %v1077, 0
      %v1094 = vsel %vm286, %v1038, 0
      %1096 = vmatprep.subr.bf16.mxu0 0
      %1097 = vmatpush1.bf16.msra.mxu0 0
      %1098 = vmatprep.subr.bf16.mxu0 0
      %1099 = vmatpush1.bf16.msra.mxu0 0
      %1100 = vmatprep.subr.bf16.mxu0 0
      %1101 = vmatpush1.bf16.msra.mxu0 0
      %1102 = vmatprep.subr.bf16.mxu0 0
      %1103 = vmatpush1.bf16.msra.mxu0 0
      %1104 = vmatprep.subr.bf16.mxu0 0
      %1105 = vmatpush1.bf16.msra.mxu0 0
      %1106 = vmatprep.subr.bf16.mxu0 0
      %1107 = vmatpush1.bf16.msra.mxu0 0
      %1108 = vmatprep.subr.bf16.mxu0 0
      %1109 = vmatpush1.bf16.msra.mxu0 0
      %1110 = vmatprep.subr.bf16.mxu0 0
      %1111 = vmatpush1.bf16.msra.mxu0 %v1094
      %1112 = vmatprep.subr.bf16.mxu0 0
      %1113 = vmatpush2.bf16.msra.mxu0 0
      %1114 = vmatprep.subr.bf16.mxu0 0
      %1115 = vmatpush2.bf16.msra.mxu0 0
      %1116 = vmatprep.subr.bf16.mxu0 0
      %1117 = vmatpush2.bf16.msra.mxu0 0
      %1118 = vmatprep.subr.bf16.mxu0 0
      %1119 = vmatpush2.bf16.msra.mxu0 0
      %1120 = vmatprep.subr.bf16.mxu0 0
      %1121 = vmatpush2.bf16.msra.mxu0 0
      %1122 = vmatprep.subr.bf16.mxu0 0
      %1123 = vmatpush2.bf16.msra.mxu0 0
      %1124 = vmatprep.subr.bf16.mxu0 0
      %1125 = vmatpush2.bf16.msra.mxu0 0
      %1126 = vmatprep.subr.bf16.mxu0 0
      %1127 = vmatpush2.bf16.msra.mxu0 0
      %1128 = vmatprep.mubr.bf16.mxu0 0
      %1129 = vmatmul.mubr.bf16.gmra.mxu0 %v1079
      %v1130 = vpop.f32.mrf.mxu0
      %v1131 = vadd.f32 0.0, %v1130
      %v1132 = vpop.f32.mrf.mxu0
      %v1133 = vpop.f32.mrf.mxu0
      %v1134 = vadd.f32 0.0, %v1133
      %v1135 = vpop.f32.mrf.mxu0
      %1136 = vmatprep.mubr.bf16.mxu0 0
      %1137 = vmatmul.mubr.bf16.gmra.mxu0 %v1082
      %v1138 = vpop.f32.mrf.mxu0
      %v1139 = vadd.f32 0.0, %v1138
      %v1140 = vpop.f32.mrf.mxu0
      %v1141 = vpop.f32.mrf.mxu0
      %v1142 = vadd.f32 0.0, %v1141
      %v1143 = vpop.f32.mrf.mxu0
      %1144 = vmatprep.mubr.bf16.mxu0 0
      %1145 = vmatmul.mubr.bf16.gmra.mxu0 %v1085
      %v1146 = vpop.f32.mrf.mxu0
      %v1147 = vadd.f32 0.0, %v1146
      %v1148 = vpop.f32.mrf.mxu0
      %v1149 = vpop.f32.mrf.mxu0
      %v1150 = vadd.f32 0.0, %v1149
      %v1151 = vpop.f32.mrf.mxu0
      %1152 = vmatprep.mubr.bf16.mxu0 0
      %1153 = vmatmul.mubr.bf16.gmra.mxu0 %v1088
      %v1154 = vpop.f32.mrf.mxu0
      %v1155 = vadd.f32 0.0, %v1154
      %v1156 = vpop.f32.mrf.mxu0
      %v1157 = vpop.f32.mrf.mxu0
      %v1158 = vadd.f32 0.0, %v1157
      %v1159 = vpop.f32.mrf.mxu0
      %1160 = vmatprep.mubr.bf16.mxu0 0
      %1161 = vmatmul.mubr.bf16.gmra.mxu0 %v1091
      %v1162 = vpop.f32.mrf.mxu0
      %v1163 = vadd.f32 0.0, %v1162
      %v1164 = vpop.f32.mrf.mxu0
      %v1165 = vpop.f32.mrf.mxu0
      %v1166 = vadd.f32 0.0, %v1165
      %v1167 = vpop.f32.mrf.mxu0
      %1168 = vdwg.mxu0
      %v1169 = vadd.f32 %v1005, %v1131
      %v1170 = vadd.f32 %v1006, %v1134
      %v1171 = vadd.f32 %v1007, %v1139
      %v1172 = vadd.f32 %v1008, %v1142
      %v1173 = vadd.f32 %v1009, %v1147
      %v1174 = vadd.f32 %v1010, %v1150
      %v1175 = vadd.f32 %v1011, %v1155
      %v1176 = vadd.f32 %v1012, %v1158
      %v1177 = vadd.f32 %v1013, %v1163
      %v1178 = vadd.f32 %v1014, %v1166
      %v1179 = vld [vmem:[%s165 + $0x30] sm:$0x7]
      %v1180 = vmax.bf16 %v1179, 0
      %s1181 = scalar_lea.vmem %s1, 28
      %v1182 = vld [vmem:[%s1181] sm:$0xf]
      %v1184 = vunpack.c.l.b16 %v1180
      %v1185 = vpack.c.b16 %v1184, %v1184
      %vm1186 = vsmask.f32 5376
      %v1188 = vshrl.u32 %v1061, 16
      %v1190 = vrot.slane %v1188, 2
      %v1191 = vshll.u32 %v1061, 16
      %v1193 = vrot.slane %v1191, 3
      %v1194 = vor.u32 %v1190, %v1193
      %v1196 = vshrl.u32 %v1062, 16
      %v1198 = vrot.slane %v1196, 2
      %v1199 = vshll.u32 %v1062, 16
      %v1201 = vrot.slane %v1199, 3
      %v1202 = vor.u32 %v1198, %v1201
      %v1203 = vsel %vm1186, %v1194, %v1202
      %v1205 = vshrl.u32 %v1063, 16
      %v1207 = vrot.slane %v1205, 2
      %v1208 = vshll.u32 %v1063, 16
      %v1210 = vrot.slane %v1208, 3
      %v1211 = vor.u32 %v1207, %v1210
      %v1212 = vsel %vm1186, %v1202, %v1211
      %v1214 = vshrl.u32 %v1064, 16
      %v1216 = vrot.slane %v1214, 2
      %v1217 = vshll.u32 %v1064, 16
      %v1219 = vrot.slane %v1217, 3
      %v1220 = vor.u32 %v1216, %v1219
      %v1221 = vsel %vm1186, %v1211, %v1220
      %v1223 = vshrl.u32 %v1065, 16
      %v1225 = vrot.slane %v1223, 2
      %v1226 = vshll.u32 %v1065, 16
      %v1228 = vrot.slane %v1226, 3
      %v1229 = vor.u32 %v1225, %v1228
      %v1230 = vsel %vm1186, %v1220, %v1229
      %v1232 = vshrl.u32 %v1185, 16
      %v1234 = vrot.slane %v1232, 2
      %v1235 = vshll.u32 %v1185, 16
      %v1237 = vrot.slane %v1235, 3
      %v1238 = vor.u32 %v1234, %v1237
      %v1239 = vsel %vm1186, %v1229, %v1238
      %v1241 = vsel %vm270, %v1203, 0
      %v1244 = vsel %vm270, %v1212, 0
      %v1247 = vsel %vm270, %v1221, 0
      %v1250 = vsel %vm270, %v1230, 0
      %v1253 = vsel %vm270, %v1239, 0
      %v1256 = vsel %vm286, %v1182, 0
      %1258 = vmatprep.subr.bf16.mxu0 0
      %1259 = vmatpush1.bf16.msra.mxu0 0
      %1260 = vmatprep.subr.bf16.mxu0 0
      %1261 = vmatpush1.bf16.msra.mxu0 0
      %1262 = vmatprep.subr.bf16.mxu0 0
      %1263 = vmatpush1.bf16.msra.mxu0 0
      %1264 = vmatprep.subr.bf16.mxu0 0
      %1265 = vmatpush1.bf16.msra.mxu0 0
      %1266 = vmatprep.subr.bf16.mxu0 0
      %1267 = vmatpush1.bf16.msra.mxu0 0
      %1268 = vmatprep.subr.bf16.mxu0 0
      %1269 = vmatpush1.bf16.msra.mxu0 0
      %1270 = vmatprep.subr.bf16.mxu0 0
      %1271 = vmatpush1.bf16.msra.mxu0 0
      %1272 = vmatprep.subr.bf16.mxu0 0
      %1273 = vmatpush1.bf16.msra.mxu0 %v1256
      %1274 = vmatprep.subr.bf16.mxu0 0
      %1275 = vmatpush2.bf16.msra.mxu0 0
      %1276 = vmatprep.subr.bf16.mxu0 0
      %1277 = vmatpush2.bf16.msra.mxu0 0
      %1278 = vmatprep.subr.bf16.mxu0 0
      %1279 = vmatpush2.bf16.msra.mxu0 0
      %1280 = vmatprep.subr.bf16.mxu0 0
      %1281 = vmatpush2.bf16.msra.mxu0 0
      %1282 = vmatprep.subr.bf16.mxu0 0
      %1283 = vmatpush2.bf16.msra.mxu0 0
      %1284 = vmatprep.subr.bf16.mxu0 0
      %1285 = vmatpush2.bf16.msra.mxu0 0
      %1286 = vmatprep.subr.bf16.mxu0 0
      %1287 = vmatpush2.bf16.msra.mxu0 0
      %1288 = vmatprep.subr.bf16.mxu0 0
      %1289 = vmatpush2.bf16.msra.mxu0 0
      %1290 = vmatprep.mubr.bf16.mxu0 0
      %1291 = vmatmul.mubr.bf16.gmra.mxu0 %v1241
      %v1292 = vpop.f32.mrf.mxu0
      %v1293 = vadd.f32 0.0, %v1292
      %v1294 = vpop.f32.mrf.mxu0
      %v1295 = vpop.f32.mrf.mxu0
      %v1296 = vadd.f32 0.0, %v1295
      %v1297 = vpop.f32.mrf.mxu0
      %1298 = vmatprep.mubr.bf16.mxu0 0
      %1299 = vmatmul.mubr.bf16.gmra.mxu0 %v1244
      %v1300 = vpop.f32.mrf.mxu0
      %v1301 = vadd.f32 0.0, %v1300
      %v1302 = vpop.f32.mrf.mxu0
      %v1303 = vpop.f32.mrf.mxu0
      %v1304 = vadd.f32 0.0, %v1303
      %v1305 = vpop.f32.mrf.mxu0
      %1306 = vmatprep.mubr.bf16.mxu0 0
      %1307 = vmatmul.mubr.bf16.gmra.mxu0 %v1247
      %v1308 = vpop.f32.mrf.mxu0
      %v1309 = vadd.f32 0.0, %v1308
      %v1310 = vpop.f32.mrf.mxu0
      %v1311 = vpop.f32.mrf.mxu0
      %v1312 = vadd.f32 0.0, %v1311
      %v1313 = vpop.f32.mrf.mxu0
      %1314 = vmatprep.mubr.bf16.mxu0 0
      %1315 = vmatmul.mubr.bf16.gmra.mxu0 %v1250
      %v1316 = vpop.f32.mrf.mxu0
      %v1317 = vadd.f32 0.0, %v1316
      %v1318 = vpop.f32.mrf.mxu0
      %v1319 = vpop.f32.mrf.mxu0
      %v1320 = vadd.f32 0.0, %v1319
      %v1321 = vpop.f32.mrf.mxu0
      %1322 = vmatprep.mubr.bf16.mxu0 0
      %1323 = vmatmul.mubr.bf16.gmra.mxu0 %v1253
      %v1324 = vpop.f32.mrf.mxu0
      %v1325 = vadd.f32 0.0, %v1324
      %v1326 = vpop.f32.mrf.mxu0
      %v1327 = vpop.f32.mrf.mxu0
      %v1328 = vadd.f32 0.0, %v1327
      %v1329 = vpop.f32.mrf.mxu0
      %1330 = vdwg.mxu0
      %v1331 = vadd.f32 %v1169, %v1293
      %v1332 = vadd.f32 %v1170, %v1296
      %v1333 = vadd.f32 %v1171, %v1301
      %v1334 = vadd.f32 %v1172, %v1304
      %v1335 = vadd.f32 %v1173, %v1309
      %v1336 = vadd.f32 %v1174, %v1312
      %v1337 = vadd.f32 %v1175, %v1317
      %v1338 = vadd.f32 %v1176, %v1320
      %v1339 = vadd.f32 %v1177, %v1325
      %v1340 = vadd.f32 %v1178, %v1328
      %v1341 = vld [vmem:[%s165 + $0x8] sm:$0x8]
      %v1342 = vmax.bf16 %v1341, 0
      %s1343 = scalar_lea.vmem %s1, 32
      %v1344 = vld [vmem:[%s1343] sm:$0xf]
      %v1346 = vunpack.c.l.b16 %v1342
      %v1347 = vpack.c.b16 %v1051, %v1346
      %vm1348 = vcmask 1044480
      %v1349 = vrot.slane %v1347, 3
      %v1350 = vrot.slane %v1062, 3
      %v1351 = vsel %vm1348, %v1349, %v1350
      %v1352 = vrot.slane %v1063, 3
      %v1353 = vsel %vm1348, %v1350, %v1352
      %v1354 = vrot.slane %v1064, 3
      %v1355 = vsel %vm1348, %v1352, %v1354
      %v1356 = vrot.slane %v1065, 3
      %v1357 = vsel %vm1348, %v1354, %v1356
      %v1358 = vrot.slane %v1185, 3
      %v1359 = vsel %vm1348, %v1356, %v1358
      %v1361 = vsel %vm270, %v1351, 0
      %v1364 = vsel %vm270, %v1353, 0
      %v1367 = vsel %vm270, %v1355, 0
      %v1370 = vsel %vm270, %v1357, 0
      %v1373 = vsel %vm270, %v1359, 0
      %v1376 = vsel %vm286, %v1344, 0
      %1378 = vmatprep.subr.bf16.mxu0 0
      %1379 = vmatpush1.bf16.msra.mxu0 0
      %1380 = vmatprep.subr.bf16.mxu0 0
      %1381 = vmatpush1.bf16.msra.mxu0 0
      %1382 = vmatprep.subr.bf16.mxu0 0
      %1383 = vmatpush1.bf16.msra.mxu0 0
      %1384 = vmatprep.subr.bf16.mxu0 0
      %1385 = vmatpush1.bf16.msra.mxu0 0
      %1386 = vmatprep.subr.bf16.mxu0 0
      %1387 = vmatpush1.bf16.msra.mxu0 0
      %1388 = vmatprep.subr.bf16.mxu0 0
      %1389 = vmatpush1.bf16.msra.mxu0 0
      %1390 = vmatprep.subr.bf16.mxu0 0
      %1391 = vmatpush1.bf16.msra.mxu0 0
      %1392 = vmatprep.subr.bf16.mxu0 0
      %1393 = vmatpush1.bf16.msra.mxu0 %v1376
      %1394 = vmatprep.subr.bf16.mxu0 0
      %1395 = vmatpush2.bf16.msra.mxu0 0
      %1396 = vmatprep.subr.bf16.mxu0 0
      %1397 = vmatpush2.bf16.msra.mxu0 0
      %1398 = vmatprep.subr.bf16.mxu0 0
      %1399 = vmatpush2.bf16.msra.mxu0 0
      %1400 = vmatprep.subr.bf16.mxu0 0
      %1401 = vmatpush2.bf16.msra.mxu0 0
      %1402 = vmatprep.subr.bf16.mxu0 0
      %1403 = vmatpush2.bf16.msra.mxu0 0
      %1404 = vmatprep.subr.bf16.mxu0 0
      %1405 = vmatpush2.bf16.msra.mxu0 0
      %1406 = vmatprep.subr.bf16.mxu0 0
      %1407 = vmatpush2.bf16.msra.mxu0 0
      %1408 = vmatprep.subr.bf16.mxu0 0
      %1409 = vmatpush2.bf16.msra.mxu0 0
      %1410 = vmatprep.mubr.bf16.mxu0 0
      %1411 = vmatmul.mubr.bf16.gmra.mxu0 %v1361
      %v1412 = vpop.f32.mrf.mxu0
      %v1413 = vadd.f32 0.0, %v1412
      %v1414 = vpop.f32.mrf.mxu0
      %v1415 = vpop.f32.mrf.mxu0
      %v1416 = vadd.f32 0.0, %v1415
      %v1417 = vpop.f32.mrf.mxu0
      %1418 = vmatprep.mubr.bf16.mxu0 0
      %1419 = vmatmul.mubr.bf16.gmra.mxu0 %v1364
      %v1420 = vpop.f32.mrf.mxu0
      %v1421 = vadd.f32 0.0, %v1420
      %v1422 = vpop.f32.mrf.mxu0
      %v1423 = vpop.f32.mrf.mxu0
      %v1424 = vadd.f32 0.0, %v1423
      %v1425 = vpop.f32.mrf.mxu0
      %1426 = vmatprep.mubr.bf16.mxu0 0
      %1427 = vmatmul.mubr.bf16.gmra.mxu0 %v1367
      %v1428 = vpop.f32.mrf.mxu0
      %v1429 = vadd.f32 0.0, %v1428
      %v1430 = vpop.f32.mrf.mxu0
      %v1431 = vpop.f32.mrf.mxu0
      %v1432 = vadd.f32 0.0, %v1431
      %v1433 = vpop.f32.mrf.mxu0
      %1434 = vmatprep.mubr.bf16.mxu0 0
      %1435 = vmatmul.mubr.bf16.gmra.mxu0 %v1370
      %v1436 = vpop.f32.mrf.mxu0
      %v1437 = vadd.f32 0.0, %v1436
      %v1438 = vpop.f32.mrf.mxu0
      %v1439 = vpop.f32.mrf.mxu0
      %v1440 = vadd.f32 0.0, %v1439
      %v1441 = vpop.f32.mrf.mxu0
      %1442 = vmatprep.mubr.bf16.mxu0 0
      %1443 = vmatmul.mubr.bf16.gmra.mxu0 %v1373
      %v1444 = vpop.f32.mrf.mxu0
      %v1445 = vadd.f32 0.0, %v1444
      %v1446 = vpop.f32.mrf.mxu0
      %v1447 = vpop.f32.mrf.mxu0
      %v1448 = vadd.f32 0.0, %v1447
      %v1449 = vpop.f32.mrf.mxu0
      %1450 = vdwg.mxu0
      %v1451 = vadd.f32 %v1331, %v1413
      %v1452 = vadd.f32 %v1332, %v1416
      %v1453 = vadd.f32 %v1333, %v1421
      %v1454 = vadd.f32 %v1334, %v1424
      %v1455 = vadd.f32 %v1335, %v1429
      %v1456 = vadd.f32 %v1336, %v1432
      %v1457 = vadd.f32 %v1337, %v1437
      %v1458 = vadd.f32 %v1338, %v1440
      %v1459 = vadd.f32 %v1339, %v1445
      %v1460 = vadd.f32 %v1340, %v1448
      %v1461 = vmax.f32 %v1451, 0.0
      %v1462 = vmax.f32 %v1452, 0.0
      %v1463 = vmax.f32 %v1453, 0.0
      %v1464 = vmax.f32 %v1454, 0.0
      %v1465 = vmax.f32 %v1455, 0.0
      %v1466 = vmax.f32 %v1456, 0.0
      %v1467 = vmax.f32 %v1457, 0.0
      %v1468 = vmax.f32 %v1458, 0.0
      %v1469 = vmax.f32 %v1459, 0.0
      %v1470 = vmax.f32 %v1460, 0.0
      %v1471 = vpack.c.bf16 %v1462, %v1461
      %v1472 = vpack.c.bf16 %v1464, %v1463
      %v1473 = vpack.c.bf16 %v1466, %v1465
      %v1474 = vpack.c.bf16 %v1468, %v1467
      %v1475 = vpack.c.bf16 %v1470, %v1469
      %v1476 = vld [vmem:[%s2] sm:$0xf]
      %v1477 = vunpack.c.l.bf16 %v569
      %v1478 = vunpack.c.l.bf16 %v570
      %v1479 = vunpack.c.l.bf16 %v571
      %v1480 = vunpack.c.l.bf16 %v572
      %v1481 = vunpack.c.l.bf16 %v573
      %v1482 = vunpack.c.l.bf16 %v574
      %v1483 = vunpack.c.l.bf16 %v575
      %v1484 = vunpack.c.l.bf16 %v576
      %v1485 = vunpack.c.l.bf16 %v577
      %v1486 = vunpack.c.l.bf16 %v578
      %v1487 = vunpack.c.l.bf16 %v733
      %vm1499 = vcmask 1044480
      %v1500 = vrot.slane %v1477, 3
      %v1501 = vrot.slane %v1478, 3
      %v1502 = vsel %vm1499, %v1500, %v1501
      %v1503 = vrot.slane %v1479, 3
      %v1504 = vsel %vm1499, %v1501, %v1503
      %v1505 = vrot.slane %v1480, 3
      %v1506 = vsel %vm1499, %v1503, %v1505
      %v1507 = vrot.slane %v1481, 3
      %v1508 = vsel %vm1499, %v1505, %v1507
      %v1509 = vrot.slane %v1482, 3
      %v1510 = vsel %vm1499, %v1507, %v1509
      %v1511 = vrot.slane %v1483, 3
      %v1512 = vsel %vm1499, %v1509, %v1511
      %v1513 = vrot.slane %v1484, 3
      %v1514 = vsel %vm1499, %v1511, %v1513
      %v1515 = vrot.slane %v1485, 3
      %v1516 = vsel %vm1499, %v1513, %v1515
      %v1517 = vrot.slane %v1486, 3
      %v1518 = vsel %vm1499, %v1515, %v1517
      %v1519 = vrot.slane %v1487, 3
      %v1520 = vsel %vm1499, %v1517, %v1519
      %v1532 = vsel %vm270, %v1471, 0
      %v1535 = vsel %vm270, %v1472, 0
      %v1538 = vsel %vm270, %v1473, 0
      %v1541 = vsel %vm270, %v1474, 0
      %v1544 = vsel %vm270, %v1475, 0
      %v1547 = vsel %vm286, %v1476, 0
      %1549 = vmatprep.subr.bf16.mxu0 0
      %1550 = vmatpush1.bf16.msra.mxu0 0
      %1551 = vmatprep.subr.bf16.mxu0 0
      %1552 = vmatpush1.bf16.msra.mxu0 0
      %1553 = vmatprep.subr.bf16.mxu0 0
      %1554 = vmatpush1.bf16.msra.mxu0 0
      %1555 = vmatprep.subr.bf16.mxu0 0
      %1556 = vmatpush1.bf16.msra.mxu0 0
      %1557 = vmatprep.subr.bf16.mxu0 0
      %1558 = vmatpush1.bf16.msra.mxu0 0
      %1559 = vmatprep.subr.bf16.mxu0 0
      %1560 = vmatpush1.bf16.msra.mxu0 0
      %1561 = vmatprep.subr.bf16.mxu0 0
      %1562 = vmatpush1.bf16.msra.mxu0 0
      %1563 = vmatprep.subr.bf16.mxu0 0
      %1564 = vmatpush1.bf16.msra.mxu0 %v1547
      %1565 = vmatprep.subr.bf16.mxu0 0
      %1566 = vmatpush2.bf16.msra.mxu0 0
      %1567 = vmatprep.subr.bf16.mxu0 0
      %1568 = vmatpush2.bf16.msra.mxu0 0
      %1569 = vmatprep.subr.bf16.mxu0 0
      %1570 = vmatpush2.bf16.msra.mxu0 0
      %1571 = vmatprep.subr.bf16.mxu0 0
      %1572 = vmatpush2.bf16.msra.mxu0 0
      %1573 = vmatprep.subr.bf16.mxu0 0
      %1574 = vmatpush2.bf16.msra.mxu0 0
      %1575 = vmatprep.subr.bf16.mxu0 0
      %1576 = vmatpush2.bf16.msra.mxu0 0
      %1577 = vmatprep.subr.bf16.mxu0 0
      %1578 = vmatpush2.bf16.msra.mxu0 0
      %1579 = vmatprep.subr.bf16.mxu0 0
      %1580 = vmatpush2.bf16.msra.mxu0 0
      %1581 = vmatprep.mubr.bf16.mxu0 0
      %1582 = vmatmul.mubr.bf16.gmra.mxu0 %v1532
      %v1583 = vpop.f32.mrf.mxu0
      %v1584 = vadd.f32 %v1502, %v1583
      %v1585 = vpop.f32.mrf.mxu0
      %v1586 = vpop.f32.mrf.mxu0
      %v1587 = vadd.f32 %v1504, %v1586
      %v1588 = vpop.f32.mrf.mxu0
      %1589 = vmatprep.mubr.bf16.mxu0 0
      %1590 = vmatmul.mubr.bf16.gmra.mxu0 %v1535
      %v1591 = vpop.f32.mrf.mxu0
      %v1592 = vadd.f32 %v1506, %v1591
      %v1593 = vpop.f32.mrf.mxu0
      %v1594 = vpop.f32.mrf.mxu0
      %v1595 = vadd.f32 %v1508, %v1594
      %v1596 = vpop.f32.mrf.mxu0
      %1597 = vmatprep.mubr.bf16.mxu0 0
      %1598 = vmatmul.mubr.bf16.gmra.mxu0 %v1538
      %v1599 = vpop.f32.mrf.mxu0
      %v1600 = vadd.f32 %v1510, %v1599
      %v1601 = vpop.f32.mrf.mxu0
      %v1602 = vpop.f32.mrf.mxu0
      %v1603 = vadd.f32 %v1512, %v1602
      %v1604 = vpop.f32.mrf.mxu0
      %1605 = vmatprep.mubr.bf16.mxu0 0
      %1606 = vmatmul.mubr.bf16.gmra.mxu0 %v1541
      %v1607 = vpop.f32.mrf.mxu0
      %v1608 = vadd.f32 %v1514, %v1607
      %v1609 = vpop.f32.mrf.mxu0
      %v1610 = vpop.f32.mrf.mxu0
      %v1611 = vadd.f32 %v1516, %v1610
      %v1612 = vpop.f32.mrf.mxu0
      %1613 = vmatprep.mubr.bf16.mxu0 0
      %1614 = vmatmul.mubr.bf16.gmra.mxu0 %v1544
      %v1615 = vpop.f32.mrf.mxu0
      %v1616 = vadd.f32 %v1518, %v1615
      %v1617 = vpop.f32.mrf.mxu0
      %v1618 = vpop.f32.mrf.mxu0
      %v1619 = vadd.f32 %v1520, %v1618
      %v1620 = vpop.f32.mrf.mxu0
      %1621 = vdwg.mxu0
      %v1622 = vmax.f32 %v1584, 0.0
      %v1623 = vmax.f32 %v1587, 0.0
      %v1624 = vmax.f32 %v1592, 0.0
      %v1625 = vmax.f32 %v1595, 0.0
      %v1626 = vmax.f32 %v1600, 0.0
      %v1627 = vmax.f32 %v1603, 0.0
      %v1628 = vmax.f32 %v1608, 0.0
      %v1629 = vmax.f32 %v1611, 0.0
      %v1630 = vmax.f32 %v1616, 0.0
      %v1631 = vmax.f32 %v1619, 0.0
      %v1632 = vpack.c.bf16 %v1623, %v1622
      %v1633 = vpack.c.bf16 %v1625, %v1624
      %v1634 = vpack.c.bf16 %v1627, %v1626
      %v1635 = vpack.c.bf16 %v1629, %v1628
      %v1636 = vpack.c.bf16 %v1631, %v1630
      %v1642 = vunpack.c.l.b16 %v1632
      %v1643 = vunpack.c.h.b16 %v1632
      %v1644 = vunpack.c.l.b16 %v1633
      %v1645 = vunpack.c.h.b16 %v1633
      %v1646 = vunpack.c.l.b16 %v1634
      %v1647 = vunpack.c.h.b16 %v1634
      %v1648 = vunpack.c.l.b16 %v1635
      %v1649 = vunpack.c.h.b16 %v1635
      %v1650 = vunpack.c.l.b16 %v1636
      %v1651 = vunpack.c.h.b16 %v1636
      %v1652 = vpack.c.b16 %v1642, %v1642
      %v1653 = vpack.c.b16 %v1643, %v1643
      %v1654 = vpack.c.b16 %v1644, %v1644
      %v1655 = vpack.c.b16 %v1645, %v1645
      %v1656 = vpack.c.b16 %v1646, %v1646
      %v1657 = vpack.c.b16 %v1647, %v1647
      %v1658 = vpack.c.b16 %v1648, %v1648
      %v1659 = vpack.c.b16 %v1649, %v1649
      %v1660 = vpack.c.b16 %v1650, %v1650
      %v1661 = vpack.c.b16 %v1651, %v1651
      %vm1672 = vcmask 60416
      %1673 = vst.msk [vmem:[%s170] sm:$0xf] %vm1672, %v1652
      %1674 = vst.msk [vmem:[%s170 + $0x4] sm:$0xf] %vm1672, %v1653
      %1675 = vst.msk [vmem:[%s170 + $0x8] sm:$0xf] %vm1672, %v1654
      %1676 = vst.msk [vmem:[%s170 + $0xc] sm:$0xf] %vm1672, %v1655
      %1677 = vst.msk [vmem:[%s170 + $0x10] sm:$0xf] %vm1672, %v1656
      %1678 = vst.msk [vmem:[%s170 + $0x14] sm:$0xf] %vm1672, %v1657
      %1679 = vst.msk [vmem:[%s170 + $0x18] sm:$0xf] %vm1672, %v1658
      %1680 = vst.msk [vmem:[%s170 + $0x1c] sm:$0xf] %vm1672, %v1659
      %1681 = vst.msk [vmem:[%s170 + $0x20] sm:$0xf] %vm1672, %v1660
      %1682 = vst.msk [vmem:[%s170 + $0x24] sm:$0xf] %vm1672, %v1661
      %p1683 = scmp.lt.s32.totalorder %s14, 1
      %s1684 = scalar_select %p1683, %s14, 1
      %s1685 = smul.addr %s1684, 10
      %s1686 = smul.addr %s1685, 4
      %s1687 = scalar_lea.vmem %s3, %s1686
      // Predicated region
      $region33: #{encoder_forward.11} parent=31 // pred_check
        %p1688 = pneg %p100
      $region34: #{encoder_forward.11} parent=31 // pred_check_branch
        %1690 = sbr.rel (%p1688) target = $region36
      $region35: #{encoder_forward.11} parent=31 // pred_region
        _
      $region36: #{encoder_forward.11} parent=31 // pred_fallthru
        _
    $region32: #{encoder_forward.11} parent=5 // pred_fallthru
      _
    %p1691 = scmp.le.s32.totalorder 2, %s9
    // Predicated region
    $region37: #{encoder_forward.11} parent=5 // pred_check
      %p1692 = pneg %p1691
    $region38: #{encoder_forward.11} parent=5 // pred_check_branch
      %1694 = sbr.rel (%p1692) target = $region40
    $region39: #{encoder_forward.11} parent=5 // pred_region
      %s1695 = ssub.s32 %s9, 2
      // Predicated region
      $region41: #{encoder_forward.11} parent=39 // pred_check
        %p1696 = pneg %p106
      $region42: #{encoder_forward.11} parent=39 // pred_check_branch
        %1698 = sbr.rel (%p1696) target = $region44
      $region43: #{encoder_forward.11} parent=39 // pred_region
        %p1699 = scmp.lt.s32.totalorder %s15, 1
        %s1700 = scalar_select %p1699, %s15, 1
        %s1701 = smul.addr %s1700, 10
        %s1702 = smul.addr %s1701, 4
        %s1703 = scalar_lea.vmem %s3, %s1702
      $region44: #{encoder_forward.11} parent=39 // pred_fallthru
        _
    $region40: #{encoder_forward.11} parent=5 // pred_fallthru
      _
  $region6: #{encoder_forward.11} parent=0 // loop_footer
    %s13 = sadd.s32 1, %s9
  $region7: #{encoder_forward.11} parent=0 // loop_footer_branch
    %8 = sbr.rel target = $region3
  $region8: #{encoder_forward.11} parent=0 // loop_exit
    _

// kernel: encoder_forward.12
$region0: #{encoder_forward.12}
  #allocation0 [shape = 'u32[]', space=smem, size = 0x4, offset = 0x4, fixed_abs, tag = 'smem constant byte address 0x4 - core index']
  #allocation1 [shape = 'u32[144,128]{1,0:T(1,128)}', space=vmem, size = 0x12000, scoped, tag = 'internal scratch']
  %s0 = inlined_call_operand.vmem [shape: bf16[2,48,32], index: 0, kind: input, shape index: {}]
  %s1 = inlined_call_operand.vmem [shape: bf16[4,32,16], index: 1, kind: input, shape index: {}]
  %s2 = inlined_call_operand.vmem [shape: bf16[2,32,16], index: 2, kind: output, shape index: {}]
  %s3 = sld [smem:[#allocation0]]
  $region41: #{encoder_forward.12} parent=0
    _
  %s5 = ssub.s32 1, %s3
  %s6 = scalar_select 0, %s5, %s3
  loop: start=0, step=1, limit=4
  $region2: #{encoder_forward.12} parent=0 // loop_pre_header
    _
  $region3: #{encoder_forward.12} parent=0 // loop_header
    %s8 = sphi 0, %s12
    %p9 = scmp.ge.s32.totalorder %s8, 4
    %s18 = sphi 0, %s20
    %s21 = sphi 0, %s18
    %s22 = sphi 0, %s21
    %s38 = sphi 0, %s22
    %s42 = sphi 0, %s42
    %s44 = sphi 0, %s42
    %s45 = sphi 0, %s44
    %s59 = sphi 0, %s45
    %s65 = sphi 0, %s67
    %s68 = sphi 0, %s65
    %s69 = sphi 0, %s68
    %s85 = sphi 0, %s69
  $region4: #{encoder_forward.12} parent=0 // loop_header_branch
    %11 = sbr.rel (%p9) target = $region8
  $region5: #{encoder_forward.12} parent=0 // loop_body
    %s13 = ssub.s32 %s8, 1
    %s14 = ssub.s32 %s8, 2
    %s15 = sadd.s32 %s8, 1
    %s16 = ssub.s32 %s8, %s15
    %p17 = scmp.eq.s32.totalorder %s16, 0
    %s19 = sadd.s32 %s18, 1
    %s20 = scalar_select %p17, %s18, %s19
    %p23 = pneg %p17
    %p24 = scmp.eq.s32.totalorder %s8, 1
    %p25 = por %p23, %p24
    %p26 = scmp.ne.s32.totalorder %s18, %s21
    %p27 = scmp.eq.s32.totalorder %s8, 0
    %p28 = por %p26, %p27
    %p29 = scmp.ne.s32.totalorder %s18, %s21
    %p30 = scmp.eq.s32.totalorder %s13, 1
    %p31 = por %p29, %p30
    %p32 = scmp.ne.s32.totalorder %s21, %s22
    %p33 = scmp.eq.s32.totalorder %s13, 0
    %p34 = por %p32, %p33
    %p35 = scmp.ne.s32.totalorder %s21, %s22
    %p36 = scmp.eq.s32.totalorder %s14, 1
    %p37 = por %p35, %p36
    %p39 = scmp.ne.s32.totalorder %s22, %s38
    %p40 = scmp.eq.s32.totalorder %s14, 0
    %p41 = por %p39, %p40
    %s43 = sadd.s32 %s42, 1
    %p46 = scmp.eq.s32.totalorder %s8, 1
    %p47 = scmp.ne.s32.totalorder %s42, %s44
    %p48 = scmp.eq.s32.totalorder %s8, 0
    %p49 = por %p47, %p48
    %p50 = scmp.ne.s32.totalorder %s42, %s44
    %p51 = scmp.eq.s32.totalorder %s13, 1
    %p52 = por %p50, %p51
    %p53 = scmp.ne.s32.totalorder %s44, %s45
    %p54 = scmp.eq.s32.totalorder %s13, 0
    %p55 = por %p53, %p54
    %p56 = scmp.ne.s32.totalorder %s44, %s45
    %p57 = scmp.eq.s32.totalorder %s14, 1
    %p58 = por %p56, %p57
    %p60 = scmp.ne.s32.totalorder %s45, %s59
    %p61 = scmp.eq.s32.totalorder %s14, 0
    %p62 = por %p60, %p61
    %s63 = ssub.s32 %s8, %s15
    %p64 = scmp.eq.s32.totalorder %s63, 0
    %s66 = sadd.s32 %s65, 1
    %s67 = scalar_select %p64, %s65, %s66
    %p70 = pneg %p64
    %p71 = scmp.eq.s32.totalorder %s8, 1
    %p72 = por %p70, %p71
    %p73 = scmp.ne.s32.totalorder %s65, %s68
    %p74 = scmp.eq.s32.totalorder %s8, 0
    %p75 = por %p73, %p74
    %p76 = scmp.ne.s32.totalorder %s65, %s68
    %p77 = scmp.eq.s32.totalorder %s13, 1
    %p78 = por %p76, %p77
    %p79 = scmp.ne.s32.totalorder %s68, %s69
    %p80 = scmp.eq.s32.totalorder %s13, 0
    %p81 = por %p79, %p80
    %p82 = scmp.ne.s32.totalorder %s68, %s69
    %p83 = scmp.eq.s32.totalorder %s14, 1
    %p84 = por %p82, %p83
    %p86 = scmp.ne.s32.totalorder %s69, %s85
    %p87 = scmp.eq.s32.totalorder %s14, 0
    %p88 = por %p86, %p87
    %p89 = scmp.le.s32.totalorder 1, %s8
    %p90 = scmp.lt.s32.totalorder %s8, 3
    %p91 = pnand %p89, %p90
    %p92 = pneg %p91
    // Predicated region
    $region9: #{encoder_forward.12} parent=5 // pred_check
      _
    $region10: #{encoder_forward.12} parent=5 // pred_check_branch
      %94 = sbr.rel (%p91) target = $region12
    $region11: #{encoder_forward.12} parent=5 // pred_region
      %s95 = ssub.s32 %s8, 1
      // Predicated region
      $region13: #{encoder_forward.12} parent=11 // pred_check
        %p96 = pneg %p55
      $region14: #{encoder_forward.12} parent=11 // pred_check_branch
        %98 = sbr.rel (%p96) target = $region16
      $region15: #{encoder_forward.12} parent=11 // pred_region
        _
      $region16: #{encoder_forward.12} parent=11 // pred_fallthru
        _
    $region12: #{encoder_forward.12} parent=5 // pred_fallthru
      _
    %p99 = scmp.lt.s32.totalorder %s8, 2
    // Predicated region
    $region17: #{encoder_forward.12} parent=5 // pred_check
      %p100 = pneg %p99
    $region18: #{encoder_forward.12} parent=5 // pred_check_branch
      %102 = sbr.rel (%p100) target = $region20
    $region19: #{encoder_forward.12} parent=5 // pred_region
      // Predicated region
      $region21: #{encoder_forward.12} parent=19 // pred_check
        %p103 = pneg %p28
      $region22: #{encoder_forward.12} parent=19 // pred_check_branch
        %105 = sbr.rel (%p103) target = $region24
      $region23: #{encoder_forward.12} parent=19 // pred_region
        %p106 = scmp.lt.s32.totalorder %s8, 1
        %s107 = scalar_select %p106, %s8, 1
        %s108 = smul.addr %s107, 6
        %s109 = smul.addr %s108, 4
        %s110 = scalar_lea.vmem %s0, %s109
      $region24: #{encoder_forward.12} parent=19 // pred_fallthru
        _
    $region20: #{encoder_forward.12} parent=5 // pred_fallthru
      _
    %p111 = scmp.le.s32.totalorder 1, %s8
    %p112 = scmp.lt.s32.totalorder %s8, 3
    %p113 = pnand %p111, %p112
    %p114 = pneg %p113
    // Predicated region
    $region25: #{encoder_forward.12} parent=5 // pred_check
      _
    $region26: #{encoder_forward.12} parent=5 // pred_check_branch
      %116 = sbr.rel (%p113) target = $region28
    $region27: #{encoder_forward.12} parent=5 // pred_region
      %s117 = ssub.s32 %s8, 1
      %p118 = scmp.lt.s32.totalorder %s13, 1
      %s119 = scalar_select %p118, %s13, 1
      %s120 = smul.addr %s119, 6
      %s121 = smul.addr %s120, 4
      %s122 = scalar_lea.vmem %s0, %s121
      %p123 = pneg %p34
      %p124 = pneg %p31
      %p125 = pneg %p55
      %p126 = pneg %p52
      %p127 = pneg %p81
      %p128 = pneg %p78
      %p129 = scmp.lt.s32.totalorder %s13, 1
      %s130 = scalar_select %p129, %s13, 1
      %s131 = smul.addr %s130, 4
      %s132 = smul.addr %s131, 4
      %s133 = scalar_lea.vmem %s2, %s132
      %p134 = scmp.lt.s32.totalorder %s13, 1
      %s135 = scalar_select %p134, %s13, 1
      %s136 = smul.addr %s135, 6
      %s137 = smul.addr %s136, 4
      %s138 = scalar_lea.vmem %s0, %s137
      %p139 = scmp.lt.s32.totalorder %s13, 1
      %s140 = scalar_select %p139, %s13, 1
      %s141 = smul.addr %s140, 4
      %s142 = smul.addr %s141, 4
      %s143 = scalar_lea.vmem %s2, %s142
      %v145 = vld [vmem:[%s138] sm:$0xf]
      %v146 = vld [vmem:[%s138 + $0x4] sm:$0xf]
      %v147 = vld [vmem:[%s138 + $0x8] sm:$0xf]
      %v148 = vld [vmem:[%s138 + $0xc] sm:$0xf]
      %v149 = vld [vmem:[%s1] sm:$0xf]
      %v150 = vld [vmem:[%s1 + $0x4] sm:$0xf]
      %v151 = vld [vmem:[%s1 + $0x8] sm:$0xf]
      %v152 = vld [vmem:[%s1 + $0xc] sm:$0xf]
      %v153 = vld [vmem:[%s138 + $0x10] sm:$0x1]
      %s154 = scalar_lea.vmem %s1, 16
      %v155 = vld [vmem:[%s154] sm:$0xf]
      %v156 = vld [vmem:[%s154 + $0x4] sm:$0xf]
      %v157 = vld [vmem:[%s154 + $0x8] sm:$0xf]
      %v158 = vld [vmem:[%s154 + $0xc] sm:$0xf]
      %v164 = vunpack.c.l.b16 %v145
      %v165 = vunpack.c.l.b16 %v146
      %v166 = vunpack.c.l.b16 %v147
      %v167 = vunpack.c.l.b16 %v148
      %v168 = vunpack.c.l.b16 %v153
      %v169 = vpack.c.b16 %v165, %v164
      %v170 = vpack.c.b16 %v167, %v166
      %v171 = vpack.c.b16 %v168, %v168
      %vm172 = vsmask.f32 7424
      %v174 = vshrl.u32 %v169, 16
      %v176 = vshll.u32 %v169, 16
      %v178 = vrot.slane %v176, 1
      %v179 = vor.u32 %v174, %v178
      %v181 = vshll.u32 %v170, 16
      %v183 = vrot.slane %v181, 1
      %v184 = vsel %vm172, %v179, %v183
      %v185 = vshrl.u32 %v170, 16
      %v187 = vor.u32 %v185, %v183
      %v189 = vshll.u32 %v171, 16
      %v191 = vrot.slane %v189, 1
      %v192 = vsel %vm172, %v187, %v191
      %v197 = vunpack.c.l.b16 %v155
      %v198 = vunpack.c.l.b16 %v156
      %v199 = vunpack.c.l.b16 %v157
      %v200 = vunpack.c.l.b16 %v158
      %v201 = vpack.c.b16 %v198, %v197
      %v202 = vpack.c.b16 %v200, %v199
      %vm205 = vcmask 261120
      %v207 = vsel %vm205, %v184, 0
      %v210 = vsel %vm205, %v192, 0
      %212 = vmatprep.subr.bf16.mxu0 0
      %213 = vmatpush1.bf16.msra.mxu0 0
      %214 = vmatprep.subr.bf16.mxu0 0
      %215 = vmatpush1.bf16.msra.mxu0 0
      %216 = vmatprep.subr.bf16.mxu0 0
      %217 = vmatpush1.bf16.msra.mxu0 0
      %218 = vmatprep.subr.bf16.mxu0 0
      %219 = vmatpush1.bf16.msra.mxu0 0
      %220 = vmatprep.subr.bf16.mxu0 0
      %221 = vmatpush1.bf16.msra.mxu0 0
      %222 = vmatprep.subr.bf16.mxu0 0
      %223 = vmatpush1.bf16.msra.mxu0 0
      %224 = vmatprep.subr.bf16.mxu0 0
      %225 = vmatpush1.bf16.msra.mxu0 %v202
      %226 = vmatprep.subr.bf16.mxu0 0
      %227 = vmatpush1.bf16.msra.mxu0 %v201
      %228 = vmatprep.subr.bf16.mxu0 0
      %229 = vmatpush2.bf16.msra.mxu0 0
      %230 = vmatprep.subr.bf16.mxu0 0
      %231 = vmatpush2.bf16.msra.mxu0 0
      %232 = vmatprep.subr.bf16.mxu0 0
      %233 = vmatpush2.bf16.msra.mxu0 0
      %234 = vmatprep.subr.bf16.mxu0 0
      %235 = vmatpush2.bf16.msra.mxu0 0
      %236 = vmatprep.subr.bf16.mxu0 0
      %237 = vmatpush2.bf16.msra.mxu0 0
      %238 = vmatprep.subr.bf16.mxu0 0
      %239 = vmatpush2.bf16.msra.mxu0 0
      %240 = vmatprep.subr.bf16.mxu0 0
      %241 = vmatpush2.bf16.msra.mxu0 0
      %242 = vmatprep.subr.bf16.mxu0 0
      %243 = vmatpush2.bf16.msra.mxu0 0
      %244 = vmatprep.mubr.bf16.mxu0 0
      %245 = vmatmul.mubr.bf16.gmra.mxu0 %v207
      %v246 = vpop.f32.mrf.mxu0
      %v247 = vadd.f32 0.0, %v246
      %v248 = vpop.f32.mrf.mxu0
      %v249 = vpop.f32.mrf.mxu0
      %v250 = vadd.f32 0.0, %v249
      %v251 = vpop.f32.mrf.mxu0
      %252 = vmatprep.mubr.bf16.mxu0 0
      %253 = vmatmul.mubr.bf16.gmra.mxu0 %v210
      %v254 = vpop.f32.mrf.mxu0
      %v255 = vadd.f32 0.0, %v254
      %v256 = vpop.f32.mrf.mxu0
      %v257 = vpop.f32.mrf.mxu0
      %v258 = vadd.f32 0.0, %v257
      %v259 = vpop.f32.mrf.mxu0
      %260 = vdwg.mxu0
      %v265 = vunpack.c.l.b16 %v149
      %v266 = vunpack.c.l.b16 %v150
      %v267 = vunpack.c.l.b16 %v151
      %v268 = vunpack.c.l.b16 %v152
      %v269 = vpack.c.b16 %v266, %v265
      %v270 = vpack.c.b16 %v268, %v267
      %v273 = vsel %vm205, %v169, 0
      %v275 = vsel %vm205, %v170, 0
      %277 = vmatprep.subr.bf16.mxu0 0
      %278 = vmatpush1.bf16.msra.mxu0 0
      %279 = vmatprep.subr.bf16.mxu0 0
      %280 = vmatpush1.bf16.msra.mxu0 0
      %281 = vmatprep.subr.bf16.mxu0 0
      %282 = vmatpush1.bf16.msra.mxu0 0
      %283 = vmatprep.subr.bf16.mxu0 0
      %284 = vmatpush1.bf16.msra.mxu0 0
      %285 = vmatprep.subr.bf16.mxu0 0
      %286 = vmatpush1.bf16.msra.mxu0 0
      %287 = vmatprep.subr.bf16.mxu0 0
      %288 = vmatpush1.bf16.msra.mxu0 0
      %289 = vmatprep.subr.bf16.mxu0 0
      %290 = vmatpush1.bf16.msra.mxu0 %v270
      %291 = vmatprep.subr.bf16.mxu0 0
      %292 = vmatpush1.bf16.msra.mxu0 %v269
      %293 = vmatprep.subr.bf16.mxu0 0
      %294 = vmatpush2.bf16.msra.mxu0 0
      %295 = vmatprep.subr.bf16.mxu0 0
      %296 = vmatpush2.bf16.msra.mxu0 0
      %297 = vmatprep.subr.bf16.mxu0 0
      %298 = vmatpush2.bf16.msra.mxu0 0
      %299 = vmatprep.subr.bf16.mxu0 0
      %300 = vmatpush2.bf16.msra.mxu0 0
      %301 = vmatprep.subr.bf16.mxu0 0
      %302 = vmatpush2.bf16.msra.mxu0 0
      %303 = vmatprep.subr.bf16.mxu0 0
      %304 = vmatpush2.bf16.msra.mxu0 0
      %305 = vmatprep.subr.bf16.mxu0 0
      %306 = vmatpush2.bf16.msra.mxu0 0
      %307 = vmatprep.subr.bf16.mxu0 0
      %308 = vmatpush2.bf16.msra.mxu0 0
      %309 = vmatprep.mubr.bf16.mxu0 0
      %310 = vmatmul.mubr.bf16.gmra.mxu0 %v273
      %v311 = vpop.f32.mrf.mxu0
      %v312 = vadd.f32 %v247, %v311
      %v313 = vpop.f32.mrf.mxu0
      %v314 = vpop.f32.mrf.mxu0
      %v315 = vadd.f32 %v250, %v314
      %v316 = vpop.f32.mrf.mxu0
      %317 = vmatprep.mubr.bf16.mxu0 0
      %318 = vmatmul.mubr.bf16.gmra.mxu0 %v275
      %v319 = vpop.f32.mrf.mxu0
      %v320 = vadd.f32 %v255, %v319
      %v321 = vpop.f32.mrf.mxu0
      %v322 = vpop.f32.mrf.mxu0
      %v323 = vadd.f32 %v258, %v322
      %v324 = vpop.f32.mrf.mxu0
      %325 = vdwg.mxu0
      %v326 = vld [vmem:[%s138] sm:$0xc]
      %v327 = vld [vmem:[%s138 + $0x10] sm:$0x7]
      %s328 = scalar_lea.vmem %s1, 32
      %v329 = vld [vmem:[%s328] sm:$0xf]
      %v330 = vld [vmem:[%s328 + $0x4] sm:$0xf]
      %v331 = vld [vmem:[%s328 + $0x8] sm:$0xf]
      %v332 = vld [vmem:[%s328 + $0xc] sm:$0xf]
      %v335 = vunpack.c.l.b16 %v326
      %v336 = vunpack.c.l.b16 %v327
      %v337 = vpack.c.b16 %v165, %v335
      %v338 = vpack.c.b16 %v336, %v336
      %vm339 = vsmask.f32 5376
      %v341 = vshrl.u32 %v337, 16
      %v343 = vrot.slane %v341, 2
      %v344 = vshll.u32 %v337, 16
      %v346 = vrot.slane %v344, 3
      %v347 = vor.u32 %v343, %v346
      %v348 = vrot.slane %v185, 2
      %v349 = vrot.slane %v181, 3
      %v350 = vor.u32 %v348, %v349
      %v351 = vsel %vm339, %v347, %v350
      %v353 = vshrl.u32 %v338, 16
      %v355 = vrot.slane %v353, 2
      %v356 = vshll.u32 %v338, 16
      %v358 = vrot.slane %v356, 3
      %v359 = vor.u32 %v355, %v358
      %v360 = vsel %vm339, %v350, %v359
      %v365 = vunpack.c.l.b16 %v329
      %v366 = vunpack.c.l.b16 %v330
      %v367 = vunpack.c.l.b16 %v331
      %v368 = vunpack.c.l.b16 %v332
      %v369 = vpack.c.b16 %v366, %v365
      %v370 = vpack.c.b16 %v368, %v367
      %v374 = vsel %vm205, %v351, 0
      %v377 = vsel %vm205, %v360, 0
      %379 = vmatprep.subr.bf16.mxu0 0
      %380 = vmatpush1.bf16.msra.mxu0 0
      %381 = vmatprep.subr.bf16.mxu0 0
      %382 = vmatpush1.bf16.msra.mxu0 0
      %383 = vmatprep.subr.bf16.mxu0 0
      %384 = vmatpush1.bf16.msra.mxu0 0
      %385 = vmatprep.subr.bf16.mxu0 0
      %386 = vmatpush1.bf16.msra.mxu0 0
      %387 = vmatprep.subr.bf16.mxu0 0
      %388 = vmatpush1.bf16.msra.mxu0 0
      %389 = vmatprep.subr.bf16.mxu0 0
      %390 = vmatpush1.bf16.msra.mxu0 0
      %391 = vmatprep.subr.bf16.mxu0 0
      %392 = vmatpush1.bf16.msra.mxu0 %v370
      %393 = vmatprep.subr.bf16.mxu0 0
      %394 = vmatpush1.bf16.msra.mxu0 %v369
      %395 = vmatprep.subr.bf16.mxu0 0
      %396 = vmatpush2.bf16.msra.mxu0 0
      %397 = vmatprep.subr.bf16.mxu0 0
      %398 = vmatpush2.bf16.msra.mxu0 0
      %399 = vmatprep.subr.bf16.mxu0 0
      %400 = vmatpush2.bf16.msra.mxu0 0
      %401 = vmatprep.subr.bf16.mxu0 0
      %402 = vmatpush2.bf16.msra.mxu0 0
      %403 = vmatprep.subr.bf16.mxu0 0
      %404 = vmatpush2.bf16.msra.mxu0 0
      %405 = vmatprep.subr.bf16.mxu0 0
      %406 = vmatpush2.bf16.msra.mxu0 0
      %407 = vmatprep.subr.bf16.mxu0 0
      %408 = vmatpush2.bf16.msra.mxu0 0
      %409 = vmatprep.subr.bf16.mxu0 0
      %410 = vmatpush2.bf16.msra.mxu0 0
      %411 = vmatprep.mubr.bf16.mxu0 0
      %412 = vmatmul.mubr.bf16.gmra.mxu0 %v374
      %v413 = vpop.f32.mrf.mxu0
      %v414 = vadd.f32 0.0, %v413
      %v415 = vpop.f32.mrf.mxu0
      %v416 = vpop.f32.mrf.mxu0
      %v417 = vadd.f32 0.0, %v416
      %v418 = vpop.f32.mrf.mxu0
      %419 = vmatprep.mubr.bf16.mxu0 0
      %420 = vmatmul.mubr.bf16.gmra.mxu0 %v377
      %v421 = vpop.f32.mrf.mxu0
      %v422 = vadd.f32 0.0, %v421
      %v423 = vpop.f32.mrf.mxu0
      %v424 = vpop.f32.mrf.mxu0
      %v425 = vadd.f32 0.0, %v424
      %v426 = vpop.f32.mrf.mxu0
      %427 = vdwg.mxu0
      %v428 = vadd.f32 %v312, %v414
      %v429 = vadd.f32 %v315, %v417
      %v430 = vadd.f32 %v320, %v422
      %v431 = vadd.f32 %v323, %v425
      %v432 = vld [vmem:[%s138] sm:$0x8]
      %s433 = scalar_lea.vmem %s1, 48
      %v434 = vld [vmem:[%s433] sm:$0xf]
      %v435 = vld [vmem:[%s433 + $0x4] sm:$0xf]
      %v436 = vld [vmem:[%s433 + $0x8] sm:$0xf]
      %v437 = vld [vmem:[%s433 + $0xc] sm:$0xf]
      %v439 = vunpack.c.l.b16 %v432
      %v440 = vpack.c.b16 %v165, %v439
      %vm441 = vcmask 1044480
      %v442 = vrot.slane %v440, 3
      %v443 = vrot.slane %v170, 3
      %v444 = vsel %vm441, %v442, %v443
      %v445 = vrot.slane %v338, 3
      %v446 = vsel %vm441, %v443, %v445
      %v451 = vunpack.c.l.b16 %v434
      %v452 = vunpack.c.l.b16 %v435
      %v453 = vunpack.c.l.b16 %v436
      %v454 = vunpack.c.l.b16 %v437
      %v455 = vpack.c.b16 %v452, %v451
      %v456 = vpack.c.b16 %v454, %v453
      %v460 = vsel %vm205, %v444, 0
      %v463 = vsel %vm205, %v446, 0
      %465 = vmatprep.subr.bf16.mxu0 0
      %466 = vmatpush1.bf16.msra.mxu0 0
      %467 = vmatprep.subr.bf16.mxu0 0
      %468 = vmatpush1.bf16.msra.mxu0 0
      %469 = vmatprep.subr.bf16.mxu0 0
      %470 = vmatpush1.bf16.msra.mxu0 0
      %471 = vmatprep.subr.bf16.mxu0 0
      %472 = vmatpush1.bf16.msra.mxu0 0
      %473 = vmatprep.subr.bf16.mxu0 0
      %474 = vmatpush1.bf16.msra.mxu0 0
      %475 = vmatprep.subr.bf16.mxu0 0
      %476 = vmatpush1.bf16.msra.mxu0 0
      %477 = vmatprep.subr.bf16.mxu0 0
      %478 = vmatpush1.bf16.msra.mxu0 %v456
      %479 = vmatprep.subr.bf16.mxu0 0
      %480 = vmatpush1.bf16.msra.mxu0 %v455
      %481 = vmatprep.subr.bf16.mxu0 0
      %482 = vmatpush2.bf16.msra.mxu0 0
      %483 = vmatprep.subr.bf16.mxu0 0
      %484 = vmatpush2.bf16.msra.mxu0 0
      %485 = vmatprep.subr.bf16.mxu0 0
      %486 = vmatpush2.bf16.msra.mxu0 0
      %487 = vmatprep.subr.bf16.mxu0 0
      %488 = vmatpush2.bf16.msra.mxu0 0
      %489 = vmatprep.subr.bf16.mxu0 0
      %490 = vmatpush2.bf16.msra.mxu0 0
      %491 = vmatprep.subr.bf16.mxu0 0
      %492 = vmatpush2.bf16.msra.mxu0 0
      %493 = vmatprep.subr.bf16.mxu0 0
      %494 = vmatpush2.bf16.msra.mxu0 0
      %495 = vmatprep.subr.bf16.mxu0 0
      %496 = vmatpush2.bf16.msra.mxu0 0
      %497 = vmatprep.mubr.bf16.mxu0 0
      %498 = vmatmul.mubr.bf16.gmra.mxu0 %v460
      %v499 = vpop.f32.mrf.mxu0
      %v500 = vadd.f32 0.0, %v499
      %v501 = vpop.f32.mrf.mxu0
      %v502 = vpop.f32.mrf.mxu0
      %v503 = vadd.f32 0.0, %v502
      %v504 = vpop.f32.mrf.mxu0
      %505 = vmatprep.mubr.bf16.mxu0 0
      %506 = vmatmul.mubr.bf16.gmra.mxu0 %v463
      %v507 = vpop.f32.mrf.mxu0
      %v508 = vadd.f32 0.0, %v507
      %v509 = vpop.f32.mrf.mxu0
      %v510 = vpop.f32.mrf.mxu0
      %v511 = vadd.f32 0.0, %v510
      %v512 = vpop.f32.mrf.mxu0
      %513 = vdwg.mxu0
      %v514 = vadd.f32 %v428, %v500
      %v515 = vadd.f32 %v429, %v503
      %v516 = vadd.f32 %v430, %v508
      %v517 = vadd.f32 %v431, %v511
      %v518 = vmax.f32 %v514, 0.0
      %v519 = vmax.f32 %v515, 0.0
      %v520 = vmax.f32 %v516, 0.0
      %v521 = vmax.f32 %v517, 0.0
      %v522 = vpack.c.bf16 %v519, %v518
      %v523 = vpack.c.bf16 %v521, %v520
      %v526 = vunpack.c.l.b16 %v522
      %v527 = vunpack.c.h.b16 %v522
      %v528 = vunpack.c.l.b16 %v523
      %v529 = vunpack.c.h.b16 %v523
      %v530 = vpack.c.b16 %v526, %v526
      %v531 = vpack.c.b16 %v527, %v527
      %v532 = vpack.c.b16 %v528, %v528
      %v533 = vpack.c.b16 %v529, %v529
      %vm538 = vcmask 125952
      %539 = vst.msk [vmem:[%s143] sm:$0xf] %vm538, %v530
      %540 = vst.msk [vmem:[%s143 + $0x4] sm:$0xf] %vm538, %v531
      %541 = vst.msk [vmem:[%s143 + $0x8] sm:$0xf] %vm538, %v532
      %542 = vst.msk [vmem:[%s143 + $0xc] sm:$0xf] %vm538, %v533
      %p543 = scmp.lt.s32.totalorder %s13, 1
      %s544 = scalar_select %p543, %s13, 1
      %s545 = smul.addr %s544, 4
      %s546 = smul.addr %s545, 4
      %s547 = scalar_lea.vmem %s2, %s546
      // Predicated region
      $region29: #{encoder_forward.12} parent=27 // pred_check
        %p548 = pneg %p78
      $region30: #{encoder_forward.12} parent=27 // pred_check_branch
        %550 = sbr.rel (%p548) target = $region32
      $region31: #{encoder_forward.12} parent=27 // pred_region
        _
      $region32: #{encoder_forward.12} parent=27 // pred_fallthru
        _
    $region28: #{encoder_forward.12} parent=5 // pred_fallthru
      _
    %p551 = scmp.le.s32.totalorder 2, %s8
    // Predicated region
    $region33: #{encoder_forward.12} parent=5 // pred_check
      %p552 = pneg %p551
    $region34: #{encoder_forward.12} parent=5 // pred_check_branch
      %554 = sbr.rel (%p552) target = $region36
    $region35: #{encoder_forward.12} parent=5 // pred_region
      %s555 = ssub.s32 %s8, 2
      // Predicated region
      $region37: #{encoder_forward.12} parent=35 // pred_check
        %p556 = pneg %p84
      $region38: #{encoder_forward.12} parent=35 // pred_check_branch
        %558 = sbr.rel (%p556) target = $region40
      $region39: #{encoder_forward.12} parent=35 // pred_region
        %p559 = scmp.lt.s32.totalorder %s14, 1
        %s560 = scalar_select %p559, %s14, 1
        %s561 = smul.addr %s560, 4
        %s562 = smul.addr %s561, 4
        %s563 = scalar_lea.vmem %s2, %s562
      $region40: #{encoder_forward.12} parent=35 // pred_fallthru
        _
    $region36: #{encoder_forward.12} parent=5 // pred_fallthru
      _
  $region6: #{encoder_forward.12} parent=0 // loop_footer
    %s12 = sadd.s32 1, %s8
  $region7: #{encoder_forward.12} parent=0 // loop_footer_branch
    %7 = sbr.rel target = $region3
  $region8: #{encoder_forward.12} parent=0 // loop_exit
    _

// kernel: encoder_forward.14
$region0: #{encoder_forward.14}
  #allocation0 [shape = 'u32[]', space=smem, size = 0x4, offset = 0x4, fixed_abs, tag = 'smem constant byte address 0x4 - core index']
  #allocation1 [shape = 'u32[144,128]{1,0:T(1,128)}', space=vmem, size = 0x12000, scoped, tag = 'internal scratch']
  %s0 = inlined_call_operand.vmem [shape: bf16[2,48,16], index: 0, kind: input, shape index: {}]
  %s1 = inlined_call_operand.vmem [shape: bf16[9,16,16], index: 1, kind: input, shape index: {}]
  %s2 = inlined_call_operand.vmem [shape: bf16[16,16], index: 2, kind: input, shape index: {}]
  %s3 = inlined_call_operand.vmem [shape: bf16[2,32,16], index: 3, kind: output, shape index: {}]
  %s4 = sld [smem:[#allocation0]]
  $region45: #{encoder_forward.14} parent=0
    _
  %s6 = ssub.s32 1, %s4
  %s7 = scalar_select 0, %s6, %s4
  loop: start=0, step=1, limit=4
  $region2: #{encoder_forward.14} parent=0 // loop_pre_header
    _
  $region3: #{encoder_forward.14} parent=0 // loop_header
    %s9 = sphi 0, %s13
    %p10 = scmp.ge.s32.totalorder %s9, 4
    %s19 = sphi 0, %s21
    %s22 = sphi 0, %s19
    %s23 = sphi 0, %s22
    %s39 = sphi 0, %s23
    %s43 = sphi 0, %s43
    %s45 = sphi 0, %s43
    %s46 = sphi 0, %s45
    %s60 = sphi 0, %s46
    %s64 = sphi 0, %s64
    %s66 = sphi 0, %s64
    %s67 = sphi 0, %s66
    %s81 = sphi 0, %s67
    %s87 = sphi 0, %s89
    %s90 = sphi 0, %s87
    %s91 = sphi 0, %s90
    %s107 = sphi 0, %s91
  $region4: #{encoder_forward.14} parent=0 // loop_header_branch
    %12 = sbr.rel (%p10) target = $region8
  $region5: #{encoder_forward.14} parent=0 // loop_body
    %s14 = ssub.s32 %s9, 1
    %s15 = ssub.s32 %s9, 2
    %s16 = sadd.s32 %s9, 1
    %s17 = ssub.s32 %s9, %s16
    %p18 = scmp.eq.s32.totalorder %s17, 0
    %s20 = sadd.s32 %s19, 1
    %s21 = scalar_select %p18, %s19, %s20
    %p24 = pneg %p18
    %p25 = scmp.eq.s32.totalorder %s9, 1
    %p26 = por %p24, %p25
    %p27 = scmp.ne.s32.totalorder %s19, %s22
    %p28 = scmp.eq.s32.totalorder %s9, 0
    %p29 = por %p27, %p28
    %p30 = scmp.ne.s32.totalorder %s19, %s22
    %p31 = scmp.eq.s32.totalorder %s14, 1
    %p32 = por %p30, %p31
    %p33 = scmp.ne.s32.totalorder %s22, %s23
    %p34 = scmp.eq.s32.totalorder %s14, 0
    %p35 = por %p33, %p34
    %p36 = scmp.ne.s32.totalorder %s22, %s23
    %p37 = scmp.eq.s32.totalorder %s15, 1
    %p38 = por %p36, %p37
    %p40 = scmp.ne.s32.totalorder %s23, %s39
    %p41 = scmp.eq.s32.totalorder %s15, 0
    %p42 = por %p40, %p41
    %s44 = sadd.s32 %s43, 1
    %p47 = scmp.eq.s32.totalorder %s9, 1
    %p48 = scmp.ne.s32.totalorder %s43, %s45
    %p49 = scmp.eq.s32.totalorder %s9, 0
    %p50 = por %p48, %p49
    %p51 = scmp.ne.s32.totalorder %s43, %s45
    %p52 = scmp.eq.s32.totalorder %s14, 1
    %p53 = por %p51, %p52
    %p54 = scmp.ne.s32.totalorder %s45, %s46
    %p55 = scmp.eq.s32.totalorder %s14, 0
    %p56 = por %p54, %p55
    %p57 = scmp.ne.s32.totalorder %s45, %s46
    %p58 = scmp.eq.s32.totalorder %s15, 1
    %p59 = por %p57, %p58
    %p61 = scmp.ne.s32.totalorder %s46, %s60
    %p62 = scmp.eq.s32.totalorder %s15, 0
    %p63 = por %p61, %p62
    %s65 = sadd.s32 %s64, 1
    %p68 = scmp.eq.s32.totalorder %s9, 1
    %p69 = scmp.ne.s32.totalorder %s64, %s66
    %p70 = scmp.eq.s32.totalorder %s9, 0
    %p71 = por %p69, %p70
    %p72 = scmp.ne.s32.totalorder %s64, %s66
    %p73 = scmp.eq.s32.totalorder %s14, 1
    %p74 = por %p72, %p73
    %p75 = scmp.ne.s32.totalorder %s66, %s67
    %p76 = scmp.eq.s32.totalorder %s14, 0
    %p77 = por %p75, %p76
    %p78 = scmp.ne.s32.totalorder %s66, %s67
    %p79 = scmp.eq.s32.totalorder %s15, 1
    %p80 = por %p78, %p79
    %p82 = scmp.ne.s32.totalorder %s67, %s81
    %p83 = scmp.eq.s32.totalorder %s15, 0
    %p84 = por %p82, %p83
    %s85 = ssub.s32 %s9, %s16
    %p86 = scmp.eq.s32.totalorder %s85, 0
    %s88 = sadd.s32 %s87, 1
    %s89 = scalar_select %p86, %s87, %s88
    %p92 = pneg %p86
    %p93 = scmp.eq.s32.totalorder %s9, 1
    %p94 = por %p92, %p93
    %p95 = scmp.ne.s32.totalorder %s87, %s90
    %p96 = scmp.eq.s32.totalorder %s9, 0
    %p97 = por %p95, %p96
    %p98 = scmp.ne.s32.totalorder %s87, %s90
    %p99 = scmp.eq.s32.totalorder %s14, 1
    %p100 = por %p98, %p99
    %p101 = scmp.ne.s32.totalorder %s90, %s91
    %p102 = scmp.eq.s32.totalorder %s14, 0
    %p103 = por %p101, %p102
    %p104 = scmp.ne.s32.totalorder %s90, %s91
    %p105 = scmp.eq.s32.totalorder %s15, 1
    %p106 = por %p104, %p105
    %p108 = scmp.ne.s32.totalorder %s91, %s107
    %p109 = scmp.eq.s32.totalorder %s15, 0
    %p110 = por %p108, %p109
    %p111 = scmp.le.s32.totalorder 1, %s9
    %p112 = scmp.lt.s32.totalorder %s9, 3
    %p113 = pnand %p111, %p112
    %p114 = pneg %p113
    // Predicated region
    $region9: #{encoder_forward.14} parent=5 // pred_check
      _
    $region10: #{encoder_forward.14} parent=5 // pred_check_branch
      %116 = sbr.rel (%p113) target = $region12
    $region11: #{encoder_forward.14} parent=5 // pred_region
      %s117 = ssub.s32 %s9, 1
      // Predicated region
      $region13: #{encoder_forward.14} parent=11 // pred_check
        %p118 = pneg %p56
      $region14: #{encoder_forward.14} parent=11 // pred_check_branch
        %120 = sbr.rel (%p118) target = $region16
      $region15: #{encoder_forward.14} parent=11 // pred_region
        _
      $region16: #{encoder_forward.14} parent=11 // pred_fallthru
        _
      // Predicated region
      $region17: #{encoder_forward.14} parent=11 // pred_check
        %p121 = pneg %p77
      $region18: #{encoder_forward.14} parent=11 // pred_check_branch
        %123 = sbr.rel (%p121) target = $region20
      $region19: #{encoder_forward.14} parent=11 // pred_region
        _
      $region20: #{encoder_forward.14} parent=11 // pred_fallthru
        _
    $region12: #{encoder_forward.14} parent=5 // pred_fallthru
      _
    %p124 = scmp.lt.s32.totalorder %s9, 2
    // Predicated region
    $region21: #{encoder_forward.14} parent=5 // pred_check
      %p125 = pneg %p124
    $region22: #{encoder_forward.14} parent=5 // pred_check_branch
      %127 = sbr.rel (%p125) target = $region24
    $region23: #{encoder_forward.14} parent=5 // pred_region
      // Predicated region
      $region25: #{encoder_forward.14} parent=23 // pred_check
        %p128 = pneg %p29
      $region26: #{encoder_forward.14} parent=23 // pred_check_branch
        %130 = sbr.rel (%p128) target = $region28
      $region27: #{encoder_forward.14} parent=23 // pred_region
        %p131 = scmp.lt.s32.totalorder %s9, 1
        %s132 = scalar_select %p131, %s9, 1
        %s133 = smul.addr %s132, 6
        %s134 = smul.addr %s133, 4
        %s135 = scalar_lea.vmem %s0, %s134
      $region28: #{encoder_forward.14} parent=23 // pred_fallthru
        _
    $region24: #{encoder_forward.14} parent=5 // pred_fallthru
      _
    %p136 = scmp.le.s32.totalorder 1, %s9
    %p137 = scmp.lt.s32.totalorder %s9, 3
    %p138 = pnand %p136, %p137
    %p139 = pneg %p138
    // Predicated region
    $region29: #{encoder_forward.14} parent=5 // pred_check
      _
    $region30: #{encoder_forward.14} parent=5 // pred_check_branch
      %141 = sbr.rel (%p138) target = $region32
    $region31: #{encoder_forward.14} parent=5 // pred_region
      %s142 = ssub.s32 %s9, 1
      %p143 = scmp.lt.s32.totalorder %s14, 1
      %s144 = scalar_select %p143, %s14, 1
      %s145 = smul.addr %s144, 6
      %s146 = smul.addr %s145, 4
      %s147 = scalar_lea.vmem %s0, %s146
      %p148 = pneg %p35
      %p149 = pneg %p32
      %p150 = pneg %p56
      %p151 = pneg %p53
      %p152 = pneg %p77
      %p153 = pneg %p74
      %p154 = pneg %p103
      %p155 = pneg %p100
      %p156 = scmp.lt.s32.totalorder %s14, 1
      %s157 = scalar_select %p156, %s14, 1
      %s158 = smul.addr %s157, 4
      %s159 = smul.addr %s158, 4
      %s160 = scalar_lea.vmem %s3, %s159
      %p161 = scmp.lt.s32.totalorder %s14, 1
      %s162 = scalar_select %p161, %s14, 1
      %s163 = smul.addr %s162, 6
      %s164 = smul.addr %s163, 4
      %s165 = scalar_lea.vmem %s0, %s164
      %p166 = scmp.lt.s32.totalorder %s14, 1
      %s167 = scalar_select %p166, %s14, 1
      %s168 = smul.addr %s167, 4
      %s169 = smul.addr %s168, 4
      %s170 = scalar_lea.vmem %s3, %s169
      %v172 = vld [vmem:[%s165] sm:$0xf]
      %v173 = vld [vmem:[%s165 + $0x4] sm:$0xf]
      %v174 = vld [vmem:[%s165 + $0x8] sm:$0xf]
      %v175 = vld [vmem:[%s165 + $0xc] sm:$0xf]
      %v176 = vmax.bf16 %v172, 0
      %v177 = vmax.bf16 %v173, 0
      %v178 = vmax.bf16 %v174, 0
      %v179 = vmax.bf16 %v175, 0
      %v180 = vld [vmem:[%s1] sm:$0xf]
      %v181 = vld [vmem:[%s1 + $0x4] sm:$0xf]
      %v182 = vld [vmem:[%s165 + $0x10] sm:$0x1]
      %v183 = vmax.bf16 %v182, 0
      %s184 = scalar_lea.vmem %s1, 8
      %v185 = vld [vmem:[%s184] sm:$0xf]
      %v186 = vld [vmem:[%s184 + $0x4] sm:$0xf]
      %v192 = vunpack.c.l.b16 %v176
      %v193 = vunpack.c.l.b16 %v177
      %v194 = vunpack.c.l.b16 %v178
      %v195 = vunpack.c.l.b16 %v179
      %v196 = vunpack.c.l.b16 %v183
      %v197 = vpack.c.b16 %v193, %v192
      %v198 = vpack.c.b16 %v195, %v194
      %v199 = vpack.c.b16 %v196, %v196
      %vm200 = vsmask.f32 7424
      %v202 = vshrl.u32 %v197, 16
      %v204 = vshll.u32 %v197, 16
      %v206 = vrot.slane %v204, 1
      %v207 = vor.u32 %v202, %v206
      %v209 = vshll.u32 %v198, 16
      %v211 = vrot.slane %v209, 1
      %v212 = vsel %vm200, %v207, %v211
      %v213 = vshrl.u32 %v198, 16
      %v215 = vor.u32 %v213, %v211
      %v217 = vshll.u32 %v199, 16
      %v219 = vrot.slane %v217, 1
      %v220 = vsel %vm200, %v215, %v219
      %v223 = vunpack.c.l.b16 %v185
      %v224 = vunpack.c.l.b16 %v186
      %v225 = vpack.c.b16 %v224, %v223
      %vm227 = vcmask 130048
      %v229 = vsel %vm227, %v212, 0
      %v232 = vsel %vm227, %v220, 0
      %234 = vmatprep.subr.bf16.mxu0 0
      %235 = vmatpush1.bf16.msra.mxu0 0
      %236 = vmatprep.subr.bf16.mxu0 0
      %237 = vmatpush1.bf16.msra.mxu0 0
      %238 = vmatprep.subr.bf16.mxu0 0
      %239 = vmatpush1.bf16.msra.mxu0 0
      %240 = vmatprep.subr.bf16.mxu0 0
      %241 = vmatpush1.bf16.msra.mxu0 0
      %242 = vmatprep.subr.bf16.mxu0 0
      %243 = vmatpush1.bf16.msra.mxu0 0
      %244 = vmatprep.subr.bf16.mxu0 0
      %245 = vmatpush1.bf16.msra.mxu0 0
      %246 = vmatprep.subr.bf16.mxu0 0
      %247 = vmatpush1.bf16.msra.mxu0 0
      %248 = vmatprep.subr.bf16.mxu0 0
      %249 = vmatpush1.bf16.msra.mxu0 %v225
      %250 = vmatprep.subr.bf16.mxu0 0
      %251 = vmatpush2.bf16.msra.mxu0 0
      %252 = vmatprep.subr.bf16.mxu0 0
      %253 = vmatpush2.bf16.msra.mxu0 0
      %254 = vmatprep.subr.bf16.mxu0 0
      %255 = vmatpush2.bf16.msra.mxu0 0
      %256 = vmatprep.subr.bf16.mxu0 0
      %257 = vmatpush2.bf16.msra.mxu0 0
      %258 = vmatprep.subr.bf16.mxu0 0
      %259 = vmatpush2.bf16.msra.mxu0 0
      %260 = vmatprep.subr.bf16.mxu0 0
      %261 = vmatpush2.bf16.msra.mxu0 0
      %262 = vmatprep.subr.bf16.mxu0 0
      %263 = vmatpush2.bf16.msra.mxu0 0
      %264 = vmatprep.subr.bf16.mxu0 0
      %265 = vmatpush2.bf16.msra.mxu0 0
      %266 = vmatprep.mubr.bf16.mxu0 0
      %267 = vmatmul.mubr.bf16.gmra.mxu0 %v229
      %v268 = vpop.f32.mrf.mxu0
      %v269 = vadd.f32 0.0, %v268
      %v270 = vpop.f32.mrf.mxu0
      %v271 = vpop.f32.mrf.mxu0
      %v272 = vadd.f32 0.0, %v271
      %v273 = vpop.f32.mrf.mxu0
      %274 = vmatprep.mubr.bf16.mxu0 0
      %275 = vmatmul.mubr.bf16.gmra.mxu0 %v232
      %v276 = vpop.f32.mrf.mxu0
      %v277 = vadd.f32 0.0, %v276
      %v278 = vpop.f32.mrf.mxu0
      %v279 = vpop.f32.mrf.mxu0
      %v280 = vadd.f32 0.0, %v279
      %v281 = vpop.f32.mrf.mxu0
      %282 = vdwg.mxu0
      %v285 = vunpack.c.l.b16 %v180
      %v286 = vunpack.c.l.b16 %v181
      %v287 = vpack.c.b16 %v286, %v285
      %v289 = vsel %vm227, %v197, 0
      %v291 = vsel %vm227, %v198, 0
      %293 = vmatprep.subr.bf16.mxu0 0
      %294 = vmatpush1.bf16.msra.mxu0 0
      %295 = vmatprep.subr.bf16.mxu0 0
      %296 = vmatpush1.bf16.msra.mxu0 0
      %297 = vmatprep.subr.bf16.mxu0 0
      %298 = vmatpush1.bf16.msra.mxu0 0
      %299 = vmatprep.subr.bf16.mxu0 0
      %300 = vmatpush1.bf16.msra.mxu0 0
      %301 = vmatprep.subr.bf16.mxu0 0
      %302 = vmatpush1.bf16.msra.mxu0 0
      %303 = vmatprep.subr.bf16.mxu0 0
      %304 = vmatpush1.bf16.msra.mxu0 0
      %305 = vmatprep.subr.bf16.mxu0 0
      %306 = vmatpush1.bf16.msra.mxu0 0
      %307 = vmatprep.subr.bf16.mxu0 0
      %308 = vmatpush1.bf16.msra.mxu0 %v287
      %309 = vmatprep.subr.bf16.mxu0 0
      %310 = vmatpush2.bf16.msra.mxu0 0
      %311 = vmatprep.subr.bf16.mxu0 0
      %312 = vmatpush2.bf16.msra.mxu0 0
      %313 = vmatprep.subr.bf16.mxu0 0
      %314 = vmatpush2.bf16.msra.mxu0 0
      %315 = vmatprep.subr.bf16.mxu0 0
      %316 = vmatpush2.bf16.msra.mxu0 0
      %317 = vmatprep.subr.bf16.mxu0 0
      %318 = vmatpush2.bf16.msra.mxu0 0
      %319 = vmatprep.subr.bf16.mxu0 0
      %320 = vmatpush2.bf16.msra.mxu0 0
      %321 = vmatprep.subr.bf16.mxu0 0
      %322 = vmatpush2.bf16.msra.mxu0 0
      %323 = vmatprep.subr.bf16.mxu0 0
      %324 = vmatpush2.bf16.msra.mxu0 0
      %325 = vmatprep.mubr.bf16.mxu0 0
      %326 = vmatmul.mubr.bf16.gmra.mxu0 %v289
      %v327 = vpop.f32.mrf.mxu0
      %v328 = vadd.f32 %v269, %v327
      %v329 = vpop.f32.mrf.mxu0
      %v330 = vpop.f32.mrf.mxu0
      %v331 = vadd.f32 %v272, %v330
      %v332 = vpop.f32.mrf.mxu0
      %333 = vmatprep.mubr.bf16.mxu0 0
      %334 = vmatmul.mubr.bf16.gmra.mxu0 %v291
      %v335 = vpop.f32.mrf.mxu0
      %v336 = vadd.f32 %v277, %v335
      %v337 = vpop.f32.mrf.mxu0
      %v338 = vpop.f32.mrf.mxu0
      %v339 = vadd.f32 %v280, %v338
      %v340 = vpop.f32.mrf.mxu0
      %341 = vdwg.mxu0
      %v342 = vld [vmem:[%s165] sm:$0xe]
      %v343 = vmax.bf16 %v342, 0
      %s344 = scalar_lea.vmem %s1, 16
      %v345 = vld [vmem:[%s344] sm:$0xf]
      %v346 = vld [vmem:[%s344 + $0x4] sm:$0xf]
      %v348 = vunpack.c.l.b16 %v343
      %v349 = vpack.c.b16 %v193, %v348
      %vm350 = vcmask 1046528
      %v351 = vrot.slane %v349, 1
      %v352 = vrot.slane %v198, 1
      %v353 = vsel %vm350, %v351, %v352
      %v354 = vrot.slane %v199, 1
      %v355 = vsel %vm350, %v352, %v354
      %v358 = vunpack.c.l.b16 %v345
      %v359 = vunpack.c.l.b16 %v346
      %v360 = vpack.c.b16 %v359, %v358
      %v363 = vsel %vm227, %v353, 0
      %v366 = vsel %vm227, %v355, 0
      %368 = vmatprep.subr.bf16.mxu0 0
      %369 = vmatpush1.bf16.msra.mxu0 0
      %370 = vmatprep.subr.bf16.mxu0 0
      %371 = vmatpush1.bf16.msra.mxu0 0
      %372 = vmatprep.subr.bf16.mxu0 0
      %373 = vmatpush1.bf16.msra.mxu0 0
      %374 = vmatprep.subr.bf16.mxu0 0
      %375 = vmatpush1.bf16.msra.mxu0 0
      %376 = vmatprep.subr.bf16.mxu0 0
      %377 = vmatpush1.bf16.msra.mxu0 0
      %378 = vmatprep.subr.bf16.mxu0 0
      %379 = vmatpush1.bf16.msra.mxu0 0
      %380 = vmatprep.subr.bf16.mxu0 0
      %381 = vmatpush1.bf16.msra.mxu0 0
      %382 = vmatprep.subr.bf16.mxu0 0
      %383 = vmatpush1.bf16.msra.mxu0 %v360
      %384 = vmatprep.subr.bf16.mxu0 0
      %385 = vmatpush2.bf16.msra.mxu0 0
      %386 = vmatprep.subr.bf16.mxu0 0
      %387 = vmatpush2.bf16.msra.mxu0 0
      %388 = vmatprep.subr.bf16.mxu0 0
      %389 = vmatpush2.bf16.msra.mxu0 0
      %390 = vmatprep.subr.bf16.mxu0 0
      %391 = vmatpush2.bf16.msra.mxu0 0
      %392 = vmatprep.subr.bf16.mxu0 0
      %393 = vmatpush2.bf16.msra.mxu0 0
      %394 = vmatprep.subr.bf16.mxu0 0
      %395 = vmatpush2.bf16.msra.mxu0 0
      %396 = vmatprep.subr.bf16.mxu0 0
      %397 = vmatpush2.bf16.msra.mxu0 0
      %398 = vmatprep.subr.bf16.mxu0 0
      %399 = vmatpush2.bf16.msra.mxu0 0
      %400 = vmatprep.mubr.bf16.mxu0 0
      %401 = vmatmul.mubr.bf16.gmra.mxu0 %v363
      %v402 = vpop.f32.mrf.mxu0
      %v403 = vadd.f32 0.0, %v402
      %v404 = vpop.f32.mrf.mxu0
      %v405 = vpop.f32.mrf.mxu0
      %v406 = vadd.f32 0.0, %v405
      %v407 = vpop.f32.mrf.mxu0
      %408 = vmatprep.mubr.bf16.mxu0 0
      %409 = vmatmul.mubr.bf16.gmra.mxu0 %v366
      %v410 = vpop.f32.mrf.mxu0
      %v411 = vadd.f32 0.0, %v410
      %v412 = vpop.f32.mrf.mxu0
      %v413 = vpop.f32.mrf.mxu0
      %v414 = vadd.f32 0.0, %v413
      %v415 = vpop.f32.mrf.mxu0
      %416 = vdwg.mxu0
      %v417 = vadd.f32 %v328, %v403
      %v418 = vadd.f32 %v331, %v406
      %v419 = vadd.f32 %v336, %v411
      %v420 = vadd.f32 %v339, %v414
      %v421 = vld [vmem:[%s165] sm:$0x8]
      %v422 = vld [vmem:[%s165 + $0x10] sm:$0x7]
      %v423 = vmax.bf16 %v421, 0
      %v424 = vmax.bf16 %v422, 0
      %s425 = scalar_lea.vmem %s1, 24
      %v426 = vld [vmem:[%s425] sm:$0xf]
      %v427 = vld [vmem:[%s425 + $0x4] sm:$0xf]
      %v430 = vunpack.c.l.b16 %v423
      %v431 = vunpack.c.l.b16 %v424
      %v432 = vpack.c.b16 %v193, %v430
      %v433 = vpack.c.b16 %v431, %v431
      %vm434 = vcmask 1044480
      %v435 = vrot.slane %v432, 3
      %v436 = vrot.slane %v198, 3
      %v437 = vsel %vm434, %v435, %v436
      %v438 = vrot.slane %v433, 3
      %v439 = vsel %vm434, %v436, %v438
      %v442 = vunpack.c.l.b16 %v426
      %v443 = vunpack.c.l.b16 %v427
      %v444 = vpack.c.b16 %v443, %v442
      %v447 = vsel %vm227, %v437, 0
      %v450 = vsel %vm227, %v439, 0
      %452 = vmatprep.subr.bf16.mxu0 0
      %453 = vmatpush1.bf16.msra.mxu0 0
      %454 = vmatprep.subr.bf16.mxu0 0
      %455 = vmatpush1.bf16.msra.mxu0 0
      %456 = vmatprep.subr.bf16.mxu0 0
      %457 = vmatpush1.bf16.msra.mxu0 0
      %458 = vmatprep.subr.bf16.mxu0 0
      %459 = vmatpush1.bf16.msra.mxu0 0
      %460 = vmatprep.subr.bf16.mxu0 0
      %461 = vmatpush1.bf16.msra.mxu0 0
      %462 = vmatprep.subr.bf16.mxu0 0
      %463 = vmatpush1.bf16.msra.mxu0 0
      %464 = vmatprep.subr.bf16.mxu0 0
      %465 = vmatpush1.bf16.msra.mxu0 0
      %466 = vmatprep.subr.bf16.mxu0 0
      %467 = vmatpush1.bf16.msra.mxu0 %v444
      %468 = vmatprep.subr.bf16.mxu0 0
      %469 = vmatpush2.bf16.msra.mxu0 0
      %470 = vmatprep.subr.bf16.mxu0 0
      %471 = vmatpush2.bf16.msra.mxu0 0
      %472 = vmatprep.subr.bf16.mxu0 0
      %473 = vmatpush2.bf16.msra.mxu0 0
      %474 = vmatprep.subr.bf16.mxu0 0
      %475 = vmatpush2.bf16.msra.mxu0 0
      %476 = vmatprep.subr.bf16.mxu0 0
      %477 = vmatpush2.bf16.msra.mxu0 0
      %478 = vmatprep.subr.bf16.mxu0 0
      %479 = vmatpush2.bf16.msra.mxu0 0
      %480 = vmatprep.subr.bf16.mxu0 0
      %481 = vmatpush2.bf16.msra.mxu0 0
      %482 = vmatprep.subr.bf16.mxu0 0
      %483 = vmatpush2.bf16.msra.mxu0 0
      %484 = vmatprep.mubr.bf16.mxu0 0
      %485 = vmatmul.mubr.bf16.gmra.mxu0 %v447
      %v486 = vpop.f32.mrf.mxu0
      %v487 = vadd.f32 0.0, %v486
      %v488 = vpop.f32.mrf.mxu0
      %v489 = vpop.f32.mrf.mxu0
      %v490 = vadd.f32 0.0, %v489
      %v491 = vpop.f32.mrf.mxu0
      %492 = vmatprep.mubr.bf16.mxu0 0
      %493 = vmatmul.mubr.bf16.gmra.mxu0 %v450
      %v494 = vpop.f32.mrf.mxu0
      %v495 = vadd.f32 0.0, %v494
      %v496 = vpop.f32.mrf.mxu0
      %v497 = vpop.f32.mrf.mxu0
      %v498 = vadd.f32 0.0, %v497
      %v499 = vpop.f32.mrf.mxu0
      %500 = vdwg.mxu0
      %v501 = vadd.f32 %v417, %v487
      %v502 = vadd.f32 %v418, %v490
      %v503 = vadd.f32 %v419, %v495
      %v504 = vadd.f32 %v420, %v498
      %v505 = vld [vmem:[%s165 + $0x10] sm:$0xf]
      %v506 = vmax.bf16 %v505, 0
      %s507 = scalar_lea.vmem %s1, 32
      %v508 = vld [vmem:[%s507] sm:$0xf]
      %v509 = vld [vmem:[%s507 + $0x4] sm:$0xf]
      %v511 = vunpack.c.l.b16 %v506
      %v512 = vpack.c.b16 %v511, %v511
      %vm513 = vsmask.f32 4352
      %v515 = vshrl.u32 %v432, 16
      %v517 = vrot.slane %v515, 3
      %v518 = vshll.u32 %v432, 16
      %v520 = vrot.slane %v518, 4
      %v521 = vor.u32 %v517, %v520
      %v522 = vrot.slane %v213, 3
      %v523 = vrot.slane %v209, 4
      %v524 = vor.u32 %v522, %v523
      %v525 = vsel %vm513, %v521, %v524
      %v527 = vshrl.u32 %v512, 16
      %v529 = vrot.slane %v527, 3
      %v530 = vshll.u32 %v512, 16
      %v532 = vrot.slane %v530, 4
      %v533 = vor.u32 %v529, %v532
      %v534 = vsel %vm513, %v524, %v533
      %v537 = vunpack.c.l.b16 %v508
      %v538 = vunpack.c.l.b16 %v509
      %v539 = vpack.c.b16 %v538, %v537
      %v542 = vsel %vm227, %v525, 0
      %v545 = vsel %vm227, %v534, 0
      %547 = vmatprep.subr.bf16.mxu0 0
      %548 = vmatpush1.bf16.msra.mxu0 0
      %549 = vmatprep.subr.bf16.mxu0 0
      %550 = vmatpush1.bf16.msra.mxu0 0
      %551 = vmatprep.subr.bf16.mxu0 0
      %552 = vmatpush1.bf16.msra.mxu0 0
      %553 = vmatprep.subr.bf16.mxu0 0
      %554 = vmatpush1.bf16.msra.mxu0 0
      %555 = vmatprep.subr.bf16.mxu0 0
      %556 = vmatpush1.bf16.msra.mxu0 0
      %557 = vmatprep.subr.bf16.mxu0 0
      %558 = vmatpush1.bf16.msra.mxu0 0
      %559 = vmatprep.subr.bf16.mxu0 0
      %560 = vmatpush1.bf16.msra.mxu0 0
      %561 = vmatprep.subr.bf16.mxu0 0
      %562 = vmatpush1.bf16.msra.mxu0 %v539
      %563 = vmatprep.subr.bf16.mxu0 0
      %564 = vmatpush2.bf16.msra.mxu0 0
      %565 = vmatprep.subr.bf16.mxu0 0
      %566 = vmatpush2.bf16.msra.mxu0 0
      %567 = vmatprep.subr.bf16.mxu0 0
      %568 = vmatpush2.bf16.msra.mxu0 0
      %569 = vmatprep.subr.bf16.mxu0 0
      %570 = vmatpush2.bf16.msra.mxu0 0
      %571 = vmatprep.subr.bf16.mxu0 0
      %572 = vmatpush2.bf16.msra.mxu0 0
      %573 = vmatprep.subr.bf16.mxu0 0
      %574 = vmatpush2.bf16.msra.mxu0 0
      %575 = vmatprep.subr.bf16.mxu0 0
      %576 = vmatpush2.bf16.msra.mxu0 0
      %577 = vmatprep.subr.bf16.mxu0 0
      %578 = vmatpush2.bf16.msra.mxu0 0
      %579 = vmatprep.mubr.bf16.mxu0 0
      %580 = vmatmul.mubr.bf16.gmra.mxu0 %v542
      %v581 = vpop.f32.mrf.mxu0
      %v582 = vadd.f32 0.0, %v581
      %v583 = vpop.f32.mrf.mxu0
      %v584 = vpop.f32.mrf.mxu0
      %v585 = vadd.f32 0.0, %v584
      %v586 = vpop.f32.mrf.mxu0
      %587 = vmatprep.mubr.bf16.mxu0 0
      %588 = vmatmul.mubr.bf16.gmra.mxu0 %v545
      %v589 = vpop.f32.mrf.mxu0
      %v590 = vadd.f32 0.0, %v589
      %v591 = vpop.f32.mrf.mxu0
      %v592 = vpop.f32.mrf.mxu0
      %v593 = vadd.f32 0.0, %v592
      %v594 = vpop.f32.mrf.mxu0
      %595 = vdwg.mxu0
      %v596 = vadd.f32 %v501, %v582
      %v597 = vadd.f32 %v502, %v585
      %v598 = vadd.f32 %v503, %v590
      %v599 = vadd.f32 %v504, %v593
      %s600 = scalar_lea.vmem %s1, 40
      %v601 = vld [vmem:[%s600] sm:$0xf]
      %v602 = vld [vmem:[%s600 + $0x4] sm:$0xf]
      %v603 = vpack.c.b16 %v194, %v193
      %v604 = vpack.c.b16 %v511, %v195
      %v607 = vunpack.c.l.b16 %v601
      %v608 = vunpack.c.l.b16 %v602
      %v609 = vpack.c.b16 %v608, %v607
      %v612 = vsel %vm227, %v603, 0
      %v615 = vsel %vm227, %v604, 0
      %617 = vmatprep.subr.bf16.mxu0 0
      %618 = vmatpush1.bf16.msra.mxu0 0
      %619 = vmatprep.subr.bf16.mxu0 0
      %620 = vmatpush1.bf16.msra.mxu0 0
      %621 = vmatprep.subr.bf16.mxu0 0
      %622 = vmatpush1.bf16.msra.mxu0 0
      %623 = vmatprep.subr.bf16.mxu0 0
      %624 = vmatpush1.bf16.msra.mxu0 0
      %625 = vmatprep.subr.bf16.mxu0 0
      %626 = vmatpush1.bf16.msra.mxu0 0
      %627 = vmatprep.subr.bf16.mxu0 0
      %628 = vmatpush1.bf16.msra.mxu0 0
      %629 = vmatprep.subr.bf16.mxu0 0
      %630 = vmatpush1.bf16.msra.mxu0 0
      %631 = vmatprep.subr.bf16.mxu0 0
      %632 = vmatpush1.bf16.msra.mxu0 %v609
      %633 = vmatprep.subr.bf16.mxu0 0
      %634 = vmatpush2.bf16.msra.mxu0 0
      %635 = vmatprep.subr.bf16.mxu0 0
      %636 = vmatpush2.bf16.msra.mxu0 0
      %637 = vmatprep.subr.bf16.mxu0 0
      %638 = vmatpush2.bf16.msra.mxu0 0
      %639 = vmatprep.subr.bf16.mxu0 0
      %640 = vmatpush2.bf16.msra.mxu0 0
      %641 = vmatprep.subr.bf16.mxu0 0
      %642 = vmatpush2.bf16.msra.mxu0 0
      %643 = vmatprep.subr.bf16.mxu0 0
      %644 = vmatpush2.bf16.msra.mxu0 0
      %645 = vmatprep.subr.bf16.mxu0 0
      %646 = vmatpush2.bf16.msra.mxu0 0
      %647 = vmatprep.subr.bf16.mxu0 0
      %648 = vmatpush2.bf16.msra.mxu0 0
      %649 = vmatprep.mubr.bf16.mxu0 0
      %650 = vmatmul.mubr.bf16.gmra.mxu0 %v612
      %v651 = vpop.f32.mrf.mxu0
      %v652 = vadd.f32 0.0, %v651
      %v653 = vpop.f32.mrf.mxu0
      %v654 = vpop.f32.mrf.mxu0
      %v655 = vadd.f32 0.0, %v654
      %v656 = vpop.f32.mrf.mxu0
      %657 = vmatprep.mubr.bf16.mxu0 0
      %658 = vmatmul.mubr.bf16.gmra.mxu0 %v615
      %v659 = vpop.f32.mrf.mxu0
      %v660 = vadd.f32 0.0, %v659
      %v661 = vpop.f32.mrf.mxu0
      %v662 = vpop.f32.mrf.mxu0
      %v663 = vadd.f32 0.0, %v662
      %v664 = vpop.f32.mrf.mxu0
      %665 = vdwg.mxu0
      %v666 = vadd.f32 %v596, %v652
      %v667 = vadd.f32 %v597, %v655
      %v668 = vadd.f32 %v598, %v660
      %v669 = vadd.f32 %v599, %v663
      %v670 = vld [vmem:[%s165 + $0x4] sm:$0xc]
      %v671 = vld [vmem:[%s165 + $0x8] sm:$0xf]
      %v672 = vld [vmem:[%s165 + $0xc] sm:$0xf]
      %v673 = vld [vmem:[%s165 + $0x10] sm:$0xf]
      %v674 = vld [vmem:[%s165 + $0x14] sm:$0x3]
      %v675 = vmax.bf16 %v670, 0
      %v676 = vmax.bf16 %v671, 0
      %v677 = vmax.bf16 %v672, 0
      %v678 = vmax.bf16 %v673, 0
      %v679 = vmax.bf16 %v674, 0
      %s680 = scalar_lea.vmem %s1, 48
      %v681 = vld [vmem:[%s680] sm:$0xf]
      %v682 = vld [vmem:[%s680 + $0x4] sm:$0xf]
      %v688 = vunpack.c.l.b16 %v675
      %v689 = vunpack.c.l.b16 %v676
      %v690 = vunpack.c.l.b16 %v677
      %v691 = vunpack.c.l.b16 %v678
      %v692 = vunpack.c.l.b16 %v679
      %v693 = vpack.c.b16 %v689, %v688
      %v694 = vpack.c.b16 %v691, %v690
      %v695 = vpack.c.b16 %v692, %v692
      %vm696 = vcmask 1045504
      %v697 = vrot.slane %v693, 2
      %v698 = vrot.slane %v694, 2
      %v699 = vsel %vm696, %v697, %v698
      %v700 = vrot.slane %v695, 2
      %v701 = vsel %vm696, %v698, %v700
      %v704 = vunpack.c.l.b16 %v681
      %v705 = vunpack.c.l.b16 %v682
      %v706 = vpack.c.b16 %v705, %v704
      %v709 = vsel %vm227, %v699, 0
      %v712 = vsel %vm227, %v701, 0
      %714 = vmatprep.subr.bf16.mxu0 0
      %715 = vmatpush1.bf16.msra.mxu0 0
      %716 = vmatprep.subr.bf16.mxu0 0
      %717 = vmatpush1.bf16.msra.mxu0 0
      %718 = vmatprep.subr.bf16.mxu0 0
      %719 = vmatpush1.bf16.msra.mxu0 0
      %720 = vmatprep.subr.bf16.mxu0 0
      %721 = vmatpush1.bf16.msra.mxu0 0
      %722 = vmatprep.subr.bf16.mxu0 0
      %723 = vmatpush1.bf16.msra.mxu0 0
      %724 = vmatprep.subr.bf16.mxu0 0
      %725 = vmatpush1.bf16.msra.mxu0 0
      %726 = vmatprep.subr.bf16.mxu0 0
      %727 = vmatpush1.bf16.msra.mxu0 0
      %728 = vmatprep.subr.bf16.mxu0 0
      %729 = vmatpush1.bf16.msra.mxu0 %v706
      %730 = vmatprep.subr.bf16.mxu0 0
      %731 = vmatpush2.bf16.msra.mxu0 0
      %732 = vmatprep.subr.bf16.mxu0 0
      %733 = vmatpush2.bf16.msra.mxu0 0
      %734 = vmatprep.subr.bf16.mxu0 0
      %735 = vmatpush2.bf16.msra.mxu0 0
      %736 = vmatprep.subr.bf16.mxu0 0
      %737 = vmatpush2.bf16.msra.mxu0 0
      %738 = vmatprep.subr.bf16.mxu0 0
      %739 = vmatpush2.bf16.msra.mxu0 0
      %740 = vmatprep.subr.bf16.mxu0 0
      %741 = vmatpush2.bf16.msra.mxu0 0
      %742 = vmatprep.subr.bf16.mxu0 0
      %743 = vmatpush2.bf16.msra.mxu0 0
      %744 = vmatprep.subr.bf16.mxu0 0
      %745 = vmatpush2.bf16.msra.mxu0 0
      %746 = vmatprep.mubr.bf16.mxu0 0
      %747 = vmatmul.mubr.bf16.gmra.mxu0 %v709
      %v748 = vpop.f32.mrf.mxu0
      %v749 = vadd.f32 0.0, %v748
      %v750 = vpop.f32.mrf.mxu0
      %v751 = vpop.f32.mrf.mxu0
      %v752 = vadd.f32 0.0, %v751
      %v753 = vpop.f32.mrf.mxu0
      %754 = vmatprep.mubr.bf16.mxu0 0
      %755 = vmatmul.mubr.bf16.gmra.mxu0 %v712
      %v756 = vpop.f32.mrf.mxu0
      %v757 = vadd.f32 0.0, %v756
      %v758 = vpop.f32.mrf.mxu0
      %v759 = vpop.f32.mrf.mxu0
      %v760 = vadd.f32 0.0, %v759
      %v761 = vpop.f32.mrf.mxu0
      %762 = vdwg.mxu0
      %v763 = vadd.f32 %v666, %v749
      %v764 = vadd.f32 %v667, %v752
      %v765 = vadd.f32 %v668, %v757
      %v766 = vadd.f32 %v669, %v760
      %v767 = vld [vmem:[%s165 + $0x14] sm:$0x7]
      %v768 = vmax.bf16 %v767, 0
      %s769 = scalar_lea.vmem %s1, 56
      %v770 = vld [vmem:[%s769] sm:$0xf]
      %v771 = vld [vmem:[%s769 + $0x4] sm:$0xf]
      %v773 = vunpack.c.l.b16 %v768
      %v774 = vpack.c.b16 %v773, %v773
      %vm775 = vsmask.f32 5376
      %v777 = vshrl.u32 %v693, 16
      %v779 = vrot.slane %v777, 2
      %v780 = vshll.u32 %v693, 16
      %v782 = vrot.slane %v780, 3
      %v783 = vor.u32 %v779, %v782
      %v785 = vshrl.u32 %v694, 16
      %v787 = vrot.slane %v785, 2
      %v788 = vshll.u32 %v694, 16
      %v790 = vrot.slane %v788, 3
      %v791 = vor.u32 %v787, %v790
      %v792 = vsel %vm775, %v783, %v791
      %v794 = vshrl.u32 %v774, 16
      %v796 = vrot.slane %v794, 2
      %v797 = vshll.u32 %v774, 16
      %v799 = vrot.slane %v797, 3
      %v800 = vor.u32 %v796, %v799
      %v801 = vsel %vm775, %v791, %v800
      %v804 = vunpack.c.l.b16 %v770
      %v805 = vunpack.c.l.b16 %v771
      %v806 = vpack.c.b16 %v805, %v804
      %v809 = vsel %vm227, %v792, 0
      %v812 = vsel %vm227, %v801, 0
      %814 = vmatprep.subr.bf16.mxu0 0
      %815 = vmatpush1.bf16.msra.mxu0 0
      %816 = vmatprep.subr.bf16.mxu0 0
      %817 = vmatpush1.bf16.msra.mxu0 0
      %818 = vmatprep.subr.bf16.mxu0 0
      %819 = vmatpush1.bf16.msra.mxu0 0
      %820 = vmatprep.subr.bf16.mxu0 0
      %821 = vmatpush1.bf16.msra.mxu0 0
      %822 = vmatprep.subr.bf16.mxu0 0
      %823 = vmatpush1.bf16.msra.mxu0 0
      %824 = vmatprep.subr.bf16.mxu0 0
      %825 = vmatpush1.bf16.msra.mxu0 0
      %826 = vmatprep.subr.bf16.mxu0 0
      %827 = vmatpush1.bf16.msra.mxu0 0
      %828 = vmatprep.subr.bf16.mxu0 0
      %829 = vmatpush1.bf16.msra.mxu0 %v806
      %830 = vmatprep.subr.bf16.mxu0 0
      %831 = vmatpush2.bf16.msra.mxu0 0
      %832 = vmatprep.subr.bf16.mxu0 0
      %833 = vmatpush2.bf16.msra.mxu0 0
      %834 = vmatprep.subr.bf16.mxu0 0
      %835 = vmatpush2.bf16.msra.mxu0 0
      %836 = vmatprep.subr.bf16.mxu0 0
      %837 = vmatpush2.bf16.msra.mxu0 0
      %838 = vmatprep.subr.bf16.mxu0 0
      %839 = vmatpush2.bf16.msra.mxu0 0
      %840 = vmatprep.subr.bf16.mxu0 0
      %841 = vmatpush2.bf16.msra.mxu0 0
      %842 = vmatprep.subr.bf16.mxu0 0
      %843 = vmatpush2.bf16.msra.mxu0 0
      %844 = vmatprep.subr.bf16.mxu0 0
      %845 = vmatpush2.bf16.msra.mxu0 0
      %846 = vmatprep.mubr.bf16.mxu0 0
      %847 = vmatmul.mubr.bf16.gmra.mxu0 %v809
      %v848 = vpop.f32.mrf.mxu0
      %v849 = vadd.f32 0.0, %v848
      %v850 = vpop.f32.mrf.mxu0
      %v851 = vpop.f32.mrf.mxu0
      %v852 = vadd.f32 0.0, %v851
      %v853 = vpop.f32.mrf.mxu0
      %854 = vmatprep.mubr.bf16.mxu0 0
      %855 = vmatmul.mubr.bf16.gmra.mxu0 %v812
      %v856 = vpop.f32.mrf.mxu0
      %v857 = vadd.f32 0.0, %v856
      %v858 = vpop.f32.mrf.mxu0
      %v859 = vpop.f32.mrf.mxu0
      %v860 = vadd.f32 0.0, %v859
      %v861 = vpop.f32.mrf.mxu0
      %862 = vdwg.mxu0
      %v863 = vadd.f32 %v763, %v849
      %v864 = vadd.f32 %v764, %v852
      %v865 = vadd.f32 %v765, %v857
      %v866 = vadd.f32 %v766, %v860
      %v867 = vld [vmem:[%s165 + $0x4] sm:$0x8]
      %v868 = vmax.bf16 %v867, 0
      %s869 = scalar_lea.vmem %s1, 64
      %v870 = vld [vmem:[%s869] sm:$0xf]
      %v871 = vld [vmem:[%s869 + $0x4] sm:$0xf]
      %v873 = vunpack.c.l.b16 %v868
      %v874 = vpack.c.b16 %v689, %v873
      %v875 = vrot.slane %v874, 3
      %v876 = vrot.slane %v694, 3
      %v877 = vsel %vm434, %v875, %v876
      %v878 = vrot.slane %v774, 3
      %v879 = vsel %vm434, %v876, %v878
      %v882 = vunpack.c.l.b16 %v870
      %v883 = vunpack.c.l.b16 %v871
      %v884 = vpack.c.b16 %v883, %v882
      %v887 = vsel %vm227, %v877, 0
      %v890 = vsel %vm227, %v879, 0
      %892 = vmatprep.subr.bf16.mxu0 0
      %893 = vmatpush1.bf16.msra.mxu0 0
      %894 = vmatprep.subr.bf16.mxu0 0
      %895 = vmatpush1.bf16.msra.mxu0 0
      %896 = vmatprep.subr.bf16.mxu0 0
      %897 = vmatpush1.bf16.msra.mxu0 0
      %898 = vmatprep.subr.bf16.mxu0 0
      %899 = vmatpush1.bf16.msra.mxu0 0
      %900 = vmatprep.subr.bf16.mxu0 0
      %901 = vmatpush1.bf16.msra.mxu0 0
      %902 = vmatprep.subr.bf16.mxu0 0
      %903 = vmatpush1.bf16.msra.mxu0 0
      %904 = vmatprep.subr.bf16.mxu0 0
      %905 = vmatpush1.bf16.msra.mxu0 0
      %906 = vmatprep.subr.bf16.mxu0 0
      %907 = vmatpush1.bf16.msra.mxu0 %v884
      %908 = vmatprep.subr.bf16.mxu0 0
      %909 = vmatpush2.bf16.msra.mxu0 0
      %910 = vmatprep.subr.bf16.mxu0 0
      %911 = vmatpush2.bf16.msra.mxu0 0
      %912 = vmatprep.subr.bf16.mxu0 0
      %913 = vmatpush2.bf16.msra.mxu0 0
      %914 = vmatprep.subr.bf16.mxu0 0
      %915 = vmatpush2.bf16.msra.mxu0 0
      %916 = vmatprep.subr.bf16.mxu0 0
      %917 = vmatpush2.bf16.msra.mxu0 0
      %918 = vmatprep.subr.bf16.mxu0 0
      %919 = vmatpush2.bf16.msra.mxu0 0
      %920 = vmatprep.subr.bf16.mxu0 0
      %921 = vmatpush2.bf16.msra.mxu0 0
      %922 = vmatprep.subr.bf16.mxu0 0
      %923 = vmatpush2.bf16.msra.mxu0 0
      %924 = vmatprep.mubr.bf16.mxu0 0
      %925 = vmatmul.mubr.bf16.gmra.mxu0 %v887
      %v926 = vpop.f32.mrf.mxu0
      %v927 = vadd.f32 0.0, %v926
      %v928 = vpop.f32.mrf.mxu0
      %v929 = vpop.f32.mrf.mxu0
      %v930 = vadd.f32 0.0, %v929
      %v931 = vpop.f32.mrf.mxu0
      %932 = vmatprep.mubr.bf16.mxu0 0
      %933 = vmatmul.mubr.bf16.gmra.mxu0 %v890
      %v934 = vpop.f32.mrf.mxu0
      %v935 = vadd.f32 0.0, %v934
      %v936 = vpop.f32.mrf.mxu0
      %v937 = vpop.f32.mrf.mxu0
      %v938 = vadd.f32 0.0, %v937
      %v939 = vpop.f32.mrf.mxu0
      %940 = vdwg.mxu0
      %v941 = vadd.f32 %v863, %v927
      %v942 = vadd.f32 %v864, %v930
      %v943 = vadd.f32 %v865, %v935
      %v944 = vadd.f32 %v866, %v938
      %v945 = vmax.f32 %v941, 0.0
      %v946 = vmax.f32 %v942, 0.0
      %v947 = vmax.f32 %v943, 0.0
      %v948 = vmax.f32 %v944, 0.0
      %v949 = vpack.c.bf16 %v946, %v945
      %v950 = vpack.c.bf16 %v948, %v947
      %v951 = vld [vmem:[%s2] sm:$0xf]
      %v952 = vld [vmem:[%s2 + $0x4] sm:$0xf]
      %v953 = vunpack.c.l.bf16 %v421
      %v954 = vunpack.c.l.bf16 %v173
      %v955 = vunpack.c.l.bf16 %v174
      %v956 = vunpack.c.l.bf16 %v175
      %v957 = vunpack.c.l.bf16 %v505
      %v960 = vunpack.c.l.b16 %v951
      %v961 = vunpack.c.l.b16 %v952
      %v962 = vpack.c.b16 %v961, %v960
      %vm969 = vcmask 1040384
      %v970 = vrot.slane %v953, 7
      %v971 = vrot.slane %v954, 7
      %v972 = vsel %vm969, %v970, %v971
      %v973 = vrot.slane %v955, 7
      %v974 = vsel %vm969, %v971, %v973
      %v975 = vrot.slane %v956, 7
      %v976 = vsel %vm969, %v973, %v975
      %v977 = vrot.slane %v957, 7
      %v978 = vsel %vm969, %v975, %v977
      %v984 = vsel %vm227, %v949, 0
      %v987 = vsel %vm227, %v950, 0
      %989 = vmatprep.subr.bf16.mxu0 0
      %990 = vmatpush1.bf16.msra.mxu0 0
      %991 = vmatprep.subr.bf16.mxu0 0
      %992 = vmatpush1.bf16.msra.mxu0 0
      %993 = vmatprep.subr.bf16.mxu0 0
      %994 = vmatpush1.bf16.msra.mxu0 0
      %995 = vmatprep.subr.bf16.mxu0 0
      %996 = vmatpush1.bf16.msra.mxu0 0
      %997 = vmatprep.subr.bf16.mxu0 0
      %998 = vmatpush1.bf16.msra.mxu0 0
      %999 = vmatprep.subr.bf16.mxu0 0
      %1000 = vmatpush1.bf16.msra.mxu0 0
      %1001 = vmatprep.subr.bf16.mxu0 0
      %1002 = vmatpush1.bf16.msra.mxu0 0
      %1003 = vmatprep.subr.bf16.mxu0 0
      %1004 = vmatpush1.bf16.msra.mxu0 %v962
      %1005 = vmatprep.subr.bf16.mxu0 0
      %1006 = vmatpush2.bf16.msra.mxu0 0
      %1007 = vmatprep.subr.bf16.mxu0 0
      %1008 = vmatpush2.bf16.msra.mxu0 0
      %1009 = vmatprep.subr.bf16.mxu0 0
      %1010 = vmatpush2.bf16.msra.mxu0 0
      %1011 = vmatprep.subr.bf16.mxu0 0
      %1012 = vmatpush2.bf16.msra.mxu0 0
      %1013 = vmatprep.subr.bf16.mxu0 0
      %1014 = vmatpush2.bf16.msra.mxu0 0
      %1015 = vmatprep.subr.bf16.mxu0 0
      %1016 = vmatpush2.bf16.msra.mxu0 0
      %1017 = vmatprep.subr.bf16.mxu0 0
      %1018 = vmatpush2.bf16.msra.mxu0 0
      %1019 = vmatprep.subr.bf16.mxu0 0
      %1020 = vmatpush2.bf16.msra.mxu0 0
      %1021 = vmatprep.mubr.bf16.mxu0 0
      %1022 = vmatmul.mubr.bf16.gmra.mxu0 %v984
      %v1023 = vpop.f32.mrf.mxu0
      %v1024 = vadd.f32 %v972, %v1023
      %v1025 = vpop.f32.mrf.mxu0
      %v1026 = vpop.f32.mrf.mxu0
      %v1027 = vadd.f32 %v974, %v1026
      %v1028 = vpop.f32.mrf.mxu0
      %1029 = vmatprep.mubr.bf16.mxu0 0
      %1030 = vmatmul.mubr.bf16.gmra.mxu0 %v987
      %v1031 = vpop.f32.mrf.mxu0
      %v1032 = vadd.f32 %v976, %v1031
      %v1033 = vpop.f32.mrf.mxu0
      %v1034 = vpop.f32.mrf.mxu0
      %v1035 = vadd.f32 %v978, %v1034
      %v1036 = vpop.f32.mrf.mxu0
      %1037 = vdwg.mxu0
      %v1038 = vpack.c.bf16 %v1027, %v1024
      %v1039 = vpack.c.bf16 %v1035, %v1032
      %v1042 = vunpack.c.l.b16 %v1038
      %v1043 = vunpack.c.h.b16 %v1038
      %v1044 = vunpack.c.l.b16 %v1039
      %v1045 = vunpack.c.h.b16 %v1039
      %v1046 = vpack.c.b16 %v1042, %v1042
      %v1047 = vpack.c.b16 %v1043, %v1043
      %v1048 = vpack.c.b16 %v1044, %v1044
      %v1049 = vpack.c.b16 %v1045, %v1045
      %vm1054 = vcmask 125952
      %1055 = vst.msk [vmem:[%s170] sm:$0xf] %vm1054, %v1046
      %1056 = vst.msk [vmem:[%s170 + $0x4] sm:$0xf] %vm1054, %v1047
      %1057 = vst.msk [vmem:[%s170 + $0x8] sm:$0xf] %vm1054, %v1048
      %1058 = vst.msk [vmem:[%s170 + $0xc] sm:$0xf] %vm1054, %v1049
      %p1059 = scmp.lt.s32.totalorder %s14, 1
      %s1060 = scalar_select %p1059, %s14, 1
      %s1061 = smul.addr %s1060, 4
      %s1062 = smul.addr %s1061, 4
      %s1063 = scalar_lea.vmem %s3, %s1062
      // Predicated region
      $region33: #{encoder_forward.14} parent=31 // pred_check
        %p1064 = pneg %p100
      $region34: #{encoder_forward.14} parent=31 // pred_check_branch
        %1066 = sbr.rel (%p1064) target = $region36
      $region35: #{encoder_forward.14} parent=31 // pred_region
        _
      $region36: #{encoder_forward.14} parent=31 // pred_fallthru
        _
    $region32: #{encoder_forward.14} parent=5 // pred_fallthru
      _
    %p1067 = scmp.le.s32.totalorder 2, %s9
    // Predicated region
    $region37: #{encoder_forward.14} parent=5 // pred_check
      %p1068 = pneg %p1067
    $region38: #{encoder_forward.14} parent=5 // pred_check_branch
      %1070 = sbr.rel (%p1068) target = $region40
    $region39: #{encoder_forward.14} parent=5 // pred_region
      %s1071 = ssub.s32 %s9, 2
      // Predicated region
      $region41: #{encoder_forward.14} parent=39 // pred_check
        %p1072 = pneg %p106
      $region42: #{encoder_forward.14} parent=39 // pred_check_branch
        %1074 = sbr.rel (%p1072) target = $region44
      $region43: #{encoder_forward.14} parent=39 // pred_region
        %p1075 = scmp.lt.s32.totalorder %s15, 1
        %s1076 = scalar_select %p1075, %s15, 1
        %s1077 = smul.addr %s1076, 4
        %s1078 = smul.addr %s1077, 4
        %s1079 = scalar_lea.vmem %s3, %s1078
      $region44: #{encoder_forward.14} parent=39 // pred_fallthru
        _
    $region40: #{encoder_forward.14} parent=5 // pred_fallthru
      _
  $region6: #{encoder_forward.14} parent=0 // loop_footer
    %s13 = sadd.s32 1, %s9
  $region7: #{encoder_forward.14} parent=0 // loop_footer_branch
    %8 = sbr.rel target = $region3
  $region8: #{encoder_forward.14} parent=0 // loop_exit
    _

// kernel: encoder_forward.13
$region0: #{encoder_forward.13}
  #allocation0 [shape = 'u32[]', space=smem, size = 0x4, offset = 0x4, fixed_abs, tag = 'smem constant byte address 0x4 - core index']
  #allocation1 [shape = 'u32[144,128]{1,0:T(1,128)}', space=vmem, size = 0x12000, scoped, tag = 'internal scratch']
  %s0 = inlined_call_operand.vmem [shape: bf16[2,48,16], index: 0, kind: input, shape index: {}]
  %s1 = inlined_call_operand.vmem [shape: bf16[9,16,16], index: 1, kind: input, shape index: {}]
  %s2 = inlined_call_operand.vmem [shape: bf16[16,16], index: 2, kind: input, shape index: {}]
  %s3 = inlined_call_operand.vmem [shape: bf16[2,32,16], index: 3, kind: output, shape index: {}]
  %s4 = sld [smem:[#allocation0]]
  $region45: #{encoder_forward.13} parent=0
    _
  %s6 = ssub.s32 1, %s4
  %s7 = scalar_select 0, %s6, %s4
  loop: start=0, step=1, limit=4
  $region2: #{encoder_forward.13} parent=0 // loop_pre_header
    _
  $region3: #{encoder_forward.13} parent=0 // loop_header
    %s9 = sphi 0, %s13
    %p10 = scmp.ge.s32.totalorder %s9, 4
    %s19 = sphi 0, %s21
    %s22 = sphi 0, %s19
    %s23 = sphi 0, %s22
    %s39 = sphi 0, %s23
    %s43 = sphi 0, %s43
    %s45 = sphi 0, %s43
    %s46 = sphi 0, %s45
    %s60 = sphi 0, %s46
    %s64 = sphi 0, %s64
    %s66 = sphi 0, %s64
    %s67 = sphi 0, %s66
    %s81 = sphi 0, %s67
    %s87 = sphi 0, %s89
    %s90 = sphi 0, %s87
    %s91 = sphi 0, %s90
    %s107 = sphi 0, %s91
  $region4: #{encoder_forward.13} parent=0 // loop_header_branch
    %12 = sbr.rel (%p10) target = $region8
  $region5: #{encoder_forward.13} parent=0 // loop_body
    %s14 = ssub.s32 %s9, 1
    %s15 = ssub.s32 %s9, 2
    %s16 = sadd.s32 %s9, 1
    %s17 = ssub.s32 %s9, %s16
    %p18 = scmp.eq.s32.totalorder %s17, 0
    %s20 = sadd.s32 %s19, 1
    %s21 = scalar_select %p18, %s19, %s20
    %p24 = pneg %p18
    %p25 = scmp.eq.s32.totalorder %s9, 1
    %p26 = por %p24, %p25
    %p27 = scmp.ne.s32.totalorder %s19, %s22
    %p28 = scmp.eq.s32.totalorder %s9, 0
    %p29 = por %p27, %p28
    %p30 = scmp.ne.s32.totalorder %s19, %s22
    %p31 = scmp.eq.s32.totalorder %s14, 1
    %p32 = por %p30, %p31
    %p33 = scmp.ne.s32.totalorder %s22, %s23
    %p34 = scmp.eq.s32.totalorder %s14, 0
    %p35 = por %p33, %p34
    %p36 = scmp.ne.s32.totalorder %s22, %s23
    %p37 = scmp.eq.s32.totalorder %s15, 1
    %p38 = por %p36, %p37
    %p40 = scmp.ne.s32.totalorder %s23, %s39
    %p41 = scmp.eq.s32.totalorder %s15, 0
    %p42 = por %p40, %p41
    %s44 = sadd.s32 %s43, 1
    %p47 = scmp.eq.s32.totalorder %s9, 1
    %p48 = scmp.ne.s32.totalorder %s43, %s45
    %p49 = scmp.eq.s32.totalorder %s9, 0
    %p50 = por %p48, %p49
    %p51 = scmp.ne.s32.totalorder %s43, %s45
    %p52 = scmp.eq.s32.totalorder %s14, 1
    %p53 = por %p51, %p52
    %p54 = scmp.ne.s32.totalorder %s45, %s46
    %p55 = scmp.eq.s32.totalorder %s14, 0
    %p56 = por %p54, %p55
    %p57 = scmp.ne.s32.totalorder %s45, %s46
    %p58 = scmp.eq.s32.totalorder %s15, 1
    %p59 = por %p57, %p58
    %p61 = scmp.ne.s32.totalorder %s46, %s60
    %p62 = scmp.eq.s32.totalorder %s15, 0
    %p63 = por %p61, %p62
    %s65 = sadd.s32 %s64, 1
    %p68 = scmp.eq.s32.totalorder %s9, 1
    %p69 = scmp.ne.s32.totalorder %s64, %s66
    %p70 = scmp.eq.s32.totalorder %s9, 0
    %p71 = por %p69, %p70
    %p72 = scmp.ne.s32.totalorder %s64, %s66
    %p73 = scmp.eq.s32.totalorder %s14, 1
    %p74 = por %p72, %p73
    %p75 = scmp.ne.s32.totalorder %s66, %s67
    %p76 = scmp.eq.s32.totalorder %s14, 0
    %p77 = por %p75, %p76
    %p78 = scmp.ne.s32.totalorder %s66, %s67
    %p79 = scmp.eq.s32.totalorder %s15, 1
    %p80 = por %p78, %p79
    %p82 = scmp.ne.s32.totalorder %s67, %s81
    %p83 = scmp.eq.s32.totalorder %s15, 0
    %p84 = por %p82, %p83
    %s85 = ssub.s32 %s9, %s16
    %p86 = scmp.eq.s32.totalorder %s85, 0
    %s88 = sadd.s32 %s87, 1
    %s89 = scalar_select %p86, %s87, %s88
    %p92 = pneg %p86
    %p93 = scmp.eq.s32.totalorder %s9, 1
    %p94 = por %p92, %p93
    %p95 = scmp.ne.s32.totalorder %s87, %s90
    %p96 = scmp.eq.s32.totalorder %s9, 0
    %p97 = por %p95, %p96
    %p98 = scmp.ne.s32.totalorder %s87, %s90
    %p99 = scmp.eq.s32.totalorder %s14, 1
    %p100 = por %p98, %p99
    %p101 = scmp.ne.s32.totalorder %s90, %s91
    %p102 = scmp.eq.s32.totalorder %s14, 0
    %p103 = por %p101, %p102
    %p104 = scmp.ne.s32.totalorder %s90, %s91
    %p105 = scmp.eq.s32.totalorder %s15, 1
    %p106 = por %p104, %p105
    %p108 = scmp.ne.s32.totalorder %s91, %s107
    %p109 = scmp.eq.s32.totalorder %s15, 0
    %p110 = por %p108, %p109
    %p111 = scmp.le.s32.totalorder 1, %s9
    %p112 = scmp.lt.s32.totalorder %s9, 3
    %p113 = pnand %p111, %p112
    %p114 = pneg %p113
    // Predicated region
    $region9: #{encoder_forward.13} parent=5 // pred_check
      _
    $region10: #{encoder_forward.13} parent=5 // pred_check_branch
      %116 = sbr.rel (%p113) target = $region12
    $region11: #{encoder_forward.13} parent=5 // pred_region
      %s117 = ssub.s32 %s9, 1
      // Predicated region
      $region13: #{encoder_forward.13} parent=11 // pred_check
        %p118 = pneg %p56
      $region14: #{encoder_forward.13} parent=11 // pred_check_branch
        %120 = sbr.rel (%p118) target = $region16
      $region15: #{encoder_forward.13} parent=11 // pred_region
        _
      $region16: #{encoder_forward.13} parent=11 // pred_fallthru
        _
      // Predicated region
      $region17: #{encoder_forward.13} parent=11 // pred_check
        %p121 = pneg %p77
      $region18: #{encoder_forward.13} parent=11 // pred_check_branch
        %123 = sbr.rel (%p121) target = $region20
      $region19: #{encoder_forward.13} parent=11 // pred_region
        _
      $region20: #{encoder_forward.13} parent=11 // pred_fallthru
        _
    $region12: #{encoder_forward.13} parent=5 // pred_fallthru
      _
    %p124 = scmp.lt.s32.totalorder %s9, 2
    // Predicated region
    $region21: #{encoder_forward.13} parent=5 // pred_check
      %p125 = pneg %p124
    $region22: #{encoder_forward.13} parent=5 // pred_check_branch
      %127 = sbr.rel (%p125) target = $region24
    $region23: #{encoder_forward.13} parent=5 // pred_region
      // Predicated region
      $region25: #{encoder_forward.13} parent=23 // pred_check
        %p128 = pneg %p29
      $region26: #{encoder_forward.13} parent=23 // pred_check_branch
        %130 = sbr.rel (%p128) target = $region28
      $region27: #{encoder_forward.13} parent=23 // pred_region
        %p131 = scmp.lt.s32.totalorder %s9, 1
        %s132 = scalar_select %p131, %s9, 1
        %s133 = smul.addr %s132, 6
        %s134 = smul.addr %s133, 4
        %s135 = scalar_lea.vmem %s0, %s134
      $region28: #{encoder_forward.13} parent=23 // pred_fallthru
        _
    $region24: #{encoder_forward.13} parent=5 // pred_fallthru
      _
    %p136 = scmp.le.s32.totalorder 1, %s9
    %p137 = scmp.lt.s32.totalorder %s9, 3
    %p138 = pnand %p136, %p137
    %p139 = pneg %p138
    // Predicated region
    $region29: #{encoder_forward.13} parent=5 // pred_check
      _
    $region30: #{encoder_forward.13} parent=5 // pred_check_branch
      %141 = sbr.rel (%p138) target = $region32
    $region31: #{encoder_forward.13} parent=5 // pred_region
      %s142 = ssub.s32 %s9, 1
      %p143 = scmp.lt.s32.totalorder %s14, 1
      %s144 = scalar_select %p143, %s14, 1
      %s145 = smul.addr %s144, 6
      %s146 = smul.addr %s145, 4
      %s147 = scalar_lea.vmem %s0, %s146
      %p148 = pneg %p35
      %p149 = pneg %p32
      %p150 = pneg %p56
      %p151 = pneg %p53
      %p152 = pneg %p77
      %p153 = pneg %p74
      %p154 = pneg %p103
      %p155 = pneg %p100
      %p156 = scmp.lt.s32.totalorder %s14, 1
      %s157 = scalar_select %p156, %s14, 1
      %s158 = smul.addr %s157, 4
      %s159 = smul.addr %s158, 4
      %s160 = scalar_lea.vmem %s3, %s159
      %p161 = scmp.lt.s32.totalorder %s14, 1
      %s162 = scalar_select %p161, %s14, 1
      %s163 = smul.addr %s162, 6
      %s164 = smul.addr %s163, 4
      %s165 = scalar_lea.vmem %s0, %s164
      %p166 = scmp.lt.s32.totalorder %s14, 1
      %s167 = scalar_select %p166, %s14, 1
      %s168 = smul.addr %s167, 4
      %s169 = smul.addr %s168, 4
      %s170 = scalar_lea.vmem %s3, %s169
      %v172 = vld [vmem:[%s165] sm:$0xf]
      %v173 = vld [vmem:[%s165 + $0x4] sm:$0xf]
      %v174 = vld [vmem:[%s165 + $0x8] sm:$0xf]
      %v175 = vld [vmem:[%s165 + $0xc] sm:$0xf]
      %v176 = vmax.bf16 %v172, 0
      %v177 = vmax.bf16 %v173, 0
      %v178 = vmax.bf16 %v174, 0
      %v179 = vmax.bf16 %v175, 0
      %v180 = vld [vmem:[%s1] sm:$0xf]
      %v181 = vld [vmem:[%s1 + $0x4] sm:$0xf]
      %v182 = vld [vmem:[%s165 + $0x10] sm:$0x1]
      %v183 = vmax.bf16 %v182, 0
      %s184 = scalar_lea.vmem %s1, 8
      %v185 = vld [vmem:[%s184] sm:$0xf]
      %v186 = vld [vmem:[%s184 + $0x4] sm:$0xf]
      %v192 = vunpack.c.l.b16 %v176
      %v193 = vunpack.c.l.b16 %v177
      %v194 = vunpack.c.l.b16 %v178
      %v195 = vunpack.c.l.b16 %v179
      %v196 = vunpack.c.l.b16 %v183
      %v197 = vpack.c.b16 %v193, %v192
      %v198 = vpack.c.b16 %v195, %v194
      %v199 = vpack.c.b16 %v196, %v196
      %vm200 = vsmask.f32 7424
      %v202 = vshrl.u32 %v197, 16
      %v204 = vshll.u32 %v197, 16
      %v206 = vrot.slane %v204, 1
      %v207 = vor.u32 %v202, %v206
      %v209 = vshll.u32 %v198, 16
      %v211 = vrot.slane %v209, 1
      %v212 = vsel %vm200, %v207, %v211
      %v213 = vshrl.u32 %v198, 16
      %v215 = vor.u32 %v213, %v211
      %v217 = vshll.u32 %v199, 16
      %v219 = vrot.slane %v217, 1
      %v220 = vsel %vm200, %v215, %v219
      %v223 = vunpack.c.l.b16 %v185
      %v224 = vunpack.c.l.b16 %v186
      %v225 = vpack.c.b16 %v224, %v223
      %vm227 = vcmask 130048
      %v229 = vsel %vm227, %v212, 0
      %v232 = vsel %vm227, %v220, 0
      %234 = vmatprep.subr.bf16.mxu0 0
      %235 = vmatpush1.bf16.msra.mxu0 0
      %236 = vmatprep.subr.bf16.mxu0 0
      %237 = vmatpush1.bf16.msra.mxu0 0
      %238 = vmatprep.subr.bf16.mxu0 0
      %239 = vmatpush1.bf16.msra.mxu0 0
      %240 = vmatprep.subr.bf16.mxu0 0
      %241 = vmatpush1.bf16.msra.mxu0 0
      %242 = vmatprep.subr.bf16.mxu0 0
      %243 = vmatpush1.bf16.msra.mxu0 0
      %244 = vmatprep.subr.bf16.mxu0 0
      %245 = vmatpush1.bf16.msra.mxu0 0
      %246 = vmatprep.subr.bf16.mxu0 0
      %247 = vmatpush1.bf16.msra.mxu0 0
      %248 = vmatprep.subr.bf16.mxu0 0
      %249 = vmatpush1.bf16.msra.mxu0 %v225
      %250 = vmatprep.subr.bf16.mxu0 0
      %251 = vmatpush2.bf16.msra.mxu0 0
      %252 = vmatprep.subr.bf16.mxu0 0
      %253 = vmatpush2.bf16.msra.mxu0 0
      %254 = vmatprep.subr.bf16.mxu0 0
      %255 = vmatpush2.bf16.msra.mxu0 0
      %256 = vmatprep.subr.bf16.mxu0 0
      %257 = vmatpush2.bf16.msra.mxu0 0
      %258 = vmatprep.subr.bf16.mxu0 0
      %259 = vmatpush2.bf16.msra.mxu0 0
      %260 = vmatprep.subr.bf16.mxu0 0
      %261 = vmatpush2.bf16.msra.mxu0 0
      %262 = vmatprep.subr.bf16.mxu0 0
      %263 = vmatpush2.bf16.msra.mxu0 0
      %264 = vmatprep.subr.bf16.mxu0 0
      %265 = vmatpush2.bf16.msra.mxu0 0
      %266 = vmatprep.mubr.bf16.mxu0 0
      %267 = vmatmul.mubr.bf16.gmra.mxu0 %v229
      %v268 = vpop.f32.mrf.mxu0
      %v269 = vadd.f32 0.0, %v268
      %v270 = vpop.f32.mrf.mxu0
      %v271 = vpop.f32.mrf.mxu0
      %v272 = vadd.f32 0.0, %v271
      %v273 = vpop.f32.mrf.mxu0
      %274 = vmatprep.mubr.bf16.mxu0 0
      %275 = vmatmul.mubr.bf16.gmra.mxu0 %v232
      %v276 = vpop.f32.mrf.mxu0
      %v277 = vadd.f32 0.0, %v276
      %v278 = vpop.f32.mrf.mxu0
      %v279 = vpop.f32.mrf.mxu0
      %v280 = vadd.f32 0.0, %v279
      %v281 = vpop.f32.mrf.mxu0
      %282 = vdwg.mxu0
      %v285 = vunpack.c.l.b16 %v180
      %v286 = vunpack.c.l.b16 %v181
      %v287 = vpack.c.b16 %v286, %v285
      %v289 = vsel %vm227, %v197, 0
      %v291 = vsel %vm227, %v198, 0
      %293 = vmatprep.subr.bf16.mxu0 0
      %294 = vmatpush1.bf16.msra.mxu0 0
      %295 = vmatprep.subr.bf16.mxu0 0
      %296 = vmatpush1.bf16.msra.mxu0 0
      %297 = vmatprep.subr.bf16.mxu0 0
      %298 = vmatpush1.bf16.msra.mxu0 0
      %299 = vmatprep.subr.bf16.mxu0 0
      %300 = vmatpush1.bf16.msra.mxu0 0
      %301 = vmatprep.subr.bf16.mxu0 0
      %302 = vmatpush1.bf16.msra.mxu0 0
      %303 = vmatprep.subr.bf16.mxu0 0
      %304 = vmatpush1.bf16.msra.mxu0 0
      %305 = vmatprep.subr.bf16.mxu0 0
      %306 = vmatpush1.bf16.msra.mxu0 0
      %307 = vmatprep.subr.bf16.mxu0 0
      %308 = vmatpush1.bf16.msra.mxu0 %v287
      %309 = vmatprep.subr.bf16.mxu0 0
      %310 = vmatpush2.bf16.msra.mxu0 0
      %311 = vmatprep.subr.bf16.mxu0 0
      %312 = vmatpush2.bf16.msra.mxu0 0
      %313 = vmatprep.subr.bf16.mxu0 0
      %314 = vmatpush2.bf16.msra.mxu0 0
      %315 = vmatprep.subr.bf16.mxu0 0
      %316 = vmatpush2.bf16.msra.mxu0 0
      %317 = vmatprep.subr.bf16.mxu0 0
      %318 = vmatpush2.bf16.msra.mxu0 0
      %319 = vmatprep.subr.bf16.mxu0 0
      %320 = vmatpush2.bf16.msra.mxu0 0
      %321 = vmatprep.subr.bf16.mxu0 0
      %322 = vmatpush2.bf16.msra.mxu0 0
      %323 = vmatprep.subr.bf16.mxu0 0
      %324 = vmatpush2.bf16.msra.mxu0 0
      %325 = vmatprep.mubr.bf16.mxu0 0
      %326 = vmatmul.mubr.bf16.gmra.mxu0 %v289
      %v327 = vpop.f32.mrf.mxu0
      %v328 = vadd.f32 %v269, %v327
      %v329 = vpop.f32.mrf.mxu0
      %v330 = vpop.f32.mrf.mxu0
      %v331 = vadd.f32 %v272, %v330
      %v332 = vpop.f32.mrf.mxu0
      %333 = vmatprep.mubr.bf16.mxu0 0
      %334 = vmatmul.mubr.bf16.gmra.mxu0 %v291
      %v335 = vpop.f32.mrf.mxu0
      %v336 = vadd.f32 %v277, %v335
      %v337 = vpop.f32.mrf.mxu0
      %v338 = vpop.f32.mrf.mxu0
      %v339 = vadd.f32 %v280, %v338
      %v340 = vpop.f32.mrf.mxu0
      %341 = vdwg.mxu0
      %v342 = vld [vmem:[%s165] sm:$0xe]
      %v343 = vmax.bf16 %v342, 0
      %s344 = scalar_lea.vmem %s1, 16
      %v345 = vld [vmem:[%s344] sm:$0xf]
      %v346 = vld [vmem:[%s344 + $0x4] sm:$0xf]
      %v348 = vunpack.c.l.b16 %v343
      %v349 = vpack.c.b16 %v193, %v348
      %vm350 = vcmask 1046528
      %v351 = vrot.slane %v349, 1
      %v352 = vrot.slane %v198, 1
      %v353 = vsel %vm350, %v351, %v352
      %v354 = vrot.slane %v199, 1
      %v355 = vsel %vm350, %v352, %v354
      %v358 = vunpack.c.l.b16 %v345
      %v359 = vunpack.c.l.b16 %v346
      %v360 = vpack.c.b16 %v359, %v358
      %v363 = vsel %vm227, %v353, 0
      %v366 = vsel %vm227, %v355, 0
      %368 = vmatprep.subr.bf16.mxu0 0
      %369 = vmatpush1.bf16.msra.mxu0 0
      %370 = vmatprep.subr.bf16.mxu0 0
      %371 = vmatpush1.bf16.msra.mxu0 0
      %372 = vmatprep.subr.bf16.mxu0 0
      %373 = vmatpush1.bf16.msra.mxu0 0
      %374 = vmatprep.subr.bf16.mxu0 0
      %375 = vmatpush1.bf16.msra.mxu0 0
      %376 = vmatprep.subr.bf16.mxu0 0
      %377 = vmatpush1.bf16.msra.mxu0 0
      %378 = vmatprep.subr.bf16.mxu0 0
      %379 = vmatpush1.bf16.msra.mxu0 0
      %380 = vmatprep.subr.bf16.mxu0 0
      %381 = vmatpush1.bf16.msra.mxu0 0
      %382 = vmatprep.subr.bf16.mxu0 0
      %383 = vmatpush1.bf16.msra.mxu0 %v360
      %384 = vmatprep.subr.bf16.mxu0 0
      %385 = vmatpush2.bf16.msra.mxu0 0
      %386 = vmatprep.subr.bf16.mxu0 0
      %387 = vmatpush2.bf16.msra.mxu0 0
      %388 = vmatprep.subr.bf16.mxu0 0
      %389 = vmatpush2.bf16.msra.mxu0 0
      %390 = vmatprep.subr.bf16.mxu0 0
      %391 = vmatpush2.bf16.msra.mxu0 0
      %392 = vmatprep.subr.bf16.mxu0 0
      %393 = vmatpush2.bf16.msra.mxu0 0
      %394 = vmatprep.subr.bf16.mxu0 0
      %395 = vmatpush2.bf16.msra.mxu0 0
      %396 = vmatprep.subr.bf16.mxu0 0
      %397 = vmatpush2.bf16.msra.mxu0 0
      %398 = vmatprep.subr.bf16.mxu0 0
      %399 = vmatpush2.bf16.msra.mxu0 0
      %400 = vmatprep.mubr.bf16.mxu0 0
      %401 = vmatmul.mubr.bf16.gmra.mxu0 %v363
      %v402 = vpop.f32.mrf.mxu0
      %v403 = vadd.f32 0.0, %v402
      %v404 = vpop.f32.mrf.mxu0
      %v405 = vpop.f32.mrf.mxu0
      %v406 = vadd.f32 0.0, %v405
      %v407 = vpop.f32.mrf.mxu0
      %408 = vmatprep.mubr.bf16.mxu0 0
      %409 = vmatmul.mubr.bf16.gmra.mxu0 %v366
      %v410 = vpop.f32.mrf.mxu0
      %v411 = vadd.f32 0.0, %v410
      %v412 = vpop.f32.mrf.mxu0
      %v413 = vpop.f32.mrf.mxu0
      %v414 = vadd.f32 0.0, %v413
      %v415 = vpop.f32.mrf.mxu0
      %416 = vdwg.mxu0
      %v417 = vadd.f32 %v328, %v403
      %v418 = vadd.f32 %v331, %v406
      %v419 = vadd.f32 %v336, %v411
      %v420 = vadd.f32 %v339, %v414
      %v421 = vld [vmem:[%s165] sm:$0x8]
      %v422 = vld [vmem:[%s165 + $0x10] sm:$0x7]
      %v423 = vmax.bf16 %v421, 0
      %v424 = vmax.bf16 %v422, 0
      %s425 = scalar_lea.vmem %s1, 24
      %v426 = vld [vmem:[%s425] sm:$0xf]
      %v427 = vld [vmem:[%s425 + $0x4] sm:$0xf]
      %v430 = vunpack.c.l.b16 %v423
      %v431 = vunpack.c.l.b16 %v424
      %v432 = vpack.c.b16 %v193, %v430
      %v433 = vpack.c.b16 %v431, %v431
      %vm434 = vcmask 1044480
      %v435 = vrot.slane %v432, 3
      %v436 = vrot.slane %v198, 3
      %v437 = vsel %vm434, %v435, %v436
      %v438 = vrot.slane %v433, 3
      %v439 = vsel %vm434, %v436, %v438
      %v442 = vunpack.c.l.b16 %v426
      %v443 = vunpack.c.l.b16 %v427
      %v444 = vpack.c.b16 %v443, %v442
      %v447 = vsel %vm227, %v437, 0
      %v450 = vsel %vm227, %v439, 0
      %452 = vmatprep.subr.bf16.mxu0 0
      %453 = vmatpush1.bf16.msra.mxu0 0
      %454 = vmatprep.subr.bf16.mxu0 0
      %455 = vmatpush1.bf16.msra.mxu0 0
      %456 = vmatprep.subr.bf16.mxu0 0
      %457 = vmatpush1.bf16.msra.mxu0 0
      %458 = vmatprep.subr.bf16.mxu0 0
      %459 = vmatpush1.bf16.msra.mxu0 0
      %460 = vmatprep.subr.bf16.mxu0 0
      %461 = vmatpush1.bf16.msra.mxu0 0
      %462 = vmatprep.subr.bf16.mxu0 0
      %463 = vmatpush1.bf16.msra.mxu0 0
      %464 = vmatprep.subr.bf16.mxu0 0
      %465 = vmatpush1.bf16.msra.mxu0 0
      %466 = vmatprep.subr.bf16.mxu0 0
      %467 = vmatpush1.bf16.msra.mxu0 %v444
      %468 = vmatprep.subr.bf16.mxu0 0
      %469 = vmatpush2.bf16.msra.mxu0 0
      %470 = vmatprep.subr.bf16.mxu0 0
      %471 = vmatpush2.bf16.msra.mxu0 0
      %472 = vmatprep.subr.bf16.mxu0 0
      %473 = vmatpush2.bf16.msra.mxu0 0
      %474 = vmatprep.subr.bf16.mxu0 0
      %475 = vmatpush2.bf16.msra.mxu0 0
      %476 = vmatprep.subr.bf16.mxu0 0
      %477 = vmatpush2.bf16.msra.mxu0 0
      %478 = vmatprep.subr.bf16.mxu0 0
      %479 = vmatpush2.bf16.msra.mxu0 0
      %480 = vmatprep.subr.bf16.mxu0 0
      %481 = vmatpush2.bf16.msra.mxu0 0
      %482 = vmatprep.subr.bf16.mxu0 0
      %483 = vmatpush2.bf16.msra.mxu0 0
      %484 = vmatprep.mubr.bf16.mxu0 0
      %485 = vmatmul.mubr.bf16.gmra.mxu0 %v447
      %v486 = vpop.f32.mrf.mxu0
      %v487 = vadd.f32 0.0, %v486
      %v488 = vpop.f32.mrf.mxu0
      %v489 = vpop.f32.mrf.mxu0
      %v490 = vadd.f32 0.0, %v489
      %v491 = vpop.f32.mrf.mxu0
      %492 = vmatprep.mubr.bf16.mxu0 0
      %493 = vmatmul.mubr.bf16.gmra.mxu0 %v450
      %v494 = vpop.f32.mrf.mxu0
      %v495 = vadd.f32 0.0, %v494
      %v496 = vpop.f32.mrf.mxu0
      %v497 = vpop.f32.mrf.mxu0
      %v498 = vadd.f32 0.0, %v497
      %v499 = vpop.f32.mrf.mxu0
      %500 = vdwg.mxu0
      %v501 = vadd.f32 %v417, %v487
      %v502 = vadd.f32 %v418, %v490
      %v503 = vadd.f32 %v419, %v495
      %v504 = vadd.f32 %v420, %v498
      %v505 = vld [vmem:[%s165 + $0x10] sm:$0xf]
      %v506 = vmax.bf16 %v505, 0
      %s507 = scalar_lea.vmem %s1, 32
      %v508 = vld [vmem:[%s507] sm:$0xf]
      %v509 = vld [vmem:[%s507 + $0x4] sm:$0xf]
      %v511 = vunpack.c.l.b16 %v506
      %v512 = vpack.c.b16 %v511, %v511
      %vm513 = vsmask.f32 4352
      %v515 = vshrl.u32 %v432, 16
      %v517 = vrot.slane %v515, 3
      %v518 = vshll.u32 %v432, 16
      %v520 = vrot.slane %v518, 4
      %v521 = vor.u32 %v517, %v520
      %v522 = vrot.slane %v213, 3
      %v523 = vrot.slane %v209, 4
      %v524 = vor.u32 %v522, %v523
      %v525 = vsel %vm513, %v521, %v524
      %v527 = vshrl.u32 %v512, 16
      %v529 = vrot.slane %v527, 3
      %v530 = vshll.u32 %v512, 16
      %v532 = vrot.slane %v530, 4
      %v533 = vor.u32 %v529, %v532
      %v534 = vsel %vm513, %v524, %v533
      %v537 = vunpack.c.l.b16 %v508
      %v538 = vunpack.c.l.b16 %v509
      %v539 = vpack.c.b16 %v538, %v537
      %v542 = vsel %vm227, %v525, 0
      %v545 = vsel %vm227, %v534, 0
      %547 = vmatprep.subr.bf16.mxu0 0
      %548 = vmatpush1.bf16.msra.mxu0 0
      %549 = vmatprep.subr.bf16.mxu0 0
      %550 = vmatpush1.bf16.msra.mxu0 0
      %551 = vmatprep.subr.bf16.mxu0 0
      %552 = vmatpush1.bf16.msra.mxu0 0
      %553 = vmatprep.subr.bf16.mxu0 0
      %554 = vmatpush1.bf16.msra.mxu0 0
      %555 = vmatprep.subr.bf16.mxu0 0
      %556 = vmatpush1.bf16.msra.mxu0 0
      %557 = vmatprep.subr.bf16.mxu0 0
      %558 = vmatpush1.bf16.msra.mxu0 0
      %559 = vmatprep.subr.bf16.mxu0 0
      %560 = vmatpush1.bf16.msra.mxu0 0
      %561 = vmatprep.subr.bf16.mxu0 0
      %562 = vmatpush1.bf16.msra.mxu0 %v539
      %563 = vmatprep.subr.bf16.mxu0 0
      %564 = vmatpush2.bf16.msra.mxu0 0
      %565 = vmatprep.subr.bf16.mxu0 0
      %566 = vmatpush2.bf16.msra.mxu0 0
      %567 = vmatprep.subr.bf16.mxu0 0
      %568 = vmatpush2.bf16.msra.mxu0 0
      %569 = vmatprep.subr.bf16.mxu0 0
      %570 = vmatpush2.bf16.msra.mxu0 0
      %571 = vmatprep.subr.bf16.mxu0 0
      %572 = vmatpush2.bf16.msra.mxu0 0
      %573 = vmatprep.subr.bf16.mxu0 0
      %574 = vmatpush2.bf16.msra.mxu0 0
      %575 = vmatprep.subr.bf16.mxu0 0
      %576 = vmatpush2.bf16.msra.mxu0 0
      %577 = vmatprep.subr.bf16.mxu0 0
      %578 = vmatpush2.bf16.msra.mxu0 0
      %579 = vmatprep.mubr.bf16.mxu0 0
      %580 = vmatmul.mubr.bf16.gmra.mxu0 %v542
      %v581 = vpop.f32.mrf.mxu0
      %v582 = vadd.f32 0.0, %v581
      %v583 = vpop.f32.mrf.mxu0
      %v584 = vpop.f32.mrf.mxu0
      %v585 = vadd.f32 0.0, %v584
      %v586 = vpop.f32.mrf.mxu0
      %587 = vmatprep.mubr.bf16.mxu0 0
      %588 = vmatmul.mubr.bf16.gmra.mxu0 %v545
      %v589 = vpop.f32.mrf.mxu0
      %v590 = vadd.f32 0.0, %v589
      %v591 = vpop.f32.mrf.mxu0
      %v592 = vpop.f32.mrf.mxu0
      %v593 = vadd.f32 0.0, %v592
      %v594 = vpop.f32.mrf.mxu0
      %595 = vdwg.mxu0
      %v596 = vadd.f32 %v501, %v582
      %v597 = vadd.f32 %v502, %v585
      %v598 = vadd.f32 %v503, %v590
      %v599 = vadd.f32 %v504, %v593
      %s600 = scalar_lea.vmem %s1, 40
      %v601 = vld [vmem:[%s600] sm:$0xf]
      %v602 = vld [vmem:[%s600 + $0x4] sm:$0xf]
      %v603 = vpack.c.b16 %v194, %v193
      %v604 = vpack.c.b16 %v511, %v195
      %v607 = vunpack.c.l.b16 %v601
      %v608 = vunpack.c.l.b16 %v602
      %v609 = vpack.c.b16 %v608, %v607
      %v612 = vsel %vm227, %v603, 0
      %v615 = vsel %vm227, %v604, 0
      %617 = vmatprep.subr.bf16.mxu0 0
      %618 = vmatpush1.bf16.msra.mxu0 0
      %619 = vmatprep.subr.bf16.mxu0 0
      %620 = vmatpush1.bf16.msra.mxu0 0
      %621 = vmatprep.subr.bf16.mxu0 0
      %622 = vmatpush1.bf16.msra.mxu0 0
      %623 = vmatprep.subr.bf16.mxu0 0
      %624 = vmatpush1.bf16.msra.mxu0 0
      %625 = vmatprep.subr.bf16.mxu0 0
      %626 = vmatpush1.bf16.msra.mxu0 0
      %627 = vmatprep.subr.bf16.mxu0 0
      %628 = vmatpush1.bf16.msra.mxu0 0
      %629 = vmatprep.subr.bf16.mxu0 0
      %630 = vmatpush1.bf16.msra.mxu0 0
      %631 = vmatprep.subr.bf16.mxu0 0
      %632 = vmatpush1.bf16.msra.mxu0 %v609
      %633 = vmatprep.subr.bf16.mxu0 0
      %634 = vmatpush2.bf16.msra.mxu0 0
      %635 = vmatprep.subr.bf16.mxu0 0
      %636 = vmatpush2.bf16.msra.mxu0 0
      %637 = vmatprep.subr.bf16.mxu0 0
      %638 = vmatpush2.bf16.msra.mxu0 0
      %639 = vmatprep.subr.bf16.mxu0 0
      %640 = vmatpush2.bf16.msra.mxu0 0
      %641 = vmatprep.subr.bf16.mxu0 0
      %642 = vmatpush2.bf16.msra.mxu0 0
      %643 = vmatprep.subr.bf16.mxu0 0
      %644 = vmatpush2.bf16.msra.mxu0 0
      %645 = vmatprep.subr.bf16.mxu0 0
      %646 = vmatpush2.bf16.msra.mxu0 0
      %647 = vmatprep.subr.bf16.mxu0 0
      %648 = vmatpush2.bf16.msra.mxu0 0
      %649 = vmatprep.mubr.bf16.mxu0 0
      %650 = vmatmul.mubr.bf16.gmra.mxu0 %v612
      %v651 = vpop.f32.mrf.mxu0
      %v652 = vadd.f32 0.0, %v651
      %v653 = vpop.f32.mrf.mxu0
      %v654 = vpop.f32.mrf.mxu0
      %v655 = vadd.f32 0.0, %v654
      %v656 = vpop.f32.mrf.mxu0
      %657 = vmatprep.mubr.bf16.mxu0 0
      %658 = vmatmul.mubr.bf16.gmra.mxu0 %v615
      %v659 = vpop.f32.mrf.mxu0
      %v660 = vadd.f32 0.0, %v659
      %v661 = vpop.f32.mrf.mxu0
      %v662 = vpop.f32.mrf.mxu0
      %v663 = vadd.f32 0.0, %v662
      %v664 = vpop.f32.mrf.mxu0
      %665 = vdwg.mxu0
      %v666 = vadd.f32 %v596, %v652
      %v667 = vadd.f32 %v597, %v655
      %v668 = vadd.f32 %v598, %v660
      %v669 = vadd.f32 %v599, %v663
      %v670 = vld [vmem:[%s165 + $0x4] sm:$0xc]
      %v671 = vld [vmem:[%s165 + $0x8] sm:$0xf]
      %v672 = vld [vmem:[%s165 + $0xc] sm:$0xf]
      %v673 = vld [vmem:[%s165 + $0x10] sm:$0xf]
      %v674 = vld [vmem:[%s165 + $0x14] sm:$0x3]
      %v675 = vmax.bf16 %v670, 0
      %v676 = vmax.bf16 %v671, 0
      %v677 = vmax.bf16 %v672, 0
      %v678 = vmax.bf16 %v673, 0
      %v679 = vmax.bf16 %v674, 0
      %s680 = scalar_lea.vmem %s1, 48
      %v681 = vld [vmem:[%s680] sm:$0xf]
      %v682 = vld [vmem:[%s680 + $0x4] sm:$0xf]
      %v688 = vunpack.c.l.b16 %v675
      %v689 = vunpack.c.l.b16 %v676
      %v690 = vunpack.c.l.b16 %v677
      %v691 = vunpack.c.l.b16 %v678
      %v692 = vunpack.c.l.b16 %v679
      %v693 = vpack.c.b16 %v689, %v688
      %v694 = vpack.c.b16 %v691, %v690
      %v695 = vpack.c.b16 %v692, %v692
      %vm696 = vcmask 1045504
      %v697 = vrot.slane %v693, 2
      %v698 = vrot.slane %v694, 2
      %v699 = vsel %vm696, %v697, %v698
      %v700 = vrot.slane %v695, 2
      %v701 = vsel %vm696, %v698, %v700
      %v704 = vunpack.c.l.b16 %v681
      %v705 = vunpack.c.l.b16 %v682
      %v706 = vpack.c.b16 %v705, %v704
      %v709 = vsel %vm227, %v699, 0
      %v712 = vsel %vm227, %v701, 0
      %714 = vmatprep.subr.bf16.mxu0 0
      %715 = vmatpush1.bf16.msra.mxu0 0
      %716 = vmatprep.subr.bf16.mxu0 0
      %717 = vmatpush1.bf16.msra.mxu0 0
      %718 = vmatprep.subr.bf16.mxu0 0
      %719 = vmatpush1.bf16.msra.mxu0 0
      %720 = vmatprep.subr.bf16.mxu0 0
      %721 = vmatpush1.bf16.msra.mxu0 0
      %722 = vmatprep.subr.bf16.mxu0 0
      %723 = vmatpush1.bf16.msra.mxu0 0
      %724 = vmatprep.subr.bf16.mxu0 0
      %725 = vmatpush1.bf16.msra.mxu0 0
      %726 = vmatprep.subr.bf16.mxu0 0
      %727 = vmatpush1.bf16.msra.mxu0 0
      %728 = vmatprep.subr.bf16.mxu0 0
      %729 = vmatpush1.bf16.msra.mxu0 %v706
      %730 = vmatprep.subr.bf16.mxu0 0
      %731 = vmatpush2.bf16.msra.mxu0 0
      %732 = vmatprep.subr.bf16.mxu0 0
      %733 = vmatpush2.bf16.msra.mxu0 0
      %734 = vmatprep.subr.bf16.mxu0 0
      %735 = vmatpush2.bf16.msra.mxu0 0
      %736 = vmatprep.subr.bf16.mxu0 0
      %737 = vmatpush2.bf16.msra.mxu0 0
      %738 = vmatprep.subr.bf16.mxu0 0
      %739 = vmatpush2.bf16.msra.mxu0 0
      %740 = vmatprep.subr.bf16.mxu0 0
      %741 = vmatpush2.bf16.msra.mxu0 0
      %742 = vmatprep.subr.bf16.mxu0 0
      %743 = vmatpush2.bf16.msra.mxu0 0
      %744 = vmatprep.subr.bf16.mxu0 0
      %745 = vmatpush2.bf16.msra.mxu0 0
      %746 = vmatprep.mubr.bf16.mxu0 0
      %747 = vmatmul.mubr.bf16.gmra.mxu0 %v709
      %v748 = vpop.f32.mrf.mxu0
      %v749 = vadd.f32 0.0, %v748
      %v750 = vpop.f32.mrf.mxu0
      %v751 = vpop.f32.mrf.mxu0
      %v752 = vadd.f32 0.0, %v751
      %v753 = vpop.f32.mrf.mxu0
      %754 = vmatprep.mubr.bf16.mxu0 0
      %755 = vmatmul.mubr.bf16.gmra.mxu0 %v712
      %v756 = vpop.f32.mrf.mxu0
      %v757 = vadd.f32 0.0, %v756
      %v758 = vpop.f32.mrf.mxu0
      %v759 = vpop.f32.mrf.mxu0
      %v760 = vadd.f32 0.0, %v759
      %v761 = vpop.f32.mrf.mxu0
      %762 = vdwg.mxu0
      %v763 = vadd.f32 %v666, %v749
      %v764 = vadd.f32 %v667, %v752
      %v765 = vadd.f32 %v668, %v757
      %v766 = vadd.f32 %v669, %v760
      %v767 = vld [vmem:[%s165 + $0x14] sm:$0x7]
      %v768 = vmax.bf16 %v767, 0
      %s769 = scalar_lea.vmem %s1, 56
      %v770 = vld [vmem:[%s769] sm:$0xf]
      %v771 = vld [vmem:[%s769 + $0x4] sm:$0xf]
      %v773 = vunpack.c.l.b16 %v768
      %v774 = vpack.c.b16 %v773, %v773
      %vm775 = vsmask.f32 5376
      %v777 = vshrl.u32 %v693, 16
      %v779 = vrot.slane %v777, 2
      %v780 = vshll.u32 %v693, 16
      %v782 = vrot.slane %v780, 3
      %v783 = vor.u32 %v779, %v782
      %v785 = vshrl.u32 %v694, 16
      %v787 = vrot.slane %v785, 2
      %v788 = vshll.u32 %v694, 16
      %v790 = vrot.slane %v788, 3
      %v791 = vor.u32 %v787, %v790
      %v792 = vsel %vm775, %v783, %v791
      %v794 = vshrl.u32 %v774, 16
      %v796 = vrot.slane %v794, 2
      %v797 = vshll.u32 %v774, 16
      %v799 = vrot.slane %v797, 3
      %v800 = vor.u32 %v796, %v799
      %v801 = vsel %vm775, %v791, %v800
      %v804 = vunpack.c.l.b16 %v770
      %v805 = vunpack.c.l.b16 %v771
      %v806 = vpack.c.b16 %v805, %v804
      %v809 = vsel %vm227, %v792, 0
      %v812 = vsel %vm227, %v801, 0
      %814 = vmatprep.subr.bf16.mxu0 0
      %815 = vmatpush1.bf16.msra.mxu0 0
      %816 = vmatprep.subr.bf16.mxu0 0
      %817 = vmatpush1.bf16.msra.mxu0 0
      %818 = vmatprep.subr.bf16.mxu0 0
      %819 = vmatpush1.bf16.msra.mxu0 0
      %820 = vmatprep.subr.bf16.mxu0 0
      %821 = vmatpush1.bf16.msra.mxu0 0
      %822 = vmatprep.subr.bf16.mxu0 0
      %823 = vmatpush1.bf16.msra.mxu0 0
      %824 = vmatprep.subr.bf16.mxu0 0
      %825 = vmatpush1.bf16.msra.mxu0 0
      %826 = vmatprep.subr.bf16.mxu0 0
      %827 = vmatpush1.bf16.msra.mxu0 0
      %828 = vmatprep.subr.bf16.mxu0 0
      %829 = vmatpush1.bf16.msra.mxu0 %v806
      %830 = vmatprep.subr.bf16.mxu0 0
      %831 = vmatpush2.bf16.msra.mxu0 0
      %832 = vmatprep.subr.bf16.mxu0 0
      %833 = vmatpush2.bf16.msra.mxu0 0
      %834 = vmatprep.subr.bf16.mxu0 0
      %835 = vmatpush2.bf16.msra.mxu0 0
      %836 = vmatprep.subr.bf16.mxu0 0
      %837 = vmatpush2.bf16.msra.mxu0 0
      %838 = vmatprep.subr.bf16.mxu0 0
      %839 = vmatpush2.bf16.msra.mxu0 0
      %840 = vmatprep.subr.bf16.mxu0 0
      %841 = vmatpush2.bf16.msra.mxu0 0
      %842 = vmatprep.subr.bf16.mxu0 0
      %843 = vmatpush2.bf16.msra.mxu0 0
      %844 = vmatprep.subr.bf16.mxu0 0
      %845 = vmatpush2.bf16.msra.mxu0 0
      %846 = vmatprep.mubr.bf16.mxu0 0
      %847 = vmatmul.mubr.bf16.gmra.mxu0 %v809
      %v848 = vpop.f32.mrf.mxu0
      %v849 = vadd.f32 0.0, %v848
      %v850 = vpop.f32.mrf.mxu0
      %v851 = vpop.f32.mrf.mxu0
      %v852 = vadd.f32 0.0, %v851
      %v853 = vpop.f32.mrf.mxu0
      %854 = vmatprep.mubr.bf16.mxu0 0
      %855 = vmatmul.mubr.bf16.gmra.mxu0 %v812
      %v856 = vpop.f32.mrf.mxu0
      %v857 = vadd.f32 0.0, %v856
      %v858 = vpop.f32.mrf.mxu0
      %v859 = vpop.f32.mrf.mxu0
      %v860 = vadd.f32 0.0, %v859
      %v861 = vpop.f32.mrf.mxu0
      %862 = vdwg.mxu0
      %v863 = vadd.f32 %v763, %v849
      %v864 = vadd.f32 %v764, %v852
      %v865 = vadd.f32 %v765, %v857
      %v866 = vadd.f32 %v766, %v860
      %v867 = vld [vmem:[%s165 + $0x4] sm:$0x8]
      %v868 = vmax.bf16 %v867, 0
      %s869 = scalar_lea.vmem %s1, 64
      %v870 = vld [vmem:[%s869] sm:$0xf]
      %v871 = vld [vmem:[%s869 + $0x4] sm:$0xf]
      %v873 = vunpack.c.l.b16 %v868
      %v874 = vpack.c.b16 %v689, %v873
      %v875 = vrot.slane %v874, 3
      %v876 = vrot.slane %v694, 3
      %v877 = vsel %vm434, %v875, %v876
      %v878 = vrot.slane %v774, 3
      %v879 = vsel %vm434, %v876, %v878
      %v882 = vunpack.c.l.b16 %v870
      %v883 = vunpack.c.l.b16 %v871
      %v884 = vpack.c.b16 %v883, %v882
      %v887 = vsel %vm227, %v877, 0
      %v890 = vsel %vm227, %v879, 0
      %892 = vmatprep.subr.bf16.mxu0 0
      %893 = vmatpush1.bf16.msra.mxu0 0
      %894 = vmatprep.subr.bf16.mxu0 0
      %895 = vmatpush1.bf16.msra.mxu0 0
      %896 = vmatprep.subr.bf16.mxu0 0
      %897 = vmatpush1.bf16.msra.mxu0 0
      %898 = vmatprep.subr.bf16.mxu0 0
      %899 = vmatpush1.bf16.msra.mxu0 0
      %900 = vmatprep.subr.bf16.mxu0 0
      %901 = vmatpush1.bf16.msra.mxu0 0
      %902 = vmatprep.subr.bf16.mxu0 0
      %903 = vmatpush1.bf16.msra.mxu0 0
      %904 = vmatprep.subr.bf16.mxu0 0
      %905 = vmatpush1.bf16.msra.mxu0 0
      %906 = vmatprep.subr.bf16.mxu0 0
      %907 = vmatpush1.bf16.msra.mxu0 %v884
      %908 = vmatprep.subr.bf16.mxu0 0
      %909 = vmatpush2.bf16.msra.mxu0 0
      %910 = vmatprep.subr.bf16.mxu0 0
      %911 = vmatpush2.bf16.msra.mxu0 0
      %912 = vmatprep.subr.bf16.mxu0 0
      %913 = vmatpush2.bf16.msra.mxu0 0
      %914 = vmatprep.subr.bf16.mxu0 0
      %915 = vmatpush2.bf16.msra.mxu0 0
      %916 = vmatprep.subr.bf16.mxu0 0
      %917 = vmatpush2.bf16.msra.mxu0 0
      %918 = vmatprep.subr.bf16.mxu0 0
      %919 = vmatpush2.bf16.msra.mxu0 0
      %920 = vmatprep.subr.bf16.mxu0 0
      %921 = vmatpush2.bf16.msra.mxu0 0
      %922 = vmatprep.subr.bf16.mxu0 0
      %923 = vmatpush2.bf16.msra.mxu0 0
      %924 = vmatprep.mubr.bf16.mxu0 0
      %925 = vmatmul.mubr.bf16.gmra.mxu0 %v887
      %v926 = vpop.f32.mrf.mxu0
      %v927 = vadd.f32 0.0, %v926
      %v928 = vpop.f32.mrf.mxu0
      %v929 = vpop.f32.mrf.mxu0
      %v930 = vadd.f32 0.0, %v929
      %v931 = vpop.f32.mrf.mxu0
      %932 = vmatprep.mubr.bf16.mxu0 0
      %933 = vmatmul.mubr.bf16.gmra.mxu0 %v890
      %v934 = vpop.f32.mrf.mxu0
      %v935 = vadd.f32 0.0, %v934
      %v936 = vpop.f32.mrf.mxu0
      %v937 = vpop.f32.mrf.mxu0
      %v938 = vadd.f32 0.0, %v937
      %v939 = vpop.f32.mrf.mxu0
      %940 = vdwg.mxu0
      %v941 = vadd.f32 %v863, %v927
      %v942 = vadd.f32 %v864, %v930
      %v943 = vadd.f32 %v865, %v935
      %v944 = vadd.f32 %v866, %v938
      %v945 = vmax.f32 %v941, 0.0
      %v946 = vmax.f32 %v942, 0.0
      %v947 = vmax.f32 %v943, 0.0
      %v948 = vmax.f32 %v944, 0.0
      %v949 = vpack.c.bf16 %v946, %v945
      %v950 = vpack.c.bf16 %v948, %v947
      %v951 = vld [vmem:[%s2] sm:$0xf]
      %v952 = vld [vmem:[%s2 + $0x4] sm:$0xf]
      %v953 = vunpack.c.l.bf16 %v421
      %v954 = vunpack.c.l.bf16 %v173
      %v955 = vunpack.c.l.bf16 %v174
      %v956 = vunpack.c.l.bf16 %v175
      %v957 = vunpack.c.l.bf16 %v505
      %v960 = vunpack.c.l.b16 %v951
      %v961 = vunpack.c.l.b16 %v952
      %v962 = vpack.c.b16 %v961, %v960
      %vm969 = vcmask 1040384
      %v970 = vrot.slane %v953, 7
      %v971 = vrot.slane %v954, 7
      %v972 = vsel %vm969, %v970, %v971
      %v973 = vrot.slane %v955, 7
      %v974 = vsel %vm969, %v971, %v973
      %v975 = vrot.slane %v956, 7
      %v976 = vsel %vm969, %v973, %v975
      %v977 = vrot.slane %v957, 7
      %v978 = vsel %vm969, %v975, %v977
      %v984 = vsel %vm227, %v949, 0
      %v987 = vsel %vm227, %v950, 0
      %989 = vmatprep.subr.bf16.mxu0 0
      %990 = vmatpush1.bf16.msra.mxu0 0
      %991 = vmatprep.subr.bf16.mxu0 0
      %992 = vmatpush1.bf16.msra.mxu0 0
      %993 = vmatprep.subr.bf16.mxu0 0
      %994 = vmatpush1.bf16.msra.mxu0 0
      %995 = vmatprep.subr.bf16.mxu0 0
      %996 = vmatpush1.bf16.msra.mxu0 0
      %997 = vmatprep.subr.bf16.mxu0 0
      %998 = vmatpush1.bf16.msra.mxu0 0
      %999 = vmatprep.subr.bf16.mxu0 0
      %1000 = vmatpush1.bf16.msra.mxu0 0
      %1001 = vmatprep.subr.bf16.mxu0 0
      %1002 = vmatpush1.bf16.msra.mxu0 0
      %1003 = vmatprep.subr.bf16.mxu0 0
      %1004 = vmatpush1.bf16.msra.mxu0 %v962
      %1005 = vmatprep.subr.bf16.mxu0 0
      %1006 = vmatpush2.bf16.msra.mxu0 0
      %1007 = vmatprep.subr.bf16.mxu0 0
      %1008 = vmatpush2.bf16.msra.mxu0 0
      %1009 = vmatprep.subr.bf16.mxu0 0
      %1010 = vmatpush2.bf16.msra.mxu0 0
      %1011 = vmatprep.subr.bf16.mxu0 0
      %1012 = vmatpush2.bf16.msra.mxu0 0
      %1013 = vmatprep.subr.bf16.mxu0 0
      %1014 = vmatpush2.bf16.msra.mxu0 0
      %1015 = vmatprep.subr.bf16.mxu0 0
      %1016 = vmatpush2.bf16.msra.mxu0 0
      %1017 = vmatprep.subr.bf16.mxu0 0
      %1018 = vmatpush2.bf16.msra.mxu0 0
      %1019 = vmatprep.subr.bf16.mxu0 0
      %1020 = vmatpush2.bf16.msra.mxu0 0
      %1021 = vmatprep.mubr.bf16.mxu0 0
      %1022 = vmatmul.mubr.bf16.gmra.mxu0 %v984
      %v1023 = vpop.f32.mrf.mxu0
      %v1024 = vadd.f32 %v972, %v1023
      %v1025 = vpop.f32.mrf.mxu0
      %v1026 = vpop.f32.mrf.mxu0
      %v1027 = vadd.f32 %v974, %v1026
      %v1028 = vpop.f32.mrf.mxu0
      %1029 = vmatprep.mubr.bf16.mxu0 0
      %1030 = vmatmul.mubr.bf16.gmra.mxu0 %v987
      %v1031 = vpop.f32.mrf.mxu0
      %v1032 = vadd.f32 %v976, %v1031
      %v1033 = vpop.f32.mrf.mxu0
      %v1034 = vpop.f32.mrf.mxu0
      %v1035 = vadd.f32 %v978, %v1034
      %v1036 = vpop.f32.mrf.mxu0
      %1037 = vdwg.mxu0
      %v1038 = vmax.f32 %v1024, 0.0
      %v1039 = vmax.f32 %v1027, 0.0
      %v1040 = vmax.f32 %v1032, 0.0
      %v1041 = vmax.f32 %v1035, 0.0
      %v1042 = vpack.c.bf16 %v1039, %v1038
      %v1043 = vpack.c.bf16 %v1041, %v1040
      %v1046 = vunpack.c.l.b16 %v1042
      %v1047 = vunpack.c.h.b16 %v1042
      %v1048 = vunpack.c.l.b16 %v1043
      %v1049 = vunpack.c.h.b16 %v1043
      %v1050 = vpack.c.b16 %v1046, %v1046
      %v1051 = vpack.c.b16 %v1047, %v1047
      %v1052 = vpack.c.b16 %v1048, %v1048
      %v1053 = vpack.c.b16 %v1049, %v1049
      %vm1058 = vcmask 125952
      %1059 = vst.msk [vmem:[%s170] sm:$0xf] %vm1058, %v1050
      %1060 = vst.msk [vmem:[%s170 + $0x4] sm:$0xf] %vm1058, %v1051
      %1061 = vst.msk [vmem:[%s170 + $0x8] sm:$0xf] %vm1058, %v1052
      %1062 = vst.msk [vmem:[%s170 + $0xc] sm:$0xf] %vm1058, %v1053
      %p1063 = scmp.lt.s32.totalorder %s14, 1
      %s1064 = scalar_select %p1063, %s14, 1
      %s1065 = smul.addr %s1064, 4
      %s1066 = smul.addr %s1065, 4
      %s1067 = scalar_lea.vmem %s3, %s1066
      // Predicated region
      $region33: #{encoder_forward.13} parent=31 // pred_check
        %p1068 = pneg %p100
      $region34: #{encoder_forward.13} parent=31 // pred_check_branch
        %1070 = sbr.rel (%p1068) target = $region36
      $region35: #{encoder_forward.13} parent=31 // pred_region
        _
      $region36: #{encoder_forward.13} parent=31 // pred_fallthru
        _
    $region32: #{encoder_forward.13} parent=5 // pred_fallthru
      _
    %p1071 = scmp.le.s32.totalorder 2, %s9
    // Predicated region
    $region37: #{encoder_forward.13} parent=5 // pred_check
      %p1072 = pneg %p1071
    $region38: #{encoder_forward.13} parent=5 // pred_check_branch
      %1074 = sbr.rel (%p1072) target = $region40
    $region39: #{encoder_forward.13} parent=5 // pred_region
      %s1075 = ssub.s32 %s9, 2
      // Predicated region
      $region41: #{encoder_forward.13} parent=39 // pred_check
        %p1076 = pneg %p106
      $region42: #{encoder_forward.13} parent=39 // pred_check_branch
        %1078 = sbr.rel (%p1076) target = $region44
      $region43: #{encoder_forward.13} parent=39 // pred_region
        %p1079 = scmp.lt.s32.totalorder %s15, 1
        %s1080 = scalar_select %p1079, %s15, 1
        %s1081 = smul.addr %s1080, 4
        %s1082 = smul.addr %s1081, 4
        %s1083 = scalar_lea.vmem %s3, %s1082
      $region44: #{encoder_forward.13} parent=39 // pred_fallthru
        _
    $region40: #{encoder_forward.13} parent=5 // pred_fallthru
      _
  $region6: #{encoder_forward.13} parent=0 // loop_footer
    %s13 = sadd.s32 1, %s9
  $region7: #{encoder_forward.13} parent=0 // loop_footer_branch
    %8 = sbr.rel target = $region3
  $region8: #{encoder_forward.13} parent=0 // loop_exit
    _

</llo_original>
